<compile_context>
chip_gen: v5e
topology: v5e:2x2
jax: 0.10.0
libtpu: 0.0.40
codegen_flags: <defaults>
</compile_context>

<pallas_src>
import functools

import jax
import jax.numpy as jnp
from jax.experimental import pallas as pl
from jax.experimental.pallas import tpu as pltpu

EPS = 1e-5


# --------------------------------------------------------------------------- #
# Kernel: one stage of the 1x1-conv stack, channels-first.
#   x block     : (1, Cin, T)
#   scale/shift : (Cin, 1)  f32   (fused BatchNorm affine, optional)
#   weight      : (Cout, Cin)     (conv layout, VMEM-resident)
#   bias        : (Cout, 1) f32   (optional, only for the final conv)
#   y block     : (1, Cout, T)
#   stats       : per-tile sum / sum-of-squares, (1, 1, Cout, 1) each (optional)
# --------------------------------------------------------------------------- #
def _stage_kernel(*refs, apply_affine, add_bias, emit_stats, hw_total, tile_hw):
    idx = 0
    x_ref = refs[idx]; idx += 1
    if apply_affine:
        scale_ref = refs[idx]
        shift_ref = refs[idx + 1]
        idx += 2
    w_ref = refs[idx]; idx += 1
    if add_bias:
        b_ref = refs[idx]; idx += 1
    y_ref = refs[idx]; idx += 1
    if emit_stats:
        sum_ref = refs[idx]
        sq_ref = refs[idx + 1]

    x = x_ref[0]                                           # (Cin, T), io dtype
    if apply_affine:
        # Fused training-mode BatchNorm (precomputed scale/shift) + ReLU:
        # one FMA + max per element.
        a = x.astype(jnp.float32) * scale_ref[...] + shift_ref[...]
        h = jnp.maximum(a, 0.0).astype(x.dtype)
    else:
        h = x

    # 1x1 conv == per-pixel channel matmul on the MXU, f32 accumulation.
    y = jnp.dot(w_ref[...], h, preferred_element_type=jnp.float32)   # (Cout, T)
    if add_bias:
        y = y + b_ref[...]

    if emit_stats:
        if hw_total % tile_hw != 0:
            # Mask the out-of-bounds pixel columns of the (padded) last tile so
            # BN statistics stay exact.
            t = pl.program_id(1)
            col = jax.lax.broadcasted_iota(jnp.int32, y.shape, 1) + t * tile_hw
            ym = jnp.where(col < hw_total, y, 0.0)
        else:
            ym = y
        sum_ref[0, 0] = jnp.sum(ym, axis=-1, keepdims=True)           # (Cout, 1)
        sq_ref[0, 0] = jnp.sum(ym * ym, axis=-1, keepdims=True)       # (Cout, 1)

    y_ref[0] = y.astype(y_ref.dtype)


def _run_stage(x, w, *, scale=None, shift=None, bias=None, want_stats,
               tile_hw, out_dtype=None):
    """One pallas_call: [affine+ReLU] -> matmul -> [bias] -> [partial stats]."""
    n, cin, hw = x.shape
    cout = w.shape[0]
    assert w.shape == (cout, cin)
    tile_hw = min(tile_hw, hw)
    assert tile_hw == hw or tile_hw % 128 == 0, tile_hw
    n_tiles = pl.cdiv(hw, tile_hw)
    out_dtype = x.dtype if out_dtype is None else out_dtype
    apply_affine = scale is not None
    add_bias = bias is not None

    def const_spec(shape):
        zeros = (0,) * len(shape)
        return pl.BlockSpec(shape, lambda i, j: zeros)

    inputs = [x]
    in_specs = [pl.BlockSpec((1, cin, tile_hw), lambda i, j: (i, 0, j))]
    if apply_affine:
        inputs += [scale.reshape(cin, 1).astype(jnp.float32),
                   shift.reshape(cin, 1).astype(jnp.float32)]
        in_specs += [const_spec((cin, 1)), const_spec((cin, 1))]
    inputs.append(w)
    in_specs.append(const_spec((cout, cin)))
    if add_bias:
        inputs.append(bias.reshape(cout, 1).astype(jnp.float32))
        in_specs.append(const_spec((cout, 1)))

    out_shape = [jax.ShapeDtypeStruct((n, cout, hw), out_dtype)]
    out_specs = [pl.BlockSpec((1, cout, tile_hw), lambda i, j: (i, 0, j))]
    if want_stats:
        stat_shape = jax.ShapeDtypeStruct((n, n_tiles, cout, 1), jnp.float32)
        stat_spec = pl.BlockSpec((1, 1, cout, 1), lambda i, j: (i, j, 0, 0))
        out_shape += [stat_shape, stat_shape]
        out_specs += [stat_spec, stat_spec]

    itemsize = jnp.dtype(x.dtype).itemsize
    flops = 2 * n * hw * cin * cout
    bytes_accessed = (n * hw * (cin + cout) + cout * cin) * itemsize
    # VMEM budget: double-buffered activation tiles + f32 temps + resident
    # weights, with headroom; capped below v7x's 64 MiB physical VMEM.
    act_bytes = (cin + cout) * tile_hw * (2 * itemsize + 4)
    vmem_limit = int(min(60 << 20,
                         max(32 << 20,
                             2 * (act_bytes + 2 * cout * cin * itemsize) + (4 << 20))))

    kernel = functools.partial(
        _stage_kernel, apply_affine=apply_affine, add_bias=add_bias,
        emit_stats=want_stats, hw_total=hw, tile_hw=tile_hw)

    return pl.pallas_call(
        kernel,
        grid=(n, n_tiles),
        in_specs=in_specs,
        out_specs=tuple(out_specs),
        out_shape=tuple(out_shape),
        compiler_params=pltpu.CompilerParams(
            dimension_semantics=("parallel", "parallel"),
            vmem_limit_bytes=vmem_limit),
        cost_estimate=pl.CostEstimate(
            flops=flops, transcendentals=0, bytes_accessed=bytes_accessed),
    )(*inputs)


def _bn_scale_shift(part_sum, part_sq, gamma, beta, n_pixels):
    """Reduce per-tile partials -> fused BN affine (training-mode, biased var)."""
    s = jnp.sum(part_sum, axis=(0, 1, 3))                       # (C,)
    q = jnp.sum(part_sq, axis=(0, 1, 3))                        # (C,)
    mean = s / n_pixels
    var = jnp.maximum(q / n_pixels - mean * mean, 0.0)          # biased variance
    scale = gamma.astype(jnp.float32) * jax.lax.rsqrt(var + EPS)
    shift = beta.astype(jnp.float32) - mean * scale
    return scale, shift


def dfr_feature_cae_forward(x_nchw, params, *, compute_dtype=jnp.float32,
                            tile_hw=None):
    n, c, h, w = x_nchw.shape
    hw = h * w
    if tile_hw is None:
        tile_hw = hw if hw <= 512 else 512
    n_pixels = float(n * hw)
    p = params
    cd = compute_dtype

    x = x_nchw.reshape(n, c, hw).astype(cd)   # channels-first, no transpose

    # Conv-layout (Cout, Cin) weights.  enc-conv3 / dec-conv1 are fused (no
    # nonlinearity in between); every bias feeding straight into a BN is
    # dropped because training-mode BN cancels constant biases exactly.
    w1 = p["w1"].astype(cd)
    w2 = p["w2"].astype(cd)
    w34 = (p["w4"] @ p["w3"]).astype(cd)
    w5 = p["w5"].astype(cd)
    w6 = p["w6"].astype(cd)

    h1, a1, q1 = _run_stage(x, w1, want_stats=True, tile_hw=tile_hw)
    s1, t1 = _bn_scale_shift(a1, q1, p["g1"], p["be1"], n_pixels)

    h2, a2, q2 = _run_stage(h1, w2, scale=s1, shift=t1, want_stats=True,
                            tile_hw=tile_hw)
    s2, t2 = _bn_scale_shift(a2, q2, p["g2"], p["be2"], n_pixels)

    h4, a4, q4 = _run_stage(h2, w34, scale=s2, shift=t2, want_stats=True,
                            tile_hw=tile_hw)
    s4, t4 = _bn_scale_shift(a4, q4, p["g4"], p["be4"], n_pixels)

    h5, a5, q5 = _run_stage(h4, w5, scale=s4, shift=t4, want_stats=True,
                            tile_hw=tile_hw)
    s5, t5 = _bn_scale_shift(a5, q5, p["g5"], p["be5"], n_pixels)

    (recon,) = _run_stage(h5, w6, scale=s5, shift=t5, bias=p["b6"],
                          want_stats=False, tile_hw=tile_hw,
                          out_dtype=jnp.float32)

    return recon.reshape(n, c, h, w)


# --------------------------------------------------------------------------- #
# Parameters (PyTorch Conv2d / BatchNorm2d default init), conv layout (Cout,Cin)
# --------------------------------------------------------------------------- #
def init_params(key, in_channels, latent_dim, dtype=jnp.float32):
    mid1 = (in_channels + 2 * latent_dim) // 2
    dims = [(in_channels, mid1, True),          # enc conv1 (+BN)
            (mid1, 2 * latent_dim, True),       # enc conv2 (+BN)
            (2 * latent_dim, latent_dim, False),  # enc conv3
            (latent_dim, 2 * latent_dim, True),   # dec conv1 (+BN)
            (2 * latent_dim, mid1, True),         # dec conv2 (+BN)
            (mid1, in_channels, False)]           # dec conv3
    params = {}
    keys = jax.random.split(key, 2 * len(dims))
    for i, (cin, cout, has_bn) in enumerate(dims):
        bound = 1.0 / (float(cin) ** 0.5)         # 1x1 kernel -> fan_in = cin
        params[f"w{i + 1}"] = jax.random.uniform(
            keys[2 * i], (cout, cin), dtype, minval=-bound, maxval=bound)
        params[f"b{i + 1}"] = jax.random.uniform(
            keys[2 * i + 1], (cout,), dtype, minval=-bound, maxval=bound)
        if has_bn:
            params[f"g{i + 1}"] = jnp.ones((cout,), dtype)
            params[f"be{i + 1}"] = jnp.zeros((cout,), dtype)
    return params


def dfr_feature_cae_reference(x_nchw, params):
    """Pure-JAX fp32 reference implementing the literal module math."""
    n, c, h, w = x_nchw.shape
    x = jnp.transpose(x_nchw, (0, 2, 3, 1)).reshape(-1, c).astype(jnp.float32)

    def lin(a, wgt, b):
        return a @ wgt.T.astype(jnp.float32) + b.astype(jnp.float32)

    def bn_relu(a, g, be):
        mean = jnp.mean(a, axis=0, keepdims=True)
        var = jnp.mean((a - mean) ** 2, axis=0, keepdims=True)  # biased variance
        return jnp.maximum(g * (a - mean) * jax.lax.rsqrt(var + EPS) + be, 0.0)

    p = params
    a = lin(x, p["w1"], p["b1"]); a = bn_relu(a, p["g1"], p["be1"])
    a = lin(a, p["w2"], p["b2"]); a = bn_relu(a, p["g2"], p["be2"])
    a = lin(a, p["w3"], p["b3"])
    a = lin(a, p["w4"], p["b4"]); a = bn_relu(a, p["g4"], p["be4"])
    a = lin(a, p["w5"], p["b5"]); a = bn_relu(a, p["g5"], p["be5"])
    a = lin(a, p["w6"], p["b6"])
    return jnp.transpose(a.reshape(n, h, w, c), (0, 3, 1, 2))


if __name__ == "__main__":
    # Small shapes consistent with the module (scaled-down channels/latent).
    N, H, W = 2, 32, 32
    in_channels, latent_dim = 64, 16     # mid1 = 48

    key = jax.random.PRNGKey(0)
    kx, kp = jax.random.split(key)
    x = jax.random.normal(kx, (N, in_channels, H, W), jnp.float32)
    params = init_params(kp, in_channels, latent_dim)

    ref = jax.block_until_ready(dfr_feature_cae_reference(x, params))

    # f32 path; tile_hw=384 exercises full tiles, a partial (masked) last tile,
    # and multi-tile BN-stat accumulation.
    out = jax.block_until_ready(
        jax.jit(lambda a: dfr_feature_cae_forward(a, params, tile_hw=384))(x))
    assert out.shape == (N, in_channels, H, W), out.shape
    err = float(jnp.max(jnp.abs(out - ref)))
    assert err < 1e-3, f"fp32 max abs err {err}"

    # bf16 I/O path (half the HBM/VMEM traffic, bf16 MXU); looser tolerance.
    out_bf = jax.block_until_ready(
        jax.jit(lambda a: dfr_feature_cae_forward(
            a, params, compute_dtype=jnp.bfloat16, tile_hw=256))(x))
    err_bf = float(jnp.max(jnp.abs(out_bf.astype(jnp.float32) - ref)))
    assert bool(jnp.all(jnp.isfinite(out_bf))) and err_bf < 0.5, \
        f"bf16 max abs err {err_bf}"

    print("KERNEL_OK")
</pallas_src>

<mosaic_0001>
module attributes {stable_mosaic.version = 11 : i64} {
  func.func @_stage_kernel(%arg0: i32, %arg1: i32, %arg2: memref<1x64x384xf32, #tpu.memory_space<vmem>>, %arg3: memref<48x64xf32, #tpu.memory_space<vmem>>, %arg4: memref<1x48x384xf32, #tpu.memory_space<vmem>>, %arg5: memref<1x1x48x1xf32, #tpu.memory_space<vmem>>, %arg6: memref<1x1x48x1xf32, #tpu.memory_space<vmem>>) attributes {dimension_semantics = [#tpu.dimension_semantics<parallel>, #tpu.dimension_semantics<parallel>], iteration_bounds = array<i64: 2, 3>, scalar_prefetch = 0 : i64, scratch_operands = 0 : i64, tpu.core_type = #tpu.core_type<tc>, window_params = [{transform_indices = @transform_0, window_bounds = array<i64: 1, 64, 384>}, {pipeline_mode = #tpu.pipeline_mode<synchronous>, transform_indices = @transform_1, window_bounds = array<i64: 48, 64>}, {transform_indices = @transform_2, window_bounds = array<i64: 1, 48, 384>}, {transform_indices = @transform_3, window_bounds = array<i64: 1, 1, 48, 1>}, {transform_indices = @transform_4, window_bounds = array<i64: 1, 1, 48, 1>}]} {
    %c0 = arith.constant 0 : index
    %c0_0 = arith.constant 0 : index
    %c0_1 = arith.constant 0 : index
    %0 = vector.load %arg2[%c0, %c0_0, %c0_1] : memref<1x64x384xf32, #tpu.memory_space<vmem>>, vector<1x64x384xf32>
    %1 = vector.shape_cast %0 : vector<1x64x384xf32> to vector<64x384xf32>
    %c0_2 = arith.constant 0 : index
    %c0_3 = arith.constant 0 : index
    %2 = vector.load %arg3[%c0_2, %c0_3] : memref<48x64xf32, #tpu.memory_space<vmem>>, vector<48x64xf32>
    %cst = arith.constant dense<0.000000e+00> : vector<48x384xf32>
    %3 = tpu.matmul %2, %1, %cst {dimension_numbers = #tpu.dot_dimension_numbers<[1], [0], [0], [1], [0, 0, 1, 1], [], []>} : vector<48x64xf32>, vector<64x384xf32>, vector<48x384xf32> -> vector<48x384xf32>
    %4 = tpu.iota {dimensions = array<i32: 1>} : vector<48x384xi32>
    %c384_i32 = arith.constant 384 : i32
    %5 = arith.muli %arg1, %c384_i32 : i32
    %6 = vector.broadcast %5 : i32 to vector<48x384xi32>
    %7 = arith.addi %4, %6 : vector<48x384xi32>
    %c1024_i32 = arith.constant 1024 : i32
    %8 = vector.broadcast %c1024_i32 : i32 to vector<48x384xi32>
    %9 = arith.cmpi slt, %7, %8 : vector<48x384xi32>
    %cst_4 = arith.constant 0.000000e+00 : f32
    %10 = vector.broadcast %cst_4 : f32 to vector<48x384xf32>
    %11 = arith.select %9, %3, %10 : vector<48x384xi1>, vector<48x384xf32>
    %cst_5 = arith.constant dense<0.000000e+00> : vector<48xf32>
    %12 = vector.multi_reduction <add>, %11, %cst_5 [1] : vector<48x384xf32> to vector<48xf32>
    %13 = vector.shape_cast %12 : vector<48xf32> to vector<48x1xf32>
    %c0_6 = arith.constant 0 : index
    %c0_7 = arith.constant 0 : index
    %c0_8 = arith.constant 0 : index
    %c0_9 = arith.constant 0 : index
    %14 = vector.load %arg5[%c0_6, %c0_7, %c0_8, %c0_9] : memref<1x1x48x1xf32, #tpu.memory_space<vmem>>, vector<1x1x48x1xf32>
    %15 = vector.shape_cast %14 : vector<1x1x48x1xf32> to vector<48x1xf32>
    %16 = vector.shape_cast %13 : vector<48x1xf32> to vector<1x1x48x1xf32>
    tpu.vector_store %arg5[%c0_6, %c0_7, %c0_8, %c0_9], %16 {strides = array<i32>} : memref<1x1x48x1xf32, #tpu.memory_space<vmem>>, vector<1x1x48x1xf32>,
    %17 = arith.mulf %11, %11 : vector<48x384xf32>
    %cst_10 = arith.constant dense<0.000000e+00> : vector<48xf32>
    %18 = vector.multi_reduction <add>, %17, %cst_10 [1] : vector<48x384xf32> to vector<48xf32>
    %19 = vector.shape_cast %18 : vector<48xf32> to vector<48x1xf32>
    %c0_11 = arith.constant 0 : index
    %c0_12 = arith.constant 0 : index
    %c0_13 = arith.constant 0 : index
    %c0_14 = arith.constant 0 : index
    %20 = vector.load %arg6[%c0_11, %c0_12, %c0_13, %c0_14] : memref<1x1x48x1xf32, #tpu.memory_space<vmem>>, vector<1x1x48x1xf32>
    %21 = vector.shape_cast %20 : vector<1x1x48x1xf32> to vector<48x1xf32>
    %22 = vector.shape_cast %19 : vector<48x1xf32> to vector<1x1x48x1xf32>
    tpu.vector_store %arg6[%c0_11, %c0_12, %c0_13, %c0_14], %22 {strides = array<i32>} : memref<1x1x48x1xf32, #tpu.memory_space<vmem>>, vector<1x1x48x1xf32>,
    %c0_15 = arith.constant 0 : index
    %c0_16 = arith.constant 0 : index
    %c0_17 = arith.constant 0 : index
    %23 = vector.load %arg4[%c0_15, %c0_16, %c0_17] : memref<1x48x384xf32, #tpu.memory_space<vmem>>, vector<1x48x384xf32>
    %24 = vector.shape_cast %23 : vector<1x48x384xf32> to vector<48x384xf32>
    %25 = vector.shape_cast %3 : vector<48x384xf32> to vector<1x48x384xf32>
    tpu.vector_store %arg4[%c0_15, %c0_16, %c0_17], %25 {strides = array<i32>} : memref<1x48x384xf32, #tpu.memory_space<vmem>>, vector<1x48x384xf32>,
    return
  }
  func.func @transform_0(%arg0: i32, %arg1: i32) -> (i32, i32, i32) {
    %c0_i32 = arith.constant 0 : i32
    %c0_i32_0 = arith.constant 0 : i32
    return %arg0, %c0_i32, %arg1 : i32, i32, i32
  }
  func.func @transform_1(%arg0: i32, %arg1: i32) -> (i32, i32) {
    %c0_i32 = arith.constant 0 : i32
    %c0_i32_0 = arith.constant 0 : i32
    %c0_i32_1 = arith.constant 0 : i32
    return %c0_i32, %c0_i32_0 : i32, i32
  }
  func.func @transform_2(%arg0: i32, %arg1: i32) -> (i32, i32, i32) {
    %c0_i32 = arith.constant 0 : i32
    %c0_i32_0 = arith.constant 0 : i32
    return %arg0, %c0_i32, %arg1 : i32, i32, i32
  }
  func.func @transform_3(%arg0: i32, %arg1: i32) -> (i32, i32, i32, i32) {
    %c0_i32 = arith.constant 0 : i32
    %c0_i32_0 = arith.constant 0 : i32
    %c0_i32_1 = arith.constant 0 : i32
    return %arg0, %arg1, %c0_i32, %c0_i32_0 : i32, i32, i32, i32
  }
  func.func @transform_4(%arg0: i32, %arg1: i32) -> (i32, i32, i32, i32) {
    %c0_i32 = arith.constant 0 : i32
    %c0_i32_0 = arith.constant 0 : i32
    %c0_i32_1 = arith.constant 0 : i32
    return %arg0, %arg1, %c0_i32, %c0_i32_0 : i32, i32, i32, i32
  }
}

module attributes {stable_mosaic.version = 11 : i64} {
  func.func @_stage_kernel(%arg0: i32, %arg1: i32, %arg2: memref<1x32x384xf32, #tpu.memory_space<vmem>>, %arg3: memref<32x1xf32, #tpu.memory_space<vmem>>, %arg4: memref<32x1xf32, #tpu.memory_space<vmem>>, %arg5: memref<48x32xf32, #tpu.memory_space<vmem>>, %arg6: memref<1x48x384xf32, #tpu.memory_space<vmem>>, %arg7: memref<1x1x48x1xf32, #tpu.memory_space<vmem>>, %arg8: memref<1x1x48x1xf32, #tpu.memory_space<vmem>>) attributes {dimension_semantics = [#tpu.dimension_semantics<parallel>, #tpu.dimension_semantics<parallel>], iteration_bounds = array<i64: 2, 3>, scalar_prefetch = 0 : i64, scratch_operands = 0 : i64, tpu.core_type = #tpu.core_type<tc>, window_params = [{transform_indices = @transform_0, window_bounds = array<i64: 1, 32, 384>}, {pipeline_mode = #tpu.pipeline_mode<synchronous>, transform_indices = @transform_1, window_bounds = array<i64: 32, 1>}, {pipeline_mode = #tpu.pipeline_mode<synchronous>, transform_indices = @transform_2, window_bounds = array<i64: 32, 1>}, {pipeline_mode = #tpu.pipeline_mode<synchronous>, transform_indices = @transform_3, window_bounds = array<i64: 48, 32>}, {transform_indices = @transform_4, window_bounds = array<i64: 1, 48, 384>}, {transform_indices = @transform_5, window_bounds = array<i64: 1, 1, 48, 1>}, {transform_indices = @transform_6, window_bounds = array<i64: 1, 1, 48, 1>}]} {
    %c0 = arith.constant 0 : index
    %c0_0 = arith.constant 0 : index
    %c0_1 = arith.constant 0 : index
    %0 = vector.load %arg2[%c0, %c0_0, %c0_1] : memref<1x32x384xf32, #tpu.memory_space<vmem>>, vector<1x32x384xf32>
    %1 = vector.shape_cast %0 : vector<1x32x384xf32> to vector<32x384xf32>
    %c0_2 = arith.constant 0 : index
    %c0_3 = arith.constant 0 : index
    %2 = vector.load %arg3[%c0_2, %c0_3] : memref<32x1xf32, #tpu.memory_space<vmem>>, vector<32x1xf32>
    %3 = vector.broadcast %2 : vector<32x1xf32> to vector<32x384xf32>
    %4 = arith.mulf %1, %3 : vector<32x384xf32>
    %c0_4 = arith.constant 0 : index
    %c0_5 = arith.constant 0 : index
    %5 = vector.load %arg4[%c0_4, %c0_5] : memref<32x1xf32, #tpu.memory_space<vmem>>, vector<32x1xf32>
    %6 = vector.broadcast %5 : vector<32x1xf32> to vector<32x384xf32>
    %7 = arith.addf %4, %6 : vector<32x384xf32>
    %cst = arith.constant 0.000000e+00 : f32
    %8 = vector.broadcast %cst : f32 to vector<32x384xf32>
    %9 = arith.maximumf %7, %8 : vector<32x384xf32>
    %c0_6 = arith.constant 0 : index
    %c0_7 = arith.constant 0 : index
    %10 = vector.load %arg5[%c0_6, %c0_7] : memref<48x32xf32, #tpu.memory_space<vmem>>, vector<48x32xf32>
    %cst_8 = arith.constant dense<0.000000e+00> : vector<48x384xf32>
    %11 = tpu.matmul %10, %9, %cst_8 {dimension_numbers = #tpu.dot_dimension_numbers<[1], [0], [0], [1], [0, 0, 1, 1], [], []>} : vector<48x32xf32>, vector<32x384xf32>, vector<48x384xf32> -> vector<48x384xf32>
    %12 = tpu.iota {dimensions = array<i32: 1>} : vector<48x384xi32>
    %c384_i32 = arith.constant 384 : i32
    %13 = arith.muli %arg1, %c384_i32 : i32
    %14 = vector.broadcast %13 : i32 to vector<48x384xi32>
    %15 = arith.addi %12, %14 : vector<48x384xi32>
    %c1024_i32 = arith.constant 1024 : i32
    %16 = vector.broadcast %c1024_i32 : i32 to vector<48x384xi32>
    %17 = arith.cmpi slt, %15, %16 : vector<48x384xi32>
    %cst_9 = arith.constant 0.000000e+00 : f32
    %18 = vector.broadcast %cst_9 : f32 to vector<48x384xf32>
    %19 = arith.select %17, %11, %18 : vector<48x384xi1>, vector<48x384xf32>
    %cst_10 = arith.constant dense<0.000000e+00> : vector<48xf32>
    %20 = vector.multi_reduction <add>, %19, %cst_10 [1] : vector<48x384xf32> to vector<48xf32>
    %21 = vector.shape_cast %20 : vector<48xf32> to vector<48x1xf32>
    %c0_11 = arith.constant 0 : index
    %c0_12 = arith.constant 0 : index
    %c0_13 = arith.constant 0 : index
    %c0_14 = arith.constant 0 : index
    %22 = vector.load %arg7[%c0_11, %c0_12, %c0_13, %c0_14] : memref<1x1x48x1xf32, #tpu.memory_space<vmem>>, vector<1x1x48x1xf32>
    %23 = vector.shape_cast %22 : vector<1x1x48x1xf32> to vector<48x1xf32>
    %24 = vector.shape_cast %21 : vector<48x1xf32> to vector<1x1x48x1xf32>
    tpu.vector_store %arg7[%c0_11, %c0_12, %c0_13, %c0_14], %24 {strides = array<i32>} : memref<1x1x48x1xf32, #tpu.memory_space<vmem>>, vector<1x1x48x1xf32>,
    %25 = arith.mulf %19, %19 : vector<48x384xf32>
    %cst_15 = arith.constant dense<0.000000e+00> : vector<48xf32>
    %26 = vector.multi_reduction <add>, %25, %cst_15 [1] : vector<48x384xf32> to vector<48xf32>
    %27 = vector.shape_cast %26 : vector<48xf32> to vector<48x1xf32>
    %c0_16 = arith.constant 0 : index
    %c0_17 = arith.constant 0 : index
    %c0_18 = arith.constant 0 : index
    %c0_19 = arith.constant 0 : index
    %28 = vector.load %arg8[%c0_16, %c0_17, %c0_18, %c0_19] : memref<1x1x48x1xf32, #tpu.memory_space<vmem>>, vector<1x1x48x1xf32>
    %29 = vector.shape_cast %28 : vector<1x1x48x1xf32> to vector<48x1xf32>
    %30 = vector.shape_cast %27 : vector<48x1xf32> to vector<1x1x48x1xf32>
    tpu.vector_store %arg8[%c0_16, %c0_17, %c0_18, %c0_19], %30 {strides = array<i32>} : memref<1x1x48x1xf32, #tpu.memory_space<vmem>>, vector<1x1x48x1xf32>,
    %c0_20 = arith.constant 0 : index
    %c0_21 = arith.constant 0 : index
    %c0_22 = arith.constant 0 : index
    %31 = vector.load %arg6[%c0_20, %c0_21, %c0_22] : memref<1x48x384xf32, #tpu.memory_space<vmem>>, vector<1x48x384xf32>
    %32 = vector.shape_cast %31 : vector<1x48x384xf32> to vector<48x384xf32>
    %33 = vector.shape_cast %11 : vector<48x384xf32> to vector<1x48x384xf32>
    tpu.vector_store %arg6[%c0_20, %c0_21, %c0_22], %33 {strides = array<i32>} : memref<1x48x384xf32, #tpu.memory_space<vmem>>, vector<1x48x384xf32>,
    return
  }
  func.func @transform_0(%arg0: i32, %arg1: i32) -> (i32, i32, i32) {
    %c0_i32 = arith.constant 0 : i32
    %c0_i32_0 = arith.constant 0 : i32
    return %arg0, %c0_i32, %arg1 : i32, i32, i32
  }
  func.func @transform_1(%arg0: i32, %arg1: i32) -> (i32, i32) {
    %c0_i32 = arith.constant 0 : i32
    %c0_i32_0 = arith.constant 0 : i32
    %c0_i32_1 = arith.constant 0 : i32
    return %c0_i32, %c0_i32_0 : i32, i32
  }
  func.func @transform_2(%arg0: i32, %arg1: i32) -> (i32, i32) {
    %c0_i32 = arith.constant 0 : i32
    %c0_i32_0 = arith.constant 0 : i32
    %c0_i32_1 = arith.constant 0 : i32
    return %c0_i32, %c0_i32_0 : i32, i32
  }
  func.func @transform_3(%arg0: i32, %arg1: i32) -> (i32, i32) {
    %c0_i32 = arith.constant 0 : i32
    %c0_i32_0 = arith.constant 0 : i32
    %c0_i32_1 = arith.constant 0 : i32
    return %c0_i32, %c0_i32_0 : i32, i32
  }
  func.func @transform_4(%arg0: i32, %arg1: i32) -> (i32, i32, i32) {
    %c0_i32 = arith.constant 0 : i32
    %c0_i32_0 = arith.constant 0 : i32
    return %arg0, %c0_i32, %arg1 : i32, i32, i32
  }
  func.func @transform_5(%arg0: i32, %arg1: i32) -> (i32, i32, i32, i32) {
    %c0_i32 = arith.constant 0 : i32
    %c0_i32_0 = arith.constant 0 : i32
    %c0_i32_1 = arith.constant 0 : i32
    return %arg0, %arg1, %c0_i32, %c0_i32_0 : i32, i32, i32, i32
  }
  func.func @transform_6(%arg0: i32, %arg1: i32) -> (i32, i32, i32, i32) {
    %c0_i32 = arith.constant 0 : i32
    %c0_i32_0 = arith.constant 0 : i32
    %c0_i32_1 = arith.constant 0 : i32
    return %arg0, %arg1, %c0_i32, %c0_i32_0 : i32, i32, i32, i32
  }
}

module attributes {stable_mosaic.version = 11 : i64} {
  func.func @_stage_kernel(%arg0: i32, %arg1: i32, %arg2: memref<1x48x384xf32, #tpu.memory_space<vmem>>, %arg3: memref<48x1xf32, #tpu.memory_space<vmem>>, %arg4: memref<48x1xf32, #tpu.memory_space<vmem>>, %arg5: memref<32x48xf32, #tpu.memory_space<vmem>>, %arg6: memref<1x32x384xf32, #tpu.memory_space<vmem>>, %arg7: memref<1x1x32x1xf32, #tpu.memory_space<vmem>>, %arg8: memref<1x1x32x1xf32, #tpu.memory_space<vmem>>) attributes {dimension_semantics = [#tpu.dimension_semantics<parallel>, #tpu.dimension_semantics<parallel>], iteration_bounds = array<i64: 2, 3>, scalar_prefetch = 0 : i64, scratch_operands = 0 : i64, tpu.core_type = #tpu.core_type<tc>, window_params = [{transform_indices = @transform_0, window_bounds = array<i64: 1, 48, 384>}, {pipeline_mode = #tpu.pipeline_mode<synchronous>, transform_indices = @transform_1, window_bounds = array<i64: 48, 1>}, {pipeline_mode = #tpu.pipeline_mode<synchronous>, transform_indices = @transform_2, window_bounds = array<i64: 48, 1>}, {pipeline_mode = #tpu.pipeline_mode<synchronous>, transform_indices = @transform_3, window_bounds = array<i64: 32, 48>}, {transform_indices = @transform_4, window_bounds = array<i64: 1, 32, 384>}, {transform_indices = @transform_5, window_bounds = array<i64: 1, 1, 32, 1>}, {transform_indices = @transform_6, window_bounds = array<i64: 1, 1, 32, 1>}]} {
    %c0 = arith.constant 0 : index
    %c0_0 = arith.constant 0 : index
    %c0_1 = arith.constant 0 : index
    %0 = vector.load %arg2[%c0, %c0_0, %c0_1] : memref<1x48x384xf32, #tpu.memory_space<vmem>>, vector<1x48x384xf32>
    %1 = vector.shape_cast %0 : vector<1x48x384xf32> to vector<48x384xf32>
    %c0_2 = arith.constant 0 : index
    %c0_3 = arith.constant 0 : index
    %2 = vector.load %arg3[%c0_2, %c0_3] : memref<48x1xf32, #tpu.memory_space<vmem>>, vector<48x1xf32>
    %3 = vector.broadcast %2 : vector<48x1xf32> to vector<48x384xf32>
    %4 = arith.mulf %1, %3 : vector<48x384xf32>
    %c0_4 = arith.constant 0 : index
    %c0_5 = arith.constant 0 : index
    %5 = vector.load %arg4[%c0_4, %c0_5] : memref<48x1xf32, #tpu.memory_space<vmem>>, vector<48x1xf32>
    %6 = vector.broadcast %5 : vector<48x1xf32> to vector<48x384xf32>
    %7 = arith.addf %4, %6 : vector<48x384xf32>
    %cst = arith.constant 0.000000e+00 : f32
    %8 = vector.broadcast %cst : f32 to vector<48x384xf32>
    %9 = arith.maximumf %7, %8 : vector<48x384xf32>
    %c0_6 = arith.constant 0 : index
    %c0_7 = arith.constant 0 : index
    %10 = vector.load %arg5[%c0_6, %c0_7] : memref<32x48xf32, #tpu.memory_space<vmem>>, vector<32x48xf32>
    %cst_8 = arith.constant dense<0.000000e+00> : vector<32x384xf32>
    %11 = tpu.matmul %10, %9, %cst_8 {dimension_numbers = #tpu.dot_dimension_numbers<[1], [0], [0], [1], [0, 0, 1, 1], [], []>} : vector<32x48xf32>, vector<48x384xf32>, vector<32x384xf32> -> vector<32x384xf32>
    %12 = tpu.iota {dimensions = array<i32: 1>} : vector<32x384xi32>
    %c384_i32 = arith.constant 384 : i32
    %13 = arith.muli %arg1, %c384_i32 : i32
    %14 = vector.broadcast %13 : i32 to vector<32x384xi32>
    %15 = arith.addi %12, %14 : vector<32x384xi32>
    %c1024_i32 = arith.constant 1024 : i32
    %16 = vector.broadcast %c1024_i32 : i32 to vector<32x384xi32>
    %17 = arith.cmpi slt, %15, %16 : vector<32x384xi32>
    %cst_9 = arith.constant 0.000000e+00 : f32
    %18 = vector.broadcast %cst_9 : f32 to vector<32x384xf32>
    %19 = arith.select %17, %11, %18 : vector<32x384xi1>, vector<32x384xf32>
    %cst_10 = arith.constant dense<0.000000e+00> : vector<32xf32>
    %20 = vector.multi_reduction <add>, %19, %cst_10 [1] : vector<32x384xf32> to vector<32xf32>
    %21 = vector.shape_cast %20 : vector<32xf32> to vector<32x1xf32>
    %c0_11 = arith.constant 0 : index
    %c0_12 = arith.constant 0 : index
    %c0_13 = arith.constant 0 : index
    %c0_14 = arith.constant 0 : index
    %22 = vector.load %arg7[%c0_11, %c0_12, %c0_13, %c0_14] : memref<1x1x32x1xf32, #tpu.memory_space<vmem>>, vector<1x1x32x1xf32>
    %23 = vector.shape_cast %22 : vector<1x1x32x1xf32> to vector<32x1xf32>
    %24 = vector.shape_cast %21 : vector<32x1xf32> to vector<1x1x32x1xf32>
    tpu.vector_store %arg7[%c0_11, %c0_12, %c0_13, %c0_14], %24 {strides = array<i32>} : memref<1x1x32x1xf32, #tpu.memory_space<vmem>>, vector<1x1x32x1xf32>,
    %25 = arith.mulf %19, %19 : vector<32x384xf32>
    %cst_15 = arith.constant dense<0.000000e+00> : vector<32xf32>
    %26 = vector.multi_reduction <add>, %25, %cst_15 [1] : vector<32x384xf32> to vector<32xf32>
    %27 = vector.shape_cast %26 : vector<32xf32> to vector<32x1xf32>
    %c0_16 = arith.constant 0 : index
    %c0_17 = arith.constant 0 : index
    %c0_18 = arith.constant 0 : index
    %c0_19 = arith.constant 0 : index
    %28 = vector.load %arg8[%c0_16, %c0_17, %c0_18, %c0_19] : memref<1x1x32x1xf32, #tpu.memory_space<vmem>>, vector<1x1x32x1xf32>
    %29 = vector.shape_cast %28 : vector<1x1x32x1xf32> to vector<32x1xf32>
    %30 = vector.shape_cast %27 : vector<32x1xf32> to vector<1x1x32x1xf32>
    tpu.vector_store %arg8[%c0_16, %c0_17, %c0_18, %c0_19], %30 {strides = array<i32>} : memref<1x1x32x1xf32, #tpu.memory_space<vmem>>, vector<1x1x32x1xf32>,
    %c0_20 = arith.constant 0 : index
    %c0_21 = arith.constant 0 : index
    %c0_22 = arith.constant 0 : index
    %31 = vector.load %arg6[%c0_20, %c0_21, %c0_22] : memref<1x32x384xf32, #tpu.memory_space<vmem>>, vector<1x32x384xf32>
    %32 = vector.shape_cast %31 : vector<1x32x384xf32> to vector<32x384xf32>
    %33 = vector.shape_cast %11 : vector<32x384xf32> to vector<1x32x384xf32>
    tpu.vector_store %arg6[%c0_20, %c0_21, %c0_22], %33 {strides = array<i32>} : memref<1x32x384xf32, #tpu.memory_space<vmem>>, vector<1x32x384xf32>,
    return
  }
  func.func @transform_0(%arg0: i32, %arg1: i32) -> (i32, i32, i32) {
    %c0_i32 = arith.constant 0 : i32
    %c0_i32_0 = arith.constant 0 : i32
    return %arg0, %c0_i32, %arg1 : i32, i32, i32
  }
  func.func @transform_1(%arg0: i32, %arg1: i32) -> (i32, i32) {
    %c0_i32 = arith.constant 0 : i32
    %c0_i32_0 = arith.constant 0 : i32
    %c0_i32_1 = arith.constant 0 : i32
    return %c0_i32, %c0_i32_0 : i32, i32
  }
  func.func @transform_2(%arg0: i32, %arg1: i32) -> (i32, i32) {
    %c0_i32 = arith.constant 0 : i32
    %c0_i32_0 = arith.constant 0 : i32
    %c0_i32_1 = arith.constant 0 : i32
    return %c0_i32, %c0_i32_0 : i32, i32
  }
  func.func @transform_3(%arg0: i32, %arg1: i32) -> (i32, i32) {
    %c0_i32 = arith.constant 0 : i32
    %c0_i32_0 = arith.constant 0 : i32
    %c0_i32_1 = arith.constant 0 : i32
    return %c0_i32, %c0_i32_0 : i32, i32
  }
  func.func @transform_4(%arg0: i32, %arg1: i32) -> (i32, i32, i32) {
    %c0_i32 = arith.constant 0 : i32
    %c0_i32_0 = arith.constant 0 : i32
    return %arg0, %c0_i32, %arg1 : i32, i32, i32
  }
  func.func @transform_5(%arg0: i32, %arg1: i32) -> (i32, i32, i32, i32) {
    %c0_i32 = arith.constant 0 : i32
    %c0_i32_0 = arith.constant 0 : i32
    %c0_i32_1 = arith.constant 0 : i32
    return %arg0, %arg1, %c0_i32, %c0_i32_0 : i32, i32, i32, i32
  }
  func.func @transform_6(%arg0: i32, %arg1: i32) -> (i32, i32, i32, i32) {
    %c0_i32 = arith.constant 0 : i32
    %c0_i32_0 = arith.constant 0 : i32
    %c0_i32_1 = arith.constant 0 : i32
    return %arg0, %arg1, %c0_i32, %c0_i32_0 : i32, i32, i32, i32
  }
}

module attributes {stable_mosaic.version = 11 : i64} {
  func.func @_stage_kernel(%arg0: i32, %arg1: i32, %arg2: memref<1x32x384xf32, #tpu.memory_space<vmem>>, %arg3: memref<32x1xf32, #tpu.memory_space<vmem>>, %arg4: memref<32x1xf32, #tpu.memory_space<vmem>>, %arg5: memref<32x32xf32, #tpu.memory_space<vmem>>, %arg6: memref<1x32x384xf32, #tpu.memory_space<vmem>>, %arg7: memref<1x1x32x1xf32, #tpu.memory_space<vmem>>, %arg8: memref<1x1x32x1xf32, #tpu.memory_space<vmem>>) attributes {dimension_semantics = [#tpu.dimension_semantics<parallel>, #tpu.dimension_semantics<parallel>], iteration_bounds = array<i64: 2, 3>, scalar_prefetch = 0 : i64, scratch_operands = 0 : i64, tpu.core_type = #tpu.core_type<tc>, window_params = [{transform_indices = @transform_0, window_bounds = array<i64: 1, 32, 384>}, {pipeline_mode = #tpu.pipeline_mode<synchronous>, transform_indices = @transform_1, window_bounds = array<i64: 32, 1>}, {pipeline_mode = #tpu.pipeline_mode<synchronous>, transform_indices = @transform_2, window_bounds = array<i64: 32, 1>}, {pipeline_mode = #tpu.pipeline_mode<synchronous>, transform_indices = @transform_3, window_bounds = array<i64: 32, 32>}, {transform_indices = @transform_4, window_bounds = array<i64: 1, 32, 384>}, {transform_indices = @transform_5, window_bounds = array<i64: 1, 1, 32, 1>}, {transform_indices = @transform_6, window_bounds = array<i64: 1, 1, 32, 1>}]} {
    %c0 = arith.constant 0 : index
    %c0_0 = arith.constant 0 : index
    %c0_1 = arith.constant 0 : index
    %0 = vector.load %arg2[%c0, %c0_0, %c0_1] : memref<1x32x384xf32, #tpu.memory_space<vmem>>, vector<1x32x384xf32>
    %1 = vector.shape_cast %0 : vector<1x32x384xf32> to vector<32x384xf32>
    %c0_2 = arith.constant 0 : index
    %c0_3 = arith.constant 0 : index
    %2 = vector.load %arg3[%c0_2, %c0_3] : memref<32x1xf32, #tpu.memory_space<vmem>>, vector<32x1xf32>
    %3 = vector.broadcast %2 : vector<32x1xf32> to vector<32x384xf32>
    %4 = arith.mulf %1, %3 : vector<32x384xf32>
    %c0_4 = arith.constant 0 : index
    %c0_5 = arith.constant 0 : index
    %5 = vector.load %arg4[%c0_4, %c0_5] : memref<32x1xf32, #tpu.memory_space<vmem>>, vector<32x1xf32>
    %6 = vector.broadcast %5 : vector<32x1xf32> to vector<32x384xf32>
    %7 = arith.addf %4, %6 : vector<32x384xf32>
    %cst = arith.constant 0.000000e+00 : f32
    %8 = vector.broadcast %cst : f32 to vector<32x384xf32>
    %9 = arith.maximumf %7, %8 : vector<32x384xf32>
    %c0_6 = arith.constant 0 : index
    %c0_7 = arith.constant 0 : index
    %10 = vector.load %arg5[%c0_6, %c0_7] : memref<32x32xf32, #tpu.memory_space<vmem>>, vector<32x32xf32>
    %cst_8 = arith.constant dense<0.000000e+00> : vector<32x384xf32>
    %11 = tpu.matmul %10, %9, %cst_8 {dimension_numbers = #tpu.dot_dimension_numbers<[1], [0], [0], [1], [0, 0, 1, 1], [], []>} : vector<32x32xf32>, vector<32x384xf32>, vector<32x384xf32> -> vector<32x384xf32>
    %12 = tpu.iota {dimensions = array<i32: 1>} : vector<32x384xi32>
    %c384_i32 = arith.constant 384 : i32
    %13 = arith.muli %arg1, %c384_i32 : i32
    %14 = vector.broadcast %13 : i32 to vector<32x384xi32>
    %15 = arith.addi %12, %14 : vector<32x384xi32>
    %c1024_i32 = arith.constant 1024 : i32
    %16 = vector.broadcast %c1024_i32 : i32 to vector<32x384xi32>
    %17 = arith.cmpi slt, %15, %16 : vector<32x384xi32>
    %cst_9 = arith.constant 0.000000e+00 : f32
    %18 = vector.broadcast %cst_9 : f32 to vector<32x384xf32>
    %19 = arith.select %17, %11, %18 : vector<32x384xi1>, vector<32x384xf32>
    %cst_10 = arith.constant dense<0.000000e+00> : vector<32xf32>
    %20 = vector.multi_reduction <add>, %19, %cst_10 [1] : vector<32x384xf32> to vector<32xf32>
    %21 = vector.shape_cast %20 : vector<32xf32> to vector<32x1xf32>
    %c0_11 = arith.constant 0 : index
    %c0_12 = arith.constant 0 : index
    %c0_13 = arith.constant 0 : index
    %c0_14 = arith.constant 0 : index
    %22 = vector.load %arg7[%c0_11, %c0_12, %c0_13, %c0_14] : memref<1x1x32x1xf32, #tpu.memory_space<vmem>>, vector<1x1x32x1xf32>
    %23 = vector.shape_cast %22 : vector<1x1x32x1xf32> to vector<32x1xf32>
    %24 = vector.shape_cast %21 : vector<32x1xf32> to vector<1x1x32x1xf32>
    tpu.vector_store %arg7[%c0_11, %c0_12, %c0_13, %c0_14], %24 {strides = array<i32>} : memref<1x1x32x1xf32, #tpu.memory_space<vmem>>, vector<1x1x32x1xf32>,
    %25 = arith.mulf %19, %19 : vector<32x384xf32>
    %cst_15 = arith.constant dense<0.000000e+00> : vector<32xf32>
    %26 = vector.multi_reduction <add>, %25, %cst_15 [1] : vector<32x384xf32> to vector<32xf32>
    %27 = vector.shape_cast %26 : vector<32xf32> to vector<32x1xf32>
    %c0_16 = arith.constant 0 : index
    %c0_17 = arith.constant 0 : index
    %c0_18 = arith.constant 0 : index
    %c0_19 = arith.constant 0 : index
    %28 = vector.load %arg8[%c0_16, %c0_17, %c0_18, %c0_19] : memref<1x1x32x1xf32, #tpu.memory_space<vmem>>, vector<1x1x32x1xf32>
    %29 = vector.shape_cast %28 : vector<1x1x32x1xf32> to vector<32x1xf32>
    %30 = vector.shape_cast %27 : vector<32x1xf32> to vector<1x1x32x1xf32>
    tpu.vector_store %arg8[%c0_16, %c0_17, %c0_18, %c0_19], %30 {strides = array<i32>} : memref<1x1x32x1xf32, #tpu.memory_space<vmem>>, vector<1x1x32x1xf32>,
    %c0_20 = arith.constant 0 : index
    %c0_21 = arith.constant 0 : index
    %c0_22 = arith.constant 0 : index
    %31 = vector.load %arg6[%c0_20, %c0_21, %c0_22] : memref<1x32x384xf32, #tpu.memory_space<vmem>>, vector<1x32x384xf32>
    %32 = vector.shape_cast %31 : vector<1x32x384xf32> to vector<32x384xf32>
    %33 = vector.shape_cast %11 : vector<32x384xf32> to vector<1x32x384xf32>
    tpu.vector_store %arg6[%c0_20, %c0_21, %c0_22], %33 {strides = array<i32>} : memref<1x32x384xf32, #tpu.memory_space<vmem>>, vector<1x32x384xf32>,
    return
  }
  func.func @transform_0(%arg0: i32, %arg1: i32) -> (i32, i32, i32) {
    %c0_i32 = arith.constant 0 : i32
    %c0_i32_0 = arith.constant 0 : i32
    return %arg0, %c0_i32, %arg1 : i32, i32, i32
  }
  func.func @transform_1(%arg0: i32, %arg1: i32) -> (i32, i32) {
    %c0_i32 = arith.constant 0 : i32
    %c0_i32_0 = arith.constant 0 : i32
    %c0_i32_1 = arith.constant 0 : i32
    return %c0_i32, %c0_i32_0 : i32, i32
  }
  func.func @transform_2(%arg0: i32, %arg1: i32) -> (i32, i32) {
    %c0_i32 = arith.constant 0 : i32
    %c0_i32_0 = arith.constant 0 : i32
    %c0_i32_1 = arith.constant 0 : i32
    return %c0_i32, %c0_i32_0 : i32, i32
  }
  func.func @transform_3(%arg0: i32, %arg1: i32) -> (i32, i32) {
    %c0_i32 = arith.constant 0 : i32
    %c0_i32_0 = arith.constant 0 : i32
    %c0_i32_1 = arith.constant 0 : i32
    return %c0_i32, %c0_i32_0 : i32, i32
  }
  func.func @transform_4(%arg0: i32, %arg1: i32) -> (i32, i32, i32) {
    %c0_i32 = arith.constant 0 : i32
    %c0_i32_0 = arith.constant 0 : i32
    return %arg0, %c0_i32, %arg1 : i32, i32, i32
  }
  func.func @transform_5(%arg0: i32, %arg1: i32) -> (i32, i32, i32, i32) {
    %c0_i32 = arith.constant 0 : i32
    %c0_i32_0 = arith.constant 0 : i32
    %c0_i32_1 = arith.constant 0 : i32
    return %arg0, %arg1, %c0_i32, %c0_i32_0 : i32, i32, i32, i32
  }
  func.func @transform_6(%arg0: i32, %arg1: i32) -> (i32, i32, i32, i32) {
    %c0_i32 = arith.constant 0 : i32
    %c0_i32_0 = arith.constant 0 : i32
    %c0_i32_1 = arith.constant 0 : i32
    return %arg0, %arg1, %c0_i32, %c0_i32_0 : i32, i32, i32, i32
  }
}

module attributes {stable_mosaic.version = 11 : i64} {
  func.func @_stage_kernel(%arg0: i32, %arg1: i32, %arg2: memref<1x48x384xf32, #tpu.memory_space<vmem>>, %arg3: memref<48x1xf32, #tpu.memory_space<vmem>>, %arg4: memref<48x1xf32, #tpu.memory_space<vmem>>, %arg5: memref<64x48xf32, #tpu.memory_space<vmem>>, %arg6: memref<64x1xf32, #tpu.memory_space<vmem>>, %arg7: memref<1x64x384xf32, #tpu.memory_space<vmem>>) attributes {dimension_semantics = [#tpu.dimension_semantics<parallel>, #tpu.dimension_semantics<parallel>], iteration_bounds = array<i64: 2, 3>, scalar_prefetch = 0 : i64, scratch_operands = 0 : i64, tpu.core_type = #tpu.core_type<tc>, window_params = [{transform_indices = @transform_0, window_bounds = array<i64: 1, 48, 384>}, {pipeline_mode = #tpu.pipeline_mode<synchronous>, transform_indices = @transform_1, window_bounds = array<i64: 48, 1>}, {pipeline_mode = #tpu.pipeline_mode<synchronous>, transform_indices = @transform_2, window_bounds = array<i64: 48, 1>}, {pipeline_mode = #tpu.pipeline_mode<synchronous>, transform_indices = @transform_3, window_bounds = array<i64: 64, 48>}, {pipeline_mode = #tpu.pipeline_mode<synchronous>, transform_indices = @transform_4, window_bounds = array<i64: 64, 1>}, {transform_indices = @transform_5, window_bounds = array<i64: 1, 64, 384>}]} {
    %c0 = arith.constant 0 : index
    %c0_0 = arith.constant 0 : index
    %c0_1 = arith.constant 0 : index
    %0 = vector.load %arg2[%c0, %c0_0, %c0_1] : memref<1x48x384xf32, #tpu.memory_space<vmem>>, vector<1x48x384xf32>
    %1 = vector.shape_cast %0 : vector<1x48x384xf32> to vector<48x384xf32>
    %c0_2 = arith.constant 0 : index
    %c0_3 = arith.constant 0 : index
    %2 = vector.load %arg3[%c0_2, %c0_3] : memref<48x1xf32, #tpu.memory_space<vmem>>, vector<48x1xf32>
    %3 = vector.broadcast %2 : vector<48x1xf32> to vector<48x384xf32>
    %4 = arith.mulf %1, %3 : vector<48x384xf32>
    %c0_4 = arith.constant 0 : index
    %c0_5 = arith.constant 0 : index
    %5 = vector.load %arg4[%c0_4, %c0_5] : memref<48x1xf32, #tpu.memory_space<vmem>>, vector<48x1xf32>
    %6 = vector.broadcast %5 : vector<48x1xf32> to vector<48x384xf32>
    %7 = arith.addf %4, %6 : vector<48x384xf32>
    %cst = arith.constant 0.000000e+00 : f32
    %8 = vector.broadcast %cst : f32 to vector<48x384xf32>
    %9 = arith.maximumf %7, %8 : vector<48x384xf32>
    %c0_6 = arith.constant 0 : index
    %c0_7 = arith.constant 0 : index
    %10 = vector.load %arg5[%c0_6, %c0_7] : memref<64x48xf32, #tpu.memory_space<vmem>>, vector<64x48xf32>
    %cst_8 = arith.constant dense<0.000000e+00> : vector<64x384xf32>
    %11 = tpu.matmul %10, %9, %cst_8 {dimension_numbers = #tpu.dot_dimension_numbers<[1], [0], [0], [1], [0, 0, 1, 1], [], []>} : vector<64x48xf32>, vector<48x384xf32>, vector<64x384xf32> -> vector<64x384xf32>
    %c0_9 = arith.constant 0 : index
    %c0_10 = arith.constant 0 : index
    %12 = vector.load %arg6[%c0_9, %c0_10] : memref<64x1xf32, #tpu.memory_space<vmem>>, vector<64x1xf32>
    %13 = vector.broadcast %12 : vector<64x1xf32> to vector<64x384xf32>
    %14 = arith.addf %11, %13 : vector<64x384xf32>
    %c0_11 = arith.constant 0 : index
    %c0_12 = arith.constant 0 : index
    %c0_13 = arith.constant 0 : index
    %15 = vector.load %arg7[%c0_11, %c0_12, %c0_13] : memref<1x64x384xf32, #tpu.memory_space<vmem>>, vector<1x64x384xf32>
    %16 = vector.shape_cast %15 : vector<1x64x384xf32> to vector<64x384xf32>
    %17 = vector.shape_cast %14 : vector<64x384xf32> to vector<1x64x384xf32>
    tpu.vector_store %arg7[%c0_11, %c0_12, %c0_13], %17 {strides = array<i32>} : memref<1x64x384xf32, #tpu.memory_space<vmem>>, vector<1x64x384xf32>,
    return
  }
  func.func @transform_0(%arg0: i32, %arg1: i32) -> (i32, i32, i32) {
    %c0_i32 = arith.constant 0 : i32
    %c0_i32_0 = arith.constant 0 : i32
    return %arg0, %c0_i32, %arg1 : i32, i32, i32
  }
  func.func @transform_1(%arg0: i32, %arg1: i32) -> (i32, i32) {
    %c0_i32 = arith.constant 0 : i32
    %c0_i32_0 = arith.constant 0 : i32
    %c0_i32_1 = arith.constant 0 : i32
    return %c0_i32, %c0_i32_0 : i32, i32
  }
  func.func @transform_2(%arg0: i32, %arg1: i32) -> (i32, i32) {
    %c0_i32 = arith.constant 0 : i32
    %c0_i32_0 = arith.constant 0 : i32
    %c0_i32_1 = arith.constant 0 : i32
    return %c0_i32, %c0_i32_0 : i32, i32
  }
  func.func @transform_3(%arg0: i32, %arg1: i32) -> (i32, i32) {
    %c0_i32 = arith.constant 0 : i32
    %c0_i32_0 = arith.constant 0 : i32
    %c0_i32_1 = arith.constant 0 : i32
    return %c0_i32, %c0_i32_0 : i32, i32
  }
  func.func @transform_4(%arg0: i32, %arg1: i32) -> (i32, i32) {
    %c0_i32 = arith.constant 0 : i32
    %c0_i32_0 = arith.constant 0 : i32
    %c0_i32_1 = arith.constant 0 : i32
    return %c0_i32, %c0_i32_0 : i32, i32
  }
  func.func @transform_5(%arg0: i32, %arg1: i32) -> (i32, i32, i32) {
    %c0_i32 = arith.constant 0 : i32
    %c0_i32_0 = arith.constant 0 : i32
    return %arg0, %c0_i32, %arg1 : i32, i32, i32
  }
}

</mosaic_0001>

<llo_original>
// kernel: _lambda_.5
$region0: #{_lambda_.5}
  #allocation0 [shape = 'u32[]', space=smem, size = 0x4, offset = 0x4, fixed_abs, tag = 'smem constant byte address 0x4 - core index']
  #allocation1 [shape = 'u32[72,128]{1,0:T(1,128)}', space=vmem, size = 0x9000, scoped, tag = 'internal scratch']
  %s0 = inlined_call_operand.vmem [shape: f32[2,64,1024], index: 0, kind: input, shape index: {}]
  %s1 = inlined_call_operand.vmem [shape: f32[48,64], index: 1, kind: input, shape index: {}]
  %s2 = inlined_call_operand.vmem [shape: f32[2,48,1024], index: 2, kind: output, shape index: {0}]
  %s3 = inlined_call_operand.vmem [shape: f32[2,3,48,1], index: 3, kind: output, shape index: {1}]
  %s4 = inlined_call_operand.vmem [shape: f32[2,3,48,1], index: 4, kind: output, shape index: {2}]
  %5 = xla_tuple %s2, %s3, %s4
  %s6 = sld [smem:[#allocation0]]
  $region185: #{_lambda_.5} parent=0
    _
  %s8 = ssub.s32 1, %s6
  %s9 = scalar_select 0, %s8, %s6
  $region1: #{_lambda_.5} parent=0
    #allocation2 [shape = 'u8[196608]{0}', space=vmem, size = 0x30000, scoped, tag = 'input window, operand 0']
    #allocation3 [shape = 'u8[147456]{0}', space=vmem, size = 0x24000, scoped, tag = 'output window, operand 0']
    loop: start=0, step=1, limit=8
    $region2: #{_lambda_.5} parent=1 // loop_pre_header
      _
    $region3: #{_lambda_.5} parent=1 // loop_header
      %s11 = sphi 0, %s15
      %p12 = scmp.ge.s32.totalorder %s11, 8
      %s18 = sphi 0, %s30
      %s19 = sphi 0, %s26
      %s20 = sphi 0, %s18
      %s21 = sphi 0, %s19
      %s22 = sphi 0, %s20
      %s23 = sphi 0, %s21
      %s35 = sphi 0, %s37
      %s38 = sphi 0, %s35
      %s39 = sphi 0, %s38
      %s55 = sphi 0, %s39
      %s59 = sphi 0, %s59
      %s61 = sphi 0, %s59
      %s62 = sphi 0, %s61
      %s76 = sphi 0, %s62
      %s84 = sphi 0, %s86
      %s87 = sphi 0, %s84
      %s88 = sphi 0, %s87
      %s104 = sphi 0, %s88
      %s112 = sphi 0, %s114
      %s115 = sphi 0, %s112
      %s116 = sphi 0, %s115
      %s132 = sphi 0, %s116
      %s140 = sphi 0, %s142
      %s143 = sphi 0, %s140
      %s144 = sphi 0, %s143
      %s160 = sphi 0, %s144
    $region4: #{_lambda_.5} parent=1 // loop_header_branch
      %14 = sbr.rel (%p12) target = $region8
    $region5: #{_lambda_.5} parent=1 // loop_body
      %s16 = ssub.s32 %s11, 1
      %s17 = ssub.s32 %s11, 2
      %s24 = sadd.s32 1, %s19
      %p25 = scmp.ge.s32.totalorder %s24, 3
      %s26 = scalar_select %p25, 0, %s24
      %s27 = sadd.s32 1, %s18
      %s28 = scalar_select %p25, %s27, %s18
      %p29 = scmp.ge.s32.totalorder %s28, 2
      %s30 = scalar_select %p29, 0, %s28
      %s31 = ssub.s32 %s18, %s30
      %s32 = ssub.s32 %s19, %s26
      %s33 = sor.u32 %s31, %s32
      %p34 = scmp.eq.s32.totalorder %s33, 0
      %s36 = sadd.s32 %s35, 1
      %s37 = scalar_select %p34, %s35, %s36
      %p40 = pneg %p34
      %p41 = scmp.eq.s32.totalorder %s11, 5
      %p42 = por %p40, %p41
      %p43 = scmp.ne.s32.totalorder %s35, %s38
      %p44 = scmp.eq.s32.totalorder %s11, 0
      %p45 = por %p43, %p44
      %p46 = scmp.ne.s32.totalorder %s35, %s38
      %p47 = scmp.eq.s32.totalorder %s16, 5
      %p48 = por %p46, %p47
      %p49 = scmp.ne.s32.totalorder %s38, %s39
      %p50 = scmp.eq.s32.totalorder %s16, 0
      %p51 = por %p49, %p50
      %p52 = scmp.ne.s32.totalorder %s38, %s39
      %p53 = scmp.eq.s32.totalorder %s17, 5
      %p54 = por %p52, %p53
      %p56 = scmp.ne.s32.totalorder %s39, %s55
      %p57 = scmp.eq.s32.totalorder %s17, 0
      %p58 = por %p56, %p57
      %s60 = sadd.s32 %s59, 1
      %p63 = scmp.eq.s32.totalorder %s11, 5
      %p64 = scmp.ne.s32.totalorder %s59, %s61
      %p65 = scmp.eq.s32.totalorder %s11, 0
      %p66 = por %p64, %p65
      %p67 = scmp.ne.s32.totalorder %s59, %s61
      %p68 = scmp.eq.s32.totalorder %s16, 5
      %p69 = por %p67, %p68
      %p70 = scmp.ne.s32.totalorder %s61, %s62
      %p71 = scmp.eq.s32.totalorder %s16, 0
      %p72 = por %p70, %p71
      %p73 = scmp.ne.s32.totalorder %s61, %s62
      %p74 = scmp.eq.s32.totalorder %s17, 5
      %p75 = por %p73, %p74
      %p77 = scmp.ne.s32.totalorder %s62, %s76
      %p78 = scmp.eq.s32.totalorder %s17, 0
      %p79 = por %p77, %p78
      %s80 = ssub.s32 %s18, %s30
      %s81 = ssub.s32 %s19, %s26
      %s82 = sor.u32 %s80, %s81
      %p83 = scmp.eq.s32.totalorder %s82, 0
      %s85 = sadd.s32 %s84, 1
      %s86 = scalar_select %p83, %s84, %s85
      %p89 = pneg %p83
      %p90 = scmp.eq.s32.totalorder %s11, 5
      %p91 = por %p89, %p90
      %p92 = scmp.ne.s32.totalorder %s84, %s87
      %p93 = scmp.eq.s32.totalorder %s11, 0
      %p94 = por %p92, %p93
      %p95 = scmp.ne.s32.totalorder %s84, %s87
      %p96 = scmp.eq.s32.totalorder %s16, 5
      %p97 = por %p95, %p96
      %p98 = scmp.ne.s32.totalorder %s87, %s88
      %p99 = scmp.eq.s32.totalorder %s16, 0
      %p100 = por %p98, %p99
      %p101 = scmp.ne.s32.totalorder %s87, %s88
      %p102 = scmp.eq.s32.totalorder %s17, 5
      %p103 = por %p101, %p102
      %p105 = scmp.ne.s32.totalorder %s88, %s104
      %p106 = scmp.eq.s32.totalorder %s17, 0
      %p107 = por %p105, %p106
      %s108 = ssub.s32 %s18, %s30
      %s109 = ssub.s32 %s19, %s26
      %s110 = sor.u32 %s108, %s109
      %p111 = scmp.eq.s32.totalorder %s110, 0
      %s113 = sadd.s32 %s112, 1
      %s114 = scalar_select %p111, %s112, %s113
      %p117 = pneg %p111
      %p118 = scmp.eq.s32.totalorder %s11, 5
      %p119 = por %p117, %p118
      %p120 = scmp.ne.s32.totalorder %s112, %s115
      %p121 = scmp.eq.s32.totalorder %s11, 0
      %p122 = por %p120, %p121
      %p123 = scmp.ne.s32.totalorder %s112, %s115
      %p124 = scmp.eq.s32.totalorder %s16, 5
      %p125 = por %p123, %p124
      %p126 = scmp.ne.s32.totalorder %s115, %s116
      %p127 = scmp.eq.s32.totalorder %s16, 0
      %p128 = por %p126, %p127
      %p129 = scmp.ne.s32.totalorder %s115, %s116
      %p130 = scmp.eq.s32.totalorder %s17, 5
      %p131 = por %p129, %p130
      %p133 = scmp.ne.s32.totalorder %s116, %s132
      %p134 = scmp.eq.s32.totalorder %s17, 0
      %p135 = por %p133, %p134
      %s136 = ssub.s32 %s18, %s30
      %s137 = ssub.s32 %s19, %s26
      %s138 = sor.u32 %s136, %s137
      %p139 = scmp.eq.s32.totalorder %s138, 0
      %s141 = sadd.s32 %s140, 1
      %s142 = scalar_select %p139, %s140, %s141
      %p145 = pneg %p139
      %p146 = scmp.eq.s32.totalorder %s11, 5
      %p147 = por %p145, %p146
      %p148 = scmp.ne.s32.totalorder %s140, %s143
      %p149 = scmp.eq.s32.totalorder %s11, 0
      %p150 = por %p148, %p149
      %p151 = scmp.ne.s32.totalorder %s140, %s143
      %p152 = scmp.eq.s32.totalorder %s16, 5
      %p153 = por %p151, %p152
      %p154 = scmp.ne.s32.totalorder %s143, %s144
      %p155 = scmp.eq.s32.totalorder %s16, 0
      %p156 = por %p154, %p155
      %p157 = scmp.ne.s32.totalorder %s143, %s144
      %p158 = scmp.eq.s32.totalorder %s17, 5
      %p159 = por %p157, %p158
      %p161 = scmp.ne.s32.totalorder %s144, %s160
      %p162 = scmp.eq.s32.totalorder %s17, 0
      %p163 = por %p161, %p162
      %p164 = scmp.le.s32.totalorder 1, %s11
      %p165 = scmp.lt.s32.totalorder %s11, 7
      %p166 = pnand %p164, %p165
      %p167 = pneg %p166
      // Predicated region
      $region9: #{_lambda_.5} parent=5 // pred_check
        _
      $region10: #{_lambda_.5} parent=5 // pred_check_branch
        %169 = sbr.rel (%p166) target = $region12
      $region11: #{_lambda_.5} parent=5 // pred_region
        %s170 = ssub.s32 %s11, 1
        // Predicated region
        $region13: #{_lambda_.5} parent=11 // pred_check
          %p171 = pneg %p72
        $region14: #{_lambda_.5} parent=11 // pred_check_branch
          %173 = sbr.rel (%p171) target = $region16
        $region15: #{_lambda_.5} parent=11 // pred_region
          _
        $region16: #{_lambda_.5} parent=11 // pred_fallthru
          _
      $region12: #{_lambda_.5} parent=5 // pred_fallthru
        _
      %p174 = scmp.lt.s32.totalorder %s11, 6
      // Predicated region
      $region17: #{_lambda_.5} parent=5 // pred_check
        %p175 = pneg %p174
      $region18: #{_lambda_.5} parent=5 // pred_check_branch
        %177 = sbr.rel (%p175) target = $region20
      $region19: #{_lambda_.5} parent=5 // pred_region
        // Predicated region
        $region21: #{_lambda_.5} parent=19 // pred_check
          %p178 = pneg %p45
        $region22: #{_lambda_.5} parent=19 // pred_check_branch
          %180 = sbr.rel (%p178) target = $region24
        $region23: #{_lambda_.5} parent=19 // pred_region
          %s181 = sand.u32 %s35, 1
          %s182 = sand.u32 %s35, 1
          %s183 = smul.addr %s182, 192
          %s184 = scalar_lea.vmem [#allocation2], %s183
          %s185 = smul.u32 3, %s19
          %s186 = ssub.s32 8, %s185
          %p187 = scmp.lt.s32.totalorder %s186, 3
          %s188 = scalar_select %p187, %s186, 3
          %s189 = smul.u32 64, %s188
          %p190 = scmp.ne.s32.totalorder 0, %s189
          %s191 = smul.addr %s18, 64
          %s192 = sadd.s32 %s185, %s191
          %s193 = smul.addr %s192, 8
          %s194 = scalar_lea.vmem %s0, %s193
          %s195 = smul.u32 %s188, 8
          // Predicated region
          $region25: #{_lambda_.5} parent=23 // pred_check
            %p196 = pneg %p190
          $region26: #{_lambda_.5} parent=23 // pred_check_branch
            %198 = sbr.rel (%p196) target = $region28
          $region27: #{_lambda_.5} parent=23 // pred_region
            %p199 = scmp.lt.u32.totalorder %s195, 8
            %p200 = pneg %p199
            // Predicated region
            $region29: #{_lambda_.5} parent=27 // pred_check
              _
            $region30: #{_lambda_.5} parent=27 // pred_check_branch
              %202 = sbr.rel (%p199) target = $region32
            $region31: #{_lambda_.5} parent=27 // pred_region
              %s232 = sand.u32 %s195, 7
              %p233 = scmp.eq.s32.totalorder %s232, 0
              // Predicated region
              $region44: #{_lambda_.5} parent=31 // pred_check
                %p234 = pneg %p233
              $region45: #{_lambda_.5} parent=31 // pred_check_branch
                %236 = sbr.rel (%p234) target = $region47
              $region46: #{_lambda_.5} parent=31 // pred_region
                %s237 = sshrl.u32 %s195, 3
                %s238 = sshrl.u32 %s237, 2
                // While loop
                $region48: #{_lambda_.5} parent=46 // loop_pre_header
                  _
                $region49: #{_lambda_.5} parent=46 // loop_header
                  %s240 = sphi 0, %s242
                  %p241 = scmp.ge.s32.totalorder %s240, %s238
                  %s245 = sphi 0, %s314
                  %s246 = sphi %s194, %s317
                  %s247 = sphi %s184, %s318
                $region50: #{_lambda_.5} parent=46 // loop_header_branch
                  %244 = sbr.rel (%p241) target = $region54
                $region51: #{_lambda_.5} parent=46 // loop_body
                  %v248 = vld [vmem:[%s246] sm:$0xff]
                  %249 = vst [vmem:[%s247] sm:$0xff] %v248
                  %v250 = vld [vmem:[%s246 + $0x8] sm:$0xff]
                  %251 = vst [vmem:[%s247 + $0x8] sm:$0xff] %v250
                  %v252 = vld [vmem:[%s246 + $0x10] sm:$0xff]
                  %253 = vst [vmem:[%s247 + $0x10] sm:$0xff] %v252
                  %v254 = vld [vmem:[%s246 + $0x18] sm:$0xff]
                  %255 = vst [vmem:[%s247 + $0x18] sm:$0xff] %v254
                  %v256 = vld [vmem:[%s246 + $0x40] sm:$0xff]
                  %257 = vst [vmem:[%s247 + $0x18] sm:$0xff] %v256
                  %v258 = vld [vmem:[%s246 + $0x48] sm:$0xff]
                  %259 = vst [vmem:[%s247 + $0x20] sm:$0xff] %v258
                  %v260 = vld [vmem:[%s246 + $0x50] sm:$0xff]
                  %261 = vst [vmem:[%s247 + $0x28] sm:$0xff] %v260
                  %v262 = vld [vmem:[%s246 + $0x58] sm:$0xff]
                  %263 = vst [vmem:[%s247 + $0x30] sm:$0xff] %v262
                  %v264 = vld [vmem:[%s246 + $0x80] sm:$0xff]
                  %265 = vst [vmem:[%s247 + $0x30] sm:$0xff] %v264
                  %v266 = vld [vmem:[%s246 + $0x88] sm:$0xff]
                  %267 = vst [vmem:[%s247 + $0x38] sm:$0xff] %v266
                  %v268 = vld [vmem:[%s246 + $0x90] sm:$0xff]
                  %269 = vst [vmem:[%s247 + $0x40] sm:$0xff] %v268
                  %v270 = vld [vmem:[%s246 + $0x98] sm:$0xff]
                  %271 = vst [vmem:[%s247 + $0x48] sm:$0xff] %v270
                  %v272 = vld [vmem:[%s246 + $0xc0] sm:$0xff]
                  %273 = vst [vmem:[%s247 + $0x48] sm:$0xff] %v272
                  %v274 = vld [vmem:[%s246 + $0xc8] sm:$0xff]
                  %275 = vst [vmem:[%s247 + $0x50] sm:$0xff] %v274
                  %v276 = vld [vmem:[%s246 + $0xd0] sm:$0xff]
                  %277 = vst [vmem:[%s247 + $0x58] sm:$0xff] %v276
                  %v278 = vld [vmem:[%s246 + $0xd8] sm:$0xff]
                  %279 = vst [vmem:[%s247 + $0x60] sm:$0xff] %v278
                  %v280 = vld [vmem:[%s246 + $0x100] sm:$0xff]
                  %281 = vst [vmem:[%s247 + $0x60] sm:$0xff] %v280
                  %v282 = vld [vmem:[%s246 + $0x108] sm:$0xff]
                  %283 = vst [vmem:[%s247 + $0x68] sm:$0xff] %v282
                  %v284 = vld [vmem:[%s246 + $0x110] sm:$0xff]
                  %285 = vst [vmem:[%s247 + $0x70] sm:$0xff] %v284
                  %v286 = vld [vmem:[%s246 + $0x118] sm:$0xff]
                  %287 = vst [vmem:[%s247 + $0x78] sm:$0xff] %v286
                  %v288 = vld [vmem:[%s246 + $0x140] sm:$0xff]
                  %289 = vst [vmem:[%s247 + $0x78] sm:$0xff] %v288
                  %v290 = vld [vmem:[%s246 + $0x148] sm:$0xff]
                  %291 = vst [vmem:[%s247 + $0x80] sm:$0xff] %v290
                  %v292 = vld [vmem:[%s246 + $0x150] sm:$0xff]
                  %293 = vst [vmem:[%s247 + $0x88] sm:$0xff] %v292
                  %v294 = vld [vmem:[%s246 + $0x158] sm:$0xff]
                  %295 = vst [vmem:[%s247 + $0x90] sm:$0xff] %v294
                  %v296 = vld [vmem:[%s246 + $0x180] sm:$0xff]
                  %297 = vst [vmem:[%s247 + $0x90] sm:$0xff] %v296
                  %v298 = vld [vmem:[%s246 + $0x188] sm:$0xff]
                  %299 = vst [vmem:[%s247 + $0x98] sm:$0xff] %v298
                  %v300 = vld [vmem:[%s246 + $0x190] sm:$0xff]
                  %301 = vst [vmem:[%s247 + $0xa0] sm:$0xff] %v300
                  %v302 = vld [vmem:[%s246 + $0x198] sm:$0xff]
                  %303 = vst [vmem:[%s247 + $0xa8] sm:$0xff] %v302
                  %v304 = vld [vmem:[%s246 + $0x1c0] sm:$0xff]
                  %305 = vst [vmem:[%s247 + $0xa8] sm:$0xff] %v304
                  %v306 = vld [vmem:[%s246 + $0x1c8] sm:$0xff]
                  %307 = vst [vmem:[%s247 + $0xb0] sm:$0xff] %v306
                  %v308 = vld [vmem:[%s246 + $0x1d0] sm:$0xff]
                  %309 = vst [vmem:[%s247 + $0xb8] sm:$0xff] %v308
                  %v310 = vld [vmem:[%s246 + $0x1d8] sm:$0xff]
                  %311 = vst [vmem:[%s247 + $0xc0] sm:$0xff] %v310
                  %s312 = sadd.s32 1, %s245
                  %p313 = scmp.ge.s32.totalorder %s312, %s238
                  %s314 = scalar_select %p313, 0, %s312
                  %s315 = smul.u32 %s314, 32
                  %s316 = smul.u32 %s314, 32
                  %s317 = scalar_lea.vmem %s194, %s315
                  %s318 = scalar_lea.vmem %s184, %s316 [#allocation2]
                $region52: #{_lambda_.5} parent=46 // loop_footer
                  %s242 = sadd.s32 %s240, 1
                $region53: #{_lambda_.5} parent=46 // loop_footer_branch
                  %239 = sbr.rel target = $region49
                $region54: #{_lambda_.5} parent=46 // loop_exit
                  _
                %s319 = sshrl.u32 %s237, 2
                %s320 = sand.u32 %s237, 3
                %s321 = smul.u32 %s319, 4
                %s322 = smul.u32 8, %s321
                %s323 = scalar_lea.vmem %s194, %s322
                %s324 = smul.u32 8, %s321
                %s325 = scalar_lea.vmem %s184, %s324 [#allocation2]
                // While loop
                $region55: #{_lambda_.5} parent=46 // loop_pre_header
                  _
                $region56: #{_lambda_.5} parent=46 // loop_header
                  %s327 = sphi 0, %s329
                  %p328 = scmp.ge.s32.totalorder %s327, %s320
                  %s332 = sphi 0, %s353
                  %s333 = sphi %s323, %s356
                  %s334 = sphi %s325, %s357
                $region57: #{_lambda_.5} parent=46 // loop_header_branch
                  %331 = sbr.rel (%p328) target = $region61
                $region58: #{_lambda_.5} parent=46 // loop_body
                  %v335 = vld [vmem:[%s333] sm:$0xff]
                  %336 = vst [vmem:[%s334] sm:$0xff] %v335
                  %v337 = vld [vmem:[%s333 + $0x40] sm:$0xff]
                  %338 = vst [vmem:[%s334 + $0x18] sm:$0xff] %v337
                  %v339 = vld [vmem:[%s333 + $0x80] sm:$0xff]
                  %340 = vst [vmem:[%s334 + $0x30] sm:$0xff] %v339
                  %v341 = vld [vmem:[%s333 + $0xc0] sm:$0xff]
                  %342 = vst [vmem:[%s334 + $0x48] sm:$0xff] %v341
                  %v343 = vld [vmem:[%s333 + $0x100] sm:$0xff]
                  %344 = vst [vmem:[%s334 + $0x60] sm:$0xff] %v343
                  %v345 = vld [vmem:[%s333 + $0x140] sm:$0xff]
                  %346 = vst [vmem:[%s334 + $0x78] sm:$0xff] %v345
                  %v347 = vld [vmem:[%s333 + $0x180] sm:$0xff]
                  %348 = vst [vmem:[%s334 + $0x90] sm:$0xff] %v347
                  %v349 = vld [vmem:[%s333 + $0x1c0] sm:$0xff]
                  %350 = vst [vmem:[%s334 + $0xa8] sm:$0xff] %v349
                  %s351 = sadd.s32 1, %s332
                  %p352 = scmp.ge.s32.totalorder %s351, %s320
                  %s353 = scalar_select %p352, 0, %s351
                  %s354 = smul.u32 %s353, 8
                  %s355 = smul.u32 %s353, 8
                  %s356 = scalar_lea.vmem %s323, %s354
                  %s357 = scalar_lea.vmem %s325, %s355 [#allocation2]
                $region59: #{_lambda_.5} parent=46 // loop_footer
                  %s329 = sadd.s32 %s327, 1
                $region60: #{_lambda_.5} parent=46 // loop_footer_branch
                  %326 = sbr.rel target = $region56
                $region61: #{_lambda_.5} parent=46 // loop_exit
                  _
              $region47: #{_lambda_.5} parent=31 // pred_fallthru
                _
              %p358 = pneg %p233
              // Predicated region
              $region62: #{_lambda_.5} parent=31 // pred_check
                _
              $region63: #{_lambda_.5} parent=31 // pred_check_branch
                %360 = sbr.rel (%p233) target = $region65
              $region64: #{_lambda_.5} parent=31 // pred_region
                %s361 = sand.u32 %s195, 7
                %s362 = ssub.s32 %s195, %s361
                %s363 = scalar_lea.vmem %s194, %s362
                %s364 = ssub.s32 %s195, %s361
                %s365 = scalar_lea.vmem %s184, %s364 [#allocation2]
                %s366 = sshrl.u32 %s195, 3
                %s367 = sshrl.u32 %s366, 2
                // While loop
                $region66: #{_lambda_.5} parent=64 // loop_pre_header
                  _
                $region67: #{_lambda_.5} parent=64 // loop_header
                  %s369 = sphi 0, %s371
                  %p370 = scmp.ge.s32.totalorder %s369, %s367
                  %s374 = sphi 0, %s443
                  %s375 = sphi %s194, %s446
                  %s376 = sphi %s184, %s447
                $region68: #{_lambda_.5} parent=64 // loop_header_branch
                  %373 = sbr.rel (%p370) target = $region72
                $region69: #{_lambda_.5} parent=64 // loop_body
                  %v377 = vld [vmem:[%s375] sm:$0xff]
                  %378 = vst [vmem:[%s376] sm:$0xff] %v377
                  %v379 = vld [vmem:[%s375 + $0x8] sm:$0xff]
                  %380 = vst [vmem:[%s376 + $0x8] sm:$0xff] %v379
                  %v381 = vld [vmem:[%s375 + $0x10] sm:$0xff]
                  %382 = vst [vmem:[%s376 + $0x10] sm:$0xff] %v381
                  %v383 = vld [vmem:[%s375 + $0x18] sm:$0xff]
                  %384 = vst [vmem:[%s376 + $0x18] sm:$0xff] %v383
                  %v385 = vld [vmem:[%s375 + $0x40] sm:$0xff]
                  %386 = vst [vmem:[%s376 + $0x18] sm:$0xff] %v385
                  %v387 = vld [vmem:[%s375 + $0x48] sm:$0xff]
                  %388 = vst [vmem:[%s376 + $0x20] sm:$0xff] %v387
                  %v389 = vld [vmem:[%s375 + $0x50] sm:$0xff]
                  %390 = vst [vmem:[%s376 + $0x28] sm:$0xff] %v389
                  %v391 = vld [vmem:[%s375 + $0x58] sm:$0xff]
                  %392 = vst [vmem:[%s376 + $0x30] sm:$0xff] %v391
                  %v393 = vld [vmem:[%s375 + $0x80] sm:$0xff]
                  %394 = vst [vmem:[%s376 + $0x30] sm:$0xff] %v393
                  %v395 = vld [vmem:[%s375 + $0x88] sm:$0xff]
                  %396 = vst [vmem:[%s376 + $0x38] sm:$0xff] %v395
                  %v397 = vld [vmem:[%s375 + $0x90] sm:$0xff]
                  %398 = vst [vmem:[%s376 + $0x40] sm:$0xff] %v397
                  %v399 = vld [vmem:[%s375 + $0x98] sm:$0xff]
                  %400 = vst [vmem:[%s376 + $0x48] sm:$0xff] %v399
                  %v401 = vld [vmem:[%s375 + $0xc0] sm:$0xff]
                  %402 = vst [vmem:[%s376 + $0x48] sm:$0xff] %v401
                  %v403 = vld [vmem:[%s375 + $0xc8] sm:$0xff]
                  %404 = vst [vmem:[%s376 + $0x50] sm:$0xff] %v403
                  %v405 = vld [vmem:[%s375 + $0xd0] sm:$0xff]
                  %406 = vst [vmem:[%s376 + $0x58] sm:$0xff] %v405
                  %v407 = vld [vmem:[%s375 + $0xd8] sm:$0xff]
                  %408 = vst [vmem:[%s376 + $0x60] sm:$0xff] %v407
                  %v409 = vld [vmem:[%s375 + $0x100] sm:$0xff]
                  %410 = vst [vmem:[%s376 + $0x60] sm:$0xff] %v409
                  %v411 = vld [vmem:[%s375 + $0x108] sm:$0xff]
                  %412 = vst [vmem:[%s376 + $0x68] sm:$0xff] %v411
                  %v413 = vld [vmem:[%s375 + $0x110] sm:$0xff]
                  %414 = vst [vmem:[%s376 + $0x70] sm:$0xff] %v413
                  %v415 = vld [vmem:[%s375 + $0x118] sm:$0xff]
                  %416 = vst [vmem:[%s376 + $0x78] sm:$0xff] %v415
                  %v417 = vld [vmem:[%s375 + $0x140] sm:$0xff]
                  %418 = vst [vmem:[%s376 + $0x78] sm:$0xff] %v417
                  %v419 = vld [vmem:[%s375 + $0x148] sm:$0xff]
                  %420 = vst [vmem:[%s376 + $0x80] sm:$0xff] %v419
                  %v421 = vld [vmem:[%s375 + $0x150] sm:$0xff]
                  %422 = vst [vmem:[%s376 + $0x88] sm:$0xff] %v421
                  %v423 = vld [vmem:[%s375 + $0x158] sm:$0xff]
                  %424 = vst [vmem:[%s376 + $0x90] sm:$0xff] %v423
                  %v425 = vld [vmem:[%s375 + $0x180] sm:$0xff]
                  %426 = vst [vmem:[%s376 + $0x90] sm:$0xff] %v425
                  %v427 = vld [vmem:[%s375 + $0x188] sm:$0xff]
                  %428 = vst [vmem:[%s376 + $0x98] sm:$0xff] %v427
                  %v429 = vld [vmem:[%s375 + $0x190] sm:$0xff]
                  %430 = vst [vmem:[%s376 + $0xa0] sm:$0xff] %v429
                  %v431 = vld [vmem:[%s375 + $0x198] sm:$0xff]
                  %432 = vst [vmem:[%s376 + $0xa8] sm:$0xff] %v431
                  %v433 = vld [vmem:[%s375 + $0x1c0] sm:$0xff]
                  %434 = vst [vmem:[%s376 + $0xa8] sm:$0xff] %v433
                  %v435 = vld [vmem:[%s375 + $0x1c8] sm:$0xff]
                  %436 = vst [vmem:[%s376 + $0xb0] sm:$0xff] %v435
                  %v437 = vld [vmem:[%s375 + $0x1d0] sm:$0xff]
                  %438 = vst [vmem:[%s376 + $0xb8] sm:$0xff] %v437
                  %v439 = vld [vmem:[%s375 + $0x1d8] sm:$0xff]
                  %440 = vst [vmem:[%s376 + $0xc0] sm:$0xff] %v439
                  %s441 = sadd.s32 1, %s374
                  %p442 = scmp.ge.s32.totalorder %s441, %s367
                  %s443 = scalar_select %p442, 0, %s441
                  %s444 = smul.u32 %s443, 32
                  %s445 = smul.u32 %s443, 32
                  %s446 = scalar_lea.vmem %s194, %s444
                  %s447 = scalar_lea.vmem %s184, %s445 [#allocation2]
                $region70: #{_lambda_.5} parent=64 // loop_footer
                  %s371 = sadd.s32 %s369, 1
                $region71: #{_lambda_.5} parent=64 // loop_footer_branch
                  %368 = sbr.rel target = $region67
                $region72: #{_lambda_.5} parent=64 // loop_exit
                  _
                %s448 = sshrl.u32 %s366, 2
                %s449 = sand.u32 %s366, 3
                %s450 = smul.u32 %s448, 4
                %s451 = smul.u32 8, %s450
                %s452 = scalar_lea.vmem %s194, %s451
                %s453 = smul.u32 8, %s450
                %s454 = scalar_lea.vmem %s184, %s453 [#allocation2]
                // While loop
                $region73: #{_lambda_.5} parent=64 // loop_pre_header
                  _
                $region74: #{_lambda_.5} parent=64 // loop_header
                  %s456 = sphi 0, %s458
                  %p457 = scmp.ge.s32.totalorder %s456, %s449
                  %s461 = sphi 0, %s482
                  %s462 = sphi %s452, %s485
                  %s463 = sphi %s454, %s486
                $region75: #{_lambda_.5} parent=64 // loop_header_branch
                  %460 = sbr.rel (%p457) target = $region79
                $region76: #{_lambda_.5} parent=64 // loop_body
                  %v464 = vld [vmem:[%s462] sm:$0xff]
                  %465 = vst [vmem:[%s463] sm:$0xff] %v464
                  %v466 = vld [vmem:[%s462 + $0x40] sm:$0xff]
                  %467 = vst [vmem:[%s463 + $0x18] sm:$0xff] %v466
                  %v468 = vld [vmem:[%s462 + $0x80] sm:$0xff]
                  %469 = vst [vmem:[%s463 + $0x30] sm:$0xff] %v468
                  %v470 = vld [vmem:[%s462 + $0xc0] sm:$0xff]
                  %471 = vst [vmem:[%s463 + $0x48] sm:$0xff] %v470
                  %v472 = vld [vmem:[%s462 + $0x100] sm:$0xff]
                  %473 = vst [vmem:[%s463 + $0x60] sm:$0xff] %v472
                  %v474 = vld [vmem:[%s462 + $0x140] sm:$0xff]
                  %475 = vst [vmem:[%s463 + $0x78] sm:$0xff] %v474
                  %v476 = vld [vmem:[%s462 + $0x180] sm:$0xff]
                  %477 = vst [vmem:[%s463 + $0x90] sm:$0xff] %v476
                  %v478 = vld [vmem:[%s462 + $0x1c0] sm:$0xff]
                  %479 = vst [vmem:[%s463 + $0xa8] sm:$0xff] %v478
                  %s480 = sadd.s32 1, %s461
                  %p481 = scmp.ge.s32.totalorder %s480, %s449
                  %s482 = scalar_select %p481, 0, %s480
                  %s483 = smul.u32 %s482, 8
                  %s484 = smul.u32 %s482, 8
                  %s485 = scalar_lea.vmem %s452, %s483
                  %s486 = scalar_lea.vmem %s454, %s484 [#allocation2]
                $region77: #{_lambda_.5} parent=64 // loop_footer
                  %s458 = sadd.s32 %s456, 1
                $region78: #{_lambda_.5} parent=64 // loop_footer_branch
                  %455 = sbr.rel target = $region74
                $region79: #{_lambda_.5} parent=64 // loop_exit
                  _
                %s487 = sshll.u32 1, %s361
                %s488 = ssub.s32 %s487, 1
                loop: start=0, step=1, limit=1
                $region80: #{_lambda_.5} parent=64 // loop_pre_header
                  _
                $region81: #{_lambda_.5} parent=64 // loop_header
                  %s490 = sphi 0, %s494
                  %p491 = scmp.ge.s32.totalorder %s490, 1
                  %s495 = sphi %s363, %s363
                  %s496 = sphi %s365, %s365
                $region82: #{_lambda_.5} parent=64 // loop_header_branch
                  %493 = sbr.rel (%p491) target = $region86
                $region83: #{_lambda_.5} parent=64 // loop_body
                  %v497 = vld [vmem:[%s495] sm:%s488]
                  %498 = vst [vmem:[%s496] sm:%s488] %v497
                  %v499 = vld [vmem:[%s495 + $0x40] sm:%s488]
                  %500 = vst [vmem:[%s496 + $0x18] sm:%s488] %v499
                  %v501 = vld [vmem:[%s495 + $0x80] sm:%s488]
                  %502 = vst [vmem:[%s496 + $0x30] sm:%s488] %v501
                  %v503 = vld [vmem:[%s495 + $0xc0] sm:%s488]
                  %504 = vst [vmem:[%s496 + $0x48] sm:%s488] %v503
                  %v505 = vld [vmem:[%s495 + $0x100] sm:%s488]
                  %506 = vst [vmem:[%s496 + $0x60] sm:%s488] %v505
                  %v507 = vld [vmem:[%s495 + $0x140] sm:%s488]
                  %508 = vst [vmem:[%s496 + $0x78] sm:%s488] %v507
                  %v509 = vld [vmem:[%s495 + $0x180] sm:%s488]
                  %510 = vst [vmem:[%s496 + $0x90] sm:%s488] %v509
                  %v511 = vld [vmem:[%s495 + $0x1c0] sm:%s488]
                  %512 = vst [vmem:[%s496 + $0xa8] sm:%s488] %v511
                $region84: #{_lambda_.5} parent=64 // loop_footer
                  %s494 = sadd.s32 1, %s490
                $region85: #{_lambda_.5} parent=64 // loop_footer_branch
                  %489 = sbr.rel target = $region81
                $region86: #{_lambda_.5} parent=64 // loop_exit
                  _
              $region65: #{_lambda_.5} parent=31 // pred_fallthru
                _
            $region32: #{_lambda_.5} parent=27 // pred_fallthru
              _
            // Predicated region
            $region33: #{_lambda_.5} parent=27 // pred_check
              %p203 = pneg %p199
            $region34: #{_lambda_.5} parent=27 // pred_check_branch
              %205 = sbr.rel (%p203) target = $region36
            $region35: #{_lambda_.5} parent=27 // pred_region
              %s206 = sshll.u32 1, %s195
              %s207 = ssub.s32 %s206, 1
              loop: start=0, step=1, limit=1
              $region37: #{_lambda_.5} parent=35 // loop_pre_header
                _
              $region38: #{_lambda_.5} parent=35 // loop_header
                %s209 = sphi 0, %s213
                %p210 = scmp.ge.s32.totalorder %s209, 1
                %s214 = sphi %s194, %s194
                %s215 = sphi %s184, %s184
              $region39: #{_lambda_.5} parent=35 // loop_header_branch
                %212 = sbr.rel (%p210) target = $region43
              $region40: #{_lambda_.5} parent=35 // loop_body
                %v216 = vld [vmem:[%s214] sm:%s207]
                %217 = vst [vmem:[%s215] sm:%s207] %v216
                %v218 = vld [vmem:[%s214 + $0x40] sm:%s207]
                %219 = vst [vmem:[%s215 + $0x18] sm:%s207] %v218
                %v220 = vld [vmem:[%s214 + $0x80] sm:%s207]
                %221 = vst [vmem:[%s215 + $0x30] sm:%s207] %v220
                %v222 = vld [vmem:[%s214 + $0xc0] sm:%s207]
                %223 = vst [vmem:[%s215 + $0x48] sm:%s207] %v222
                %v224 = vld [vmem:[%s214 + $0x100] sm:%s207]
                %225 = vst [vmem:[%s215 + $0x60] sm:%s207] %v224
                %v226 = vld [vmem:[%s214 + $0x140] sm:%s207]
                %227 = vst [vmem:[%s215 + $0x78] sm:%s207] %v226
                %v228 = vld [vmem:[%s214 + $0x180] sm:%s207]
                %229 = vst [vmem:[%s215 + $0x90] sm:%s207] %v228
                %v230 = vld [vmem:[%s214 + $0x1c0] sm:%s207]
                %231 = vst [vmem:[%s215 + $0xa8] sm:%s207] %v230
              $region41: #{_lambda_.5} parent=35 // loop_footer
                %s213 = sadd.s32 1, %s209
              $region42: #{_lambda_.5} parent=35 // loop_footer_branch
                %208 = sbr.rel target = $region38
              $region43: #{_lambda_.5} parent=35 // loop_exit
                _
            $region36: #{_lambda_.5} parent=27 // pred_fallthru
              _
          $region28: #{_lambda_.5} parent=23 // pred_fallthru
            _
          %513 = vnop
        $region24: #{_lambda_.5} parent=19 // pred_fallthru
          _
      $region20: #{_lambda_.5} parent=5 // pred_fallthru
        _
      %p514 = scmp.le.s32.totalorder 1, %s11
      %p515 = scmp.lt.s32.totalorder %s11, 7
      %p516 = pnand %p514, %p515
      %p517 = pneg %p516
      // Predicated region
      $region87: #{_lambda_.5} parent=5 // pred_check
        _
      $region88: #{_lambda_.5} parent=5 // pred_check_branch
        %519 = sbr.rel (%p516) target = $region90
      $region89: #{_lambda_.5} parent=5 // pred_region
        %s520 = ssub.s32 %s11, 1
        %s521 = sand.u32 %s38, 1
        %s522 = sand.u32 %s38, 1
        %s523 = smul.addr %s522, 192
        %s524 = scalar_lea.vmem [#allocation2], %s523
        // Predicated region
        $region91: #{_lambda_.5} parent=89 // pred_check
          %p525 = pneg %p51
        $region92: #{_lambda_.5} parent=89 // pred_check_branch
          %527 = sbr.rel (%p525) target = $region94
        $region93: #{_lambda_.5} parent=89 // pred_region
          _
        $region94: #{_lambda_.5} parent=89 // pred_fallthru
          _
        %s528 = sand.u32 %s38, 1
        %s529 = sand.u32 %s38, 1
        %s530 = smul.addr %s529, 192
        %s531 = scalar_lea.vmem [#allocation2], %s530
        %p532 = pneg %p51
        %p533 = pneg %p48
        %p534 = pneg %p72
        %p535 = pneg %p69
        %p536 = pneg %p100
        %p537 = pneg %p97
        %s538 = sand.u32 %s87, 1
        %s539 = sand.u32 %s87, 1
        %s540 = smul.addr %s539, 144
        %s541 = scalar_lea.vmem [#allocation3], %s540
        %p542 = pneg %p128
        %p543 = pneg %p125
        %p544 = scmp.lt.s32.totalorder %s20, 1
        %s545 = scalar_select %p544, %s20, 1
        %p546 = scmp.lt.s32.totalorder %s21, 2
        %s547 = scalar_select %p546, %s21, 2
        %s548 = smul.addr %s547, 6
        %s549 = smul.addr %s545, 18
        %s550 = sadd.s32 %s548, %s549
        %s551 = smul.addr %s550, 8
        %s552 = scalar_lea.vmem %s3, %s551
        %p553 = pneg %p156
        %p554 = pneg %p153
        %p555 = scmp.lt.s32.totalorder %s20, 1
        %s556 = scalar_select %p555, %s20, 1
        %p557 = scmp.lt.s32.totalorder %s21, 2
        %s558 = scalar_select %p557, %s21, 2
        %s559 = smul.addr %s558, 6
        %s560 = smul.addr %s556, 18
        %s561 = sadd.s32 %s559, %s560
        %s562 = smul.addr %s561, 8
        %s563 = scalar_lea.vmem %s4, %s562
        %s564 = smul.u32 3, %s21
        %s565 = ssub.s32 8, %s564
        %p566 = scmp.lt.s32.totalorder %s565, 3
        %s567 = scalar_select %p566, %s565, 3
        %s568 = smul.u32 64, %s567
        %s569 = smul.u32 3, %s21
        %s570 = ssub.s32 8, %s569
        %p571 = scmp.lt.s32.totalorder %s570, 3
        %s572 = scalar_select %p571, %s570, 3
        %s573 = smul.u32 48, %s572
        %p574 = scmp.lt.s32.totalorder %s20, 1
        %s575 = scalar_select %p574, %s20, 1
        %p576 = scmp.lt.s32.totalorder %s21, 2
        %s577 = scalar_select %p576, %s21, 2
        %s578 = smul.addr %s577, 6
        %s579 = smul.addr %s575, 18
        %s580 = sadd.s32 %s578, %s579
        %s581 = smul.addr %s580, 8
        %s582 = scalar_lea.vmem %s3, %s581
        %p583 = scmp.lt.s32.totalorder %s20, 1
        %s584 = scalar_select %p583, %s20, 1
        %p585 = scmp.lt.s32.totalorder %s21, 2
        %s586 = scalar_select %p585, %s21, 2
        %s587 = smul.addr %s586, 6
        %s588 = smul.addr %s584, 18
        %s589 = sadd.s32 %s587, %s588
        %s590 = smul.addr %s589, 8
        %s591 = scalar_lea.vmem %s4, %s590
        %v592 = vld [vmem:[%s524] sm:$0xff]
        %v593 = vld [vmem:[%s524 + $0x8] sm:$0xff]
        %v594 = vld [vmem:[%s524 + $0x10] sm:$0xff]
        %v595 = vld [vmem:[%s524 + $0x18] sm:$0xff]
        %v596 = vld [vmem:[%s524 + $0x20] sm:$0xff]
        %v597 = vld [vmem:[%s524 + $0x28] sm:$0xff]
        %v598 = vld [vmem:[%s524 + $0x30] sm:$0xff]
        %v599 = vld [vmem:[%s524 + $0x38] sm:$0xff]
        %v600 = vld [vmem:[%s524 + $0x40] sm:$0xff]
        %v601 = vld [vmem:[%s524 + $0x48] sm:$0xff]
        %v602 = vld [vmem:[%s524 + $0x50] sm:$0xff]
        %v603 = vld [vmem:[%s524 + $0x58] sm:$0xff]
        %v604 = vld [vmem:[%s524 + $0x60] sm:$0xff]
        %v605 = vld [vmem:[%s524 + $0x68] sm:$0xff]
        %v606 = vld [vmem:[%s524 + $0x70] sm:$0xff]
        %v607 = vld [vmem:[%s524 + $0x78] sm:$0xff]
        %v608 = vld [vmem:[%s524 + $0x80] sm:$0xff]
        %v609 = vld [vmem:[%s524 + $0x88] sm:$0xff]
        %v610 = vld [vmem:[%s524 + $0x90] sm:$0xff]
        %v611 = vld [vmem:[%s524 + $0x98] sm:$0xff]
        %v612 = vld [vmem:[%s524 + $0xa0] sm:$0xff]
        %v613 = vld [vmem:[%s524 + $0xa8] sm:$0xff]
        %v614 = vld [vmem:[%s524 + $0xb0] sm:$0xff]
        %v615 = vld [vmem:[%s524 + $0xb8] sm:$0xff]
        %v616 = vld [vmem:[%s1] sm:$0xff]
        %v617 = vld [vmem:[%s1 + $0x8] sm:$0xff]
        %v618 = vld [vmem:[%s1 + $0x10] sm:$0xff]
        %v619 = vld [vmem:[%s1 + $0x18] sm:$0xff]
        %v620 = vld [vmem:[%s1 + $0x20] sm:$0xff]
        %v621 = vld [vmem:[%s1 + $0x28] sm:$0xff]
        %vm622 = vcmask 523264
        %v624 = vsel %vm622, %v616, 0
        %v627 = vsel %vm622, %v617, 0
        %v630 = vsel %vm622, %v618, 0
        %v633 = vsel %vm622, %v619, 0
        %v636 = vsel %vm622, %v620, 0
        %v639 = vsel %vm622, %v621, 0
        %641 = vmatpush.msra.mxu0 0.0
        %642 = vmatpush.msra.mxu0 0.0
        %643 = vmatpush.msra.mxu0 0.0
        %644 = vmatpush.msra.mxu0 0.0
        %645 = vmatpush.msra.mxu0 0.0
        %646 = vmatpush.msra.mxu0 0.0
        %647 = vmatpush.msra.mxu0 0.0
        %648 = vmatpush.msra.mxu0 0.0
        %649 = vmatpush.msra.mxu0 %v613
        %650 = vmatpush.msra.mxu0 %v610
        %651 = vmatpush.msra.mxu0 %v607
        %652 = vmatpush.msra.mxu0 %v604
        %653 = vmatpush.msra.mxu0 %v601
        %654 = vmatpush.msra.mxu0 %v598
        %655 = vmatpush.msra.mxu0 %v595
        %656 = vmatpush.msra.mxu0 %v592
        %657 = vmatmul.f32.gmra.mxu0 %v624
        %v658 = vpop.f32.mrf.mxu0
        %v659 = vadd.f32 0.0, %v658
        %660 = vmatmul.f32.gmra.mxu0 %v627
        %v661 = vpop.f32.mrf.mxu0
        %v662 = vadd.f32 0.0, %v661
        %663 = vmatmul.f32.gmra.mxu0 %v630
        %v664 = vpop.f32.mrf.mxu0
        %v665 = vadd.f32 0.0, %v664
        %666 = vmatmul.f32.gmra.mxu0 %v633
        %v667 = vpop.f32.mrf.mxu0
        %v668 = vadd.f32 0.0, %v667
        %669 = vmatmul.f32.gmra.mxu0 %v636
        %v670 = vpop.f32.mrf.mxu0
        %v671 = vadd.f32 0.0, %v670
        %672 = vmatmul.f32.gmra.mxu0 %v639
        %v673 = vpop.f32.mrf.mxu0
        %v674 = vadd.f32 0.0, %v673
        %675 = vdwg.mxu0
        %676 = vmatpush.msra.mxu0 0.0
        %677 = vmatpush.msra.mxu0 0.0
        %678 = vmatpush.msra.mxu0 0.0
        %679 = vmatpush.msra.mxu0 0.0
        %680 = vmatpush.msra.mxu0 0.0
        %681 = vmatpush.msra.mxu0 0.0
        %682 = vmatpush.msra.mxu0 0.0
        %683 = vmatpush.msra.mxu0 0.0
        %684 = vmatpush.msra.mxu0 %v614
        %685 = vmatpush.msra.mxu0 %v611
        %686 = vmatpush.msra.mxu0 %v608
        %687 = vmatpush.msra.mxu0 %v605
        %688 = vmatpush.msra.mxu0 %v602
        %689 = vmatpush.msra.mxu0 %v599
        %690 = vmatpush.msra.mxu0 %v596
        %691 = vmatpush.msra.mxu0 %v593
        %692 = vmatmul.f32.gmra.mxu0 %v624
        %v693 = vpop.f32.mrf.mxu0
        %v694 = vadd.f32 0.0, %v693
        %695 = vmatmul.f32.gmra.mxu0 %v627
        %v696 = vpop.f32.mrf.mxu0
        %v697 = vadd.f32 0.0, %v696
        %698 = vmatmul.f32.gmra.mxu0 %v630
        %v699 = vpop.f32.mrf.mxu0
        %v700 = vadd.f32 0.0, %v699
        %701 = vmatmul.f32.gmra.mxu0 %v633
        %v702 = vpop.f32.mrf.mxu0
        %v703 = vadd.f32 0.0, %v702
        %704 = vmatmul.f32.gmra.mxu0 %v636
        %v705 = vpop.f32.mrf.mxu0
        %v706 = vadd.f32 0.0, %v705
        %707 = vmatmul.f32.gmra.mxu0 %v639
        %v708 = vpop.f32.mrf.mxu0
        %v709 = vadd.f32 0.0, %v708
        %710 = vdwg.mxu0
        %711 = vmatpush.msra.mxu0 0.0
        %712 = vmatpush.msra.mxu0 0.0
        %713 = vmatpush.msra.mxu0 0.0
        %714 = vmatpush.msra.mxu0 0.0
        %715 = vmatpush.msra.mxu0 0.0
        %716 = vmatpush.msra.mxu0 0.0
        %717 = vmatpush.msra.mxu0 0.0
        %718 = vmatpush.msra.mxu0 0.0
        %719 = vmatpush.msra.mxu0 %v615
        %720 = vmatpush.msra.mxu0 %v612
        %721 = vmatpush.msra.mxu0 %v609
        %722 = vmatpush.msra.mxu0 %v606
        %723 = vmatpush.msra.mxu0 %v603
        %724 = vmatpush.msra.mxu0 %v600
        %725 = vmatpush.msra.mxu0 %v597
        %726 = vmatpush.msra.mxu0 %v594
        %727 = vmatmul.f32.gmra.mxu0 %v624
        %v728 = vpop.f32.mrf.mxu0
        %v729 = vadd.f32 0.0, %v728
        %730 = vmatmul.f32.gmra.mxu0 %v627
        %v731 = vpop.f32.mrf.mxu0
        %v732 = vadd.f32 0.0, %v731
        %733 = vmatmul.f32.gmra.mxu0 %v630
        %v734 = vpop.f32.mrf.mxu0
        %v735 = vadd.f32 0.0, %v734
        %736 = vmatmul.f32.gmra.mxu0 %v633
        %v737 = vpop.f32.mrf.mxu0
        %v738 = vadd.f32 0.0, %v737
        %739 = vmatmul.f32.gmra.mxu0 %v636
        %v740 = vpop.f32.mrf.mxu0
        %v741 = vadd.f32 0.0, %v740
        %742 = vmatmul.f32.gmra.mxu0 %v639
        %v743 = vpop.f32.mrf.mxu0
        %v744 = vadd.f32 0.0, %v743
        %745 = vdwg.mxu0
        %v746 = vlaneseq
        %v747 = vand.u32 %v746, 127
        %v748 = vadd.s32 %v747, 128
        %v749 = vadd.s32 %v747, 256
        %s750 = smul.u32 %s21, 384
        %v751 = vstv %s750
        %v752 = vadd.s32 %v747, %v751
        %v753 = vadd.s32 %v748, %v751
        %v754 = vadd.s32 %v749, %v751
        %vm755 = vcmp.lt.s32.totalorder %v752, 1024
        %vm756 = vcmp.lt.s32.totalorder %v753, 1024
        %vm757 = vcmp.lt.s32.totalorder %v754, 1024
        %v758 = vsel %vm755, %v659, 0.0
        %v759 = vsel %vm756, %v694, 0.0
        %v760 = vsel %vm757, %v729, 0.0
        %v761 = vsel %vm755, %v662, 0.0
        %v762 = vsel %vm756, %v697, 0.0
        %v763 = vsel %vm757, %v732, 0.0
        %v764 = vsel %vm755, %v665, 0.0
        %v765 = vsel %vm756, %v700, 0.0
        %v766 = vsel %vm757, %v735, 0.0
        %v767 = vsel %vm755, %v668, 0.0
        %v768 = vsel %vm756, %v703, 0.0
        %v769 = vsel %vm757, %v738, 0.0
        %v770 = vsel %vm755, %v671, 0.0
        %v771 = vsel %vm756, %v706, 0.0
        %v772 = vsel %vm757, %v741, 0.0
        %v773 = vsel %vm755, %v674, 0.0
        %v774 = vsel %vm756, %v709, 0.0
        %v775 = vsel %vm757, %v744, 0.0
        %v776 = vadd.f32 %v758, %v759
        %v777 = vadd.f32 %v776, %v760
        %778 = vadd.xlane.f32.xlu0 %v777
        %v779 = vpop.xlane.xlu0 %778
        %v780 = vadd.f32 %v761, %v762
        %v781 = vadd.f32 %v780, %v763
        %782 = vadd.xlane.f32.xlu0 %v781
        %v783 = vpop.xlane.xlu0 %782
        %v784 = vadd.f32 %v764, %v765
        %v785 = vadd.f32 %v784, %v766
        %786 = vadd.xlane.f32.xlu0 %v785
        %v787 = vpop.xlane.xlu0 %786
        %v788 = vadd.f32 %v767, %v768
        %v789 = vadd.f32 %v788, %v769
        %790 = vadd.xlane.f32.xlu0 %v789
        %v791 = vpop.xlane.xlu0 %790
        %v792 = vadd.f32 %v770, %v771
        %v793 = vadd.f32 %v792, %v772
        %794 = vadd.xlane.f32.xlu0 %v793
        %v795 = vpop.xlane.xlu0 %794
        %v796 = vadd.f32 %v773, %v774
        %v797 = vadd.f32 %v796, %v775
        %798 = vadd.xlane.f32.xlu0 %v797
        %v799 = vpop.xlane.xlu0 %798
        %vm800 = vcmask 7168
        %801 = vst.msk [vmem:[%s582] sm:$0xff] %vm800, %v779
        %802 = vst.msk [vmem:[%s582 + $0x8] sm:$0xff] %vm800, %v783
        %803 = vst.msk [vmem:[%s582 + $0x10] sm:$0xff] %vm800, %v787
        %804 = vst.msk [vmem:[%s582 + $0x18] sm:$0xff] %vm800, %v791
        %805 = vst.msk [vmem:[%s582 + $0x20] sm:$0xff] %vm800, %v795
        %806 = vst.msk [vmem:[%s582 + $0x28] sm:$0xff] %vm800, %v799
        %v807 = vmul.f32 %v758, %v758
        %v808 = vmul.f32 %v759, %v759
        %v809 = vmul.f32 %v760, %v760
        %v810 = vmul.f32 %v761, %v761
        %v811 = vmul.f32 %v762, %v762
        %v812 = vmul.f32 %v763, %v763
        %v813 = vmul.f32 %v764, %v764
        %v814 = vmul.f32 %v765, %v765
        %v815 = vmul.f32 %v766, %v766
        %v816 = vmul.f32 %v767, %v767
        %v817 = vmul.f32 %v768, %v768
        %v818 = vmul.f32 %v769, %v769
        %v819 = vmul.f32 %v770, %v770
        %v820 = vmul.f32 %v771, %v771
        %v821 = vmul.f32 %v772, %v772
        %v822 = vmul.f32 %v773, %v773
        %v823 = vmul.f32 %v774, %v774
        %v824 = vmul.f32 %v775, %v775
        %v825 = vadd.f32 %v807, %v808
        %v826 = vadd.f32 %v825, %v809
        %827 = vadd.xlane.f32.xlu0 %v826
        %v828 = vpop.xlane.xlu0 %827
        %v829 = vadd.f32 %v810, %v811
        %v830 = vadd.f32 %v829, %v812
        %831 = vadd.xlane.f32.xlu0 %v830
        %v832 = vpop.xlane.xlu0 %831
        %v833 = vadd.f32 %v813, %v814
        %v834 = vadd.f32 %v833, %v815
        %835 = vadd.xlane.f32.xlu0 %v834
        %v836 = vpop.xlane.xlu0 %835
        %v837 = vadd.f32 %v816, %v817
        %v838 = vadd.f32 %v837, %v818
        %839 = vadd.xlane.f32.xlu0 %v838
        %v840 = vpop.xlane.xlu0 %839
        %v841 = vadd.f32 %v819, %v820
        %v842 = vadd.f32 %v841, %v821
        %843 = vadd.xlane.f32.xlu0 %v842
        %v844 = vpop.xlane.xlu0 %843
        %v845 = vadd.f32 %v822, %v823
        %v846 = vadd.f32 %v845, %v824
        %847 = vadd.xlane.f32.xlu0 %v846
        %v848 = vpop.xlane.xlu0 %847
        %849 = vst.msk [vmem:[%s591] sm:$0xff] %vm800, %v828
        %850 = vst.msk [vmem:[%s591 + $0x8] sm:$0xff] %vm800, %v832
        %851 = vst.msk [vmem:[%s591 + $0x10] sm:$0xff] %vm800, %v836
        %852 = vst.msk [vmem:[%s591 + $0x18] sm:$0xff] %vm800, %v840
        %853 = vst.msk [vmem:[%s591 + $0x20] sm:$0xff] %vm800, %v844
        %854 = vst.msk [vmem:[%s591 + $0x28] sm:$0xff] %vm800, %v848
        %855 = vst [vmem:[%s541] sm:$0xff] %v659
        %856 = vst [vmem:[%s541 + $0x8] sm:$0xff] %v694
        %857 = vst [vmem:[%s541 + $0x10] sm:$0xff] %v729
        %858 = vst [vmem:[%s541 + $0x18] sm:$0xff] %v662
        %859 = vst [vmem:[%s541 + $0x20] sm:$0xff] %v697
        %860 = vst [vmem:[%s541 + $0x28] sm:$0xff] %v732
        %861 = vst [vmem:[%s541 + $0x30] sm:$0xff] %v665
        %862 = vst [vmem:[%s541 + $0x38] sm:$0xff] %v700
        %863 = vst [vmem:[%s541 + $0x40] sm:$0xff] %v735
        %864 = vst [vmem:[%s541 + $0x48] sm:$0xff] %v668
        %865 = vst [vmem:[%s541 + $0x50] sm:$0xff] %v703
        %866 = vst [vmem:[%s541 + $0x58] sm:$0xff] %v738
        %867 = vst [vmem:[%s541 + $0x60] sm:$0xff] %v671
        %868 = vst [vmem:[%s541 + $0x68] sm:$0xff] %v706
        %869 = vst [vmem:[%s541 + $0x70] sm:$0xff] %v741
        %870 = vst [vmem:[%s541 + $0x78] sm:$0xff] %v674
        %871 = vst [vmem:[%s541 + $0x80] sm:$0xff] %v709
        %872 = vst [vmem:[%s541 + $0x88] sm:$0xff] %v744
        %s873 = sand.u32 %s87, 1
        %s874 = sand.u32 %s87, 1
        %s875 = smul.addr %s874, 144
        %s876 = scalar_lea.vmem [#allocation3], %s875
        %p877 = scmp.lt.s32.totalorder %s20, 1
        %s878 = scalar_select %p877, %s20, 1
        %p879 = scmp.lt.s32.totalorder %s21, 2
        %s880 = scalar_select %p879, %s21, 2
        %s881 = smul.addr %s880, 6
        %s882 = smul.addr %s878, 18
        %s883 = sadd.s32 %s881, %s882
        %s884 = smul.addr %s883, 8
        %s885 = scalar_lea.vmem %s3, %s884
        %p886 = scmp.lt.s32.totalorder %s20, 1
        %s887 = scalar_select %p886, %s20, 1
        %p888 = scmp.lt.s32.totalorder %s21, 2
        %s889 = scalar_select %p888, %s21, 2
        %s890 = smul.addr %s889, 6
        %s891 = smul.addr %s887, 18
        %s892 = sadd.s32 %s890, %s891
        %s893 = smul.addr %s892, 8
        %s894 = scalar_lea.vmem %s4, %s893
        // Predicated region
        $region95: #{_lambda_.5} parent=89 // pred_check
          %p895 = pneg %p97
        $region96: #{_lambda_.5} parent=89 // pred_check_branch
          %897 = sbr.rel (%p895) target = $region98
        $region97: #{_lambda_.5} parent=89 // pred_region
          %s898 = smul.u32 3, %s21
          %s899 = ssub.s32 8, %s898
          %p900 = scmp.lt.s32.totalorder %s899, 3
          %s901 = scalar_select %p900, %s899, 3
          %s902 = smul.u32 48, %s901
          %p903 = scmp.ne.s32.totalorder 0, %s902
          %s904 = smul.addr %s20, 48
          %s905 = sadd.s32 %s898, %s904
          %s906 = smul.addr %s905, 8
          %s907 = scalar_lea.vmem %s2, %s906
          %s908 = smul.u32 %s901, 8
          // Predicated region
          $region99: #{_lambda_.5} parent=97 // pred_check
            %p909 = pneg %p903
          $region100: #{_lambda_.5} parent=97 // pred_check_branch
            %911 = sbr.rel (%p909) target = $region102
          $region101: #{_lambda_.5} parent=97 // pred_region
            %p912 = scmp.lt.u32.totalorder %s908, 8
            %p913 = pneg %p912
            // Predicated region
            $region103: #{_lambda_.5} parent=101 // pred_check
              _
            $region104: #{_lambda_.5} parent=101 // pred_check_branch
              %915 = sbr.rel (%p912) target = $region106
            $region105: #{_lambda_.5} parent=101 // pred_region
              %s941 = sand.u32 %s908, 7
              %p942 = scmp.eq.s32.totalorder %s941, 0
              // Predicated region
              $region118: #{_lambda_.5} parent=105 // pred_check
                %p943 = pneg %p942
              $region119: #{_lambda_.5} parent=105 // pred_check_branch
                %945 = sbr.rel (%p943) target = $region121
              $region120: #{_lambda_.5} parent=105 // pred_region
                %s946 = sshrl.u32 %s908, 3
                %s947 = sdiv.u32.pop %s946, 6
                %s948 = srem.u32.pop %s946, 6
                // While loop
                $region122: #{_lambda_.5} parent=120 // loop_pre_header
                  _
                $region123: #{_lambda_.5} parent=120 // loop_header
                  %s950 = sphi 0, %s952
                  %p951 = scmp.ge.s32.totalorder %s950, %s947
                  %s955 = sphi 0, %s1032
                  %s956 = sphi %s876, %s1035
                  %s957 = sphi %s907, %s1036
                $region124: #{_lambda_.5} parent=120 // loop_header_branch
                  %954 = sbr.rel (%p951) target = $region128
                $region125: #{_lambda_.5} parent=120 // loop_body
                  %v958 = vld [vmem:[%s956] sm:$0xff]
                  %959 = vst [vmem:[%s957] sm:$0xff] %v958
                  %v960 = vld [vmem:[%s956 + $0x8] sm:$0xff]
                  %961 = vst [vmem:[%s957 + $0x8] sm:$0xff] %v960
                  %v962 = vld [vmem:[%s956 + $0x10] sm:$0xff]
                  %963 = vst [vmem:[%s957 + $0x10] sm:$0xff] %v962
                  %v964 = vld [vmem:[%s956 + $0x18] sm:$0xff]
                  %965 = vst [vmem:[%s957 + $0x18] sm:$0xff] %v964
                  %v966 = vld [vmem:[%s956 + $0x20] sm:$0xff]
                  %967 = vst [vmem:[%s957 + $0x20] sm:$0xff] %v966
                  %v968 = vld [vmem:[%s956 + $0x28] sm:$0xff]
                  %969 = vst [vmem:[%s957 + $0x28] sm:$0xff] %v968
                  %v970 = vld [vmem:[%s956 + $0x18] sm:$0xff]
                  %971 = vst [vmem:[%s957 + $0x40] sm:$0xff] %v970
                  %v972 = vld [vmem:[%s956 + $0x20] sm:$0xff]
                  %973 = vst [vmem:[%s957 + $0x48] sm:$0xff] %v972
                  %v974 = vld [vmem:[%s956 + $0x28] sm:$0xff]
                  %975 = vst [vmem:[%s957 + $0x50] sm:$0xff] %v974
                  %v976 = vld [vmem:[%s956 + $0x30] sm:$0xff]
                  %977 = vst [vmem:[%s957 + $0x58] sm:$0xff] %v976
                  %v978 = vld [vmem:[%s956 + $0x38] sm:$0xff]
                  %979 = vst [vmem:[%s957 + $0x60] sm:$0xff] %v978
                  %v980 = vld [vmem:[%s956 + $0x40] sm:$0xff]
                  %981 = vst [vmem:[%s957 + $0x68] sm:$0xff] %v980
                  %v982 = vld [vmem:[%s956 + $0x30] sm:$0xff]
                  %983 = vst [vmem:[%s957 + $0x80] sm:$0xff] %v982
                  %v984 = vld [vmem:[%s956 + $0x38] sm:$0xff]
                  %985 = vst [vmem:[%s957 + $0x88] sm:$0xff] %v984
                  %v986 = vld [vmem:[%s956 + $0x40] sm:$0xff]
                  %987 = vst [vmem:[%s957 + $0x90] sm:$0xff] %v986
                  %v988 = vld [vmem:[%s956 + $0x48] sm:$0xff]
                  %989 = vst [vmem:[%s957 + $0x98] sm:$0xff] %v988
                  %v990 = vld [vmem:[%s956 + $0x50] sm:$0xff]
                  %991 = vst [vmem:[%s957 + $0xa0] sm:$0xff] %v990
                  %v992 = vld [vmem:[%s956 + $0x58] sm:$0xff]
                  %993 = vst [vmem:[%s957 + $0xa8] sm:$0xff] %v992
                  %v994 = vld [vmem:[%s956 + $0x48] sm:$0xff]
                  %995 = vst [vmem:[%s957 + $0xc0] sm:$0xff] %v994
                  %v996 = vld [vmem:[%s956 + $0x50] sm:$0xff]
                  %997 = vst [vmem:[%s957 + $0xc8] sm:$0xff] %v996
                  %v998 = vld [vmem:[%s956 + $0x58] sm:$0xff]
                  %999 = vst [vmem:[%s957 + $0xd0] sm:$0xff] %v998
                  %v1000 = vld [vmem:[%s956 + $0x60] sm:$0xff]
                  %1001 = vst [vmem:[%s957 + $0xd8] sm:$0xff] %v1000
                  %v1002 = vld [vmem:[%s956 + $0x68] sm:$0xff]
                  %1003 = vst [vmem:[%s957 + $0xe0] sm:$0xff] %v1002
                  %v1004 = vld [vmem:[%s956 + $0x70] sm:$0xff]
                  %1005 = vst [vmem:[%s957 + $0xe8] sm:$0xff] %v1004
                  %v1006 = vld [vmem:[%s956 + $0x60] sm:$0xff]
                  %1007 = vst [vmem:[%s957 + $0x100] sm:$0xff] %v1006
                  %v1008 = vld [vmem:[%s956 + $0x68] sm:$0xff]
                  %1009 = vst [vmem:[%s957 + $0x108] sm:$0xff] %v1008
                  %v1010 = vld [vmem:[%s956 + $0x70] sm:$0xff]
                  %1011 = vst [vmem:[%s957 + $0x110] sm:$0xff] %v1010
                  %v1012 = vld [vmem:[%s956 + $0x78] sm:$0xff]
                  %1013 = vst [vmem:[%s957 + $0x118] sm:$0xff] %v1012
                  %v1014 = vld [vmem:[%s956 + $0x80] sm:$0xff]
                  %1015 = vst [vmem:[%s957 + $0x120] sm:$0xff] %v1014
                  %v1016 = vld [vmem:[%s956 + $0x88] sm:$0xff]
                  %1017 = vst [vmem:[%s957 + $0x128] sm:$0xff] %v1016
                  %v1018 = vld [vmem:[%s956 + $0x78] sm:$0xff]
                  %1019 = vst [vmem:[%s957 + $0x140] sm:$0xff] %v1018
                  %v1020 = vld [vmem:[%s956 + $0x80] sm:$0xff]
                  %1021 = vst [vmem:[%s957 + $0x148] sm:$0xff] %v1020
                  %v1022 = vld [vmem:[%s956 + $0x88] sm:$0xff]
                  %1023 = vst [vmem:[%s957 + $0x150] sm:$0xff] %v1022
                  %v1024 = vld [vmem:[%s956 + $0x90] sm:$0xff]
                  %1025 = vst [vmem:[%s957 + $0x158] sm:$0xff] %v1024
                  %v1026 = vld [vmem:[%s956 + $0x98] sm:$0xff]
                  %1027 = vst [vmem:[%s957 + $0x160] sm:$0xff] %v1026
                  %v1028 = vld [vmem:[%s956 + $0xa0] sm:$0xff]
                  %1029 = vst [vmem:[%s957 + $0x168] sm:$0xff] %v1028
                  %s1030 = sadd.s32 1, %s955
                  %p1031 = scmp.ge.s32.totalorder %s1030, %s947
                  %s1032 = scalar_select %p1031, 0, %s1030
                  %s1033 = smul.u32 %s1032, 48
                  %s1034 = smul.u32 %s1032, 48
                  %s1035 = scalar_lea.vmem %s876, %s1033 [#allocation3]
                  %s1036 = scalar_lea.vmem %s907, %s1034
                $region126: #{_lambda_.5} parent=120 // loop_footer
                  %s952 = sadd.s32 %s950, 1
                $region127: #{_lambda_.5} parent=120 // loop_footer_branch
                  %949 = sbr.rel target = $region123
                $region128: #{_lambda_.5} parent=120 // loop_exit
                  _
                %s1037 = sdiv.u32.pop %s946, 6
                %s1038 = srem.u32.pop %s946, 6
                %s1039 = smul.u32 %s1037, 6
                %s1040 = smul.u32 8, %s1039
                %s1041 = scalar_lea.vmem %s876, %s1040 [#allocation3]
                %s1042 = smul.u32 8, %s1039
                %s1043 = scalar_lea.vmem %s907, %s1042
                // While loop
                $region129: #{_lambda_.5} parent=120 // loop_pre_header
                  _
                $region130: #{_lambda_.5} parent=120 // loop_header
                  %s1045 = sphi 0, %s1047
                  %p1046 = scmp.ge.s32.totalorder %s1045, %s1038
                  %s1050 = sphi 0, %s1067
                  %s1051 = sphi %s1041, %s1070
                  %s1052 = sphi %s1043, %s1071
                $region131: #{_lambda_.5} parent=120 // loop_header_branch
                  %1049 = sbr.rel (%p1046) target = $region135
                $region132: #{_lambda_.5} parent=120 // loop_body
                  %v1053 = vld [vmem:[%s1051] sm:$0xff]
                  %1054 = vst [vmem:[%s1052] sm:$0xff] %v1053
                  %v1055 = vld [vmem:[%s1051 + $0x18] sm:$0xff]
                  %1056 = vst [vmem:[%s1052 + $0x40] sm:$0xff] %v1055
                  %v1057 = vld [vmem:[%s1051 + $0x30] sm:$0xff]
                  %1058 = vst [vmem:[%s1052 + $0x80] sm:$0xff] %v1057
                  %v1059 = vld [vmem:[%s1051 + $0x48] sm:$0xff]
                  %1060 = vst [vmem:[%s1052 + $0xc0] sm:$0xff] %v1059
                  %v1061 = vld [vmem:[%s1051 + $0x60] sm:$0xff]
                  %1062 = vst [vmem:[%s1052 + $0x100] sm:$0xff] %v1061
                  %v1063 = vld [vmem:[%s1051 + $0x78] sm:$0xff]
                  %1064 = vst [vmem:[%s1052 + $0x140] sm:$0xff] %v1063
                  %s1065 = sadd.s32 1, %s1050
                  %p1066 = scmp.ge.s32.totalorder %s1065, %s1038
                  %s1067 = scalar_select %p1066, 0, %s1065
                  %s1068 = smul.u32 %s1067, 8
                  %s1069 = smul.u32 %s1067, 8
                  %s1070 = scalar_lea.vmem %s1041, %s1068 [#allocation3]
                  %s1071 = scalar_lea.vmem %s1043, %s1069
                $region133: #{_lambda_.5} parent=120 // loop_footer
                  %s1047 = sadd.s32 %s1045, 1
                $region134: #{_lambda_.5} parent=120 // loop_footer_branch
                  %1044 = sbr.rel target = $region130
                $region135: #{_lambda_.5} parent=120 // loop_exit
                  _
              $region121: #{_lambda_.5} parent=105 // pred_fallthru
                _
              %p1072 = pneg %p942
              // Predicated region
              $region136: #{_lambda_.5} parent=105 // pred_check
                _
              $region137: #{_lambda_.5} parent=105 // pred_check_branch
                %1074 = sbr.rel (%p942) target = $region139
              $region138: #{_lambda_.5} parent=105 // pred_region
                %s1075 = sand.u32 %s908, 7
                %s1076 = ssub.s32 %s908, %s1075
                %s1077 = scalar_lea.vmem %s876, %s1076 [#allocation3]
                %s1078 = ssub.s32 %s908, %s1075
                %s1079 = scalar_lea.vmem %s907, %s1078
                %s1080 = sshrl.u32 %s908, 3
                %s1081 = sdiv.u32.pop %s1080, 6
                %s1082 = srem.u32.pop %s1080, 6
                // While loop
                $region140: #{_lambda_.5} parent=138 // loop_pre_header
                  _
                $region141: #{_lambda_.5} parent=138 // loop_header
                  %s1084 = sphi 0, %s1086
                  %p1085 = scmp.ge.s32.totalorder %s1084, %s1081
                  %s1089 = sphi 0, %s1166
                  %s1090 = sphi %s876, %s1169
                  %s1091 = sphi %s907, %s1170
                $region142: #{_lambda_.5} parent=138 // loop_header_branch
                  %1088 = sbr.rel (%p1085) target = $region146
                $region143: #{_lambda_.5} parent=138 // loop_body
                  %v1092 = vld [vmem:[%s1090] sm:$0xff]
                  %1093 = vst [vmem:[%s1091] sm:$0xff] %v1092
                  %v1094 = vld [vmem:[%s1090 + $0x8] sm:$0xff]
                  %1095 = vst [vmem:[%s1091 + $0x8] sm:$0xff] %v1094
                  %v1096 = vld [vmem:[%s1090 + $0x10] sm:$0xff]
                  %1097 = vst [vmem:[%s1091 + $0x10] sm:$0xff] %v1096
                  %v1098 = vld [vmem:[%s1090 + $0x18] sm:$0xff]
                  %1099 = vst [vmem:[%s1091 + $0x18] sm:$0xff] %v1098
                  %v1100 = vld [vmem:[%s1090 + $0x20] sm:$0xff]
                  %1101 = vst [vmem:[%s1091 + $0x20] sm:$0xff] %v1100
                  %v1102 = vld [vmem:[%s1090 + $0x28] sm:$0xff]
                  %1103 = vst [vmem:[%s1091 + $0x28] sm:$0xff] %v1102
                  %v1104 = vld [vmem:[%s1090 + $0x18] sm:$0xff]
                  %1105 = vst [vmem:[%s1091 + $0x40] sm:$0xff] %v1104
                  %v1106 = vld [vmem:[%s1090 + $0x20] sm:$0xff]
                  %1107 = vst [vmem:[%s1091 + $0x48] sm:$0xff] %v1106
                  %v1108 = vld [vmem:[%s1090 + $0x28] sm:$0xff]
                  %1109 = vst [vmem:[%s1091 + $0x50] sm:$0xff] %v1108
                  %v1110 = vld [vmem:[%s1090 + $0x30] sm:$0xff]
                  %1111 = vst [vmem:[%s1091 + $0x58] sm:$0xff] %v1110
                  %v1112 = vld [vmem:[%s1090 + $0x38] sm:$0xff]
                  %1113 = vst [vmem:[%s1091 + $0x60] sm:$0xff] %v1112
                  %v1114 = vld [vmem:[%s1090 + $0x40] sm:$0xff]
                  %1115 = vst [vmem:[%s1091 + $0x68] sm:$0xff] %v1114
                  %v1116 = vld [vmem:[%s1090 + $0x30] sm:$0xff]
                  %1117 = vst [vmem:[%s1091 + $0x80] sm:$0xff] %v1116
                  %v1118 = vld [vmem:[%s1090 + $0x38] sm:$0xff]
                  %1119 = vst [vmem:[%s1091 + $0x88] sm:$0xff] %v1118
                  %v1120 = vld [vmem:[%s1090 + $0x40] sm:$0xff]
                  %1121 = vst [vmem:[%s1091 + $0x90] sm:$0xff] %v1120
                  %v1122 = vld [vmem:[%s1090 + $0x48] sm:$0xff]
                  %1123 = vst [vmem:[%s1091 + $0x98] sm:$0xff] %v1122
                  %v1124 = vld [vmem:[%s1090 + $0x50] sm:$0xff]
                  %1125 = vst [vmem:[%s1091 + $0xa0] sm:$0xff] %v1124
                  %v1126 = vld [vmem:[%s1090 + $0x58] sm:$0xff]
                  %1127 = vst [vmem:[%s1091 + $0xa8] sm:$0xff] %v1126
                  %v1128 = vld [vmem:[%s1090 + $0x48] sm:$0xff]
                  %1129 = vst [vmem:[%s1091 + $0xc0] sm:$0xff] %v1128
                  %v1130 = vld [vmem:[%s1090 + $0x50] sm:$0xff]
                  %1131 = vst [vmem:[%s1091 + $0xc8] sm:$0xff] %v1130
                  %v1132 = vld [vmem:[%s1090 + $0x58] sm:$0xff]
                  %1133 = vst [vmem:[%s1091 + $0xd0] sm:$0xff] %v1132
                  %v1134 = vld [vmem:[%s1090 + $0x60] sm:$0xff]
                  %1135 = vst [vmem:[%s1091 + $0xd8] sm:$0xff] %v1134
                  %v1136 = vld [vmem:[%s1090 + $0x68] sm:$0xff]
                  %1137 = vst [vmem:[%s1091 + $0xe0] sm:$0xff] %v1136
                  %v1138 = vld [vmem:[%s1090 + $0x70] sm:$0xff]
                  %1139 = vst [vmem:[%s1091 + $0xe8] sm:$0xff] %v1138
                  %v1140 = vld [vmem:[%s1090 + $0x60] sm:$0xff]
                  %1141 = vst [vmem:[%s1091 + $0x100] sm:$0xff] %v1140
                  %v1142 = vld [vmem:[%s1090 + $0x68] sm:$0xff]
                  %1143 = vst [vmem:[%s1091 + $0x108] sm:$0xff] %v1142
                  %v1144 = vld [vmem:[%s1090 + $0x70] sm:$0xff]
                  %1145 = vst [vmem:[%s1091 + $0x110] sm:$0xff] %v1144
                  %v1146 = vld [vmem:[%s1090 + $0x78] sm:$0xff]
                  %1147 = vst [vmem:[%s1091 + $0x118] sm:$0xff] %v1146
                  %v1148 = vld [vmem:[%s1090 + $0x80] sm:$0xff]
                  %1149 = vst [vmem:[%s1091 + $0x120] sm:$0xff] %v1148
                  %v1150 = vld [vmem:[%s1090 + $0x88] sm:$0xff]
                  %1151 = vst [vmem:[%s1091 + $0x128] sm:$0xff] %v1150
                  %v1152 = vld [vmem:[%s1090 + $0x78] sm:$0xff]
                  %1153 = vst [vmem:[%s1091 + $0x140] sm:$0xff] %v1152
                  %v1154 = vld [vmem:[%s1090 + $0x80] sm:$0xff]
                  %1155 = vst [vmem:[%s1091 + $0x148] sm:$0xff] %v1154
                  %v1156 = vld [vmem:[%s1090 + $0x88] sm:$0xff]
                  %1157 = vst [vmem:[%s1091 + $0x150] sm:$0xff] %v1156
                  %v1158 = vld [vmem:[%s1090 + $0x90] sm:$0xff]
                  %1159 = vst [vmem:[%s1091 + $0x158] sm:$0xff] %v1158
                  %v1160 = vld [vmem:[%s1090 + $0x98] sm:$0xff]
                  %1161 = vst [vmem:[%s1091 + $0x160] sm:$0xff] %v1160
                  %v1162 = vld [vmem:[%s1090 + $0xa0] sm:$0xff]
                  %1163 = vst [vmem:[%s1091 + $0x168] sm:$0xff] %v1162
                  %s1164 = sadd.s32 1, %s1089
                  %p1165 = scmp.ge.s32.totalorder %s1164, %s1081
                  %s1166 = scalar_select %p1165, 0, %s1164
                  %s1167 = smul.u32 %s1166, 48
                  %s1168 = smul.u32 %s1166, 48
                  %s1169 = scalar_lea.vmem %s876, %s1167 [#allocation3]
                  %s1170 = scalar_lea.vmem %s907, %s1168
                $region144: #{_lambda_.5} parent=138 // loop_footer
                  %s1086 = sadd.s32 %s1084, 1
                $region145: #{_lambda_.5} parent=138 // loop_footer_branch
                  %1083 = sbr.rel target = $region141
                $region146: #{_lambda_.5} parent=138 // loop_exit
                  _
                %s1171 = sdiv.u32.pop %s1080, 6
                %s1172 = srem.u32.pop %s1080, 6
                %s1173 = smul.u32 %s1171, 6
                %s1174 = smul.u32 8, %s1173
                %s1175 = scalar_lea.vmem %s876, %s1174 [#allocation3]
                %s1176 = smul.u32 8, %s1173
                %s1177 = scalar_lea.vmem %s907, %s1176
                // While loop
                $region147: #{_lambda_.5} parent=138 // loop_pre_header
                  _
                $region148: #{_lambda_.5} parent=138 // loop_header
                  %s1179 = sphi 0, %s1181
                  %p1180 = scmp.ge.s32.totalorder %s1179, %s1172
                  %s1184 = sphi 0, %s1201
                  %s1185 = sphi %s1175, %s1204
                  %s1186 = sphi %s1177, %s1205
                $region149: #{_lambda_.5} parent=138 // loop_header_branch
                  %1183 = sbr.rel (%p1180) target = $region153
                $region150: #{_lambda_.5} parent=138 // loop_body
                  %v1187 = vld [vmem:[%s1185] sm:$0xff]
                  %1188 = vst [vmem:[%s1186] sm:$0xff] %v1187
                  %v1189 = vld [vmem:[%s1185 + $0x18] sm:$0xff]
                  %1190 = vst [vmem:[%s1186 + $0x40] sm:$0xff] %v1189
                  %v1191 = vld [vmem:[%s1185 + $0x30] sm:$0xff]
                  %1192 = vst [vmem:[%s1186 + $0x80] sm:$0xff] %v1191
                  %v1193 = vld [vmem:[%s1185 + $0x48] sm:$0xff]
                  %1194 = vst [vmem:[%s1186 + $0xc0] sm:$0xff] %v1193
                  %v1195 = vld [vmem:[%s1185 + $0x60] sm:$0xff]
                  %1196 = vst [vmem:[%s1186 + $0x100] sm:$0xff] %v1195
                  %v1197 = vld [vmem:[%s1185 + $0x78] sm:$0xff]
                  %1198 = vst [vmem:[%s1186 + $0x140] sm:$0xff] %v1197
                  %s1199 = sadd.s32 1, %s1184
                  %p1200 = scmp.ge.s32.totalorder %s1199, %s1172
                  %s1201 = scalar_select %p1200, 0, %s1199
                  %s1202 = smul.u32 %s1201, 8
                  %s1203 = smul.u32 %s1201, 8
                  %s1204 = scalar_lea.vmem %s1175, %s1202 [#allocation3]
                  %s1205 = scalar_lea.vmem %s1177, %s1203
                $region151: #{_lambda_.5} parent=138 // loop_footer
                  %s1181 = sadd.s32 %s1179, 1
                $region152: #{_lambda_.5} parent=138 // loop_footer_branch
                  %1178 = sbr.rel target = $region148
                $region153: #{_lambda_.5} parent=138 // loop_exit
                  _
                %s1206 = sshll.u32 1, %s1075
                %s1207 = ssub.s32 %s1206, 1
                loop: start=0, step=1, limit=1
                $region154: #{_lambda_.5} parent=138 // loop_pre_header
                  _
                $region155: #{_lambda_.5} parent=138 // loop_header
                  %s1209 = sphi 0, %s1213
                  %p1210 = scmp.ge.s32.totalorder %s1209, 1
                  %s1214 = sphi %s1077, %s1077
                  %s1215 = sphi %s1079, %s1079
                $region156: #{_lambda_.5} parent=138 // loop_header_branch
                  %1212 = sbr.rel (%p1210) target = $region160
                $region157: #{_lambda_.5} parent=138 // loop_body
                  %v1216 = vld [vmem:[%s1214] sm:%s1207]
                  %1217 = vst [vmem:[%s1215] sm:%s1207] %v1216
                  %v1218 = vld [vmem:[%s1214 + $0x18] sm:%s1207]
                  %1219 = vst [vmem:[%s1215 + $0x40] sm:%s1207] %v1218
                  %v1220 = vld [vmem:[%s1214 + $0x30] sm:%s1207]
                  %1221 = vst [vmem:[%s1215 + $0x80] sm:%s1207] %v1220
                  %v1222 = vld [vmem:[%s1214 + $0x48] sm:%s1207]
                  %1223 = vst [vmem:[%s1215 + $0xc0] sm:%s1207] %v1222
                  %v1224 = vld [vmem:[%s1214 + $0x60] sm:%s1207]
                  %1225 = vst [vmem:[%s1215 + $0x100] sm:%s1207] %v1224
                  %v1226 = vld [vmem:[%s1214 + $0x78] sm:%s1207]
                  %1227 = vst [vmem:[%s1215 + $0x140] sm:%s1207] %v1226
                $region158: #{_lambda_.5} parent=138 // loop_footer
                  %s1213 = sadd.s32 1, %s1209
                $region159: #{_lambda_.5} parent=138 // loop_footer_branch
                  %1208 = sbr.rel target = $region155
                $region160: #{_lambda_.5} parent=138 // loop_exit
                  _
              $region139: #{_lambda_.5} parent=105 // pred_fallthru
                _
            $region106: #{_lambda_.5} parent=101 // pred_fallthru
              _
            // Predicated region
            $region107: #{_lambda_.5} parent=101 // pred_check
              %p916 = pneg %p912
            $region108: #{_lambda_.5} parent=101 // pred_check_branch
              %918 = sbr.rel (%p916) target = $region110
            $region109: #{_lambda_.5} parent=101 // pred_region
              %s919 = sshll.u32 1, %s908
              %s920 = ssub.s32 %s919, 1
              loop: start=0, step=1, limit=1
              $region111: #{_lambda_.5} parent=109 // loop_pre_header
                _
              $region112: #{_lambda_.5} parent=109 // loop_header
                %s922 = sphi 0, %s926
                %p923 = scmp.ge.s32.totalorder %s922, 1
                %s927 = sphi %s876, %s876
                %s928 = sphi %s907, %s907
              $region113: #{_lambda_.5} parent=109 // loop_header_branch
                %925 = sbr.rel (%p923) target = $region117
              $region114: #{_lambda_.5} parent=109 // loop_body
                %v929 = vld [vmem:[%s927] sm:%s920]
                %930 = vst [vmem:[%s928] sm:%s920] %v929
                %v931 = vld [vmem:[%s927 + $0x18] sm:%s920]
                %932 = vst [vmem:[%s928 + $0x40] sm:%s920] %v931
                %v933 = vld [vmem:[%s927 + $0x30] sm:%s920]
                %934 = vst [vmem:[%s928 + $0x80] sm:%s920] %v933
                %v935 = vld [vmem:[%s927 + $0x48] sm:%s920]
                %936 = vst [vmem:[%s928 + $0xc0] sm:%s920] %v935
                %v937 = vld [vmem:[%s927 + $0x60] sm:%s920]
                %938 = vst [vmem:[%s928 + $0x100] sm:%s920] %v937
                %v939 = vld [vmem:[%s927 + $0x78] sm:%s920]
                %940 = vst [vmem:[%s928 + $0x140] sm:%s920] %v939
              $region115: #{_lambda_.5} parent=109 // loop_footer
                %s926 = sadd.s32 1, %s922
              $region116: #{_lambda_.5} parent=109 // loop_footer_branch
                %921 = sbr.rel target = $region112
              $region117: #{_lambda_.5} parent=109 // loop_exit
                _
            $region110: #{_lambda_.5} parent=101 // pred_fallthru
              _
          $region102: #{_lambda_.5} parent=97 // pred_fallthru
            _
          %1228 = vnop
        $region98: #{_lambda_.5} parent=89 // pred_fallthru
          _
        // Predicated region
        $region161: #{_lambda_.5} parent=89 // pred_check
          %p1229 = pneg %p125
        $region162: #{_lambda_.5} parent=89 // pred_check_branch
          %1231 = sbr.rel (%p1229) target = $region164
        $region163: #{_lambda_.5} parent=89 // pred_region
          _
        $region164: #{_lambda_.5} parent=89 // pred_fallthru
          _
        // Predicated region
        $region165: #{_lambda_.5} parent=89 // pred_check
          %p1232 = pneg %p153
        $region166: #{_lambda_.5} parent=89 // pred_check_branch
          %1234 = sbr.rel (%p1232) target = $region168
        $region167: #{_lambda_.5} parent=89 // pred_region
          _
        $region168: #{_lambda_.5} parent=89 // pred_fallthru
          _
      $region90: #{_lambda_.5} parent=5 // pred_fallthru
        _
      %p1235 = scmp.le.s32.totalorder 2, %s11
      // Predicated region
      $region169: #{_lambda_.5} parent=5 // pred_check
        %p1236 = pneg %p1235
      $region170: #{_lambda_.5} parent=5 // pred_check_branch
        %1238 = sbr.rel (%p1236) target = $region172
      $region171: #{_lambda_.5} parent=5 // pred_region
        %s1239 = ssub.s32 %s11, 2
        // Predicated region
        $region173: #{_lambda_.5} parent=171 // pred_check
          %p1240 = pneg %p103
        $region174: #{_lambda_.5} parent=171 // pred_check_branch
          %1242 = sbr.rel (%p1240) target = $region176
        $region175: #{_lambda_.5} parent=171 // pred_region
          %s1243 = sand.u32 %s88, 1
          %s1244 = sand.u32 %s88, 1
          %s1245 = smul.addr %s1244, 144
          %s1246 = scalar_lea.vmem [#allocation3], %s1245
        $region176: #{_lambda_.5} parent=171 // pred_fallthru
          _
        // Predicated region
        $region177: #{_lambda_.5} parent=171 // pred_check
          %p1247 = pneg %p131
        $region178: #{_lambda_.5} parent=171 // pred_check_branch
          %1249 = sbr.rel (%p1247) target = $region180
        $region179: #{_lambda_.5} parent=171 // pred_region
          %p1250 = scmp.lt.s32.totalorder %s22, 1
          %s1251 = scalar_select %p1250, %s22, 1
          %p1252 = scmp.lt.s32.totalorder %s23, 2
          %s1253 = scalar_select %p1252, %s23, 2
          %s1254 = smul.addr %s1253, 6
          %s1255 = smul.addr %s1251, 18
          %s1256 = sadd.s32 %s1254, %s1255
          %s1257 = smul.addr %s1256, 8
          %s1258 = scalar_lea.vmem %s3, %s1257
        $region180: #{_lambda_.5} parent=171 // pred_fallthru
          _
        // Predicated region
        $region181: #{_lambda_.5} parent=171 // pred_check
          %p1259 = pneg %p159
        $region182: #{_lambda_.5} parent=171 // pred_check_branch
          %1261 = sbr.rel (%p1259) target = $region184
        $region183: #{_lambda_.5} parent=171 // pred_region
          %p1262 = scmp.lt.s32.totalorder %s22, 1
          %s1263 = scalar_select %p1262, %s22, 1
          %p1264 = scmp.lt.s32.totalorder %s23, 2
          %s1265 = scalar_select %p1264, %s23, 2
          %s1266 = smul.addr %s1265, 6
          %s1267 = smul.addr %s1263, 18
          %s1268 = sadd.s32 %s1266, %s1267
          %s1269 = smul.addr %s1268, 8
          %s1270 = scalar_lea.vmem %s4, %s1269
        $region184: #{_lambda_.5} parent=171 // pred_fallthru
          _
      $region172: #{_lambda_.5} parent=5 // pred_fallthru
        _
    $region6: #{_lambda_.5} parent=1 // loop_footer
      %s15 = sadd.s32 1, %s11
    $region7: #{_lambda_.5} parent=1 // loop_footer_branch
      %10 = sbr.rel target = $region3
    $region8: #{_lambda_.5} parent=1 // loop_exit
      _

// kernel: _lambda_.8
$region0: #{_lambda_.8}
  #allocation0 [shape = 'u32[]', space=smem, size = 0x4, offset = 0x4, fixed_abs, tag = 'smem constant byte address 0x4 - core index']
  #allocation1 [shape = 'u32[72,128]{1,0:T(1,128)}', space=vmem, size = 0x9000, scoped, tag = 'internal scratch']
  %s0 = inlined_call_operand.vmem [shape: f32[2,32,1024], index: 0, kind: input, shape index: {}]
  %s1 = inlined_call_operand.vmem [shape: f32[32,1], index: 1, kind: input, shape index: {}]
  %s2 = inlined_call_operand.vmem [shape: f32[32,1], index: 2, kind: input, shape index: {}]
  %s3 = inlined_call_operand.vmem [shape: f32[48,32], index: 3, kind: input, shape index: {}]
  %s4 = inlined_call_operand.vmem [shape: f32[2,48,1024], index: 4, kind: output, shape index: {0}]
  %s5 = inlined_call_operand.vmem [shape: f32[2,3,48,1], index: 5, kind: output, shape index: {1}]
  %s6 = inlined_call_operand.vmem [shape: f32[2,3,48,1], index: 6, kind: output, shape index: {2}]
  %7 = xla_tuple %s4, %s5, %s6
  %s8 = sld [smem:[#allocation0]]
  $region193: #{_lambda_.8} parent=0
    _
  %s10 = ssub.s32 1, %s8
  %s11 = scalar_select 0, %s10, %s8
  $region1: #{_lambda_.8} parent=0
    #allocation2 [shape = 'u8[98304]{0}', space=vmem, size = 0x18000, scoped, tag = 'input window, operand 0']
    #allocation3 [shape = 'u8[147456]{0}', space=vmem, size = 0x24000, scoped, tag = 'output window, operand 0']
    loop: start=0, step=1, limit=8
    $region2: #{_lambda_.8} parent=1 // loop_pre_header
      _
    $region3: #{_lambda_.8} parent=1 // loop_header
      %s13 = sphi 0, %s17
      %p14 = scmp.ge.s32.totalorder %s13, 8
      %s20 = sphi 0, %s32
      %s21 = sphi 0, %s28
      %s22 = sphi 0, %s20
      %s23 = sphi 0, %s21
      %s24 = sphi 0, %s22
      %s25 = sphi 0, %s23
      %s37 = sphi 0, %s39
      %s40 = sphi 0, %s37
      %s41 = sphi 0, %s40
      %s57 = sphi 0, %s41
      %s61 = sphi 0, %s61
      %s63 = sphi 0, %s61
      %s64 = sphi 0, %s63
      %s78 = sphi 0, %s64
      %s82 = sphi 0, %s82
      %s84 = sphi 0, %s82
      %s85 = sphi 0, %s84
      %s99 = sphi 0, %s85
      %s103 = sphi 0, %s103
      %s105 = sphi 0, %s103
      %s106 = sphi 0, %s105
      %s120 = sphi 0, %s106
      %s128 = sphi 0, %s130
      %s131 = sphi 0, %s128
      %s132 = sphi 0, %s131
      %s148 = sphi 0, %s132
      %s156 = sphi 0, %s158
      %s159 = sphi 0, %s156
      %s160 = sphi 0, %s159
      %s176 = sphi 0, %s160
      %s184 = sphi 0, %s186
      %s187 = sphi 0, %s184
      %s188 = sphi 0, %s187
      %s204 = sphi 0, %s188
    $region4: #{_lambda_.8} parent=1 // loop_header_branch
      %16 = sbr.rel (%p14) target = $region8
    $region5: #{_lambda_.8} parent=1 // loop_body
      %s18 = ssub.s32 %s13, 1
      %s19 = ssub.s32 %s13, 2
      %s26 = sadd.s32 1, %s21
      %p27 = scmp.ge.s32.totalorder %s26, 3
      %s28 = scalar_select %p27, 0, %s26
      %s29 = sadd.s32 1, %s20
      %s30 = scalar_select %p27, %s29, %s20
      %p31 = scmp.ge.s32.totalorder %s30, 2
      %s32 = scalar_select %p31, 0, %s30
      %s33 = ssub.s32 %s20, %s32
      %s34 = ssub.s32 %s21, %s28
      %s35 = sor.u32 %s33, %s34
      %p36 = scmp.eq.s32.totalorder %s35, 0
      %s38 = sadd.s32 %s37, 1
      %s39 = scalar_select %p36, %s37, %s38
      %p42 = pneg %p36
      %p43 = scmp.eq.s32.totalorder %s13, 5
      %p44 = por %p42, %p43
      %p45 = scmp.ne.s32.totalorder %s37, %s40
      %p46 = scmp.eq.s32.totalorder %s13, 0
      %p47 = por %p45, %p46
      %p48 = scmp.ne.s32.totalorder %s37, %s40
      %p49 = scmp.eq.s32.totalorder %s18, 5
      %p50 = por %p48, %p49
      %p51 = scmp.ne.s32.totalorder %s40, %s41
      %p52 = scmp.eq.s32.totalorder %s18, 0
      %p53 = por %p51, %p52
      %p54 = scmp.ne.s32.totalorder %s40, %s41
      %p55 = scmp.eq.s32.totalorder %s19, 5
      %p56 = por %p54, %p55
      %p58 = scmp.ne.s32.totalorder %s41, %s57
      %p59 = scmp.eq.s32.totalorder %s19, 0
      %p60 = por %p58, %p59
      %s62 = sadd.s32 %s61, 1
      %p65 = scmp.eq.s32.totalorder %s13, 5
      %p66 = scmp.ne.s32.totalorder %s61, %s63
      %p67 = scmp.eq.s32.totalorder %s13, 0
      %p68 = por %p66, %p67
      %p69 = scmp.ne.s32.totalorder %s61, %s63
      %p70 = scmp.eq.s32.totalorder %s18, 5
      %p71 = por %p69, %p70
      %p72 = scmp.ne.s32.totalorder %s63, %s64
      %p73 = scmp.eq.s32.totalorder %s18, 0
      %p74 = por %p72, %p73
      %p75 = scmp.ne.s32.totalorder %s63, %s64
      %p76 = scmp.eq.s32.totalorder %s19, 5
      %p77 = por %p75, %p76
      %p79 = scmp.ne.s32.totalorder %s64, %s78
      %p80 = scmp.eq.s32.totalorder %s19, 0
      %p81 = por %p79, %p80
      %s83 = sadd.s32 %s82, 1
      %p86 = scmp.eq.s32.totalorder %s13, 5
      %p87 = scmp.ne.s32.totalorder %s82, %s84
      %p88 = scmp.eq.s32.totalorder %s13, 0
      %p89 = por %p87, %p88
      %p90 = scmp.ne.s32.totalorder %s82, %s84
      %p91 = scmp.eq.s32.totalorder %s18, 5
      %p92 = por %p90, %p91
      %p93 = scmp.ne.s32.totalorder %s84, %s85
      %p94 = scmp.eq.s32.totalorder %s18, 0
      %p95 = por %p93, %p94
      %p96 = scmp.ne.s32.totalorder %s84, %s85
      %p97 = scmp.eq.s32.totalorder %s19, 5
      %p98 = por %p96, %p97
      %p100 = scmp.ne.s32.totalorder %s85, %s99
      %p101 = scmp.eq.s32.totalorder %s19, 0
      %p102 = por %p100, %p101
      %s104 = sadd.s32 %s103, 1
      %p107 = scmp.eq.s32.totalorder %s13, 5
      %p108 = scmp.ne.s32.totalorder %s103, %s105
      %p109 = scmp.eq.s32.totalorder %s13, 0
      %p110 = por %p108, %p109
      %p111 = scmp.ne.s32.totalorder %s103, %s105
      %p112 = scmp.eq.s32.totalorder %s18, 5
      %p113 = por %p111, %p112
      %p114 = scmp.ne.s32.totalorder %s105, %s106
      %p115 = scmp.eq.s32.totalorder %s18, 0
      %p116 = por %p114, %p115
      %p117 = scmp.ne.s32.totalorder %s105, %s106
      %p118 = scmp.eq.s32.totalorder %s19, 5
      %p119 = por %p117, %p118
      %p121 = scmp.ne.s32.totalorder %s106, %s120
      %p122 = scmp.eq.s32.totalorder %s19, 0
      %p123 = por %p121, %p122
      %s124 = ssub.s32 %s20, %s32
      %s125 = ssub.s32 %s21, %s28
      %s126 = sor.u32 %s124, %s125
      %p127 = scmp.eq.s32.totalorder %s126, 0
      %s129 = sadd.s32 %s128, 1
      %s130 = scalar_select %p127, %s128, %s129
      %p133 = pneg %p127
      %p134 = scmp.eq.s32.totalorder %s13, 5
      %p135 = por %p133, %p134
      %p136 = scmp.ne.s32.totalorder %s128, %s131
      %p137 = scmp.eq.s32.totalorder %s13, 0
      %p138 = por %p136, %p137
      %p139 = scmp.ne.s32.totalorder %s128, %s131
      %p140 = scmp.eq.s32.totalorder %s18, 5
      %p141 = por %p139, %p140
      %p142 = scmp.ne.s32.totalorder %s131, %s132
      %p143 = scmp.eq.s32.totalorder %s18, 0
      %p144 = por %p142, %p143
      %p145 = scmp.ne.s32.totalorder %s131, %s132
      %p146 = scmp.eq.s32.totalorder %s19, 5
      %p147 = por %p145, %p146
      %p149 = scmp.ne.s32.totalorder %s132, %s148
      %p150 = scmp.eq.s32.totalorder %s19, 0
      %p151 = por %p149, %p150
      %s152 = ssub.s32 %s20, %s32
      %s153 = ssub.s32 %s21, %s28
      %s154 = sor.u32 %s152, %s153
      %p155 = scmp.eq.s32.totalorder %s154, 0
      %s157 = sadd.s32 %s156, 1
      %s158 = scalar_select %p155, %s156, %s157
      %p161 = pneg %p155
      %p162 = scmp.eq.s32.totalorder %s13, 5
      %p163 = por %p161, %p162
      %p164 = scmp.ne.s32.totalorder %s156, %s159
      %p165 = scmp.eq.s32.totalorder %s13, 0
      %p166 = por %p164, %p165
      %p167 = scmp.ne.s32.totalorder %s156, %s159
      %p168 = scmp.eq.s32.totalorder %s18, 5
      %p169 = por %p167, %p168
      %p170 = scmp.ne.s32.totalorder %s159, %s160
      %p171 = scmp.eq.s32.totalorder %s18, 0
      %p172 = por %p170, %p171
      %p173 = scmp.ne.s32.totalorder %s159, %s160
      %p174 = scmp.eq.s32.totalorder %s19, 5
      %p175 = por %p173, %p174
      %p177 = scmp.ne.s32.totalorder %s160, %s176
      %p178 = scmp.eq.s32.totalorder %s19, 0
      %p179 = por %p177, %p178
      %s180 = ssub.s32 %s20, %s32
      %s181 = ssub.s32 %s21, %s28
      %s182 = sor.u32 %s180, %s181
      %p183 = scmp.eq.s32.totalorder %s182, 0
      %s185 = sadd.s32 %s184, 1
      %s186 = scalar_select %p183, %s184, %s185
      %p189 = pneg %p183
      %p190 = scmp.eq.s32.totalorder %s13, 5
      %p191 = por %p189, %p190
      %p192 = scmp.ne.s32.totalorder %s184, %s187
      %p193 = scmp.eq.s32.totalorder %s13, 0
      %p194 = por %p192, %p193
      %p195 = scmp.ne.s32.totalorder %s184, %s187
      %p196 = scmp.eq.s32.totalorder %s18, 5
      %p197 = por %p195, %p196
      %p198 = scmp.ne.s32.totalorder %s187, %s188
      %p199 = scmp.eq.s32.totalorder %s18, 0
      %p200 = por %p198, %p199
      %p201 = scmp.ne.s32.totalorder %s187, %s188
      %p202 = scmp.eq.s32.totalorder %s19, 5
      %p203 = por %p201, %p202
      %p205 = scmp.ne.s32.totalorder %s188, %s204
      %p206 = scmp.eq.s32.totalorder %s19, 0
      %p207 = por %p205, %p206
      %p208 = scmp.le.s32.totalorder 1, %s13
      %p209 = scmp.lt.s32.totalorder %s13, 7
      %p210 = pnand %p208, %p209
      %p211 = pneg %p210
      // Predicated region
      $region9: #{_lambda_.8} parent=5 // pred_check
        _
      $region10: #{_lambda_.8} parent=5 // pred_check_branch
        %213 = sbr.rel (%p210) target = $region12
      $region11: #{_lambda_.8} parent=5 // pred_region
        %s214 = ssub.s32 %s13, 1
        // Predicated region
        $region13: #{_lambda_.8} parent=11 // pred_check
          %p215 = pneg %p74
        $region14: #{_lambda_.8} parent=11 // pred_check_branch
          %217 = sbr.rel (%p215) target = $region16
        $region15: #{_lambda_.8} parent=11 // pred_region
          _
        $region16: #{_lambda_.8} parent=11 // pred_fallthru
          _
        // Predicated region
        $region17: #{_lambda_.8} parent=11 // pred_check
          %p218 = pneg %p95
        $region18: #{_lambda_.8} parent=11 // pred_check_branch
          %220 = sbr.rel (%p218) target = $region20
        $region19: #{_lambda_.8} parent=11 // pred_region
          _
        $region20: #{_lambda_.8} parent=11 // pred_fallthru
          _
        // Predicated region
        $region21: #{_lambda_.8} parent=11 // pred_check
          %p221 = pneg %p116
        $region22: #{_lambda_.8} parent=11 // pred_check_branch
          %223 = sbr.rel (%p221) target = $region24
        $region23: #{_lambda_.8} parent=11 // pred_region
          _
        $region24: #{_lambda_.8} parent=11 // pred_fallthru
          _
      $region12: #{_lambda_.8} parent=5 // pred_fallthru
        _
      %p224 = scmp.lt.s32.totalorder %s13, 6
      // Predicated region
      $region25: #{_lambda_.8} parent=5 // pred_check
        %p225 = pneg %p224
      $region26: #{_lambda_.8} parent=5 // pred_check_branch
        %227 = sbr.rel (%p225) target = $region28
      $region27: #{_lambda_.8} parent=5 // pred_region
        // Predicated region
        $region29: #{_lambda_.8} parent=27 // pred_check
          %p228 = pneg %p47
        $region30: #{_lambda_.8} parent=27 // pred_check_branch
          %230 = sbr.rel (%p228) target = $region32
        $region31: #{_lambda_.8} parent=27 // pred_region
          %s231 = sand.u32 %s37, 1
          %s232 = sand.u32 %s37, 1
          %s233 = smul.addr %s232, 96
          %s234 = scalar_lea.vmem [#allocation2], %s233
          %s235 = smul.u32 3, %s21
          %s236 = ssub.s32 8, %s235
          %p237 = scmp.lt.s32.totalorder %s236, 3
          %s238 = scalar_select %p237, %s236, 3
          %s239 = smul.u32 32, %s238
          %p240 = scmp.ne.s32.totalorder 0, %s239
          %s241 = smul.addr %s20, 32
          %s242 = sadd.s32 %s235, %s241
          %s243 = smul.addr %s242, 8
          %s244 = scalar_lea.vmem %s0, %s243
          %s245 = smul.u32 %s238, 8
          // Predicated region
          $region33: #{_lambda_.8} parent=31 // pred_check
            %p246 = pneg %p240
          $region34: #{_lambda_.8} parent=31 // pred_check_branch
            %248 = sbr.rel (%p246) target = $region36
          $region35: #{_lambda_.8} parent=31 // pred_region
            %p249 = scmp.lt.u32.totalorder %s245, 8
            %p250 = pneg %p249
            // Predicated region
            $region37: #{_lambda_.8} parent=35 // pred_check
              _
            $region38: #{_lambda_.8} parent=35 // pred_check_branch
              %252 = sbr.rel (%p249) target = $region40
            $region39: #{_lambda_.8} parent=35 // pred_region
              %s274 = sand.u32 %s245, 7
              %p275 = scmp.eq.s32.totalorder %s274, 0
              // Predicated region
              $region52: #{_lambda_.8} parent=39 // pred_check
                %p276 = pneg %p275
              $region53: #{_lambda_.8} parent=39 // pred_check_branch
                %278 = sbr.rel (%p276) target = $region55
              $region54: #{_lambda_.8} parent=39 // pred_region
                %s279 = sshrl.u32 %s245, 3
                %s280 = sshrl.u32 %s279, 3
                // While loop
                $region56: #{_lambda_.8} parent=54 // loop_pre_header
                  _
                $region57: #{_lambda_.8} parent=54 // loop_header
                  %s282 = sphi 0, %s284
                  %p283 = scmp.ge.s32.totalorder %s282, %s280
                  %s287 = sphi 0, %s356
                  %s288 = sphi %s244, %s359
                  %s289 = sphi %s234, %s360
                $region58: #{_lambda_.8} parent=54 // loop_header_branch
                  %286 = sbr.rel (%p283) target = $region62
                $region59: #{_lambda_.8} parent=54 // loop_body
                  %v290 = vld [vmem:[%s288] sm:$0xff]
                  %291 = vst [vmem:[%s289] sm:$0xff] %v290
                  %v292 = vld [vmem:[%s288 + $0x8] sm:$0xff]
                  %293 = vst [vmem:[%s289 + $0x8] sm:$0xff] %v292
                  %v294 = vld [vmem:[%s288 + $0x10] sm:$0xff]
                  %295 = vst [vmem:[%s289 + $0x10] sm:$0xff] %v294
                  %v296 = vld [vmem:[%s288 + $0x18] sm:$0xff]
                  %297 = vst [vmem:[%s289 + $0x18] sm:$0xff] %v296
                  %v298 = vld [vmem:[%s288 + $0x20] sm:$0xff]
                  %299 = vst [vmem:[%s289 + $0x20] sm:$0xff] %v298
                  %v300 = vld [vmem:[%s288 + $0x28] sm:$0xff]
                  %301 = vst [vmem:[%s289 + $0x28] sm:$0xff] %v300
                  %v302 = vld [vmem:[%s288 + $0x30] sm:$0xff]
                  %303 = vst [vmem:[%s289 + $0x30] sm:$0xff] %v302
                  %v304 = vld [vmem:[%s288 + $0x38] sm:$0xff]
                  %305 = vst [vmem:[%s289 + $0x38] sm:$0xff] %v304
                  %v306 = vld [vmem:[%s288 + $0x40] sm:$0xff]
                  %307 = vst [vmem:[%s289 + $0x18] sm:$0xff] %v306
                  %v308 = vld [vmem:[%s288 + $0x48] sm:$0xff]
                  %309 = vst [vmem:[%s289 + $0x20] sm:$0xff] %v308
                  %v310 = vld [vmem:[%s288 + $0x50] sm:$0xff]
                  %311 = vst [vmem:[%s289 + $0x28] sm:$0xff] %v310
                  %v312 = vld [vmem:[%s288 + $0x58] sm:$0xff]
                  %313 = vst [vmem:[%s289 + $0x30] sm:$0xff] %v312
                  %v314 = vld [vmem:[%s288 + $0x60] sm:$0xff]
                  %315 = vst [vmem:[%s289 + $0x38] sm:$0xff] %v314
                  %v316 = vld [vmem:[%s288 + $0x68] sm:$0xff]
                  %317 = vst [vmem:[%s289 + $0x40] sm:$0xff] %v316
                  %v318 = vld [vmem:[%s288 + $0x70] sm:$0xff]
                  %319 = vst [vmem:[%s289 + $0x48] sm:$0xff] %v318
                  %v320 = vld [vmem:[%s288 + $0x78] sm:$0xff]
                  %321 = vst [vmem:[%s289 + $0x50] sm:$0xff] %v320
                  %v322 = vld [vmem:[%s288 + $0x80] sm:$0xff]
                  %323 = vst [vmem:[%s289 + $0x30] sm:$0xff] %v322
                  %v324 = vld [vmem:[%s288 + $0x88] sm:$0xff]
                  %325 = vst [vmem:[%s289 + $0x38] sm:$0xff] %v324
                  %v326 = vld [vmem:[%s288 + $0x90] sm:$0xff]
                  %327 = vst [vmem:[%s289 + $0x40] sm:$0xff] %v326
                  %v328 = vld [vmem:[%s288 + $0x98] sm:$0xff]
                  %329 = vst [vmem:[%s289 + $0x48] sm:$0xff] %v328
                  %v330 = vld [vmem:[%s288 + $0xa0] sm:$0xff]
                  %331 = vst [vmem:[%s289 + $0x50] sm:$0xff] %v330
                  %v332 = vld [vmem:[%s288 + $0xa8] sm:$0xff]
                  %333 = vst [vmem:[%s289 + $0x58] sm:$0xff] %v332
                  %v334 = vld [vmem:[%s288 + $0xb0] sm:$0xff]
                  %335 = vst [vmem:[%s289 + $0x60] sm:$0xff] %v334
                  %v336 = vld [vmem:[%s288 + $0xb8] sm:$0xff]
                  %337 = vst [vmem:[%s289 + $0x68] sm:$0xff] %v336
                  %v338 = vld [vmem:[%s288 + $0xc0] sm:$0xff]
                  %339 = vst [vmem:[%s289 + $0x48] sm:$0xff] %v338
                  %v340 = vld [vmem:[%s288 + $0xc8] sm:$0xff]
                  %341 = vst [vmem:[%s289 + $0x50] sm:$0xff] %v340
                  %v342 = vld [vmem:[%s288 + $0xd0] sm:$0xff]
                  %343 = vst [vmem:[%s289 + $0x58] sm:$0xff] %v342
                  %v344 = vld [vmem:[%s288 + $0xd8] sm:$0xff]
                  %345 = vst [vmem:[%s289 + $0x60] sm:$0xff] %v344
                  %v346 = vld [vmem:[%s288 + $0xe0] sm:$0xff]
                  %347 = vst [vmem:[%s289 + $0x68] sm:$0xff] %v346
                  %v348 = vld [vmem:[%s288 + $0xe8] sm:$0xff]
                  %349 = vst [vmem:[%s289 + $0x70] sm:$0xff] %v348
                  %v350 = vld [vmem:[%s288 + $0xf0] sm:$0xff]
                  %351 = vst [vmem:[%s289 + $0x78] sm:$0xff] %v350
                  %v352 = vld [vmem:[%s288 + $0xf8] sm:$0xff]
                  %353 = vst [vmem:[%s289 + $0x80] sm:$0xff] %v352
                  %s354 = sadd.s32 1, %s287
                  %p355 = scmp.ge.s32.totalorder %s354, %s280
                  %s356 = scalar_select %p355, 0, %s354
                  %s357 = smul.u32 %s356, 64
                  %s358 = smul.u32 %s356, 64
                  %s359 = scalar_lea.vmem %s244, %s357
                  %s360 = scalar_lea.vmem %s234, %s358 [#allocation2]
                $region60: #{_lambda_.8} parent=54 // loop_footer
                  %s284 = sadd.s32 %s282, 1
                $region61: #{_lambda_.8} parent=54 // loop_footer_branch
                  %281 = sbr.rel target = $region57
                $region62: #{_lambda_.8} parent=54 // loop_exit
                  _
                %s361 = sshrl.u32 %s279, 3
                %s362 = sand.u32 %s279, 7
                %s363 = smul.u32 %s361, 8
                %s364 = smul.u32 8, %s363
                %s365 = scalar_lea.vmem %s244, %s364
                %s366 = smul.u32 8, %s363
                %s367 = scalar_lea.vmem %s234, %s366 [#allocation2]
                // While loop
                $region63: #{_lambda_.8} parent=54 // loop_pre_header
                  _
                $region64: #{_lambda_.8} parent=54 // loop_header
                  %s369 = sphi 0, %s371
                  %p370 = scmp.ge.s32.totalorder %s369, %s362
                  %s374 = sphi 0, %s387
                  %s375 = sphi %s365, %s390
                  %s376 = sphi %s367, %s391
                $region65: #{_lambda_.8} parent=54 // loop_header_branch
                  %373 = sbr.rel (%p370) target = $region69
                $region66: #{_lambda_.8} parent=54 // loop_body
                  %v377 = vld [vmem:[%s375] sm:$0xff]
                  %378 = vst [vmem:[%s376] sm:$0xff] %v377
                  %v379 = vld [vmem:[%s375 + $0x40] sm:$0xff]
                  %380 = vst [vmem:[%s376 + $0x18] sm:$0xff] %v379
                  %v381 = vld [vmem:[%s375 + $0x80] sm:$0xff]
                  %382 = vst [vmem:[%s376 + $0x30] sm:$0xff] %v381
                  %v383 = vld [vmem:[%s375 + $0xc0] sm:$0xff]
                  %384 = vst [vmem:[%s376 + $0x48] sm:$0xff] %v383
                  %s385 = sadd.s32 1, %s374
                  %p386 = scmp.ge.s32.totalorder %s385, %s362
                  %s387 = scalar_select %p386, 0, %s385
                  %s388 = smul.u32 %s387, 8
                  %s389 = smul.u32 %s387, 8
                  %s390 = scalar_lea.vmem %s365, %s388
                  %s391 = scalar_lea.vmem %s367, %s389 [#allocation2]
                $region67: #{_lambda_.8} parent=54 // loop_footer
                  %s371 = sadd.s32 %s369, 1
                $region68: #{_lambda_.8} parent=54 // loop_footer_branch
                  %368 = sbr.rel target = $region64
                $region69: #{_lambda_.8} parent=54 // loop_exit
                  _
              $region55: #{_lambda_.8} parent=39 // pred_fallthru
                _
              %p392 = pneg %p275
              // Predicated region
              $region70: #{_lambda_.8} parent=39 // pred_check
                _
              $region71: #{_lambda_.8} parent=39 // pred_check_branch
                %394 = sbr.rel (%p275) target = $region73
              $region72: #{_lambda_.8} parent=39 // pred_region
                %s395 = sand.u32 %s245, 7
                %s396 = ssub.s32 %s245, %s395
                %s397 = scalar_lea.vmem %s244, %s396
                %s398 = ssub.s32 %s245, %s395
                %s399 = scalar_lea.vmem %s234, %s398 [#allocation2]
                %s400 = sshrl.u32 %s245, 3
                %s401 = sshrl.u32 %s400, 3
                // While loop
                $region74: #{_lambda_.8} parent=72 // loop_pre_header
                  _
                $region75: #{_lambda_.8} parent=72 // loop_header
                  %s403 = sphi 0, %s405
                  %p404 = scmp.ge.s32.totalorder %s403, %s401
                  %s408 = sphi 0, %s477
                  %s409 = sphi %s244, %s480
                  %s410 = sphi %s234, %s481
                $region76: #{_lambda_.8} parent=72 // loop_header_branch
                  %407 = sbr.rel (%p404) target = $region80
                $region77: #{_lambda_.8} parent=72 // loop_body
                  %v411 = vld [vmem:[%s409] sm:$0xff]
                  %412 = vst [vmem:[%s410] sm:$0xff] %v411
                  %v413 = vld [vmem:[%s409 + $0x8] sm:$0xff]
                  %414 = vst [vmem:[%s410 + $0x8] sm:$0xff] %v413
                  %v415 = vld [vmem:[%s409 + $0x10] sm:$0xff]
                  %416 = vst [vmem:[%s410 + $0x10] sm:$0xff] %v415
                  %v417 = vld [vmem:[%s409 + $0x18] sm:$0xff]
                  %418 = vst [vmem:[%s410 + $0x18] sm:$0xff] %v417
                  %v419 = vld [vmem:[%s409 + $0x20] sm:$0xff]
                  %420 = vst [vmem:[%s410 + $0x20] sm:$0xff] %v419
                  %v421 = vld [vmem:[%s409 + $0x28] sm:$0xff]
                  %422 = vst [vmem:[%s410 + $0x28] sm:$0xff] %v421
                  %v423 = vld [vmem:[%s409 + $0x30] sm:$0xff]
                  %424 = vst [vmem:[%s410 + $0x30] sm:$0xff] %v423
                  %v425 = vld [vmem:[%s409 + $0x38] sm:$0xff]
                  %426 = vst [vmem:[%s410 + $0x38] sm:$0xff] %v425
                  %v427 = vld [vmem:[%s409 + $0x40] sm:$0xff]
                  %428 = vst [vmem:[%s410 + $0x18] sm:$0xff] %v427
                  %v429 = vld [vmem:[%s409 + $0x48] sm:$0xff]
                  %430 = vst [vmem:[%s410 + $0x20] sm:$0xff] %v429
                  %v431 = vld [vmem:[%s409 + $0x50] sm:$0xff]
                  %432 = vst [vmem:[%s410 + $0x28] sm:$0xff] %v431
                  %v433 = vld [vmem:[%s409 + $0x58] sm:$0xff]
                  %434 = vst [vmem:[%s410 + $0x30] sm:$0xff] %v433
                  %v435 = vld [vmem:[%s409 + $0x60] sm:$0xff]
                  %436 = vst [vmem:[%s410 + $0x38] sm:$0xff] %v435
                  %v437 = vld [vmem:[%s409 + $0x68] sm:$0xff]
                  %438 = vst [vmem:[%s410 + $0x40] sm:$0xff] %v437
                  %v439 = vld [vmem:[%s409 + $0x70] sm:$0xff]
                  %440 = vst [vmem:[%s410 + $0x48] sm:$0xff] %v439
                  %v441 = vld [vmem:[%s409 + $0x78] sm:$0xff]
                  %442 = vst [vmem:[%s410 + $0x50] sm:$0xff] %v441
                  %v443 = vld [vmem:[%s409 + $0x80] sm:$0xff]
                  %444 = vst [vmem:[%s410 + $0x30] sm:$0xff] %v443
                  %v445 = vld [vmem:[%s409 + $0x88] sm:$0xff]
                  %446 = vst [vmem:[%s410 + $0x38] sm:$0xff] %v445
                  %v447 = vld [vmem:[%s409 + $0x90] sm:$0xff]
                  %448 = vst [vmem:[%s410 + $0x40] sm:$0xff] %v447
                  %v449 = vld [vmem:[%s409 + $0x98] sm:$0xff]
                  %450 = vst [vmem:[%s410 + $0x48] sm:$0xff] %v449
                  %v451 = vld [vmem:[%s409 + $0xa0] sm:$0xff]
                  %452 = vst [vmem:[%s410 + $0x50] sm:$0xff] %v451
                  %v453 = vld [vmem:[%s409 + $0xa8] sm:$0xff]
                  %454 = vst [vmem:[%s410 + $0x58] sm:$0xff] %v453
                  %v455 = vld [vmem:[%s409 + $0xb0] sm:$0xff]
                  %456 = vst [vmem:[%s410 + $0x60] sm:$0xff] %v455
                  %v457 = vld [vmem:[%s409 + $0xb8] sm:$0xff]
                  %458 = vst [vmem:[%s410 + $0x68] sm:$0xff] %v457
                  %v459 = vld [vmem:[%s409 + $0xc0] sm:$0xff]
                  %460 = vst [vmem:[%s410 + $0x48] sm:$0xff] %v459
                  %v461 = vld [vmem:[%s409 + $0xc8] sm:$0xff]
                  %462 = vst [vmem:[%s410 + $0x50] sm:$0xff] %v461
                  %v463 = vld [vmem:[%s409 + $0xd0] sm:$0xff]
                  %464 = vst [vmem:[%s410 + $0x58] sm:$0xff] %v463
                  %v465 = vld [vmem:[%s409 + $0xd8] sm:$0xff]
                  %466 = vst [vmem:[%s410 + $0x60] sm:$0xff] %v465
                  %v467 = vld [vmem:[%s409 + $0xe0] sm:$0xff]
                  %468 = vst [vmem:[%s410 + $0x68] sm:$0xff] %v467
                  %v469 = vld [vmem:[%s409 + $0xe8] sm:$0xff]
                  %470 = vst [vmem:[%s410 + $0x70] sm:$0xff] %v469
                  %v471 = vld [vmem:[%s409 + $0xf0] sm:$0xff]
                  %472 = vst [vmem:[%s410 + $0x78] sm:$0xff] %v471
                  %v473 = vld [vmem:[%s409 + $0xf8] sm:$0xff]
                  %474 = vst [vmem:[%s410 + $0x80] sm:$0xff] %v473
                  %s475 = sadd.s32 1, %s408
                  %p476 = scmp.ge.s32.totalorder %s475, %s401
                  %s477 = scalar_select %p476, 0, %s475
                  %s478 = smul.u32 %s477, 64
                  %s479 = smul.u32 %s477, 64
                  %s480 = scalar_lea.vmem %s244, %s478
                  %s481 = scalar_lea.vmem %s234, %s479 [#allocation2]
                $region78: #{_lambda_.8} parent=72 // loop_footer
                  %s405 = sadd.s32 %s403, 1
                $region79: #{_lambda_.8} parent=72 // loop_footer_branch
                  %402 = sbr.rel target = $region75
                $region80: #{_lambda_.8} parent=72 // loop_exit
                  _
                %s482 = sshrl.u32 %s400, 3
                %s483 = sand.u32 %s400, 7
                %s484 = smul.u32 %s482, 8
                %s485 = smul.u32 8, %s484
                %s486 = scalar_lea.vmem %s244, %s485
                %s487 = smul.u32 8, %s484
                %s488 = scalar_lea.vmem %s234, %s487 [#allocation2]
                // While loop
                $region81: #{_lambda_.8} parent=72 // loop_pre_header
                  _
                $region82: #{_lambda_.8} parent=72 // loop_header
                  %s490 = sphi 0, %s492
                  %p491 = scmp.ge.s32.totalorder %s490, %s483
                  %s495 = sphi 0, %s508
                  %s496 = sphi %s486, %s511
                  %s497 = sphi %s488, %s512
                $region83: #{_lambda_.8} parent=72 // loop_header_branch
                  %494 = sbr.rel (%p491) target = $region87
                $region84: #{_lambda_.8} parent=72 // loop_body
                  %v498 = vld [vmem:[%s496] sm:$0xff]
                  %499 = vst [vmem:[%s497] sm:$0xff] %v498
                  %v500 = vld [vmem:[%s496 + $0x40] sm:$0xff]
                  %501 = vst [vmem:[%s497 + $0x18] sm:$0xff] %v500
                  %v502 = vld [vmem:[%s496 + $0x80] sm:$0xff]
                  %503 = vst [vmem:[%s497 + $0x30] sm:$0xff] %v502
                  %v504 = vld [vmem:[%s496 + $0xc0] sm:$0xff]
                  %505 = vst [vmem:[%s497 + $0x48] sm:$0xff] %v504
                  %s506 = sadd.s32 1, %s495
                  %p507 = scmp.ge.s32.totalorder %s506, %s483
                  %s508 = scalar_select %p507, 0, %s506
                  %s509 = smul.u32 %s508, 8
                  %s510 = smul.u32 %s508, 8
                  %s511 = scalar_lea.vmem %s486, %s509
                  %s512 = scalar_lea.vmem %s488, %s510 [#allocation2]
                $region85: #{_lambda_.8} parent=72 // loop_footer
                  %s492 = sadd.s32 %s490, 1
                $region86: #{_lambda_.8} parent=72 // loop_footer_branch
                  %489 = sbr.rel target = $region82
                $region87: #{_lambda_.8} parent=72 // loop_exit
                  _
                %s513 = sshll.u32 1, %s395
                %s514 = ssub.s32 %s513, 1
                loop: start=0, step=1, limit=1
                $region88: #{_lambda_.8} parent=72 // loop_pre_header
                  _
                $region89: #{_lambda_.8} parent=72 // loop_header
                  %s516 = sphi 0, %s520
                  %p517 = scmp.ge.s32.totalorder %s516, 1
                  %s521 = sphi %s397, %s397
                  %s522 = sphi %s399, %s399
                $region90: #{_lambda_.8} parent=72 // loop_header_branch
                  %519 = sbr.rel (%p517) target = $region94
                $region91: #{_lambda_.8} parent=72 // loop_body
                  %v523 = vld [vmem:[%s521] sm:%s514]
                  %524 = vst [vmem:[%s522] sm:%s514] %v523
                  %v525 = vld [vmem:[%s521 + $0x40] sm:%s514]
                  %526 = vst [vmem:[%s522 + $0x18] sm:%s514] %v525
                  %v527 = vld [vmem:[%s521 + $0x80] sm:%s514]
                  %528 = vst [vmem:[%s522 + $0x30] sm:%s514] %v527
                  %v529 = vld [vmem:[%s521 + $0xc0] sm:%s514]
                  %530 = vst [vmem:[%s522 + $0x48] sm:%s514] %v529
                $region92: #{_lambda_.8} parent=72 // loop_footer
                  %s520 = sadd.s32 1, %s516
                $region93: #{_lambda_.8} parent=72 // loop_footer_branch
                  %515 = sbr.rel target = $region89
                $region94: #{_lambda_.8} parent=72 // loop_exit
                  _
              $region73: #{_lambda_.8} parent=39 // pred_fallthru
                _
            $region40: #{_lambda_.8} parent=35 // pred_fallthru
              _
            // Predicated region
            $region41: #{_lambda_.8} parent=35 // pred_check
              %p253 = pneg %p249
            $region42: #{_lambda_.8} parent=35 // pred_check_branch
              %255 = sbr.rel (%p253) target = $region44
            $region43: #{_lambda_.8} parent=35 // pred_region
              %s256 = sshll.u32 1, %s245
              %s257 = ssub.s32 %s256, 1
              loop: start=0, step=1, limit=1
              $region45: #{_lambda_.8} parent=43 // loop_pre_header
                _
              $region46: #{_lambda_.8} parent=43 // loop_header
                %s259 = sphi 0, %s263
                %p260 = scmp.ge.s32.totalorder %s259, 1
                %s264 = sphi %s244, %s244
                %s265 = sphi %s234, %s234
              $region47: #{_lambda_.8} parent=43 // loop_header_branch
                %262 = sbr.rel (%p260) target = $region51
              $region48: #{_lambda_.8} parent=43 // loop_body
                %v266 = vld [vmem:[%s264] sm:%s257]
                %267 = vst [vmem:[%s265] sm:%s257] %v266
                %v268 = vld [vmem:[%s264 + $0x40] sm:%s257]
                %269 = vst [vmem:[%s265 + $0x18] sm:%s257] %v268
                %v270 = vld [vmem:[%s264 + $0x80] sm:%s257]
                %271 = vst [vmem:[%s265 + $0x30] sm:%s257] %v270
                %v272 = vld [vmem:[%s264 + $0xc0] sm:%s257]
                %273 = vst [vmem:[%s265 + $0x48] sm:%s257] %v272
              $region49: #{_lambda_.8} parent=43 // loop_footer
                %s263 = sadd.s32 1, %s259
              $region50: #{_lambda_.8} parent=43 // loop_footer_branch
                %258 = sbr.rel target = $region46
              $region51: #{_lambda_.8} parent=43 // loop_exit
                _
            $region44: #{_lambda_.8} parent=35 // pred_fallthru
              _
          $region36: #{_lambda_.8} parent=31 // pred_fallthru
            _
          %531 = vnop
        $region32: #{_lambda_.8} parent=27 // pred_fallthru
          _
      $region28: #{_lambda_.8} parent=5 // pred_fallthru
        _
      %p532 = scmp.le.s32.totalorder 1, %s13
      %p533 = scmp.lt.s32.totalorder %s13, 7
      %p534 = pnand %p532, %p533
      %p535 = pneg %p534
      // Predicated region
      $region95: #{_lambda_.8} parent=5 // pred_check
        _
      $region96: #{_lambda_.8} parent=5 // pred_check_branch
        %537 = sbr.rel (%p534) target = $region98
      $region97: #{_lambda_.8} parent=5 // pred_region
        %s538 = ssub.s32 %s13, 1
        %s539 = sand.u32 %s40, 1
        %s540 = sand.u32 %s40, 1
        %s541 = smul.addr %s540, 96
        %s542 = scalar_lea.vmem [#allocation2], %s541
        // Predicated region
        $region99: #{_lambda_.8} parent=97 // pred_check
          %p543 = pneg %p53
        $region100: #{_lambda_.8} parent=97 // pred_check_branch
          %545 = sbr.rel (%p543) target = $region102
        $region101: #{_lambda_.8} parent=97 // pred_region
          _
        $region102: #{_lambda_.8} parent=97 // pred_fallthru
          _
        %s546 = sand.u32 %s40, 1
        %s547 = sand.u32 %s40, 1
        %s548 = smul.addr %s547, 96
        %s549 = scalar_lea.vmem [#allocation2], %s548
        %p550 = pneg %p53
        %p551 = pneg %p50
        %p552 = pneg %p74
        %p553 = pneg %p71
        %p554 = pneg %p95
        %p555 = pneg %p92
        %p556 = pneg %p116
        %p557 = pneg %p113
        %p558 = pneg %p144
        %p559 = pneg %p141
        %s560 = sand.u32 %s131, 1
        %s561 = sand.u32 %s131, 1
        %s562 = smul.addr %s561, 144
        %s563 = scalar_lea.vmem [#allocation3], %s562
        %p564 = pneg %p172
        %p565 = pneg %p169
        %p566 = scmp.lt.s32.totalorder %s22, 1
        %s567 = scalar_select %p566, %s22, 1
        %p568 = scmp.lt.s32.totalorder %s23, 2
        %s569 = scalar_select %p568, %s23, 2
        %s570 = smul.addr %s569, 6
        %s571 = smul.addr %s567, 18
        %s572 = sadd.s32 %s570, %s571
        %s573 = smul.addr %s572, 8
        %s574 = scalar_lea.vmem %s5, %s573
        %p575 = pneg %p200
        %p576 = pneg %p197
        %p577 = scmp.lt.s32.totalorder %s22, 1
        %s578 = scalar_select %p577, %s22, 1
        %p579 = scmp.lt.s32.totalorder %s23, 2
        %s580 = scalar_select %p579, %s23, 2
        %s581 = smul.addr %s580, 6
        %s582 = smul.addr %s578, 18
        %s583 = sadd.s32 %s581, %s582
        %s584 = smul.addr %s583, 8
        %s585 = scalar_lea.vmem %s6, %s584
        %s586 = smul.u32 3, %s23
        %s587 = ssub.s32 8, %s586
        %p588 = scmp.lt.s32.totalorder %s587, 3
        %s589 = scalar_select %p588, %s587, 3
        %s590 = smul.u32 32, %s589
        %s591 = smul.u32 3, %s23
        %s592 = ssub.s32 8, %s591
        %p593 = scmp.lt.s32.totalorder %s592, 3
        %s594 = scalar_select %p593, %s592, 3
        %s595 = smul.u32 48, %s594
        %p596 = scmp.lt.s32.totalorder %s22, 1
        %s597 = scalar_select %p596, %s22, 1
        %p598 = scmp.lt.s32.totalorder %s23, 2
        %s599 = scalar_select %p598, %s23, 2
        %s600 = smul.addr %s599, 6
        %s601 = smul.addr %s597, 18
        %s602 = sadd.s32 %s600, %s601
        %s603 = smul.addr %s602, 8
        %s604 = scalar_lea.vmem %s5, %s603
        %p605 = scmp.lt.s32.totalorder %s22, 1
        %s606 = scalar_select %p605, %s22, 1
        %p607 = scmp.lt.s32.totalorder %s23, 2
        %s608 = scalar_select %p607, %s23, 2
        %s609 = smul.addr %s608, 6
        %s610 = smul.addr %s606, 18
        %s611 = sadd.s32 %s609, %s610
        %s612 = smul.addr %s611, 8
        %s613 = scalar_lea.vmem %s6, %s612
        %v614 = vld [vmem:[%s542] sm:$0xff]
        %v615 = vld [vmem:[%s542 + $0x8] sm:$0xff]
        %v616 = vld [vmem:[%s542 + $0x10] sm:$0xff]
        %v617 = vld [vmem:[%s542 + $0x18] sm:$0xff]
        %v618 = vld [vmem:[%s542 + $0x20] sm:$0xff]
        %v619 = vld [vmem:[%s542 + $0x28] sm:$0xff]
        %v620 = vld [vmem:[%s542 + $0x30] sm:$0xff]
        %v621 = vld [vmem:[%s542 + $0x38] sm:$0xff]
        %v622 = vld [vmem:[%s542 + $0x40] sm:$0xff]
        %v623 = vld [vmem:[%s542 + $0x48] sm:$0xff]
        %v624 = vld [vmem:[%s542 + $0x50] sm:$0xff]
        %v625 = vld [vmem:[%s542 + $0x58] sm:$0xff]
        %v626 = vld [vmem:[%s1] sm:$0xff]
        %v627 = vld [vmem:[%s1 + $0x8] sm:$0xff]
        %v628 = vld [vmem:[%s1 + $0x10] sm:$0xff]
        %v629 = vld [vmem:[%s1 + $0x18] sm:$0xff]
        %631 = vset.pattern.permute.xlu0 0
        %632 = vperm.xlu0 %631, %v626
        %v633 = vpop.permute.xlu0 %632
        %636 = vset.pattern.permute.xlu0 0
        %637 = vperm.xlu0 %636, %v627
        %v638 = vpop.permute.xlu0 %637
        %641 = vset.pattern.permute.xlu0 0
        %642 = vperm.xlu0 %641, %v628
        %v643 = vpop.permute.xlu0 %642
        %646 = vset.pattern.permute.xlu0 0
        %647 = vperm.xlu0 %646, %v629
        %v648 = vpop.permute.xlu0 %647
        %v650 = vmul.f32 %v614, %v633
        %v651 = vmul.f32 %v615, %v633
        %v652 = vmul.f32 %v616, %v633
        %v653 = vmul.f32 %v617, %v638
        %v654 = vmul.f32 %v618, %v638
        %v655 = vmul.f32 %v619, %v638
        %v656 = vmul.f32 %v620, %v643
        %v657 = vmul.f32 %v621, %v643
        %v658 = vmul.f32 %v622, %v643
        %v659 = vmul.f32 %v623, %v648
        %v660 = vmul.f32 %v624, %v648
        %v661 = vmul.f32 %v625, %v648
        %v662 = vld [vmem:[%s2] sm:$0xff]
        %v663 = vld [vmem:[%s2 + $0x8] sm:$0xff]
        %v664 = vld [vmem:[%s2 + $0x10] sm:$0xff]
        %v665 = vld [vmem:[%s2 + $0x18] sm:$0xff]
        %667 = vset.pattern.permute.xlu0 0
        %668 = vperm.xlu0 %667, %v662
        %v669 = vpop.permute.xlu0 %668
        %672 = vset.pattern.permute.xlu0 0
        %673 = vperm.xlu0 %672, %v663
        %v674 = vpop.permute.xlu0 %673
        %677 = vset.pattern.permute.xlu0 0
        %678 = vperm.xlu0 %677, %v664
        %v679 = vpop.permute.xlu0 %678
        %682 = vset.pattern.permute.xlu0 0
        %683 = vperm.xlu0 %682, %v665
        %v684 = vpop.permute.xlu0 %683
        %v686 = vadd.f32 %v650, %v669
        %v687 = vadd.f32 %v651, %v669
        %v688 = vadd.f32 %v652, %v669
        %v689 = vadd.f32 %v653, %v674
        %v690 = vadd.f32 %v654, %v674
        %v691 = vadd.f32 %v655, %v674
        %v692 = vadd.f32 %v656, %v679
        %v693 = vadd.f32 %v657, %v679
        %v694 = vadd.f32 %v658, %v679
        %v695 = vadd.f32 %v659, %v684
        %v696 = vadd.f32 %v660, %v684
        %v697 = vadd.f32 %v661, %v684
        %v698 = vmax.f32 %v686, 0.0
        %v699 = vmax.f32 %v687, 0.0
        %v700 = vmax.f32 %v688, 0.0
        %v701 = vmax.f32 %v689, 0.0
        %v702 = vmax.f32 %v690, 0.0
        %v703 = vmax.f32 %v691, 0.0
        %v704 = vmax.f32 %v692, 0.0
        %v705 = vmax.f32 %v693, 0.0
        %v706 = vmax.f32 %v694, 0.0
        %v707 = vmax.f32 %v695, 0.0
        %v708 = vmax.f32 %v696, 0.0
        %v709 = vmax.f32 %v697, 0.0
        %v710 = vld [vmem:[%s3] sm:$0xff]
        %v711 = vld [vmem:[%s3 + $0x8] sm:$0xff]
        %v712 = vld [vmem:[%s3 + $0x10] sm:$0xff]
        %v713 = vld [vmem:[%s3 + $0x18] sm:$0xff]
        %v714 = vld [vmem:[%s3 + $0x20] sm:$0xff]
        %v715 = vld [vmem:[%s3 + $0x28] sm:$0xff]
        %vm716 = vcmask 261120
        %v718 = vsel %vm716, %v710, 0
        %v721 = vsel %vm716, %v711, 0
        %v724 = vsel %vm716, %v712, 0
        %v727 = vsel %vm716, %v713, 0
        %v730 = vsel %vm716, %v714, 0
        %v733 = vsel %vm716, %v715, 0
        %735 = vmatpush.msra.mxu0 0.0
        %736 = vmatpush.msra.mxu0 0.0
        %737 = vmatpush.msra.mxu0 0.0
        %738 = vmatpush.msra.mxu0 0.0
        %739 = vmatpush.msra.mxu0 0.0
        %740 = vmatpush.msra.mxu0 0.0
        %741 = vmatpush.msra.mxu0 0.0
        %742 = vmatpush.msra.mxu0 0.0
        %743 = vmatpush.msra.mxu0 0.0
        %744 = vmatpush.msra.mxu0 0.0
        %745 = vmatpush.msra.mxu0 0.0
        %746 = vmatpush.msra.mxu0 0.0
        %747 = vmatpush.msra.mxu0 %v707
        %748 = vmatpush.msra.mxu0 %v704
        %749 = vmatpush.msra.mxu0 %v701
        %750 = vmatpush.msra.mxu0 %v698
        %751 = vmatmul.f32.gmra.mxu0 %v718
        %v752 = vpop.f32.mrf.mxu0
        %v753 = vadd.f32 0.0, %v752
        %754 = vmatmul.f32.gmra.mxu0 %v721
        %v755 = vpop.f32.mrf.mxu0
        %v756 = vadd.f32 0.0, %v755
        %757 = vmatmul.f32.gmra.mxu0 %v724
        %v758 = vpop.f32.mrf.mxu0
        %v759 = vadd.f32 0.0, %v758
        %760 = vmatmul.f32.gmra.mxu0 %v727
        %v761 = vpop.f32.mrf.mxu0
        %v762 = vadd.f32 0.0, %v761
        %763 = vmatmul.f32.gmra.mxu0 %v730
        %v764 = vpop.f32.mrf.mxu0
        %v765 = vadd.f32 0.0, %v764
        %766 = vmatmul.f32.gmra.mxu0 %v733
        %v767 = vpop.f32.mrf.mxu0
        %v768 = vadd.f32 0.0, %v767
        %769 = vdwg.mxu0
        %770 = vmatpush.msra.mxu0 0.0
        %771 = vmatpush.msra.mxu0 0.0
        %772 = vmatpush.msra.mxu0 0.0
        %773 = vmatpush.msra.mxu0 0.0
        %774 = vmatpush.msra.mxu0 0.0
        %775 = vmatpush.msra.mxu0 0.0
        %776 = vmatpush.msra.mxu0 0.0
        %777 = vmatpush.msra.mxu0 0.0
        %778 = vmatpush.msra.mxu0 0.0
        %779 = vmatpush.msra.mxu0 0.0
        %780 = vmatpush.msra.mxu0 0.0
        %781 = vmatpush.msra.mxu0 0.0
        %782 = vmatpush.msra.mxu0 %v708
        %783 = vmatpush.msra.mxu0 %v705
        %784 = vmatpush.msra.mxu0 %v702
        %785 = vmatpush.msra.mxu0 %v699
        %786 = vmatmul.f32.gmra.mxu0 %v718
        %v787 = vpop.f32.mrf.mxu0
        %v788 = vadd.f32 0.0, %v787
        %789 = vmatmul.f32.gmra.mxu0 %v721
        %v790 = vpop.f32.mrf.mxu0
        %v791 = vadd.f32 0.0, %v790
        %792 = vmatmul.f32.gmra.mxu0 %v724
        %v793 = vpop.f32.mrf.mxu0
        %v794 = vadd.f32 0.0, %v793
        %795 = vmatmul.f32.gmra.mxu0 %v727
        %v796 = vpop.f32.mrf.mxu0
        %v797 = vadd.f32 0.0, %v796
        %798 = vmatmul.f32.gmra.mxu0 %v730
        %v799 = vpop.f32.mrf.mxu0
        %v800 = vadd.f32 0.0, %v799
        %801 = vmatmul.f32.gmra.mxu0 %v733
        %v802 = vpop.f32.mrf.mxu0
        %v803 = vadd.f32 0.0, %v802
        %804 = vdwg.mxu0
        %805 = vmatpush.msra.mxu0 0.0
        %806 = vmatpush.msra.mxu0 0.0
        %807 = vmatpush.msra.mxu0 0.0
        %808 = vmatpush.msra.mxu0 0.0
        %809 = vmatpush.msra.mxu0 0.0
        %810 = vmatpush.msra.mxu0 0.0
        %811 = vmatpush.msra.mxu0 0.0
        %812 = vmatpush.msra.mxu0 0.0
        %813 = vmatpush.msra.mxu0 0.0
        %814 = vmatpush.msra.mxu0 0.0
        %815 = vmatpush.msra.mxu0 0.0
        %816 = vmatpush.msra.mxu0 0.0
        %817 = vmatpush.msra.mxu0 %v709
        %818 = vmatpush.msra.mxu0 %v706
        %819 = vmatpush.msra.mxu0 %v703
        %820 = vmatpush.msra.mxu0 %v700
        %821 = vmatmul.f32.gmra.mxu0 %v718
        %v822 = vpop.f32.mrf.mxu0
        %v823 = vadd.f32 0.0, %v822
        %824 = vmatmul.f32.gmra.mxu0 %v721
        %v825 = vpop.f32.mrf.mxu0
        %v826 = vadd.f32 0.0, %v825
        %827 = vmatmul.f32.gmra.mxu0 %v724
        %v828 = vpop.f32.mrf.mxu0
        %v829 = vadd.f32 0.0, %v828
        %830 = vmatmul.f32.gmra.mxu0 %v727
        %v831 = vpop.f32.mrf.mxu0
        %v832 = vadd.f32 0.0, %v831
        %833 = vmatmul.f32.gmra.mxu0 %v730
        %v834 = vpop.f32.mrf.mxu0
        %v835 = vadd.f32 0.0, %v834
        %836 = vmatmul.f32.gmra.mxu0 %v733
        %v837 = vpop.f32.mrf.mxu0
        %v838 = vadd.f32 0.0, %v837
        %839 = vdwg.mxu0
        %v840 = vlaneseq
        %v841 = vand.u32 %v840, 127
        %v842 = vadd.s32 %v841, 128
        %v843 = vadd.s32 %v841, 256
        %s844 = smul.u32 %s23, 384
        %v845 = vstv %s844
        %v846 = vadd.s32 %v841, %v845
        %v847 = vadd.s32 %v842, %v845
        %v848 = vadd.s32 %v843, %v845
        %vm849 = vcmp.lt.s32.totalorder %v846, 1024
        %vm850 = vcmp.lt.s32.totalorder %v847, 1024
        %vm851 = vcmp.lt.s32.totalorder %v848, 1024
        %v852 = vsel %vm849, %v753, 0.0
        %v853 = vsel %vm850, %v788, 0.0
        %v854 = vsel %vm851, %v823, 0.0
        %v855 = vsel %vm849, %v756, 0.0
        %v856 = vsel %vm850, %v791, 0.0
        %v857 = vsel %vm851, %v826, 0.0
        %v858 = vsel %vm849, %v759, 0.0
        %v859 = vsel %vm850, %v794, 0.0
        %v860 = vsel %vm851, %v829, 0.0
        %v861 = vsel %vm849, %v762, 0.0
        %v862 = vsel %vm850, %v797, 0.0
        %v863 = vsel %vm851, %v832, 0.0
        %v864 = vsel %vm849, %v765, 0.0
        %v865 = vsel %vm850, %v800, 0.0
        %v866 = vsel %vm851, %v835, 0.0
        %v867 = vsel %vm849, %v768, 0.0
        %v868 = vsel %vm850, %v803, 0.0
        %v869 = vsel %vm851, %v838, 0.0
        %v870 = vadd.f32 %v852, %v853
        %v871 = vadd.f32 %v870, %v854
        %872 = vadd.xlane.f32.xlu0 %v871
        %v873 = vpop.xlane.xlu0 %872
        %v874 = vadd.f32 %v855, %v856
        %v875 = vadd.f32 %v874, %v857
        %876 = vadd.xlane.f32.xlu0 %v875
        %v877 = vpop.xlane.xlu0 %876
        %v878 = vadd.f32 %v858, %v859
        %v879 = vadd.f32 %v878, %v860
        %880 = vadd.xlane.f32.xlu0 %v879
        %v881 = vpop.xlane.xlu0 %880
        %v882 = vadd.f32 %v861, %v862
        %v883 = vadd.f32 %v882, %v863
        %884 = vadd.xlane.f32.xlu0 %v883
        %v885 = vpop.xlane.xlu0 %884
        %v886 = vadd.f32 %v864, %v865
        %v887 = vadd.f32 %v886, %v866
        %888 = vadd.xlane.f32.xlu0 %v887
        %v889 = vpop.xlane.xlu0 %888
        %v890 = vadd.f32 %v867, %v868
        %v891 = vadd.f32 %v890, %v869
        %892 = vadd.xlane.f32.xlu0 %v891
        %v893 = vpop.xlane.xlu0 %892
        %vm894 = vcmask 7168
        %895 = vst.msk [vmem:[%s604] sm:$0xff] %vm894, %v873
        %896 = vst.msk [vmem:[%s604 + $0x8] sm:$0xff] %vm894, %v877
        %897 = vst.msk [vmem:[%s604 + $0x10] sm:$0xff] %vm894, %v881
        %898 = vst.msk [vmem:[%s604 + $0x18] sm:$0xff] %vm894, %v885
        %899 = vst.msk [vmem:[%s604 + $0x20] sm:$0xff] %vm894, %v889
        %900 = vst.msk [vmem:[%s604 + $0x28] sm:$0xff] %vm894, %v893
        %v901 = vmul.f32 %v852, %v852
        %v902 = vmul.f32 %v853, %v853
        %v903 = vmul.f32 %v854, %v854
        %v904 = vmul.f32 %v855, %v855
        %v905 = vmul.f32 %v856, %v856
        %v906 = vmul.f32 %v857, %v857
        %v907 = vmul.f32 %v858, %v858
        %v908 = vmul.f32 %v859, %v859
        %v909 = vmul.f32 %v860, %v860
        %v910 = vmul.f32 %v861, %v861
        %v911 = vmul.f32 %v862, %v862
        %v912 = vmul.f32 %v863, %v863
        %v913 = vmul.f32 %v864, %v864
        %v914 = vmul.f32 %v865, %v865
        %v915 = vmul.f32 %v866, %v866
        %v916 = vmul.f32 %v867, %v867
        %v917 = vmul.f32 %v868, %v868
        %v918 = vmul.f32 %v869, %v869
        %v919 = vadd.f32 %v901, %v902
        %v920 = vadd.f32 %v919, %v903
        %921 = vadd.xlane.f32.xlu0 %v920
        %v922 = vpop.xlane.xlu0 %921
        %v923 = vadd.f32 %v904, %v905
        %v924 = vadd.f32 %v923, %v906
        %925 = vadd.xlane.f32.xlu0 %v924
        %v926 = vpop.xlane.xlu0 %925
        %v927 = vadd.f32 %v907, %v908
        %v928 = vadd.f32 %v927, %v909
        %929 = vadd.xlane.f32.xlu0 %v928
        %v930 = vpop.xlane.xlu0 %929
        %v931 = vadd.f32 %v910, %v911
        %v932 = vadd.f32 %v931, %v912
        %933 = vadd.xlane.f32.xlu0 %v932
        %v934 = vpop.xlane.xlu0 %933
        %v935 = vadd.f32 %v913, %v914
        %v936 = vadd.f32 %v935, %v915
        %937 = vadd.xlane.f32.xlu0 %v936
        %v938 = vpop.xlane.xlu0 %937
        %v939 = vadd.f32 %v916, %v917
        %v940 = vadd.f32 %v939, %v918
        %941 = vadd.xlane.f32.xlu0 %v940
        %v942 = vpop.xlane.xlu0 %941
        %943 = vst.msk [vmem:[%s613] sm:$0xff] %vm894, %v922
        %944 = vst.msk [vmem:[%s613 + $0x8] sm:$0xff] %vm894, %v926
        %945 = vst.msk [vmem:[%s613 + $0x10] sm:$0xff] %vm894, %v930
        %946 = vst.msk [vmem:[%s613 + $0x18] sm:$0xff] %vm894, %v934
        %947 = vst.msk [vmem:[%s613 + $0x20] sm:$0xff] %vm894, %v938
        %948 = vst.msk [vmem:[%s613 + $0x28] sm:$0xff] %vm894, %v942
        %949 = vst [vmem:[%s563] sm:$0xff] %v753
        %950 = vst [vmem:[%s563 + $0x8] sm:$0xff] %v788
        %951 = vst [vmem:[%s563 + $0x10] sm:$0xff] %v823
        %952 = vst [vmem:[%s563 + $0x18] sm:$0xff] %v756
        %953 = vst [vmem:[%s563 + $0x20] sm:$0xff] %v791
        %954 = vst [vmem:[%s563 + $0x28] sm:$0xff] %v826
        %955 = vst [vmem:[%s563 + $0x30] sm:$0xff] %v759
        %956 = vst [vmem:[%s563 + $0x38] sm:$0xff] %v794
        %957 = vst [vmem:[%s563 + $0x40] sm:$0xff] %v829
        %958 = vst [vmem:[%s563 + $0x48] sm:$0xff] %v762
        %959 = vst [vmem:[%s563 + $0x50] sm:$0xff] %v797
        %960 = vst [vmem:[%s563 + $0x58] sm:$0xff] %v832
        %961 = vst [vmem:[%s563 + $0x60] sm:$0xff] %v765
        %962 = vst [vmem:[%s563 + $0x68] sm:$0xff] %v800
        %963 = vst [vmem:[%s563 + $0x70] sm:$0xff] %v835
        %964 = vst [vmem:[%s563 + $0x78] sm:$0xff] %v768
        %965 = vst [vmem:[%s563 + $0x80] sm:$0xff] %v803
        %966 = vst [vmem:[%s563 + $0x88] sm:$0xff] %v838
        %s967 = sand.u32 %s131, 1
        %s968 = sand.u32 %s131, 1
        %s969 = smul.addr %s968, 144
        %s970 = scalar_lea.vmem [#allocation3], %s969
        %p971 = scmp.lt.s32.totalorder %s22, 1
        %s972 = scalar_select %p971, %s22, 1
        %p973 = scmp.lt.s32.totalorder %s23, 2
        %s974 = scalar_select %p973, %s23, 2
        %s975 = smul.addr %s974, 6
        %s976 = smul.addr %s972, 18
        %s977 = sadd.s32 %s975, %s976
        %s978 = smul.addr %s977, 8
        %s979 = scalar_lea.vmem %s5, %s978
        %p980 = scmp.lt.s32.totalorder %s22, 1
        %s981 = scalar_select %p980, %s22, 1
        %p982 = scmp.lt.s32.totalorder %s23, 2
        %s983 = scalar_select %p982, %s23, 2
        %s984 = smul.addr %s983, 6
        %s985 = smul.addr %s981, 18
        %s986 = sadd.s32 %s984, %s985
        %s987 = smul.addr %s986, 8
        %s988 = scalar_lea.vmem %s6, %s987
        // Predicated region
        $region103: #{_lambda_.8} parent=97 // pred_check
          %p989 = pneg %p141
        $region104: #{_lambda_.8} parent=97 // pred_check_branch
          %991 = sbr.rel (%p989) target = $region106
        $region105: #{_lambda_.8} parent=97 // pred_region
          %s992 = smul.u32 3, %s23
          %s993 = ssub.s32 8, %s992
          %p994 = scmp.lt.s32.totalorder %s993, 3
          %s995 = scalar_select %p994, %s993, 3
          %s996 = smul.u32 48, %s995
          %p997 = scmp.ne.s32.totalorder 0, %s996
          %s998 = smul.addr %s22, 48
          %s999 = sadd.s32 %s992, %s998
          %s1000 = smul.addr %s999, 8
          %s1001 = scalar_lea.vmem %s4, %s1000
          %s1002 = smul.u32 %s995, 8
          // Predicated region
          $region107: #{_lambda_.8} parent=105 // pred_check
            %p1003 = pneg %p997
          $region108: #{_lambda_.8} parent=105 // pred_check_branch
            %1005 = sbr.rel (%p1003) target = $region110
          $region109: #{_lambda_.8} parent=105 // pred_region
            %p1006 = scmp.lt.u32.totalorder %s1002, 8
            %p1007 = pneg %p1006
            // Predicated region
            $region111: #{_lambda_.8} parent=109 // pred_check
              _
            $region112: #{_lambda_.8} parent=109 // pred_check_branch
              %1009 = sbr.rel (%p1006) target = $region114
            $region113: #{_lambda_.8} parent=109 // pred_region
              %s1035 = sand.u32 %s1002, 7
              %p1036 = scmp.eq.s32.totalorder %s1035, 0
              // Predicated region
              $region126: #{_lambda_.8} parent=113 // pred_check
                %p1037 = pneg %p1036
              $region127: #{_lambda_.8} parent=113 // pred_check_branch
                %1039 = sbr.rel (%p1037) target = $region129
              $region128: #{_lambda_.8} parent=113 // pred_region
                %s1040 = sshrl.u32 %s1002, 3
                %s1041 = sdiv.u32.pop %s1040, 6
                %s1042 = srem.u32.pop %s1040, 6
                // While loop
                $region130: #{_lambda_.8} parent=128 // loop_pre_header
                  _
                $region131: #{_lambda_.8} parent=128 // loop_header
                  %s1044 = sphi 0, %s1046
                  %p1045 = scmp.ge.s32.totalorder %s1044, %s1041
                  %s1049 = sphi 0, %s1126
                  %s1050 = sphi %s970, %s1129
                  %s1051 = sphi %s1001, %s1130
                $region132: #{_lambda_.8} parent=128 // loop_header_branch
                  %1048 = sbr.rel (%p1045) target = $region136
                $region133: #{_lambda_.8} parent=128 // loop_body
                  %v1052 = vld [vmem:[%s1050] sm:$0xff]
                  %1053 = vst [vmem:[%s1051] sm:$0xff] %v1052
                  %v1054 = vld [vmem:[%s1050 + $0x8] sm:$0xff]
                  %1055 = vst [vmem:[%s1051 + $0x8] sm:$0xff] %v1054
                  %v1056 = vld [vmem:[%s1050 + $0x10] sm:$0xff]
                  %1057 = vst [vmem:[%s1051 + $0x10] sm:$0xff] %v1056
                  %v1058 = vld [vmem:[%s1050 + $0x18] sm:$0xff]
                  %1059 = vst [vmem:[%s1051 + $0x18] sm:$0xff] %v1058
                  %v1060 = vld [vmem:[%s1050 + $0x20] sm:$0xff]
                  %1061 = vst [vmem:[%s1051 + $0x20] sm:$0xff] %v1060
                  %v1062 = vld [vmem:[%s1050 + $0x28] sm:$0xff]
                  %1063 = vst [vmem:[%s1051 + $0x28] sm:$0xff] %v1062
                  %v1064 = vld [vmem:[%s1050 + $0x18] sm:$0xff]
                  %1065 = vst [vmem:[%s1051 + $0x40] sm:$0xff] %v1064
                  %v1066 = vld [vmem:[%s1050 + $0x20] sm:$0xff]
                  %1067 = vst [vmem:[%s1051 + $0x48] sm:$0xff] %v1066
                  %v1068 = vld [vmem:[%s1050 + $0x28] sm:$0xff]
                  %1069 = vst [vmem:[%s1051 + $0x50] sm:$0xff] %v1068
                  %v1070 = vld [vmem:[%s1050 + $0x30] sm:$0xff]
                  %1071 = vst [vmem:[%s1051 + $0x58] sm:$0xff] %v1070
                  %v1072 = vld [vmem:[%s1050 + $0x38] sm:$0xff]
                  %1073 = vst [vmem:[%s1051 + $0x60] sm:$0xff] %v1072
                  %v1074 = vld [vmem:[%s1050 + $0x40] sm:$0xff]
                  %1075 = vst [vmem:[%s1051 + $0x68] sm:$0xff] %v1074
                  %v1076 = vld [vmem:[%s1050 + $0x30] sm:$0xff]
                  %1077 = vst [vmem:[%s1051 + $0x80] sm:$0xff] %v1076
                  %v1078 = vld [vmem:[%s1050 + $0x38] sm:$0xff]
                  %1079 = vst [vmem:[%s1051 + $0x88] sm:$0xff] %v1078
                  %v1080 = vld [vmem:[%s1050 + $0x40] sm:$0xff]
                  %1081 = vst [vmem:[%s1051 + $0x90] sm:$0xff] %v1080
                  %v1082 = vld [vmem:[%s1050 + $0x48] sm:$0xff]
                  %1083 = vst [vmem:[%s1051 + $0x98] sm:$0xff] %v1082
                  %v1084 = vld [vmem:[%s1050 + $0x50] sm:$0xff]
                  %1085 = vst [vmem:[%s1051 + $0xa0] sm:$0xff] %v1084
                  %v1086 = vld [vmem:[%s1050 + $0x58] sm:$0xff]
                  %1087 = vst [vmem:[%s1051 + $0xa8] sm:$0xff] %v1086
                  %v1088 = vld [vmem:[%s1050 + $0x48] sm:$0xff]
                  %1089 = vst [vmem:[%s1051 + $0xc0] sm:$0xff] %v1088
                  %v1090 = vld [vmem:[%s1050 + $0x50] sm:$0xff]
                  %1091 = vst [vmem:[%s1051 + $0xc8] sm:$0xff] %v1090
                  %v1092 = vld [vmem:[%s1050 + $0x58] sm:$0xff]
                  %1093 = vst [vmem:[%s1051 + $0xd0] sm:$0xff] %v1092
                  %v1094 = vld [vmem:[%s1050 + $0x60] sm:$0xff]
                  %1095 = vst [vmem:[%s1051 + $0xd8] sm:$0xff] %v1094
                  %v1096 = vld [vmem:[%s1050 + $0x68] sm:$0xff]
                  %1097 = vst [vmem:[%s1051 + $0xe0] sm:$0xff] %v1096
                  %v1098 = vld [vmem:[%s1050 + $0x70] sm:$0xff]
                  %1099 = vst [vmem:[%s1051 + $0xe8] sm:$0xff] %v1098
                  %v1100 = vld [vmem:[%s1050 + $0x60] sm:$0xff]
                  %1101 = vst [vmem:[%s1051 + $0x100] sm:$0xff] %v1100
                  %v1102 = vld [vmem:[%s1050 + $0x68] sm:$0xff]
                  %1103 = vst [vmem:[%s1051 + $0x108] sm:$0xff] %v1102
                  %v1104 = vld [vmem:[%s1050 + $0x70] sm:$0xff]
                  %1105 = vst [vmem:[%s1051 + $0x110] sm:$0xff] %v1104
                  %v1106 = vld [vmem:[%s1050 + $0x78] sm:$0xff]
                  %1107 = vst [vmem:[%s1051 + $0x118] sm:$0xff] %v1106
                  %v1108 = vld [vmem:[%s1050 + $0x80] sm:$0xff]
                  %1109 = vst [vmem:[%s1051 + $0x120] sm:$0xff] %v1108
                  %v1110 = vld [vmem:[%s1050 + $0x88] sm:$0xff]
                  %1111 = vst [vmem:[%s1051 + $0x128] sm:$0xff] %v1110
                  %v1112 = vld [vmem:[%s1050 + $0x78] sm:$0xff]
                  %1113 = vst [vmem:[%s1051 + $0x140] sm:$0xff] %v1112
                  %v1114 = vld [vmem:[%s1050 + $0x80] sm:$0xff]
                  %1115 = vst [vmem:[%s1051 + $0x148] sm:$0xff] %v1114
                  %v1116 = vld [vmem:[%s1050 + $0x88] sm:$0xff]
                  %1117 = vst [vmem:[%s1051 + $0x150] sm:$0xff] %v1116
                  %v1118 = vld [vmem:[%s1050 + $0x90] sm:$0xff]
                  %1119 = vst [vmem:[%s1051 + $0x158] sm:$0xff] %v1118
                  %v1120 = vld [vmem:[%s1050 + $0x98] sm:$0xff]
                  %1121 = vst [vmem:[%s1051 + $0x160] sm:$0xff] %v1120
                  %v1122 = vld [vmem:[%s1050 + $0xa0] sm:$0xff]
                  %1123 = vst [vmem:[%s1051 + $0x168] sm:$0xff] %v1122
                  %s1124 = sadd.s32 1, %s1049
                  %p1125 = scmp.ge.s32.totalorder %s1124, %s1041
                  %s1126 = scalar_select %p1125, 0, %s1124
                  %s1127 = smul.u32 %s1126, 48
                  %s1128 = smul.u32 %s1126, 48
                  %s1129 = scalar_lea.vmem %s970, %s1127 [#allocation3]
                  %s1130 = scalar_lea.vmem %s1001, %s1128
                $region134: #{_lambda_.8} parent=128 // loop_footer
                  %s1046 = sadd.s32 %s1044, 1
                $region135: #{_lambda_.8} parent=128 // loop_footer_branch
                  %1043 = sbr.rel target = $region131
                $region136: #{_lambda_.8} parent=128 // loop_exit
                  _
                %s1131 = sdiv.u32.pop %s1040, 6
                %s1132 = srem.u32.pop %s1040, 6
                %s1133 = smul.u32 %s1131, 6
                %s1134 = smul.u32 8, %s1133
                %s1135 = scalar_lea.vmem %s970, %s1134 [#allocation3]
                %s1136 = smul.u32 8, %s1133
                %s1137 = scalar_lea.vmem %s1001, %s1136
                // While loop
                $region137: #{_lambda_.8} parent=128 // loop_pre_header
                  _
                $region138: #{_lambda_.8} parent=128 // loop_header
                  %s1139 = sphi 0, %s1141
                  %p1140 = scmp.ge.s32.totalorder %s1139, %s1132
                  %s1144 = sphi 0, %s1161
                  %s1145 = sphi %s1135, %s1164
                  %s1146 = sphi %s1137, %s1165
                $region139: #{_lambda_.8} parent=128 // loop_header_branch
                  %1143 = sbr.rel (%p1140) target = $region143
                $region140: #{_lambda_.8} parent=128 // loop_body
                  %v1147 = vld [vmem:[%s1145] sm:$0xff]
                  %1148 = vst [vmem:[%s1146] sm:$0xff] %v1147
                  %v1149 = vld [vmem:[%s1145 + $0x18] sm:$0xff]
                  %1150 = vst [vmem:[%s1146 + $0x40] sm:$0xff] %v1149
                  %v1151 = vld [vmem:[%s1145 + $0x30] sm:$0xff]
                  %1152 = vst [vmem:[%s1146 + $0x80] sm:$0xff] %v1151
                  %v1153 = vld [vmem:[%s1145 + $0x48] sm:$0xff]
                  %1154 = vst [vmem:[%s1146 + $0xc0] sm:$0xff] %v1153
                  %v1155 = vld [vmem:[%s1145 + $0x60] sm:$0xff]
                  %1156 = vst [vmem:[%s1146 + $0x100] sm:$0xff] %v1155
                  %v1157 = vld [vmem:[%s1145 + $0x78] sm:$0xff]
                  %1158 = vst [vmem:[%s1146 + $0x140] sm:$0xff] %v1157
                  %s1159 = sadd.s32 1, %s1144
                  %p1160 = scmp.ge.s32.totalorder %s1159, %s1132
                  %s1161 = scalar_select %p1160, 0, %s1159
                  %s1162 = smul.u32 %s1161, 8
                  %s1163 = smul.u32 %s1161, 8
                  %s1164 = scalar_lea.vmem %s1135, %s1162 [#allocation3]
                  %s1165 = scalar_lea.vmem %s1137, %s1163
                $region141: #{_lambda_.8} parent=128 // loop_footer
                  %s1141 = sadd.s32 %s1139, 1
                $region142: #{_lambda_.8} parent=128 // loop_footer_branch
                  %1138 = sbr.rel target = $region138
                $region143: #{_lambda_.8} parent=128 // loop_exit
                  _
              $region129: #{_lambda_.8} parent=113 // pred_fallthru
                _
              %p1166 = pneg %p1036
              // Predicated region
              $region144: #{_lambda_.8} parent=113 // pred_check
                _
              $region145: #{_lambda_.8} parent=113 // pred_check_branch
                %1168 = sbr.rel (%p1036) target = $region147
              $region146: #{_lambda_.8} parent=113 // pred_region
                %s1169 = sand.u32 %s1002, 7
                %s1170 = ssub.s32 %s1002, %s1169
                %s1171 = scalar_lea.vmem %s970, %s1170 [#allocation3]
                %s1172 = ssub.s32 %s1002, %s1169
                %s1173 = scalar_lea.vmem %s1001, %s1172
                %s1174 = sshrl.u32 %s1002, 3
                %s1175 = sdiv.u32.pop %s1174, 6
                %s1176 = srem.u32.pop %s1174, 6
                // While loop
                $region148: #{_lambda_.8} parent=146 // loop_pre_header
                  _
                $region149: #{_lambda_.8} parent=146 // loop_header
                  %s1178 = sphi 0, %s1180
                  %p1179 = scmp.ge.s32.totalorder %s1178, %s1175
                  %s1183 = sphi 0, %s1260
                  %s1184 = sphi %s970, %s1263
                  %s1185 = sphi %s1001, %s1264
                $region150: #{_lambda_.8} parent=146 // loop_header_branch
                  %1182 = sbr.rel (%p1179) target = $region154
                $region151: #{_lambda_.8} parent=146 // loop_body
                  %v1186 = vld [vmem:[%s1184] sm:$0xff]
                  %1187 = vst [vmem:[%s1185] sm:$0xff] %v1186
                  %v1188 = vld [vmem:[%s1184 + $0x8] sm:$0xff]
                  %1189 = vst [vmem:[%s1185 + $0x8] sm:$0xff] %v1188
                  %v1190 = vld [vmem:[%s1184 + $0x10] sm:$0xff]
                  %1191 = vst [vmem:[%s1185 + $0x10] sm:$0xff] %v1190
                  %v1192 = vld [vmem:[%s1184 + $0x18] sm:$0xff]
                  %1193 = vst [vmem:[%s1185 + $0x18] sm:$0xff] %v1192
                  %v1194 = vld [vmem:[%s1184 + $0x20] sm:$0xff]
                  %1195 = vst [vmem:[%s1185 + $0x20] sm:$0xff] %v1194
                  %v1196 = vld [vmem:[%s1184 + $0x28] sm:$0xff]
                  %1197 = vst [vmem:[%s1185 + $0x28] sm:$0xff] %v1196
                  %v1198 = vld [vmem:[%s1184 + $0x18] sm:$0xff]
                  %1199 = vst [vmem:[%s1185 + $0x40] sm:$0xff] %v1198
                  %v1200 = vld [vmem:[%s1184 + $0x20] sm:$0xff]
                  %1201 = vst [vmem:[%s1185 + $0x48] sm:$0xff] %v1200
                  %v1202 = vld [vmem:[%s1184 + $0x28] sm:$0xff]
                  %1203 = vst [vmem:[%s1185 + $0x50] sm:$0xff] %v1202
                  %v1204 = vld [vmem:[%s1184 + $0x30] sm:$0xff]
                  %1205 = vst [vmem:[%s1185 + $0x58] sm:$0xff] %v1204
                  %v1206 = vld [vmem:[%s1184 + $0x38] sm:$0xff]
                  %1207 = vst [vmem:[%s1185 + $0x60] sm:$0xff] %v1206
                  %v1208 = vld [vmem:[%s1184 + $0x40] sm:$0xff]
                  %1209 = vst [vmem:[%s1185 + $0x68] sm:$0xff] %v1208
                  %v1210 = vld [vmem:[%s1184 + $0x30] sm:$0xff]
                  %1211 = vst [vmem:[%s1185 + $0x80] sm:$0xff] %v1210
                  %v1212 = vld [vmem:[%s1184 + $0x38] sm:$0xff]
                  %1213 = vst [vmem:[%s1185 + $0x88] sm:$0xff] %v1212
                  %v1214 = vld [vmem:[%s1184 + $0x40] sm:$0xff]
                  %1215 = vst [vmem:[%s1185 + $0x90] sm:$0xff] %v1214
                  %v1216 = vld [vmem:[%s1184 + $0x48] sm:$0xff]
                  %1217 = vst [vmem:[%s1185 + $0x98] sm:$0xff] %v1216
                  %v1218 = vld [vmem:[%s1184 + $0x50] sm:$0xff]
                  %1219 = vst [vmem:[%s1185 + $0xa0] sm:$0xff] %v1218
                  %v1220 = vld [vmem:[%s1184 + $0x58] sm:$0xff]
                  %1221 = vst [vmem:[%s1185 + $0xa8] sm:$0xff] %v1220
                  %v1222 = vld [vmem:[%s1184 + $0x48] sm:$0xff]
                  %1223 = vst [vmem:[%s1185 + $0xc0] sm:$0xff] %v1222
                  %v1224 = vld [vmem:[%s1184 + $0x50] sm:$0xff]
                  %1225 = vst [vmem:[%s1185 + $0xc8] sm:$0xff] %v1224
                  %v1226 = vld [vmem:[%s1184 + $0x58] sm:$0xff]
                  %1227 = vst [vmem:[%s1185 + $0xd0] sm:$0xff] %v1226
                  %v1228 = vld [vmem:[%s1184 + $0x60] sm:$0xff]
                  %1229 = vst [vmem:[%s1185 + $0xd8] sm:$0xff] %v1228
                  %v1230 = vld [vmem:[%s1184 + $0x68] sm:$0xff]
                  %1231 = vst [vmem:[%s1185 + $0xe0] sm:$0xff] %v1230
                  %v1232 = vld [vmem:[%s1184 + $0x70] sm:$0xff]
                  %1233 = vst [vmem:[%s1185 + $0xe8] sm:$0xff] %v1232
                  %v1234 = vld [vmem:[%s1184 + $0x60] sm:$0xff]
                  %1235 = vst [vmem:[%s1185 + $0x100] sm:$0xff] %v1234
                  %v1236 = vld [vmem:[%s1184 + $0x68] sm:$0xff]
                  %1237 = vst [vmem:[%s1185 + $0x108] sm:$0xff] %v1236
                  %v1238 = vld [vmem:[%s1184 + $0x70] sm:$0xff]
                  %1239 = vst [vmem:[%s1185 + $0x110] sm:$0xff] %v1238
                  %v1240 = vld [vmem:[%s1184 + $0x78] sm:$0xff]
                  %1241 = vst [vmem:[%s1185 + $0x118] sm:$0xff] %v1240
                  %v1242 = vld [vmem:[%s1184 + $0x80] sm:$0xff]
                  %1243 = vst [vmem:[%s1185 + $0x120] sm:$0xff] %v1242
                  %v1244 = vld [vmem:[%s1184 + $0x88] sm:$0xff]
                  %1245 = vst [vmem:[%s1185 + $0x128] sm:$0xff] %v1244
                  %v1246 = vld [vmem:[%s1184 + $0x78] sm:$0xff]
                  %1247 = vst [vmem:[%s1185 + $0x140] sm:$0xff] %v1246
                  %v1248 = vld [vmem:[%s1184 + $0x80] sm:$0xff]
                  %1249 = vst [vmem:[%s1185 + $0x148] sm:$0xff] %v1248
                  %v1250 = vld [vmem:[%s1184 + $0x88] sm:$0xff]
                  %1251 = vst [vmem:[%s1185 + $0x150] sm:$0xff] %v1250
                  %v1252 = vld [vmem:[%s1184 + $0x90] sm:$0xff]
                  %1253 = vst [vmem:[%s1185 + $0x158] sm:$0xff] %v1252
                  %v1254 = vld [vmem:[%s1184 + $0x98] sm:$0xff]
                  %1255 = vst [vmem:[%s1185 + $0x160] sm:$0xff] %v1254
                  %v1256 = vld [vmem:[%s1184 + $0xa0] sm:$0xff]
                  %1257 = vst [vmem:[%s1185 + $0x168] sm:$0xff] %v1256
                  %s1258 = sadd.s32 1, %s1183
                  %p1259 = scmp.ge.s32.totalorder %s1258, %s1175
                  %s1260 = scalar_select %p1259, 0, %s1258
                  %s1261 = smul.u32 %s1260, 48
                  %s1262 = smul.u32 %s1260, 48
                  %s1263 = scalar_lea.vmem %s970, %s1261 [#allocation3]
                  %s1264 = scalar_lea.vmem %s1001, %s1262
                $region152: #{_lambda_.8} parent=146 // loop_footer
                  %s1180 = sadd.s32 %s1178, 1
                $region153: #{_lambda_.8} parent=146 // loop_footer_branch
                  %1177 = sbr.rel target = $region149
                $region154: #{_lambda_.8} parent=146 // loop_exit
                  _
                %s1265 = sdiv.u32.pop %s1174, 6
                %s1266 = srem.u32.pop %s1174, 6
                %s1267 = smul.u32 %s1265, 6
                %s1268 = smul.u32 8, %s1267
                %s1269 = scalar_lea.vmem %s970, %s1268 [#allocation3]
                %s1270 = smul.u32 8, %s1267
                %s1271 = scalar_lea.vmem %s1001, %s1270
                // While loop
                $region155: #{_lambda_.8} parent=146 // loop_pre_header
                  _
                $region156: #{_lambda_.8} parent=146 // loop_header
                  %s1273 = sphi 0, %s1275
                  %p1274 = scmp.ge.s32.totalorder %s1273, %s1266
                  %s1278 = sphi 0, %s1295
                  %s1279 = sphi %s1269, %s1298
                  %s1280 = sphi %s1271, %s1299
                $region157: #{_lambda_.8} parent=146 // loop_header_branch
                  %1277 = sbr.rel (%p1274) target = $region161
                $region158: #{_lambda_.8} parent=146 // loop_body
                  %v1281 = vld [vmem:[%s1279] sm:$0xff]
                  %1282 = vst [vmem:[%s1280] sm:$0xff] %v1281
                  %v1283 = vld [vmem:[%s1279 + $0x18] sm:$0xff]
                  %1284 = vst [vmem:[%s1280 + $0x40] sm:$0xff] %v1283
                  %v1285 = vld [vmem:[%s1279 + $0x30] sm:$0xff]
                  %1286 = vst [vmem:[%s1280 + $0x80] sm:$0xff] %v1285
                  %v1287 = vld [vmem:[%s1279 + $0x48] sm:$0xff]
                  %1288 = vst [vmem:[%s1280 + $0xc0] sm:$0xff] %v1287
                  %v1289 = vld [vmem:[%s1279 + $0x60] sm:$0xff]
                  %1290 = vst [vmem:[%s1280 + $0x100] sm:$0xff] %v1289
                  %v1291 = vld [vmem:[%s1279 + $0x78] sm:$0xff]
                  %1292 = vst [vmem:[%s1280 + $0x140] sm:$0xff] %v1291
                  %s1293 = sadd.s32 1, %s1278
                  %p1294 = scmp.ge.s32.totalorder %s1293, %s1266
                  %s1295 = scalar_select %p1294, 0, %s1293
                  %s1296 = smul.u32 %s1295, 8
                  %s1297 = smul.u32 %s1295, 8
                  %s1298 = scalar_lea.vmem %s1269, %s1296 [#allocation3]
                  %s1299 = scalar_lea.vmem %s1271, %s1297
                $region159: #{_lambda_.8} parent=146 // loop_footer
                  %s1275 = sadd.s32 %s1273, 1
                $region160: #{_lambda_.8} parent=146 // loop_footer_branch
                  %1272 = sbr.rel target = $region156
                $region161: #{_lambda_.8} parent=146 // loop_exit
                  _
                %s1300 = sshll.u32 1, %s1169
                %s1301 = ssub.s32 %s1300, 1
                loop: start=0, step=1, limit=1
                $region162: #{_lambda_.8} parent=146 // loop_pre_header
                  _
                $region163: #{_lambda_.8} parent=146 // loop_header
                  %s1303 = sphi 0, %s1307
                  %p1304 = scmp.ge.s32.totalorder %s1303, 1
                  %s1308 = sphi %s1171, %s1171
                  %s1309 = sphi %s1173, %s1173
                $region164: #{_lambda_.8} parent=146 // loop_header_branch
                  %1306 = sbr.rel (%p1304) target = $region168
                $region165: #{_lambda_.8} parent=146 // loop_body
                  %v1310 = vld [vmem:[%s1308] sm:%s1301]
                  %1311 = vst [vmem:[%s1309] sm:%s1301] %v1310
                  %v1312 = vld [vmem:[%s1308 + $0x18] sm:%s1301]
                  %1313 = vst [vmem:[%s1309 + $0x40] sm:%s1301] %v1312
                  %v1314 = vld [vmem:[%s1308 + $0x30] sm:%s1301]
                  %1315 = vst [vmem:[%s1309 + $0x80] sm:%s1301] %v1314
                  %v1316 = vld [vmem:[%s1308 + $0x48] sm:%s1301]
                  %1317 = vst [vmem:[%s1309 + $0xc0] sm:%s1301] %v1316
                  %v1318 = vld [vmem:[%s1308 + $0x60] sm:%s1301]
                  %1319 = vst [vmem:[%s1309 + $0x100] sm:%s1301] %v1318
                  %v1320 = vld [vmem:[%s1308 + $0x78] sm:%s1301]
                  %1321 = vst [vmem:[%s1309 + $0x140] sm:%s1301] %v1320
                $region166: #{_lambda_.8} parent=146 // loop_footer
                  %s1307 = sadd.s32 1, %s1303
                $region167: #{_lambda_.8} parent=146 // loop_footer_branch
                  %1302 = sbr.rel target = $region163
                $region168: #{_lambda_.8} parent=146 // loop_exit
                  _
              $region147: #{_lambda_.8} parent=113 // pred_fallthru
                _
            $region114: #{_lambda_.8} parent=109 // pred_fallthru
              _
            // Predicated region
            $region115: #{_lambda_.8} parent=109 // pred_check
              %p1010 = pneg %p1006
            $region116: #{_lambda_.8} parent=109 // pred_check_branch
              %1012 = sbr.rel (%p1010) target = $region118
            $region117: #{_lambda_.8} parent=109 // pred_region
              %s1013 = sshll.u32 1, %s1002
              %s1014 = ssub.s32 %s1013, 1
              loop: start=0, step=1, limit=1
              $region119: #{_lambda_.8} parent=117 // loop_pre_header
                _
              $region120: #{_lambda_.8} parent=117 // loop_header
                %s1016 = sphi 0, %s1020
                %p1017 = scmp.ge.s32.totalorder %s1016, 1
                %s1021 = sphi %s970, %s970
                %s1022 = sphi %s1001, %s1001
              $region121: #{_lambda_.8} parent=117 // loop_header_branch
                %1019 = sbr.rel (%p1017) target = $region125
              $region122: #{_lambda_.8} parent=117 // loop_body
                %v1023 = vld [vmem:[%s1021] sm:%s1014]
                %1024 = vst [vmem:[%s1022] sm:%s1014] %v1023
                %v1025 = vld [vmem:[%s1021 + $0x18] sm:%s1014]
                %1026 = vst [vmem:[%s1022 + $0x40] sm:%s1014] %v1025
                %v1027 = vld [vmem:[%s1021 + $0x30] sm:%s1014]
                %1028 = vst [vmem:[%s1022 + $0x80] sm:%s1014] %v1027
                %v1029 = vld [vmem:[%s1021 + $0x48] sm:%s1014]
                %1030 = vst [vmem:[%s1022 + $0xc0] sm:%s1014] %v1029
                %v1031 = vld [vmem:[%s1021 + $0x60] sm:%s1014]
                %1032 = vst [vmem:[%s1022 + $0x100] sm:%s1014] %v1031
                %v1033 = vld [vmem:[%s1021 + $0x78] sm:%s1014]
                %1034 = vst [vmem:[%s1022 + $0x140] sm:%s1014] %v1033
              $region123: #{_lambda_.8} parent=117 // loop_footer
                %s1020 = sadd.s32 1, %s1016
              $region124: #{_lambda_.8} parent=117 // loop_footer_branch
                %1015 = sbr.rel target = $region120
              $region125: #{_lambda_.8} parent=117 // loop_exit
                _
            $region118: #{_lambda_.8} parent=109 // pred_fallthru
              _
          $region110: #{_lambda_.8} parent=105 // pred_fallthru
            _
          %1322 = vnop
        $region106: #{_lambda_.8} parent=97 // pred_fallthru
          _
        // Predicated region
        $region169: #{_lambda_.8} parent=97 // pred_check
          %p1323 = pneg %p169
        $region170: #{_lambda_.8} parent=97 // pred_check_branch
          %1325 = sbr.rel (%p1323) target = $region172
        $region171: #{_lambda_.8} parent=97 // pred_region
          _
        $region172: #{_lambda_.8} parent=97 // pred_fallthru
          _
        // Predicated region
        $region173: #{_lambda_.8} parent=97 // pred_check
          %p1326 = pneg %p197
        $region174: #{_lambda_.8} parent=97 // pred_check_branch
          %1328 = sbr.rel (%p1326) target = $region176
        $region175: #{_lambda_.8} parent=97 // pred_region
          _
        $region176: #{_lambda_.8} parent=97 // pred_fallthru
          _
      $region98: #{_lambda_.8} parent=5 // pred_fallthru
        _
      %p1329 = scmp.le.s32.totalorder 2, %s13
      // Predicated region
      $region177: #{_lambda_.8} parent=5 // pred_check
        %p1330 = pneg %p1329
      $region178: #{_lambda_.8} parent=5 // pred_check_branch
        %1332 = sbr.rel (%p1330) target = $region180
      $region179: #{_lambda_.8} parent=5 // pred_region
        %s1333 = ssub.s32 %s13, 2
        // Predicated region
        $region181: #{_lambda_.8} parent=179 // pred_check
          %p1334 = pneg %p147
        $region182: #{_lambda_.8} parent=179 // pred_check_branch
          %1336 = sbr.rel (%p1334) target = $region184
        $region183: #{_lambda_.8} parent=179 // pred_region
          %s1337 = sand.u32 %s132, 1
          %s1338 = sand.u32 %s132, 1
          %s1339 = smul.addr %s1338, 144
          %s1340 = scalar_lea.vmem [#allocation3], %s1339
        $region184: #{_lambda_.8} parent=179 // pred_fallthru
          _
        // Predicated region
        $region185: #{_lambda_.8} parent=179 // pred_check
          %p1341 = pneg %p175
        $region186: #{_lambda_.8} parent=179 // pred_check_branch
          %1343 = sbr.rel (%p1341) target = $region188
        $region187: #{_lambda_.8} parent=179 // pred_region
          %p1344 = scmp.lt.s32.totalorder %s24, 1
          %s1345 = scalar_select %p1344, %s24, 1
          %p1346 = scmp.lt.s32.totalorder %s25, 2
          %s1347 = scalar_select %p1346, %s25, 2
          %s1348 = smul.addr %s1347, 6
          %s1349 = smul.addr %s1345, 18
          %s1350 = sadd.s32 %s1348, %s1349
          %s1351 = smul.addr %s1350, 8
          %s1352 = scalar_lea.vmem %s5, %s1351
        $region188: #{_lambda_.8} parent=179 // pred_fallthru
          _
        // Predicated region
        $region189: #{_lambda_.8} parent=179 // pred_check
          %p1353 = pneg %p203
        $region190: #{_lambda_.8} parent=179 // pred_check_branch
          %1355 = sbr.rel (%p1353) target = $region192
        $region191: #{_lambda_.8} parent=179 // pred_region
          %p1356 = scmp.lt.s32.totalorder %s24, 1
          %s1357 = scalar_select %p1356, %s24, 1
          %p1358 = scmp.lt.s32.totalorder %s25, 2
          %s1359 = scalar_select %p1358, %s25, 2
          %s1360 = smul.addr %s1359, 6
          %s1361 = smul.addr %s1357, 18
          %s1362 = sadd.s32 %s1360, %s1361
          %s1363 = smul.addr %s1362, 8
          %s1364 = scalar_lea.vmem %s6, %s1363
        $region192: #{_lambda_.8} parent=179 // pred_fallthru
          _
      $region180: #{_lambda_.8} parent=5 // pred_fallthru
        _
    $region6: #{_lambda_.8} parent=1 // loop_footer
      %s17 = sadd.s32 1, %s13
    $region7: #{_lambda_.8} parent=1 // loop_footer_branch
      %12 = sbr.rel target = $region3
    $region8: #{_lambda_.8} parent=1 // loop_exit
      _

// kernel: _lambda_.6
$region0: #{_lambda_.6}
  #allocation0 [shape = 'u32[]', space=smem, size = 0x4, offset = 0x4, fixed_abs, tag = 'smem constant byte address 0x4 - core index']
  #allocation1 [shape = 'u32[72,128]{1,0:T(1,128)}', space=vmem, size = 0x9000, scoped, tag = 'internal scratch']
  %s0 = inlined_call_operand.vmem [shape: f32[2,48,1024], index: 0, kind: input, shape index: {}]
  %s1 = inlined_call_operand.vmem [shape: f32[48,1], index: 1, kind: input, shape index: {}]
  %s2 = inlined_call_operand.vmem [shape: f32[48,1], index: 2, kind: input, shape index: {}]
  %s3 = inlined_call_operand.vmem [shape: f32[32,48], index: 3, kind: input, shape index: {}]
  %s4 = inlined_call_operand.vmem [shape: f32[2,32,1024], index: 4, kind: output, shape index: {0}]
  %s5 = inlined_call_operand.vmem [shape: f32[2,3,32,1], index: 5, kind: output, shape index: {1}]
  %s6 = inlined_call_operand.vmem [shape: f32[2,3,32,1], index: 6, kind: output, shape index: {2}]
  %7 = xla_tuple %s4, %s5, %s6
  %s8 = sld [smem:[#allocation0]]
  $region193: #{_lambda_.6} parent=0
    _
  %s10 = ssub.s32 1, %s8
  %s11 = scalar_select 0, %s10, %s8
  $region1: #{_lambda_.6} parent=0
    #allocation2 [shape = 'u8[147456]{0}', space=vmem, size = 0x24000, scoped, tag = 'input window, operand 0']
    #allocation3 [shape = 'u8[98304]{0}', space=vmem, size = 0x18000, scoped, tag = 'output window, operand 0']
    loop: start=0, step=1, limit=8
    $region2: #{_lambda_.6} parent=1 // loop_pre_header
      _
    $region3: #{_lambda_.6} parent=1 // loop_header
      %s13 = sphi 0, %s17
      %p14 = scmp.ge.s32.totalorder %s13, 8
      %s20 = sphi 0, %s32
      %s21 = sphi 0, %s28
      %s22 = sphi 0, %s20
      %s23 = sphi 0, %s21
      %s24 = sphi 0, %s22
      %s25 = sphi 0, %s23
      %s37 = sphi 0, %s39
      %s40 = sphi 0, %s37
      %s41 = sphi 0, %s40
      %s57 = sphi 0, %s41
      %s61 = sphi 0, %s61
      %s63 = sphi 0, %s61
      %s64 = sphi 0, %s63
      %s78 = sphi 0, %s64
      %s82 = sphi 0, %s82
      %s84 = sphi 0, %s82
      %s85 = sphi 0, %s84
      %s99 = sphi 0, %s85
      %s103 = sphi 0, %s103
      %s105 = sphi 0, %s103
      %s106 = sphi 0, %s105
      %s120 = sphi 0, %s106
      %s128 = sphi 0, %s130
      %s131 = sphi 0, %s128
      %s132 = sphi 0, %s131
      %s148 = sphi 0, %s132
      %s156 = sphi 0, %s158
      %s159 = sphi 0, %s156
      %s160 = sphi 0, %s159
      %s176 = sphi 0, %s160
      %s184 = sphi 0, %s186
      %s187 = sphi 0, %s184
      %s188 = sphi 0, %s187
      %s204 = sphi 0, %s188
    $region4: #{_lambda_.6} parent=1 // loop_header_branch
      %16 = sbr.rel (%p14) target = $region8
    $region5: #{_lambda_.6} parent=1 // loop_body
      %s18 = ssub.s32 %s13, 1
      %s19 = ssub.s32 %s13, 2
      %s26 = sadd.s32 1, %s21
      %p27 = scmp.ge.s32.totalorder %s26, 3
      %s28 = scalar_select %p27, 0, %s26
      %s29 = sadd.s32 1, %s20
      %s30 = scalar_select %p27, %s29, %s20
      %p31 = scmp.ge.s32.totalorder %s30, 2
      %s32 = scalar_select %p31, 0, %s30
      %s33 = ssub.s32 %s20, %s32
      %s34 = ssub.s32 %s21, %s28
      %s35 = sor.u32 %s33, %s34
      %p36 = scmp.eq.s32.totalorder %s35, 0
      %s38 = sadd.s32 %s37, 1
      %s39 = scalar_select %p36, %s37, %s38
      %p42 = pneg %p36
      %p43 = scmp.eq.s32.totalorder %s13, 5
      %p44 = por %p42, %p43
      %p45 = scmp.ne.s32.totalorder %s37, %s40
      %p46 = scmp.eq.s32.totalorder %s13, 0
      %p47 = por %p45, %p46
      %p48 = scmp.ne.s32.totalorder %s37, %s40
      %p49 = scmp.eq.s32.totalorder %s18, 5
      %p50 = por %p48, %p49
      %p51 = scmp.ne.s32.totalorder %s40, %s41
      %p52 = scmp.eq.s32.totalorder %s18, 0
      %p53 = por %p51, %p52
      %p54 = scmp.ne.s32.totalorder %s40, %s41
      %p55 = scmp.eq.s32.totalorder %s19, 5
      %p56 = por %p54, %p55
      %p58 = scmp.ne.s32.totalorder %s41, %s57
      %p59 = scmp.eq.s32.totalorder %s19, 0
      %p60 = por %p58, %p59
      %s62 = sadd.s32 %s61, 1
      %p65 = scmp.eq.s32.totalorder %s13, 5
      %p66 = scmp.ne.s32.totalorder %s61, %s63
      %p67 = scmp.eq.s32.totalorder %s13, 0
      %p68 = por %p66, %p67
      %p69 = scmp.ne.s32.totalorder %s61, %s63
      %p70 = scmp.eq.s32.totalorder %s18, 5
      %p71 = por %p69, %p70
      %p72 = scmp.ne.s32.totalorder %s63, %s64
      %p73 = scmp.eq.s32.totalorder %s18, 0
      %p74 = por %p72, %p73
      %p75 = scmp.ne.s32.totalorder %s63, %s64
      %p76 = scmp.eq.s32.totalorder %s19, 5
      %p77 = por %p75, %p76
      %p79 = scmp.ne.s32.totalorder %s64, %s78
      %p80 = scmp.eq.s32.totalorder %s19, 0
      %p81 = por %p79, %p80
      %s83 = sadd.s32 %s82, 1
      %p86 = scmp.eq.s32.totalorder %s13, 5
      %p87 = scmp.ne.s32.totalorder %s82, %s84
      %p88 = scmp.eq.s32.totalorder %s13, 0
      %p89 = por %p87, %p88
      %p90 = scmp.ne.s32.totalorder %s82, %s84
      %p91 = scmp.eq.s32.totalorder %s18, 5
      %p92 = por %p90, %p91
      %p93 = scmp.ne.s32.totalorder %s84, %s85
      %p94 = scmp.eq.s32.totalorder %s18, 0
      %p95 = por %p93, %p94
      %p96 = scmp.ne.s32.totalorder %s84, %s85
      %p97 = scmp.eq.s32.totalorder %s19, 5
      %p98 = por %p96, %p97
      %p100 = scmp.ne.s32.totalorder %s85, %s99
      %p101 = scmp.eq.s32.totalorder %s19, 0
      %p102 = por %p100, %p101
      %s104 = sadd.s32 %s103, 1
      %p107 = scmp.eq.s32.totalorder %s13, 5
      %p108 = scmp.ne.s32.totalorder %s103, %s105
      %p109 = scmp.eq.s32.totalorder %s13, 0
      %p110 = por %p108, %p109
      %p111 = scmp.ne.s32.totalorder %s103, %s105
      %p112 = scmp.eq.s32.totalorder %s18, 5
      %p113 = por %p111, %p112
      %p114 = scmp.ne.s32.totalorder %s105, %s106
      %p115 = scmp.eq.s32.totalorder %s18, 0
      %p116 = por %p114, %p115
      %p117 = scmp.ne.s32.totalorder %s105, %s106
      %p118 = scmp.eq.s32.totalorder %s19, 5
      %p119 = por %p117, %p118
      %p121 = scmp.ne.s32.totalorder %s106, %s120
      %p122 = scmp.eq.s32.totalorder %s19, 0
      %p123 = por %p121, %p122
      %s124 = ssub.s32 %s20, %s32
      %s125 = ssub.s32 %s21, %s28
      %s126 = sor.u32 %s124, %s125
      %p127 = scmp.eq.s32.totalorder %s126, 0
      %s129 = sadd.s32 %s128, 1
      %s130 = scalar_select %p127, %s128, %s129
      %p133 = pneg %p127
      %p134 = scmp.eq.s32.totalorder %s13, 5
      %p135 = por %p133, %p134
      %p136 = scmp.ne.s32.totalorder %s128, %s131
      %p137 = scmp.eq.s32.totalorder %s13, 0
      %p138 = por %p136, %p137
      %p139 = scmp.ne.s32.totalorder %s128, %s131
      %p140 = scmp.eq.s32.totalorder %s18, 5
      %p141 = por %p139, %p140
      %p142 = scmp.ne.s32.totalorder %s131, %s132
      %p143 = scmp.eq.s32.totalorder %s18, 0
      %p144 = por %p142, %p143
      %p145 = scmp.ne.s32.totalorder %s131, %s132
      %p146 = scmp.eq.s32.totalorder %s19, 5
      %p147 = por %p145, %p146
      %p149 = scmp.ne.s32.totalorder %s132, %s148
      %p150 = scmp.eq.s32.totalorder %s19, 0
      %p151 = por %p149, %p150
      %s152 = ssub.s32 %s20, %s32
      %s153 = ssub.s32 %s21, %s28
      %s154 = sor.u32 %s152, %s153
      %p155 = scmp.eq.s32.totalorder %s154, 0
      %s157 = sadd.s32 %s156, 1
      %s158 = scalar_select %p155, %s156, %s157
      %p161 = pneg %p155
      %p162 = scmp.eq.s32.totalorder %s13, 5
      %p163 = por %p161, %p162
      %p164 = scmp.ne.s32.totalorder %s156, %s159
      %p165 = scmp.eq.s32.totalorder %s13, 0
      %p166 = por %p164, %p165
      %p167 = scmp.ne.s32.totalorder %s156, %s159
      %p168 = scmp.eq.s32.totalorder %s18, 5
      %p169 = por %p167, %p168
      %p170 = scmp.ne.s32.totalorder %s159, %s160
      %p171 = scmp.eq.s32.totalorder %s18, 0
      %p172 = por %p170, %p171
      %p173 = scmp.ne.s32.totalorder %s159, %s160
      %p174 = scmp.eq.s32.totalorder %s19, 5
      %p175 = por %p173, %p174
      %p177 = scmp.ne.s32.totalorder %s160, %s176
      %p178 = scmp.eq.s32.totalorder %s19, 0
      %p179 = por %p177, %p178
      %s180 = ssub.s32 %s20, %s32
      %s181 = ssub.s32 %s21, %s28
      %s182 = sor.u32 %s180, %s181
      %p183 = scmp.eq.s32.totalorder %s182, 0
      %s185 = sadd.s32 %s184, 1
      %s186 = scalar_select %p183, %s184, %s185
      %p189 = pneg %p183
      %p190 = scmp.eq.s32.totalorder %s13, 5
      %p191 = por %p189, %p190
      %p192 = scmp.ne.s32.totalorder %s184, %s187
      %p193 = scmp.eq.s32.totalorder %s13, 0
      %p194 = por %p192, %p193
      %p195 = scmp.ne.s32.totalorder %s184, %s187
      %p196 = scmp.eq.s32.totalorder %s18, 5
      %p197 = por %p195, %p196
      %p198 = scmp.ne.s32.totalorder %s187, %s188
      %p199 = scmp.eq.s32.totalorder %s18, 0
      %p200 = por %p198, %p199
      %p201 = scmp.ne.s32.totalorder %s187, %s188
      %p202 = scmp.eq.s32.totalorder %s19, 5
      %p203 = por %p201, %p202
      %p205 = scmp.ne.s32.totalorder %s188, %s204
      %p206 = scmp.eq.s32.totalorder %s19, 0
      %p207 = por %p205, %p206
      %p208 = scmp.le.s32.totalorder 1, %s13
      %p209 = scmp.lt.s32.totalorder %s13, 7
      %p210 = pnand %p208, %p209
      %p211 = pneg %p210
      // Predicated region
      $region9: #{_lambda_.6} parent=5 // pred_check
        _
      $region10: #{_lambda_.6} parent=5 // pred_check_branch
        %213 = sbr.rel (%p210) target = $region12
      $region11: #{_lambda_.6} parent=5 // pred_region
        %s214 = ssub.s32 %s13, 1
        // Predicated region
        $region13: #{_lambda_.6} parent=11 // pred_check
          %p215 = pneg %p74
        $region14: #{_lambda_.6} parent=11 // pred_check_branch
          %217 = sbr.rel (%p215) target = $region16
        $region15: #{_lambda_.6} parent=11 // pred_region
          _
        $region16: #{_lambda_.6} parent=11 // pred_fallthru
          _
        // Predicated region
        $region17: #{_lambda_.6} parent=11 // pred_check
          %p218 = pneg %p95
        $region18: #{_lambda_.6} parent=11 // pred_check_branch
          %220 = sbr.rel (%p218) target = $region20
        $region19: #{_lambda_.6} parent=11 // pred_region
          _
        $region20: #{_lambda_.6} parent=11 // pred_fallthru
          _
        // Predicated region
        $region21: #{_lambda_.6} parent=11 // pred_check
          %p221 = pneg %p116
        $region22: #{_lambda_.6} parent=11 // pred_check_branch
          %223 = sbr.rel (%p221) target = $region24
        $region23: #{_lambda_.6} parent=11 // pred_region
          _
        $region24: #{_lambda_.6} parent=11 // pred_fallthru
          _
      $region12: #{_lambda_.6} parent=5 // pred_fallthru
        _
      %p224 = scmp.lt.s32.totalorder %s13, 6
      // Predicated region
      $region25: #{_lambda_.6} parent=5 // pred_check
        %p225 = pneg %p224
      $region26: #{_lambda_.6} parent=5 // pred_check_branch
        %227 = sbr.rel (%p225) target = $region28
      $region27: #{_lambda_.6} parent=5 // pred_region
        // Predicated region
        $region29: #{_lambda_.6} parent=27 // pred_check
          %p228 = pneg %p47
        $region30: #{_lambda_.6} parent=27 // pred_check_branch
          %230 = sbr.rel (%p228) target = $region32
        $region31: #{_lambda_.6} parent=27 // pred_region
          %s231 = sand.u32 %s37, 1
          %s232 = sand.u32 %s37, 1
          %s233 = smul.addr %s232, 144
          %s234 = scalar_lea.vmem [#allocation2], %s233
          %s235 = smul.u32 3, %s21
          %s236 = ssub.s32 8, %s235
          %p237 = scmp.lt.s32.totalorder %s236, 3
          %s238 = scalar_select %p237, %s236, 3
          %s239 = smul.u32 48, %s238
          %p240 = scmp.ne.s32.totalorder 0, %s239
          %s241 = smul.addr %s20, 48
          %s242 = sadd.s32 %s235, %s241
          %s243 = smul.addr %s242, 8
          %s244 = scalar_lea.vmem %s0, %s243
          %s245 = smul.u32 %s238, 8
          // Predicated region
          $region33: #{_lambda_.6} parent=31 // pred_check
            %p246 = pneg %p240
          $region34: #{_lambda_.6} parent=31 // pred_check_branch
            %248 = sbr.rel (%p246) target = $region36
          $region35: #{_lambda_.6} parent=31 // pred_region
            %p249 = scmp.lt.u32.totalorder %s245, 8
            %p250 = pneg %p249
            // Predicated region
            $region37: #{_lambda_.6} parent=35 // pred_check
              _
            $region38: #{_lambda_.6} parent=35 // pred_check_branch
              %252 = sbr.rel (%p249) target = $region40
            $region39: #{_lambda_.6} parent=35 // pred_region
              %s278 = sand.u32 %s245, 7
              %p279 = scmp.eq.s32.totalorder %s278, 0
              // Predicated region
              $region52: #{_lambda_.6} parent=39 // pred_check
                %p280 = pneg %p279
              $region53: #{_lambda_.6} parent=39 // pred_check_branch
                %282 = sbr.rel (%p280) target = $region55
              $region54: #{_lambda_.6} parent=39 // pred_region
                %s283 = sshrl.u32 %s245, 3
                %s284 = sdiv.u32.pop %s283, 6
                %s285 = srem.u32.pop %s283, 6
                // While loop
                $region56: #{_lambda_.6} parent=54 // loop_pre_header
                  _
                $region57: #{_lambda_.6} parent=54 // loop_header
                  %s287 = sphi 0, %s289
                  %p288 = scmp.ge.s32.totalorder %s287, %s284
                  %s292 = sphi 0, %s369
                  %s293 = sphi %s244, %s372
                  %s294 = sphi %s234, %s373
                $region58: #{_lambda_.6} parent=54 // loop_header_branch
                  %291 = sbr.rel (%p288) target = $region62
                $region59: #{_lambda_.6} parent=54 // loop_body
                  %v295 = vld [vmem:[%s293] sm:$0xff]
                  %296 = vst [vmem:[%s294] sm:$0xff] %v295
                  %v297 = vld [vmem:[%s293 + $0x8] sm:$0xff]
                  %298 = vst [vmem:[%s294 + $0x8] sm:$0xff] %v297
                  %v299 = vld [vmem:[%s293 + $0x10] sm:$0xff]
                  %300 = vst [vmem:[%s294 + $0x10] sm:$0xff] %v299
                  %v301 = vld [vmem:[%s293 + $0x18] sm:$0xff]
                  %302 = vst [vmem:[%s294 + $0x18] sm:$0xff] %v301
                  %v303 = vld [vmem:[%s293 + $0x20] sm:$0xff]
                  %304 = vst [vmem:[%s294 + $0x20] sm:$0xff] %v303
                  %v305 = vld [vmem:[%s293 + $0x28] sm:$0xff]
                  %306 = vst [vmem:[%s294 + $0x28] sm:$0xff] %v305
                  %v307 = vld [vmem:[%s293 + $0x40] sm:$0xff]
                  %308 = vst [vmem:[%s294 + $0x18] sm:$0xff] %v307
                  %v309 = vld [vmem:[%s293 + $0x48] sm:$0xff]
                  %310 = vst [vmem:[%s294 + $0x20] sm:$0xff] %v309
                  %v311 = vld [vmem:[%s293 + $0x50] sm:$0xff]
                  %312 = vst [vmem:[%s294 + $0x28] sm:$0xff] %v311
                  %v313 = vld [vmem:[%s293 + $0x58] sm:$0xff]
                  %314 = vst [vmem:[%s294 + $0x30] sm:$0xff] %v313
                  %v315 = vld [vmem:[%s293 + $0x60] sm:$0xff]
                  %316 = vst [vmem:[%s294 + $0x38] sm:$0xff] %v315
                  %v317 = vld [vmem:[%s293 + $0x68] sm:$0xff]
                  %318 = vst [vmem:[%s294 + $0x40] sm:$0xff] %v317
                  %v319 = vld [vmem:[%s293 + $0x80] sm:$0xff]
                  %320 = vst [vmem:[%s294 + $0x30] sm:$0xff] %v319
                  %v321 = vld [vmem:[%s293 + $0x88] sm:$0xff]
                  %322 = vst [vmem:[%s294 + $0x38] sm:$0xff] %v321
                  %v323 = vld [vmem:[%s293 + $0x90] sm:$0xff]
                  %324 = vst [vmem:[%s294 + $0x40] sm:$0xff] %v323
                  %v325 = vld [vmem:[%s293 + $0x98] sm:$0xff]
                  %326 = vst [vmem:[%s294 + $0x48] sm:$0xff] %v325
                  %v327 = vld [vmem:[%s293 + $0xa0] sm:$0xff]
                  %328 = vst [vmem:[%s294 + $0x50] sm:$0xff] %v327
                  %v329 = vld [vmem:[%s293 + $0xa8] sm:$0xff]
                  %330 = vst [vmem:[%s294 + $0x58] sm:$0xff] %v329
                  %v331 = vld [vmem:[%s293 + $0xc0] sm:$0xff]
                  %332 = vst [vmem:[%s294 + $0x48] sm:$0xff] %v331
                  %v333 = vld [vmem:[%s293 + $0xc8] sm:$0xff]
                  %334 = vst [vmem:[%s294 + $0x50] sm:$0xff] %v333
                  %v335 = vld [vmem:[%s293 + $0xd0] sm:$0xff]
                  %336 = vst [vmem:[%s294 + $0x58] sm:$0xff] %v335
                  %v337 = vld [vmem:[%s293 + $0xd8] sm:$0xff]
                  %338 = vst [vmem:[%s294 + $0x60] sm:$0xff] %v337
                  %v339 = vld [vmem:[%s293 + $0xe0] sm:$0xff]
                  %340 = vst [vmem:[%s294 + $0x68] sm:$0xff] %v339
                  %v341 = vld [vmem:[%s293 + $0xe8] sm:$0xff]
                  %342 = vst [vmem:[%s294 + $0x70] sm:$0xff] %v341
                  %v343 = vld [vmem:[%s293 + $0x100] sm:$0xff]
                  %344 = vst [vmem:[%s294 + $0x60] sm:$0xff] %v343
                  %v345 = vld [vmem:[%s293 + $0x108] sm:$0xff]
                  %346 = vst [vmem:[%s294 + $0x68] sm:$0xff] %v345
                  %v347 = vld [vmem:[%s293 + $0x110] sm:$0xff]
                  %348 = vst [vmem:[%s294 + $0x70] sm:$0xff] %v347
                  %v349 = vld [vmem:[%s293 + $0x118] sm:$0xff]
                  %350 = vst [vmem:[%s294 + $0x78] sm:$0xff] %v349
                  %v351 = vld [vmem:[%s293 + $0x120] sm:$0xff]
                  %352 = vst [vmem:[%s294 + $0x80] sm:$0xff] %v351
                  %v353 = vld [vmem:[%s293 + $0x128] sm:$0xff]
                  %354 = vst [vmem:[%s294 + $0x88] sm:$0xff] %v353
                  %v355 = vld [vmem:[%s293 + $0x140] sm:$0xff]
                  %356 = vst [vmem:[%s294 + $0x78] sm:$0xff] %v355
                  %v357 = vld [vmem:[%s293 + $0x148] sm:$0xff]
                  %358 = vst [vmem:[%s294 + $0x80] sm:$0xff] %v357
                  %v359 = vld [vmem:[%s293 + $0x150] sm:$0xff]
                  %360 = vst [vmem:[%s294 + $0x88] sm:$0xff] %v359
                  %v361 = vld [vmem:[%s293 + $0x158] sm:$0xff]
                  %362 = vst [vmem:[%s294 + $0x90] sm:$0xff] %v361
                  %v363 = vld [vmem:[%s293 + $0x160] sm:$0xff]
                  %364 = vst [vmem:[%s294 + $0x98] sm:$0xff] %v363
                  %v365 = vld [vmem:[%s293 + $0x168] sm:$0xff]
                  %366 = vst [vmem:[%s294 + $0xa0] sm:$0xff] %v365
                  %s367 = sadd.s32 1, %s292
                  %p368 = scmp.ge.s32.totalorder %s367, %s284
                  %s369 = scalar_select %p368, 0, %s367
                  %s370 = smul.u32 %s369, 48
                  %s371 = smul.u32 %s369, 48
                  %s372 = scalar_lea.vmem %s244, %s370
                  %s373 = scalar_lea.vmem %s234, %s371 [#allocation2]
                $region60: #{_lambda_.6} parent=54 // loop_footer
                  %s289 = sadd.s32 %s287, 1
                $region61: #{_lambda_.6} parent=54 // loop_footer_branch
                  %286 = sbr.rel target = $region57
                $region62: #{_lambda_.6} parent=54 // loop_exit
                  _
                %s374 = sdiv.u32.pop %s283, 6
                %s375 = srem.u32.pop %s283, 6
                %s376 = smul.u32 %s374, 6
                %s377 = smul.u32 8, %s376
                %s378 = scalar_lea.vmem %s244, %s377
                %s379 = smul.u32 8, %s376
                %s380 = scalar_lea.vmem %s234, %s379 [#allocation2]
                // While loop
                $region63: #{_lambda_.6} parent=54 // loop_pre_header
                  _
                $region64: #{_lambda_.6} parent=54 // loop_header
                  %s382 = sphi 0, %s384
                  %p383 = scmp.ge.s32.totalorder %s382, %s375
                  %s387 = sphi 0, %s404
                  %s388 = sphi %s378, %s407
                  %s389 = sphi %s380, %s408
                $region65: #{_lambda_.6} parent=54 // loop_header_branch
                  %386 = sbr.rel (%p383) target = $region69
                $region66: #{_lambda_.6} parent=54 // loop_body
                  %v390 = vld [vmem:[%s388] sm:$0xff]
                  %391 = vst [vmem:[%s389] sm:$0xff] %v390
                  %v392 = vld [vmem:[%s388 + $0x40] sm:$0xff]
                  %393 = vst [vmem:[%s389 + $0x18] sm:$0xff] %v392
                  %v394 = vld [vmem:[%s388 + $0x80] sm:$0xff]
                  %395 = vst [vmem:[%s389 + $0x30] sm:$0xff] %v394
                  %v396 = vld [vmem:[%s388 + $0xc0] sm:$0xff]
                  %397 = vst [vmem:[%s389 + $0x48] sm:$0xff] %v396
                  %v398 = vld [vmem:[%s388 + $0x100] sm:$0xff]
                  %399 = vst [vmem:[%s389 + $0x60] sm:$0xff] %v398
                  %v400 = vld [vmem:[%s388 + $0x140] sm:$0xff]
                  %401 = vst [vmem:[%s389 + $0x78] sm:$0xff] %v400
                  %s402 = sadd.s32 1, %s387
                  %p403 = scmp.ge.s32.totalorder %s402, %s375
                  %s404 = scalar_select %p403, 0, %s402
                  %s405 = smul.u32 %s404, 8
                  %s406 = smul.u32 %s404, 8
                  %s407 = scalar_lea.vmem %s378, %s405
                  %s408 = scalar_lea.vmem %s380, %s406 [#allocation2]
                $region67: #{_lambda_.6} parent=54 // loop_footer
                  %s384 = sadd.s32 %s382, 1
                $region68: #{_lambda_.6} parent=54 // loop_footer_branch
                  %381 = sbr.rel target = $region64
                $region69: #{_lambda_.6} parent=54 // loop_exit
                  _
              $region55: #{_lambda_.6} parent=39 // pred_fallthru
                _
              %p409 = pneg %p279
              // Predicated region
              $region70: #{_lambda_.6} parent=39 // pred_check
                _
              $region71: #{_lambda_.6} parent=39 // pred_check_branch
                %411 = sbr.rel (%p279) target = $region73
              $region72: #{_lambda_.6} parent=39 // pred_region
                %s412 = sand.u32 %s245, 7
                %s413 = ssub.s32 %s245, %s412
                %s414 = scalar_lea.vmem %s244, %s413
                %s415 = ssub.s32 %s245, %s412
                %s416 = scalar_lea.vmem %s234, %s415 [#allocation2]
                %s417 = sshrl.u32 %s245, 3
                %s418 = sdiv.u32.pop %s417, 6
                %s419 = srem.u32.pop %s417, 6
                // While loop
                $region74: #{_lambda_.6} parent=72 // loop_pre_header
                  _
                $region75: #{_lambda_.6} parent=72 // loop_header
                  %s421 = sphi 0, %s423
                  %p422 = scmp.ge.s32.totalorder %s421, %s418
                  %s426 = sphi 0, %s503
                  %s427 = sphi %s244, %s506
                  %s428 = sphi %s234, %s507
                $region76: #{_lambda_.6} parent=72 // loop_header_branch
                  %425 = sbr.rel (%p422) target = $region80
                $region77: #{_lambda_.6} parent=72 // loop_body
                  %v429 = vld [vmem:[%s427] sm:$0xff]
                  %430 = vst [vmem:[%s428] sm:$0xff] %v429
                  %v431 = vld [vmem:[%s427 + $0x8] sm:$0xff]
                  %432 = vst [vmem:[%s428 + $0x8] sm:$0xff] %v431
                  %v433 = vld [vmem:[%s427 + $0x10] sm:$0xff]
                  %434 = vst [vmem:[%s428 + $0x10] sm:$0xff] %v433
                  %v435 = vld [vmem:[%s427 + $0x18] sm:$0xff]
                  %436 = vst [vmem:[%s428 + $0x18] sm:$0xff] %v435
                  %v437 = vld [vmem:[%s427 + $0x20] sm:$0xff]
                  %438 = vst [vmem:[%s428 + $0x20] sm:$0xff] %v437
                  %v439 = vld [vmem:[%s427 + $0x28] sm:$0xff]
                  %440 = vst [vmem:[%s428 + $0x28] sm:$0xff] %v439
                  %v441 = vld [vmem:[%s427 + $0x40] sm:$0xff]
                  %442 = vst [vmem:[%s428 + $0x18] sm:$0xff] %v441
                  %v443 = vld [vmem:[%s427 + $0x48] sm:$0xff]
                  %444 = vst [vmem:[%s428 + $0x20] sm:$0xff] %v443
                  %v445 = vld [vmem:[%s427 + $0x50] sm:$0xff]
                  %446 = vst [vmem:[%s428 + $0x28] sm:$0xff] %v445
                  %v447 = vld [vmem:[%s427 + $0x58] sm:$0xff]
                  %448 = vst [vmem:[%s428 + $0x30] sm:$0xff] %v447
                  %v449 = vld [vmem:[%s427 + $0x60] sm:$0xff]
                  %450 = vst [vmem:[%s428 + $0x38] sm:$0xff] %v449
                  %v451 = vld [vmem:[%s427 + $0x68] sm:$0xff]
                  %452 = vst [vmem:[%s428 + $0x40] sm:$0xff] %v451
                  %v453 = vld [vmem:[%s427 + $0x80] sm:$0xff]
                  %454 = vst [vmem:[%s428 + $0x30] sm:$0xff] %v453
                  %v455 = vld [vmem:[%s427 + $0x88] sm:$0xff]
                  %456 = vst [vmem:[%s428 + $0x38] sm:$0xff] %v455
                  %v457 = vld [vmem:[%s427 + $0x90] sm:$0xff]
                  %458 = vst [vmem:[%s428 + $0x40] sm:$0xff] %v457
                  %v459 = vld [vmem:[%s427 + $0x98] sm:$0xff]
                  %460 = vst [vmem:[%s428 + $0x48] sm:$0xff] %v459
                  %v461 = vld [vmem:[%s427 + $0xa0] sm:$0xff]
                  %462 = vst [vmem:[%s428 + $0x50] sm:$0xff] %v461
                  %v463 = vld [vmem:[%s427 + $0xa8] sm:$0xff]
                  %464 = vst [vmem:[%s428 + $0x58] sm:$0xff] %v463
                  %v465 = vld [vmem:[%s427 + $0xc0] sm:$0xff]
                  %466 = vst [vmem:[%s428 + $0x48] sm:$0xff] %v465
                  %v467 = vld [vmem:[%s427 + $0xc8] sm:$0xff]
                  %468 = vst [vmem:[%s428 + $0x50] sm:$0xff] %v467
                  %v469 = vld [vmem:[%s427 + $0xd0] sm:$0xff]
                  %470 = vst [vmem:[%s428 + $0x58] sm:$0xff] %v469
                  %v471 = vld [vmem:[%s427 + $0xd8] sm:$0xff]
                  %472 = vst [vmem:[%s428 + $0x60] sm:$0xff] %v471
                  %v473 = vld [vmem:[%s427 + $0xe0] sm:$0xff]
                  %474 = vst [vmem:[%s428 + $0x68] sm:$0xff] %v473
                  %v475 = vld [vmem:[%s427 + $0xe8] sm:$0xff]
                  %476 = vst [vmem:[%s428 + $0x70] sm:$0xff] %v475
                  %v477 = vld [vmem:[%s427 + $0x100] sm:$0xff]
                  %478 = vst [vmem:[%s428 + $0x60] sm:$0xff] %v477
                  %v479 = vld [vmem:[%s427 + $0x108] sm:$0xff]
                  %480 = vst [vmem:[%s428 + $0x68] sm:$0xff] %v479
                  %v481 = vld [vmem:[%s427 + $0x110] sm:$0xff]
                  %482 = vst [vmem:[%s428 + $0x70] sm:$0xff] %v481
                  %v483 = vld [vmem:[%s427 + $0x118] sm:$0xff]
                  %484 = vst [vmem:[%s428 + $0x78] sm:$0xff] %v483
                  %v485 = vld [vmem:[%s427 + $0x120] sm:$0xff]
                  %486 = vst [vmem:[%s428 + $0x80] sm:$0xff] %v485
                  %v487 = vld [vmem:[%s427 + $0x128] sm:$0xff]
                  %488 = vst [vmem:[%s428 + $0x88] sm:$0xff] %v487
                  %v489 = vld [vmem:[%s427 + $0x140] sm:$0xff]
                  %490 = vst [vmem:[%s428 + $0x78] sm:$0xff] %v489
                  %v491 = vld [vmem:[%s427 + $0x148] sm:$0xff]
                  %492 = vst [vmem:[%s428 + $0x80] sm:$0xff] %v491
                  %v493 = vld [vmem:[%s427 + $0x150] sm:$0xff]
                  %494 = vst [vmem:[%s428 + $0x88] sm:$0xff] %v493
                  %v495 = vld [vmem:[%s427 + $0x158] sm:$0xff]
                  %496 = vst [vmem:[%s428 + $0x90] sm:$0xff] %v495
                  %v497 = vld [vmem:[%s427 + $0x160] sm:$0xff]
                  %498 = vst [vmem:[%s428 + $0x98] sm:$0xff] %v497
                  %v499 = vld [vmem:[%s427 + $0x168] sm:$0xff]
                  %500 = vst [vmem:[%s428 + $0xa0] sm:$0xff] %v499
                  %s501 = sadd.s32 1, %s426
                  %p502 = scmp.ge.s32.totalorder %s501, %s418
                  %s503 = scalar_select %p502, 0, %s501
                  %s504 = smul.u32 %s503, 48
                  %s505 = smul.u32 %s503, 48
                  %s506 = scalar_lea.vmem %s244, %s504
                  %s507 = scalar_lea.vmem %s234, %s505 [#allocation2]
                $region78: #{_lambda_.6} parent=72 // loop_footer
                  %s423 = sadd.s32 %s421, 1
                $region79: #{_lambda_.6} parent=72 // loop_footer_branch
                  %420 = sbr.rel target = $region75
                $region80: #{_lambda_.6} parent=72 // loop_exit
                  _
                %s508 = sdiv.u32.pop %s417, 6
                %s509 = srem.u32.pop %s417, 6
                %s510 = smul.u32 %s508, 6
                %s511 = smul.u32 8, %s510
                %s512 = scalar_lea.vmem %s244, %s511
                %s513 = smul.u32 8, %s510
                %s514 = scalar_lea.vmem %s234, %s513 [#allocation2]
                // While loop
                $region81: #{_lambda_.6} parent=72 // loop_pre_header
                  _
                $region82: #{_lambda_.6} parent=72 // loop_header
                  %s516 = sphi 0, %s518
                  %p517 = scmp.ge.s32.totalorder %s516, %s509
                  %s521 = sphi 0, %s538
                  %s522 = sphi %s512, %s541
                  %s523 = sphi %s514, %s542
                $region83: #{_lambda_.6} parent=72 // loop_header_branch
                  %520 = sbr.rel (%p517) target = $region87
                $region84: #{_lambda_.6} parent=72 // loop_body
                  %v524 = vld [vmem:[%s522] sm:$0xff]
                  %525 = vst [vmem:[%s523] sm:$0xff] %v524
                  %v526 = vld [vmem:[%s522 + $0x40] sm:$0xff]
                  %527 = vst [vmem:[%s523 + $0x18] sm:$0xff] %v526
                  %v528 = vld [vmem:[%s522 + $0x80] sm:$0xff]
                  %529 = vst [vmem:[%s523 + $0x30] sm:$0xff] %v528
                  %v530 = vld [vmem:[%s522 + $0xc0] sm:$0xff]
                  %531 = vst [vmem:[%s523 + $0x48] sm:$0xff] %v530
                  %v532 = vld [vmem:[%s522 + $0x100] sm:$0xff]
                  %533 = vst [vmem:[%s523 + $0x60] sm:$0xff] %v532
                  %v534 = vld [vmem:[%s522 + $0x140] sm:$0xff]
                  %535 = vst [vmem:[%s523 + $0x78] sm:$0xff] %v534
                  %s536 = sadd.s32 1, %s521
                  %p537 = scmp.ge.s32.totalorder %s536, %s509
                  %s538 = scalar_select %p537, 0, %s536
                  %s539 = smul.u32 %s538, 8
                  %s540 = smul.u32 %s538, 8
                  %s541 = scalar_lea.vmem %s512, %s539
                  %s542 = scalar_lea.vmem %s514, %s540 [#allocation2]
                $region85: #{_lambda_.6} parent=72 // loop_footer
                  %s518 = sadd.s32 %s516, 1
                $region86: #{_lambda_.6} parent=72 // loop_footer_branch
                  %515 = sbr.rel target = $region82
                $region87: #{_lambda_.6} parent=72 // loop_exit
                  _
                %s543 = sshll.u32 1, %s412
                %s544 = ssub.s32 %s543, 1
                loop: start=0, step=1, limit=1
                $region88: #{_lambda_.6} parent=72 // loop_pre_header
                  _
                $region89: #{_lambda_.6} parent=72 // loop_header
                  %s546 = sphi 0, %s550
                  %p547 = scmp.ge.s32.totalorder %s546, 1
                  %s551 = sphi %s414, %s414
                  %s552 = sphi %s416, %s416
                $region90: #{_lambda_.6} parent=72 // loop_header_branch
                  %549 = sbr.rel (%p547) target = $region94
                $region91: #{_lambda_.6} parent=72 // loop_body
                  %v553 = vld [vmem:[%s551] sm:%s544]
                  %554 = vst [vmem:[%s552] sm:%s544] %v553
                  %v555 = vld [vmem:[%s551 + $0x40] sm:%s544]
                  %556 = vst [vmem:[%s552 + $0x18] sm:%s544] %v555
                  %v557 = vld [vmem:[%s551 + $0x80] sm:%s544]
                  %558 = vst [vmem:[%s552 + $0x30] sm:%s544] %v557
                  %v559 = vld [vmem:[%s551 + $0xc0] sm:%s544]
                  %560 = vst [vmem:[%s552 + $0x48] sm:%s544] %v559
                  %v561 = vld [vmem:[%s551 + $0x100] sm:%s544]
                  %562 = vst [vmem:[%s552 + $0x60] sm:%s544] %v561
                  %v563 = vld [vmem:[%s551 + $0x140] sm:%s544]
                  %564 = vst [vmem:[%s552 + $0x78] sm:%s544] %v563
                $region92: #{_lambda_.6} parent=72 // loop_footer
                  %s550 = sadd.s32 1, %s546
                $region93: #{_lambda_.6} parent=72 // loop_footer_branch
                  %545 = sbr.rel target = $region89
                $region94: #{_lambda_.6} parent=72 // loop_exit
                  _
              $region73: #{_lambda_.6} parent=39 // pred_fallthru
                _
            $region40: #{_lambda_.6} parent=35 // pred_fallthru
              _
            // Predicated region
            $region41: #{_lambda_.6} parent=35 // pred_check
              %p253 = pneg %p249
            $region42: #{_lambda_.6} parent=35 // pred_check_branch
              %255 = sbr.rel (%p253) target = $region44
            $region43: #{_lambda_.6} parent=35 // pred_region
              %s256 = sshll.u32 1, %s245
              %s257 = ssub.s32 %s256, 1
              loop: start=0, step=1, limit=1
              $region45: #{_lambda_.6} parent=43 // loop_pre_header
                _
              $region46: #{_lambda_.6} parent=43 // loop_header
                %s259 = sphi 0, %s263
                %p260 = scmp.ge.s32.totalorder %s259, 1
                %s264 = sphi %s244, %s244
                %s265 = sphi %s234, %s234
              $region47: #{_lambda_.6} parent=43 // loop_header_branch
                %262 = sbr.rel (%p260) target = $region51
              $region48: #{_lambda_.6} parent=43 // loop_body
                %v266 = vld [vmem:[%s264] sm:%s257]
                %267 = vst [vmem:[%s265] sm:%s257] %v266
                %v268 = vld [vmem:[%s264 + $0x40] sm:%s257]
                %269 = vst [vmem:[%s265 + $0x18] sm:%s257] %v268
                %v270 = vld [vmem:[%s264 + $0x80] sm:%s257]
                %271 = vst [vmem:[%s265 + $0x30] sm:%s257] %v270
                %v272 = vld [vmem:[%s264 + $0xc0] sm:%s257]
                %273 = vst [vmem:[%s265 + $0x48] sm:%s257] %v272
                %v274 = vld [vmem:[%s264 + $0x100] sm:%s257]
                %275 = vst [vmem:[%s265 + $0x60] sm:%s257] %v274
                %v276 = vld [vmem:[%s264 + $0x140] sm:%s257]
                %277 = vst [vmem:[%s265 + $0x78] sm:%s257] %v276
              $region49: #{_lambda_.6} parent=43 // loop_footer
                %s263 = sadd.s32 1, %s259
              $region50: #{_lambda_.6} parent=43 // loop_footer_branch
                %258 = sbr.rel target = $region46
              $region51: #{_lambda_.6} parent=43 // loop_exit
                _
            $region44: #{_lambda_.6} parent=35 // pred_fallthru
              _
          $region36: #{_lambda_.6} parent=31 // pred_fallthru
            _
          %565 = vnop
        $region32: #{_lambda_.6} parent=27 // pred_fallthru
          _
      $region28: #{_lambda_.6} parent=5 // pred_fallthru
        _
      %p566 = scmp.le.s32.totalorder 1, %s13
      %p567 = scmp.lt.s32.totalorder %s13, 7
      %p568 = pnand %p566, %p567
      %p569 = pneg %p568
      // Predicated region
      $region95: #{_lambda_.6} parent=5 // pred_check
        _
      $region96: #{_lambda_.6} parent=5 // pred_check_branch
        %571 = sbr.rel (%p568) target = $region98
      $region97: #{_lambda_.6} parent=5 // pred_region
        %s572 = ssub.s32 %s13, 1
        %s573 = sand.u32 %s40, 1
        %s574 = sand.u32 %s40, 1
        %s575 = smul.addr %s574, 144
        %s576 = scalar_lea.vmem [#allocation2], %s575
        // Predicated region
        $region99: #{_lambda_.6} parent=97 // pred_check
          %p577 = pneg %p53
        $region100: #{_lambda_.6} parent=97 // pred_check_branch
          %579 = sbr.rel (%p577) target = $region102
        $region101: #{_lambda_.6} parent=97 // pred_region
          _
        $region102: #{_lambda_.6} parent=97 // pred_fallthru
          _
        %s580 = sand.u32 %s40, 1
        %s581 = sand.u32 %s40, 1
        %s582 = smul.addr %s581, 144
        %s583 = scalar_lea.vmem [#allocation2], %s582
        %p584 = pneg %p53
        %p585 = pneg %p50
        %p586 = pneg %p74
        %p587 = pneg %p71
        %p588 = pneg %p95
        %p589 = pneg %p92
        %p590 = pneg %p116
        %p591 = pneg %p113
        %p592 = pneg %p144
        %p593 = pneg %p141
        %s594 = sand.u32 %s131, 1
        %s595 = sand.u32 %s131, 1
        %s596 = smul.addr %s595, 96
        %s597 = scalar_lea.vmem [#allocation3], %s596
        %p598 = pneg %p172
        %p599 = pneg %p169
        %p600 = scmp.lt.s32.totalorder %s22, 1
        %s601 = scalar_select %p600, %s22, 1
        %p602 = scmp.lt.s32.totalorder %s23, 2
        %s603 = scalar_select %p602, %s23, 2
        %s604 = smul.addr %s603, 4
        %s605 = smul.addr %s601, 12
        %s606 = sadd.s32 %s604, %s605
        %s607 = smul.addr %s606, 8
        %s608 = scalar_lea.vmem %s5, %s607
        %p609 = pneg %p200
        %p610 = pneg %p197
        %p611 = scmp.lt.s32.totalorder %s22, 1
        %s612 = scalar_select %p611, %s22, 1
        %p613 = scmp.lt.s32.totalorder %s23, 2
        %s614 = scalar_select %p613, %s23, 2
        %s615 = smul.addr %s614, 4
        %s616 = smul.addr %s612, 12
        %s617 = sadd.s32 %s615, %s616
        %s618 = smul.addr %s617, 8
        %s619 = scalar_lea.vmem %s6, %s618
        %s620 = smul.u32 3, %s23
        %s621 = ssub.s32 8, %s620
        %p622 = scmp.lt.s32.totalorder %s621, 3
        %s623 = scalar_select %p622, %s621, 3
        %s624 = smul.u32 48, %s623
        %s625 = smul.u32 3, %s23
        %s626 = ssub.s32 8, %s625
        %p627 = scmp.lt.s32.totalorder %s626, 3
        %s628 = scalar_select %p627, %s626, 3
        %s629 = smul.u32 32, %s628
        %p630 = scmp.lt.s32.totalorder %s22, 1
        %s631 = scalar_select %p630, %s22, 1
        %p632 = scmp.lt.s32.totalorder %s23, 2
        %s633 = scalar_select %p632, %s23, 2
        %s634 = smul.addr %s633, 4
        %s635 = smul.addr %s631, 12
        %s636 = sadd.s32 %s634, %s635
        %s637 = smul.addr %s636, 8
        %s638 = scalar_lea.vmem %s5, %s637
        %p639 = scmp.lt.s32.totalorder %s22, 1
        %s640 = scalar_select %p639, %s22, 1
        %p641 = scmp.lt.s32.totalorder %s23, 2
        %s642 = scalar_select %p641, %s23, 2
        %s643 = smul.addr %s642, 4
        %s644 = smul.addr %s640, 12
        %s645 = sadd.s32 %s643, %s644
        %s646 = smul.addr %s645, 8
        %s647 = scalar_lea.vmem %s6, %s646
        %v648 = vld [vmem:[%s576] sm:$0xff]
        %v649 = vld [vmem:[%s576 + $0x8] sm:$0xff]
        %v650 = vld [vmem:[%s576 + $0x10] sm:$0xff]
        %v651 = vld [vmem:[%s576 + $0x18] sm:$0xff]
        %v652 = vld [vmem:[%s576 + $0x20] sm:$0xff]
        %v653 = vld [vmem:[%s576 + $0x28] sm:$0xff]
        %v654 = vld [vmem:[%s576 + $0x30] sm:$0xff]
        %v655 = vld [vmem:[%s576 + $0x38] sm:$0xff]
        %v656 = vld [vmem:[%s576 + $0x40] sm:$0xff]
        %v657 = vld [vmem:[%s576 + $0x48] sm:$0xff]
        %v658 = vld [vmem:[%s576 + $0x50] sm:$0xff]
        %v659 = vld [vmem:[%s576 + $0x58] sm:$0xff]
        %v660 = vld [vmem:[%s576 + $0x60] sm:$0xff]
        %v661 = vld [vmem:[%s576 + $0x68] sm:$0xff]
        %v662 = vld [vmem:[%s576 + $0x70] sm:$0xff]
        %v663 = vld [vmem:[%s576 + $0x78] sm:$0xff]
        %v664 = vld [vmem:[%s576 + $0x80] sm:$0xff]
        %v665 = vld [vmem:[%s576 + $0x88] sm:$0xff]
        %v666 = vld [vmem:[%s1] sm:$0xff]
        %v667 = vld [vmem:[%s1 + $0x8] sm:$0xff]
        %v668 = vld [vmem:[%s1 + $0x10] sm:$0xff]
        %v669 = vld [vmem:[%s1 + $0x18] sm:$0xff]
        %v670 = vld [vmem:[%s1 + $0x20] sm:$0xff]
        %v671 = vld [vmem:[%s1 + $0x28] sm:$0xff]
        %673 = vset.pattern.permute.xlu0 0
        %674 = vperm.xlu0 %673, %v666
        %v675 = vpop.permute.xlu0 %674
        %678 = vset.pattern.permute.xlu0 0
        %679 = vperm.xlu0 %678, %v667
        %v680 = vpop.permute.xlu0 %679
        %683 = vset.pattern.permute.xlu0 0
        %684 = vperm.xlu0 %683, %v668
        %v685 = vpop.permute.xlu0 %684
        %688 = vset.pattern.permute.xlu0 0
        %689 = vperm.xlu0 %688, %v669
        %v690 = vpop.permute.xlu0 %689
        %693 = vset.pattern.permute.xlu0 0
        %694 = vperm.xlu0 %693, %v670
        %v695 = vpop.permute.xlu0 %694
        %698 = vset.pattern.permute.xlu0 0
        %699 = vperm.xlu0 %698, %v671
        %v700 = vpop.permute.xlu0 %699
        %v702 = vmul.f32 %v648, %v675
        %v703 = vmul.f32 %v649, %v675
        %v704 = vmul.f32 %v650, %v675
        %v705 = vmul.f32 %v651, %v680
        %v706 = vmul.f32 %v652, %v680
        %v707 = vmul.f32 %v653, %v680
        %v708 = vmul.f32 %v654, %v685
        %v709 = vmul.f32 %v655, %v685
        %v710 = vmul.f32 %v656, %v685
        %v711 = vmul.f32 %v657, %v690
        %v712 = vmul.f32 %v658, %v690
        %v713 = vmul.f32 %v659, %v690
        %v714 = vmul.f32 %v660, %v695
        %v715 = vmul.f32 %v661, %v695
        %v716 = vmul.f32 %v662, %v695
        %v717 = vmul.f32 %v663, %v700
        %v718 = vmul.f32 %v664, %v700
        %v719 = vmul.f32 %v665, %v700
        %v720 = vld [vmem:[%s2] sm:$0xff]
        %v721 = vld [vmem:[%s2 + $0x8] sm:$0xff]
        %v722 = vld [vmem:[%s2 + $0x10] sm:$0xff]
        %v723 = vld [vmem:[%s2 + $0x18] sm:$0xff]
        %v724 = vld [vmem:[%s2 + $0x20] sm:$0xff]
        %v725 = vld [vmem:[%s2 + $0x28] sm:$0xff]
        %727 = vset.pattern.permute.xlu0 0
        %728 = vperm.xlu0 %727, %v720
        %v729 = vpop.permute.xlu0 %728
        %732 = vset.pattern.permute.xlu0 0
        %733 = vperm.xlu0 %732, %v721
        %v734 = vpop.permute.xlu0 %733
        %737 = vset.pattern.permute.xlu0 0
        %738 = vperm.xlu0 %737, %v722
        %v739 = vpop.permute.xlu0 %738
        %742 = vset.pattern.permute.xlu0 0
        %743 = vperm.xlu0 %742, %v723
        %v744 = vpop.permute.xlu0 %743
        %747 = vset.pattern.permute.xlu0 0
        %748 = vperm.xlu0 %747, %v724
        %v749 = vpop.permute.xlu0 %748
        %752 = vset.pattern.permute.xlu0 0
        %753 = vperm.xlu0 %752, %v725
        %v754 = vpop.permute.xlu0 %753
        %v756 = vadd.f32 %v702, %v729
        %v757 = vadd.f32 %v703, %v729
        %v758 = vadd.f32 %v704, %v729
        %v759 = vadd.f32 %v705, %v734
        %v760 = vadd.f32 %v706, %v734
        %v761 = vadd.f32 %v707, %v734
        %v762 = vadd.f32 %v708, %v739
        %v763 = vadd.f32 %v709, %v739
        %v764 = vadd.f32 %v710, %v739
        %v765 = vadd.f32 %v711, %v744
        %v766 = vadd.f32 %v712, %v744
        %v767 = vadd.f32 %v713, %v744
        %v768 = vadd.f32 %v714, %v749
        %v769 = vadd.f32 %v715, %v749
        %v770 = vadd.f32 %v716, %v749
        %v771 = vadd.f32 %v717, %v754
        %v772 = vadd.f32 %v718, %v754
        %v773 = vadd.f32 %v719, %v754
        %v774 = vmax.f32 %v756, 0.0
        %v775 = vmax.f32 %v757, 0.0
        %v776 = vmax.f32 %v758, 0.0
        %v777 = vmax.f32 %v759, 0.0
        %v778 = vmax.f32 %v760, 0.0
        %v779 = vmax.f32 %v761, 0.0
        %v780 = vmax.f32 %v762, 0.0
        %v781 = vmax.f32 %v763, 0.0
        %v782 = vmax.f32 %v764, 0.0
        %v783 = vmax.f32 %v765, 0.0
        %v784 = vmax.f32 %v766, 0.0
        %v785 = vmax.f32 %v767, 0.0
        %v786 = vmax.f32 %v768, 0.0
        %v787 = vmax.f32 %v769, 0.0
        %v788 = vmax.f32 %v770, 0.0
        %v789 = vmax.f32 %v771, 0.0
        %v790 = vmax.f32 %v772, 0.0
        %v791 = vmax.f32 %v773, 0.0
        %v792 = vld [vmem:[%s3] sm:$0xff]
        %v793 = vld [vmem:[%s3 + $0x8] sm:$0xff]
        %v794 = vld [vmem:[%s3 + $0x10] sm:$0xff]
        %v795 = vld [vmem:[%s3 + $0x18] sm:$0xff]
        %vm796 = vcmask 392192
        %v798 = vsel %vm796, %v792, 0
        %v801 = vsel %vm796, %v793, 0
        %v804 = vsel %vm796, %v794, 0
        %v807 = vsel %vm796, %v795, 0
        %809 = vmatpush.msra.mxu0 0.0
        %810 = vmatpush.msra.mxu0 0.0
        %811 = vmatpush.msra.mxu0 0.0
        %812 = vmatpush.msra.mxu0 0.0
        %813 = vmatpush.msra.mxu0 0.0
        %814 = vmatpush.msra.mxu0 0.0
        %815 = vmatpush.msra.mxu0 0.0
        %816 = vmatpush.msra.mxu0 0.0
        %817 = vmatpush.msra.mxu0 0.0
        %818 = vmatpush.msra.mxu0 0.0
        %819 = vmatpush.msra.mxu0 %v789
        %820 = vmatpush.msra.mxu0 %v786
        %821 = vmatpush.msra.mxu0 %v783
        %822 = vmatpush.msra.mxu0 %v780
        %823 = vmatpush.msra.mxu0 %v777
        %824 = vmatpush.msra.mxu0 %v774
        %825 = vmatmul.f32.gmra.mxu0 %v798
        %v826 = vpop.f32.mrf.mxu0
        %v827 = vadd.f32 0.0, %v826
        %828 = vmatmul.f32.gmra.mxu0 %v801
        %v829 = vpop.f32.mrf.mxu0
        %v830 = vadd.f32 0.0, %v829
        %831 = vmatmul.f32.gmra.mxu0 %v804
        %v832 = vpop.f32.mrf.mxu0
        %v833 = vadd.f32 0.0, %v832
        %834 = vmatmul.f32.gmra.mxu0 %v807
        %v835 = vpop.f32.mrf.mxu0
        %v836 = vadd.f32 0.0, %v835
        %837 = vdwg.mxu0
        %838 = vmatpush.msra.mxu0 0.0
        %839 = vmatpush.msra.mxu0 0.0
        %840 = vmatpush.msra.mxu0 0.0
        %841 = vmatpush.msra.mxu0 0.0
        %842 = vmatpush.msra.mxu0 0.0
        %843 = vmatpush.msra.mxu0 0.0
        %844 = vmatpush.msra.mxu0 0.0
        %845 = vmatpush.msra.mxu0 0.0
        %846 = vmatpush.msra.mxu0 0.0
        %847 = vmatpush.msra.mxu0 0.0
        %848 = vmatpush.msra.mxu0 %v790
        %849 = vmatpush.msra.mxu0 %v787
        %850 = vmatpush.msra.mxu0 %v784
        %851 = vmatpush.msra.mxu0 %v781
        %852 = vmatpush.msra.mxu0 %v778
        %853 = vmatpush.msra.mxu0 %v775
        %854 = vmatmul.f32.gmra.mxu0 %v798
        %v855 = vpop.f32.mrf.mxu0
        %v856 = vadd.f32 0.0, %v855
        %857 = vmatmul.f32.gmra.mxu0 %v801
        %v858 = vpop.f32.mrf.mxu0
        %v859 = vadd.f32 0.0, %v858
        %860 = vmatmul.f32.gmra.mxu0 %v804
        %v861 = vpop.f32.mrf.mxu0
        %v862 = vadd.f32 0.0, %v861
        %863 = vmatmul.f32.gmra.mxu0 %v807
        %v864 = vpop.f32.mrf.mxu0
        %v865 = vadd.f32 0.0, %v864
        %866 = vdwg.mxu0
        %867 = vmatpush.msra.mxu0 0.0
        %868 = vmatpush.msra.mxu0 0.0
        %869 = vmatpush.msra.mxu0 0.0
        %870 = vmatpush.msra.mxu0 0.0
        %871 = vmatpush.msra.mxu0 0.0
        %872 = vmatpush.msra.mxu0 0.0
        %873 = vmatpush.msra.mxu0 0.0
        %874 = vmatpush.msra.mxu0 0.0
        %875 = vmatpush.msra.mxu0 0.0
        %876 = vmatpush.msra.mxu0 0.0
        %877 = vmatpush.msra.mxu0 %v791
        %878 = vmatpush.msra.mxu0 %v788
        %879 = vmatpush.msra.mxu0 %v785
        %880 = vmatpush.msra.mxu0 %v782
        %881 = vmatpush.msra.mxu0 %v779
        %882 = vmatpush.msra.mxu0 %v776
        %883 = vmatmul.f32.gmra.mxu0 %v798
        %v884 = vpop.f32.mrf.mxu0
        %v885 = vadd.f32 0.0, %v884
        %886 = vmatmul.f32.gmra.mxu0 %v801
        %v887 = vpop.f32.mrf.mxu0
        %v888 = vadd.f32 0.0, %v887
        %889 = vmatmul.f32.gmra.mxu0 %v804
        %v890 = vpop.f32.mrf.mxu0
        %v891 = vadd.f32 0.0, %v890
        %892 = vmatmul.f32.gmra.mxu0 %v807
        %v893 = vpop.f32.mrf.mxu0
        %v894 = vadd.f32 0.0, %v893
        %895 = vdwg.mxu0
        %v896 = vlaneseq
        %v897 = vand.u32 %v896, 127
        %v898 = vadd.s32 %v897, 128
        %v899 = vadd.s32 %v897, 256
        %s900 = smul.u32 %s23, 384
        %v901 = vstv %s900
        %v902 = vadd.s32 %v897, %v901
        %v903 = vadd.s32 %v898, %v901
        %v904 = vadd.s32 %v899, %v901
        %vm905 = vcmp.lt.s32.totalorder %v902, 1024
        %vm906 = vcmp.lt.s32.totalorder %v903, 1024
        %vm907 = vcmp.lt.s32.totalorder %v904, 1024
        %v908 = vsel %vm905, %v827, 0.0
        %v909 = vsel %vm906, %v856, 0.0
        %v910 = vsel %vm907, %v885, 0.0
        %v911 = vsel %vm905, %v830, 0.0
        %v912 = vsel %vm906, %v859, 0.0
        %v913 = vsel %vm907, %v888, 0.0
        %v914 = vsel %vm905, %v833, 0.0
        %v915 = vsel %vm906, %v862, 0.0
        %v916 = vsel %vm907, %v891, 0.0
        %v917 = vsel %vm905, %v836, 0.0
        %v918 = vsel %vm906, %v865, 0.0
        %v919 = vsel %vm907, %v894, 0.0
        %v920 = vadd.f32 %v908, %v909
        %v921 = vadd.f32 %v920, %v910
        %922 = vadd.xlane.f32.xlu0 %v921
        %v923 = vpop.xlane.xlu0 %922
        %v924 = vadd.f32 %v911, %v912
        %v925 = vadd.f32 %v924, %v913
        %926 = vadd.xlane.f32.xlu0 %v925
        %v927 = vpop.xlane.xlu0 %926
        %v928 = vadd.f32 %v914, %v915
        %v929 = vadd.f32 %v928, %v916
        %930 = vadd.xlane.f32.xlu0 %v929
        %v931 = vpop.xlane.xlu0 %930
        %v932 = vadd.f32 %v917, %v918
        %v933 = vadd.f32 %v932, %v919
        %934 = vadd.xlane.f32.xlu0 %v933
        %v935 = vpop.xlane.xlu0 %934
        %vm936 = vcmask 7168
        %937 = vst.msk [vmem:[%s638] sm:$0xff] %vm936, %v923
        %938 = vst.msk [vmem:[%s638 + $0x8] sm:$0xff] %vm936, %v927
        %939 = vst.msk [vmem:[%s638 + $0x10] sm:$0xff] %vm936, %v931
        %940 = vst.msk [vmem:[%s638 + $0x18] sm:$0xff] %vm936, %v935
        %v941 = vmul.f32 %v908, %v908
        %v942 = vmul.f32 %v909, %v909
        %v943 = vmul.f32 %v910, %v910
        %v944 = vmul.f32 %v911, %v911
        %v945 = vmul.f32 %v912, %v912
        %v946 = vmul.f32 %v913, %v913
        %v947 = vmul.f32 %v914, %v914
        %v948 = vmul.f32 %v915, %v915
        %v949 = vmul.f32 %v916, %v916
        %v950 = vmul.f32 %v917, %v917
        %v951 = vmul.f32 %v918, %v918
        %v952 = vmul.f32 %v919, %v919
        %v953 = vadd.f32 %v941, %v942
        %v954 = vadd.f32 %v953, %v943
        %955 = vadd.xlane.f32.xlu0 %v954
        %v956 = vpop.xlane.xlu0 %955
        %v957 = vadd.f32 %v944, %v945
        %v958 = vadd.f32 %v957, %v946
        %959 = vadd.xlane.f32.xlu0 %v958
        %v960 = vpop.xlane.xlu0 %959
        %v961 = vadd.f32 %v947, %v948
        %v962 = vadd.f32 %v961, %v949
        %963 = vadd.xlane.f32.xlu0 %v962
        %v964 = vpop.xlane.xlu0 %963
        %v965 = vadd.f32 %v950, %v951
        %v966 = vadd.f32 %v965, %v952
        %967 = vadd.xlane.f32.xlu0 %v966
        %v968 = vpop.xlane.xlu0 %967
        %969 = vst.msk [vmem:[%s647] sm:$0xff] %vm936, %v956
        %970 = vst.msk [vmem:[%s647 + $0x8] sm:$0xff] %vm936, %v960
        %971 = vst.msk [vmem:[%s647 + $0x10] sm:$0xff] %vm936, %v964
        %972 = vst.msk [vmem:[%s647 + $0x18] sm:$0xff] %vm936, %v968
        %973 = vst [vmem:[%s597] sm:$0xff] %v827
        %974 = vst [vmem:[%s597 + $0x8] sm:$0xff] %v856
        %975 = vst [vmem:[%s597 + $0x10] sm:$0xff] %v885
        %976 = vst [vmem:[%s597 + $0x18] sm:$0xff] %v830
        %977 = vst [vmem:[%s597 + $0x20] sm:$0xff] %v859
        %978 = vst [vmem:[%s597 + $0x28] sm:$0xff] %v888
        %979 = vst [vmem:[%s597 + $0x30] sm:$0xff] %v833
        %980 = vst [vmem:[%s597 + $0x38] sm:$0xff] %v862
        %981 = vst [vmem:[%s597 + $0x40] sm:$0xff] %v891
        %982 = vst [vmem:[%s597 + $0x48] sm:$0xff] %v836
        %983 = vst [vmem:[%s597 + $0x50] sm:$0xff] %v865
        %984 = vst [vmem:[%s597 + $0x58] sm:$0xff] %v894
        %s985 = sand.u32 %s131, 1
        %s986 = sand.u32 %s131, 1
        %s987 = smul.addr %s986, 96
        %s988 = scalar_lea.vmem [#allocation3], %s987
        %p989 = scmp.lt.s32.totalorder %s22, 1
        %s990 = scalar_select %p989, %s22, 1
        %p991 = scmp.lt.s32.totalorder %s23, 2
        %s992 = scalar_select %p991, %s23, 2
        %s993 = smul.addr %s992, 4
        %s994 = smul.addr %s990, 12
        %s995 = sadd.s32 %s993, %s994
        %s996 = smul.addr %s995, 8
        %s997 = scalar_lea.vmem %s5, %s996
        %p998 = scmp.lt.s32.totalorder %s22, 1
        %s999 = scalar_select %p998, %s22, 1
        %p1000 = scmp.lt.s32.totalorder %s23, 2
        %s1001 = scalar_select %p1000, %s23, 2
        %s1002 = smul.addr %s1001, 4
        %s1003 = smul.addr %s999, 12
        %s1004 = sadd.s32 %s1002, %s1003
        %s1005 = smul.addr %s1004, 8
        %s1006 = scalar_lea.vmem %s6, %s1005
        // Predicated region
        $region103: #{_lambda_.6} parent=97 // pred_check
          %p1007 = pneg %p141
        $region104: #{_lambda_.6} parent=97 // pred_check_branch
          %1009 = sbr.rel (%p1007) target = $region106
        $region105: #{_lambda_.6} parent=97 // pred_region
          %s1010 = smul.u32 3, %s23
          %s1011 = ssub.s32 8, %s1010
          %p1012 = scmp.lt.s32.totalorder %s1011, 3
          %s1013 = scalar_select %p1012, %s1011, 3
          %s1014 = smul.u32 32, %s1013
          %p1015 = scmp.ne.s32.totalorder 0, %s1014
          %s1016 = smul.addr %s22, 32
          %s1017 = sadd.s32 %s1010, %s1016
          %s1018 = smul.addr %s1017, 8
          %s1019 = scalar_lea.vmem %s4, %s1018
          %s1020 = smul.u32 %s1013, 8
          // Predicated region
          $region107: #{_lambda_.6} parent=105 // pred_check
            %p1021 = pneg %p1015
          $region108: #{_lambda_.6} parent=105 // pred_check_branch
            %1023 = sbr.rel (%p1021) target = $region110
          $region109: #{_lambda_.6} parent=105 // pred_region
            %p1024 = scmp.lt.u32.totalorder %s1020, 8
            %p1025 = pneg %p1024
            // Predicated region
            $region111: #{_lambda_.6} parent=109 // pred_check
              _
            $region112: #{_lambda_.6} parent=109 // pred_check_branch
              %1027 = sbr.rel (%p1024) target = $region114
            $region113: #{_lambda_.6} parent=109 // pred_region
              %s1049 = sand.u32 %s1020, 7
              %p1050 = scmp.eq.s32.totalorder %s1049, 0
              // Predicated region
              $region126: #{_lambda_.6} parent=113 // pred_check
                %p1051 = pneg %p1050
              $region127: #{_lambda_.6} parent=113 // pred_check_branch
                %1053 = sbr.rel (%p1051) target = $region129
              $region128: #{_lambda_.6} parent=113 // pred_region
                %s1054 = sshrl.u32 %s1020, 3
                %s1055 = sshrl.u32 %s1054, 3
                // While loop
                $region130: #{_lambda_.6} parent=128 // loop_pre_header
                  _
                $region131: #{_lambda_.6} parent=128 // loop_header
                  %s1057 = sphi 0, %s1059
                  %p1058 = scmp.ge.s32.totalorder %s1057, %s1055
                  %s1062 = sphi 0, %s1131
                  %s1063 = sphi %s988, %s1134
                  %s1064 = sphi %s1019, %s1135
                $region132: #{_lambda_.6} parent=128 // loop_header_branch
                  %1061 = sbr.rel (%p1058) target = $region136
                $region133: #{_lambda_.6} parent=128 // loop_body
                  %v1065 = vld [vmem:[%s1063] sm:$0xff]
                  %1066 = vst [vmem:[%s1064] sm:$0xff] %v1065
                  %v1067 = vld [vmem:[%s1063 + $0x8] sm:$0xff]
                  %1068 = vst [vmem:[%s1064 + $0x8] sm:$0xff] %v1067
                  %v1069 = vld [vmem:[%s1063 + $0x10] sm:$0xff]
                  %1070 = vst [vmem:[%s1064 + $0x10] sm:$0xff] %v1069
                  %v1071 = vld [vmem:[%s1063 + $0x18] sm:$0xff]
                  %1072 = vst [vmem:[%s1064 + $0x18] sm:$0xff] %v1071
                  %v1073 = vld [vmem:[%s1063 + $0x20] sm:$0xff]
                  %1074 = vst [vmem:[%s1064 + $0x20] sm:$0xff] %v1073
                  %v1075 = vld [vmem:[%s1063 + $0x28] sm:$0xff]
                  %1076 = vst [vmem:[%s1064 + $0x28] sm:$0xff] %v1075
                  %v1077 = vld [vmem:[%s1063 + $0x30] sm:$0xff]
                  %1078 = vst [vmem:[%s1064 + $0x30] sm:$0xff] %v1077
                  %v1079 = vld [vmem:[%s1063 + $0x38] sm:$0xff]
                  %1080 = vst [vmem:[%s1064 + $0x38] sm:$0xff] %v1079
                  %v1081 = vld [vmem:[%s1063 + $0x18] sm:$0xff]
                  %1082 = vst [vmem:[%s1064 + $0x40] sm:$0xff] %v1081
                  %v1083 = vld [vmem:[%s1063 + $0x20] sm:$0xff]
                  %1084 = vst [vmem:[%s1064 + $0x48] sm:$0xff] %v1083
                  %v1085 = vld [vmem:[%s1063 + $0x28] sm:$0xff]
                  %1086 = vst [vmem:[%s1064 + $0x50] sm:$0xff] %v1085
                  %v1087 = vld [vmem:[%s1063 + $0x30] sm:$0xff]
                  %1088 = vst [vmem:[%s1064 + $0x58] sm:$0xff] %v1087
                  %v1089 = vld [vmem:[%s1063 + $0x38] sm:$0xff]
                  %1090 = vst [vmem:[%s1064 + $0x60] sm:$0xff] %v1089
                  %v1091 = vld [vmem:[%s1063 + $0x40] sm:$0xff]
                  %1092 = vst [vmem:[%s1064 + $0x68] sm:$0xff] %v1091
                  %v1093 = vld [vmem:[%s1063 + $0x48] sm:$0xff]
                  %1094 = vst [vmem:[%s1064 + $0x70] sm:$0xff] %v1093
                  %v1095 = vld [vmem:[%s1063 + $0x50] sm:$0xff]
                  %1096 = vst [vmem:[%s1064 + $0x78] sm:$0xff] %v1095
                  %v1097 = vld [vmem:[%s1063 + $0x30] sm:$0xff]
                  %1098 = vst [vmem:[%s1064 + $0x80] sm:$0xff] %v1097
                  %v1099 = vld [vmem:[%s1063 + $0x38] sm:$0xff]
                  %1100 = vst [vmem:[%s1064 + $0x88] sm:$0xff] %v1099
                  %v1101 = vld [vmem:[%s1063 + $0x40] sm:$0xff]
                  %1102 = vst [vmem:[%s1064 + $0x90] sm:$0xff] %v1101
                  %v1103 = vld [vmem:[%s1063 + $0x48] sm:$0xff]
                  %1104 = vst [vmem:[%s1064 + $0x98] sm:$0xff] %v1103
                  %v1105 = vld [vmem:[%s1063 + $0x50] sm:$0xff]
                  %1106 = vst [vmem:[%s1064 + $0xa0] sm:$0xff] %v1105
                  %v1107 = vld [vmem:[%s1063 + $0x58] sm:$0xff]
                  %1108 = vst [vmem:[%s1064 + $0xa8] sm:$0xff] %v1107
                  %v1109 = vld [vmem:[%s1063 + $0x60] sm:$0xff]
                  %1110 = vst [vmem:[%s1064 + $0xb0] sm:$0xff] %v1109
                  %v1111 = vld [vmem:[%s1063 + $0x68] sm:$0xff]
                  %1112 = vst [vmem:[%s1064 + $0xb8] sm:$0xff] %v1111
                  %v1113 = vld [vmem:[%s1063 + $0x48] sm:$0xff]
                  %1114 = vst [vmem:[%s1064 + $0xc0] sm:$0xff] %v1113
                  %v1115 = vld [vmem:[%s1063 + $0x50] sm:$0xff]
                  %1116 = vst [vmem:[%s1064 + $0xc8] sm:$0xff] %v1115
                  %v1117 = vld [vmem:[%s1063 + $0x58] sm:$0xff]
                  %1118 = vst [vmem:[%s1064 + $0xd0] sm:$0xff] %v1117
                  %v1119 = vld [vmem:[%s1063 + $0x60] sm:$0xff]
                  %1120 = vst [vmem:[%s1064 + $0xd8] sm:$0xff] %v1119
                  %v1121 = vld [vmem:[%s1063 + $0x68] sm:$0xff]
                  %1122 = vst [vmem:[%s1064 + $0xe0] sm:$0xff] %v1121
                  %v1123 = vld [vmem:[%s1063 + $0x70] sm:$0xff]
                  %1124 = vst [vmem:[%s1064 + $0xe8] sm:$0xff] %v1123
                  %v1125 = vld [vmem:[%s1063 + $0x78] sm:$0xff]
                  %1126 = vst [vmem:[%s1064 + $0xf0] sm:$0xff] %v1125
                  %v1127 = vld [vmem:[%s1063 + $0x80] sm:$0xff]
                  %1128 = vst [vmem:[%s1064 + $0xf8] sm:$0xff] %v1127
                  %s1129 = sadd.s32 1, %s1062
                  %p1130 = scmp.ge.s32.totalorder %s1129, %s1055
                  %s1131 = scalar_select %p1130, 0, %s1129
                  %s1132 = smul.u32 %s1131, 64
                  %s1133 = smul.u32 %s1131, 64
                  %s1134 = scalar_lea.vmem %s988, %s1132 [#allocation3]
                  %s1135 = scalar_lea.vmem %s1019, %s1133
                $region134: #{_lambda_.6} parent=128 // loop_footer
                  %s1059 = sadd.s32 %s1057, 1
                $region135: #{_lambda_.6} parent=128 // loop_footer_branch
                  %1056 = sbr.rel target = $region131
                $region136: #{_lambda_.6} parent=128 // loop_exit
                  _
                %s1136 = sshrl.u32 %s1054, 3
                %s1137 = sand.u32 %s1054, 7
                %s1138 = smul.u32 %s1136, 8
                %s1139 = smul.u32 8, %s1138
                %s1140 = scalar_lea.vmem %s988, %s1139 [#allocation3]
                %s1141 = smul.u32 8, %s1138
                %s1142 = scalar_lea.vmem %s1019, %s1141
                // While loop
                $region137: #{_lambda_.6} parent=128 // loop_pre_header
                  _
                $region138: #{_lambda_.6} parent=128 // loop_header
                  %s1144 = sphi 0, %s1146
                  %p1145 = scmp.ge.s32.totalorder %s1144, %s1137
                  %s1149 = sphi 0, %s1162
                  %s1150 = sphi %s1140, %s1165
                  %s1151 = sphi %s1142, %s1166
                $region139: #{_lambda_.6} parent=128 // loop_header_branch
                  %1148 = sbr.rel (%p1145) target = $region143
                $region140: #{_lambda_.6} parent=128 // loop_body
                  %v1152 = vld [vmem:[%s1150] sm:$0xff]
                  %1153 = vst [vmem:[%s1151] sm:$0xff] %v1152
                  %v1154 = vld [vmem:[%s1150 + $0x18] sm:$0xff]
                  %1155 = vst [vmem:[%s1151 + $0x40] sm:$0xff] %v1154
                  %v1156 = vld [vmem:[%s1150 + $0x30] sm:$0xff]
                  %1157 = vst [vmem:[%s1151 + $0x80] sm:$0xff] %v1156
                  %v1158 = vld [vmem:[%s1150 + $0x48] sm:$0xff]
                  %1159 = vst [vmem:[%s1151 + $0xc0] sm:$0xff] %v1158
                  %s1160 = sadd.s32 1, %s1149
                  %p1161 = scmp.ge.s32.totalorder %s1160, %s1137
                  %s1162 = scalar_select %p1161, 0, %s1160
                  %s1163 = smul.u32 %s1162, 8
                  %s1164 = smul.u32 %s1162, 8
                  %s1165 = scalar_lea.vmem %s1140, %s1163 [#allocation3]
                  %s1166 = scalar_lea.vmem %s1142, %s1164
                $region141: #{_lambda_.6} parent=128 // loop_footer
                  %s1146 = sadd.s32 %s1144, 1
                $region142: #{_lambda_.6} parent=128 // loop_footer_branch
                  %1143 = sbr.rel target = $region138
                $region143: #{_lambda_.6} parent=128 // loop_exit
                  _
              $region129: #{_lambda_.6} parent=113 // pred_fallthru
                _
              %p1167 = pneg %p1050
              // Predicated region
              $region144: #{_lambda_.6} parent=113 // pred_check
                _
              $region145: #{_lambda_.6} parent=113 // pred_check_branch
                %1169 = sbr.rel (%p1050) target = $region147
              $region146: #{_lambda_.6} parent=113 // pred_region
                %s1170 = sand.u32 %s1020, 7
                %s1171 = ssub.s32 %s1020, %s1170
                %s1172 = scalar_lea.vmem %s988, %s1171 [#allocation3]
                %s1173 = ssub.s32 %s1020, %s1170
                %s1174 = scalar_lea.vmem %s1019, %s1173
                %s1175 = sshrl.u32 %s1020, 3
                %s1176 = sshrl.u32 %s1175, 3
                // While loop
                $region148: #{_lambda_.6} parent=146 // loop_pre_header
                  _
                $region149: #{_lambda_.6} parent=146 // loop_header
                  %s1178 = sphi 0, %s1180
                  %p1179 = scmp.ge.s32.totalorder %s1178, %s1176
                  %s1183 = sphi 0, %s1252
                  %s1184 = sphi %s988, %s1255
                  %s1185 = sphi %s1019, %s1256
                $region150: #{_lambda_.6} parent=146 // loop_header_branch
                  %1182 = sbr.rel (%p1179) target = $region154
                $region151: #{_lambda_.6} parent=146 // loop_body
                  %v1186 = vld [vmem:[%s1184] sm:$0xff]
                  %1187 = vst [vmem:[%s1185] sm:$0xff] %v1186
                  %v1188 = vld [vmem:[%s1184 + $0x8] sm:$0xff]
                  %1189 = vst [vmem:[%s1185 + $0x8] sm:$0xff] %v1188
                  %v1190 = vld [vmem:[%s1184 + $0x10] sm:$0xff]
                  %1191 = vst [vmem:[%s1185 + $0x10] sm:$0xff] %v1190
                  %v1192 = vld [vmem:[%s1184 + $0x18] sm:$0xff]
                  %1193 = vst [vmem:[%s1185 + $0x18] sm:$0xff] %v1192
                  %v1194 = vld [vmem:[%s1184 + $0x20] sm:$0xff]
                  %1195 = vst [vmem:[%s1185 + $0x20] sm:$0xff] %v1194
                  %v1196 = vld [vmem:[%s1184 + $0x28] sm:$0xff]
                  %1197 = vst [vmem:[%s1185 + $0x28] sm:$0xff] %v1196
                  %v1198 = vld [vmem:[%s1184 + $0x30] sm:$0xff]
                  %1199 = vst [vmem:[%s1185 + $0x30] sm:$0xff] %v1198
                  %v1200 = vld [vmem:[%s1184 + $0x38] sm:$0xff]
                  %1201 = vst [vmem:[%s1185 + $0x38] sm:$0xff] %v1200
                  %v1202 = vld [vmem:[%s1184 + $0x18] sm:$0xff]
                  %1203 = vst [vmem:[%s1185 + $0x40] sm:$0xff] %v1202
                  %v1204 = vld [vmem:[%s1184 + $0x20] sm:$0xff]
                  %1205 = vst [vmem:[%s1185 + $0x48] sm:$0xff] %v1204
                  %v1206 = vld [vmem:[%s1184 + $0x28] sm:$0xff]
                  %1207 = vst [vmem:[%s1185 + $0x50] sm:$0xff] %v1206
                  %v1208 = vld [vmem:[%s1184 + $0x30] sm:$0xff]
                  %1209 = vst [vmem:[%s1185 + $0x58] sm:$0xff] %v1208
                  %v1210 = vld [vmem:[%s1184 + $0x38] sm:$0xff]
                  %1211 = vst [vmem:[%s1185 + $0x60] sm:$0xff] %v1210
                  %v1212 = vld [vmem:[%s1184 + $0x40] sm:$0xff]
                  %1213 = vst [vmem:[%s1185 + $0x68] sm:$0xff] %v1212
                  %v1214 = vld [vmem:[%s1184 + $0x48] sm:$0xff]
                  %1215 = vst [vmem:[%s1185 + $0x70] sm:$0xff] %v1214
                  %v1216 = vld [vmem:[%s1184 + $0x50] sm:$0xff]
                  %1217 = vst [vmem:[%s1185 + $0x78] sm:$0xff] %v1216
                  %v1218 = vld [vmem:[%s1184 + $0x30] sm:$0xff]
                  %1219 = vst [vmem:[%s1185 + $0x80] sm:$0xff] %v1218
                  %v1220 = vld [vmem:[%s1184 + $0x38] sm:$0xff]
                  %1221 = vst [vmem:[%s1185 + $0x88] sm:$0xff] %v1220
                  %v1222 = vld [vmem:[%s1184 + $0x40] sm:$0xff]
                  %1223 = vst [vmem:[%s1185 + $0x90] sm:$0xff] %v1222
                  %v1224 = vld [vmem:[%s1184 + $0x48] sm:$0xff]
                  %1225 = vst [vmem:[%s1185 + $0x98] sm:$0xff] %v1224
                  %v1226 = vld [vmem:[%s1184 + $0x50] sm:$0xff]
                  %1227 = vst [vmem:[%s1185 + $0xa0] sm:$0xff] %v1226
                  %v1228 = vld [vmem:[%s1184 + $0x58] sm:$0xff]
                  %1229 = vst [vmem:[%s1185 + $0xa8] sm:$0xff] %v1228
                  %v1230 = vld [vmem:[%s1184 + $0x60] sm:$0xff]
                  %1231 = vst [vmem:[%s1185 + $0xb0] sm:$0xff] %v1230
                  %v1232 = vld [vmem:[%s1184 + $0x68] sm:$0xff]
                  %1233 = vst [vmem:[%s1185 + $0xb8] sm:$0xff] %v1232
                  %v1234 = vld [vmem:[%s1184 + $0x48] sm:$0xff]
                  %1235 = vst [vmem:[%s1185 + $0xc0] sm:$0xff] %v1234
                  %v1236 = vld [vmem:[%s1184 + $0x50] sm:$0xff]
                  %1237 = vst [vmem:[%s1185 + $0xc8] sm:$0xff] %v1236
                  %v1238 = vld [vmem:[%s1184 + $0x58] sm:$0xff]
                  %1239 = vst [vmem:[%s1185 + $0xd0] sm:$0xff] %v1238
                  %v1240 = vld [vmem:[%s1184 + $0x60] sm:$0xff]
                  %1241 = vst [vmem:[%s1185 + $0xd8] sm:$0xff] %v1240
                  %v1242 = vld [vmem:[%s1184 + $0x68] sm:$0xff]
                  %1243 = vst [vmem:[%s1185 + $0xe0] sm:$0xff] %v1242
                  %v1244 = vld [vmem:[%s1184 + $0x70] sm:$0xff]
                  %1245 = vst [vmem:[%s1185 + $0xe8] sm:$0xff] %v1244
                  %v1246 = vld [vmem:[%s1184 + $0x78] sm:$0xff]
                  %1247 = vst [vmem:[%s1185 + $0xf0] sm:$0xff] %v1246
                  %v1248 = vld [vmem:[%s1184 + $0x80] sm:$0xff]
                  %1249 = vst [vmem:[%s1185 + $0xf8] sm:$0xff] %v1248
                  %s1250 = sadd.s32 1, %s1183
                  %p1251 = scmp.ge.s32.totalorder %s1250, %s1176
                  %s1252 = scalar_select %p1251, 0, %s1250
                  %s1253 = smul.u32 %s1252, 64
                  %s1254 = smul.u32 %s1252, 64
                  %s1255 = scalar_lea.vmem %s988, %s1253 [#allocation3]
                  %s1256 = scalar_lea.vmem %s1019, %s1254
                $region152: #{_lambda_.6} parent=146 // loop_footer
                  %s1180 = sadd.s32 %s1178, 1
                $region153: #{_lambda_.6} parent=146 // loop_footer_branch
                  %1177 = sbr.rel target = $region149
                $region154: #{_lambda_.6} parent=146 // loop_exit
                  _
                %s1257 = sshrl.u32 %s1175, 3
                %s1258 = sand.u32 %s1175, 7
                %s1259 = smul.u32 %s1257, 8
                %s1260 = smul.u32 8, %s1259
                %s1261 = scalar_lea.vmem %s988, %s1260 [#allocation3]
                %s1262 = smul.u32 8, %s1259
                %s1263 = scalar_lea.vmem %s1019, %s1262
                // While loop
                $region155: #{_lambda_.6} parent=146 // loop_pre_header
                  _
                $region156: #{_lambda_.6} parent=146 // loop_header
                  %s1265 = sphi 0, %s1267
                  %p1266 = scmp.ge.s32.totalorder %s1265, %s1258
                  %s1270 = sphi 0, %s1283
                  %s1271 = sphi %s1261, %s1286
                  %s1272 = sphi %s1263, %s1287
                $region157: #{_lambda_.6} parent=146 // loop_header_branch
                  %1269 = sbr.rel (%p1266) target = $region161
                $region158: #{_lambda_.6} parent=146 // loop_body
                  %v1273 = vld [vmem:[%s1271] sm:$0xff]
                  %1274 = vst [vmem:[%s1272] sm:$0xff] %v1273
                  %v1275 = vld [vmem:[%s1271 + $0x18] sm:$0xff]
                  %1276 = vst [vmem:[%s1272 + $0x40] sm:$0xff] %v1275
                  %v1277 = vld [vmem:[%s1271 + $0x30] sm:$0xff]
                  %1278 = vst [vmem:[%s1272 + $0x80] sm:$0xff] %v1277
                  %v1279 = vld [vmem:[%s1271 + $0x48] sm:$0xff]
                  %1280 = vst [vmem:[%s1272 + $0xc0] sm:$0xff] %v1279
                  %s1281 = sadd.s32 1, %s1270
                  %p1282 = scmp.ge.s32.totalorder %s1281, %s1258
                  %s1283 = scalar_select %p1282, 0, %s1281
                  %s1284 = smul.u32 %s1283, 8
                  %s1285 = smul.u32 %s1283, 8
                  %s1286 = scalar_lea.vmem %s1261, %s1284 [#allocation3]
                  %s1287 = scalar_lea.vmem %s1263, %s1285
                $region159: #{_lambda_.6} parent=146 // loop_footer
                  %s1267 = sadd.s32 %s1265, 1
                $region160: #{_lambda_.6} parent=146 // loop_footer_branch
                  %1264 = sbr.rel target = $region156
                $region161: #{_lambda_.6} parent=146 // loop_exit
                  _
                %s1288 = sshll.u32 1, %s1170
                %s1289 = ssub.s32 %s1288, 1
                loop: start=0, step=1, limit=1
                $region162: #{_lambda_.6} parent=146 // loop_pre_header
                  _
                $region163: #{_lambda_.6} parent=146 // loop_header
                  %s1291 = sphi 0, %s1295
                  %p1292 = scmp.ge.s32.totalorder %s1291, 1
                  %s1296 = sphi %s1172, %s1172
                  %s1297 = sphi %s1174, %s1174
                $region164: #{_lambda_.6} parent=146 // loop_header_branch
                  %1294 = sbr.rel (%p1292) target = $region168
                $region165: #{_lambda_.6} parent=146 // loop_body
                  %v1298 = vld [vmem:[%s1296] sm:%s1289]
                  %1299 = vst [vmem:[%s1297] sm:%s1289] %v1298
                  %v1300 = vld [vmem:[%s1296 + $0x18] sm:%s1289]
                  %1301 = vst [vmem:[%s1297 + $0x40] sm:%s1289] %v1300
                  %v1302 = vld [vmem:[%s1296 + $0x30] sm:%s1289]
                  %1303 = vst [vmem:[%s1297 + $0x80] sm:%s1289] %v1302
                  %v1304 = vld [vmem:[%s1296 + $0x48] sm:%s1289]
                  %1305 = vst [vmem:[%s1297 + $0xc0] sm:%s1289] %v1304
                $region166: #{_lambda_.6} parent=146 // loop_footer
                  %s1295 = sadd.s32 1, %s1291
                $region167: #{_lambda_.6} parent=146 // loop_footer_branch
                  %1290 = sbr.rel target = $region163
                $region168: #{_lambda_.6} parent=146 // loop_exit
                  _
              $region147: #{_lambda_.6} parent=113 // pred_fallthru
                _
            $region114: #{_lambda_.6} parent=109 // pred_fallthru
              _
            // Predicated region
            $region115: #{_lambda_.6} parent=109 // pred_check
              %p1028 = pneg %p1024
            $region116: #{_lambda_.6} parent=109 // pred_check_branch
              %1030 = sbr.rel (%p1028) target = $region118
            $region117: #{_lambda_.6} parent=109 // pred_region
              %s1031 = sshll.u32 1, %s1020
              %s1032 = ssub.s32 %s1031, 1
              loop: start=0, step=1, limit=1
              $region119: #{_lambda_.6} parent=117 // loop_pre_header
                _
              $region120: #{_lambda_.6} parent=117 // loop_header
                %s1034 = sphi 0, %s1038
                %p1035 = scmp.ge.s32.totalorder %s1034, 1
                %s1039 = sphi %s988, %s988
                %s1040 = sphi %s1019, %s1019
              $region121: #{_lambda_.6} parent=117 // loop_header_branch
                %1037 = sbr.rel (%p1035) target = $region125
              $region122: #{_lambda_.6} parent=117 // loop_body
                %v1041 = vld [vmem:[%s1039] sm:%s1032]
                %1042 = vst [vmem:[%s1040] sm:%s1032] %v1041
                %v1043 = vld [vmem:[%s1039 + $0x18] sm:%s1032]
                %1044 = vst [vmem:[%s1040 + $0x40] sm:%s1032] %v1043
                %v1045 = vld [vmem:[%s1039 + $0x30] sm:%s1032]
                %1046 = vst [vmem:[%s1040 + $0x80] sm:%s1032] %v1045
                %v1047 = vld [vmem:[%s1039 + $0x48] sm:%s1032]
                %1048 = vst [vmem:[%s1040 + $0xc0] sm:%s1032] %v1047
              $region123: #{_lambda_.6} parent=117 // loop_footer
                %s1038 = sadd.s32 1, %s1034
              $region124: #{_lambda_.6} parent=117 // loop_footer_branch
                %1033 = sbr.rel target = $region120
              $region125: #{_lambda_.6} parent=117 // loop_exit
                _
            $region118: #{_lambda_.6} parent=109 // pred_fallthru
              _
          $region110: #{_lambda_.6} parent=105 // pred_fallthru
            _
          %1306 = vnop
        $region106: #{_lambda_.6} parent=97 // pred_fallthru
          _
        // Predicated region
        $region169: #{_lambda_.6} parent=97 // pred_check
          %p1307 = pneg %p169
        $region170: #{_lambda_.6} parent=97 // pred_check_branch
          %1309 = sbr.rel (%p1307) target = $region172
        $region171: #{_lambda_.6} parent=97 // pred_region
          _
        $region172: #{_lambda_.6} parent=97 // pred_fallthru
          _
        // Predicated region
        $region173: #{_lambda_.6} parent=97 // pred_check
          %p1310 = pneg %p197
        $region174: #{_lambda_.6} parent=97 // pred_check_branch
          %1312 = sbr.rel (%p1310) target = $region176
        $region175: #{_lambda_.6} parent=97 // pred_region
          _
        $region176: #{_lambda_.6} parent=97 // pred_fallthru
          _
      $region98: #{_lambda_.6} parent=5 // pred_fallthru
        _
      %p1313 = scmp.le.s32.totalorder 2, %s13
      // Predicated region
      $region177: #{_lambda_.6} parent=5 // pred_check
        %p1314 = pneg %p1313
      $region178: #{_lambda_.6} parent=5 // pred_check_branch
        %1316 = sbr.rel (%p1314) target = $region180
      $region179: #{_lambda_.6} parent=5 // pred_region
        %s1317 = ssub.s32 %s13, 2
        // Predicated region
        $region181: #{_lambda_.6} parent=179 // pred_check
          %p1318 = pneg %p147
        $region182: #{_lambda_.6} parent=179 // pred_check_branch
          %1320 = sbr.rel (%p1318) target = $region184
        $region183: #{_lambda_.6} parent=179 // pred_region
          %s1321 = sand.u32 %s132, 1
          %s1322 = sand.u32 %s132, 1
          %s1323 = smul.addr %s1322, 96
          %s1324 = scalar_lea.vmem [#allocation3], %s1323
        $region184: #{_lambda_.6} parent=179 // pred_fallthru
          _
        // Predicated region
        $region185: #{_lambda_.6} parent=179 // pred_check
          %p1325 = pneg %p175
        $region186: #{_lambda_.6} parent=179 // pred_check_branch
          %1327 = sbr.rel (%p1325) target = $region188
        $region187: #{_lambda_.6} parent=179 // pred_region
          %p1328 = scmp.lt.s32.totalorder %s24, 1
          %s1329 = scalar_select %p1328, %s24, 1
          %p1330 = scmp.lt.s32.totalorder %s25, 2
          %s1331 = scalar_select %p1330, %s25, 2
          %s1332 = smul.addr %s1331, 4
          %s1333 = smul.addr %s1329, 12
          %s1334 = sadd.s32 %s1332, %s1333
          %s1335 = smul.addr %s1334, 8
          %s1336 = scalar_lea.vmem %s5, %s1335
        $region188: #{_lambda_.6} parent=179 // pred_fallthru
          _
        // Predicated region
        $region189: #{_lambda_.6} parent=179 // pred_check
          %p1337 = pneg %p203
        $region190: #{_lambda_.6} parent=179 // pred_check_branch
          %1339 = sbr.rel (%p1337) target = $region192
        $region191: #{_lambda_.6} parent=179 // pred_region
          %p1340 = scmp.lt.s32.totalorder %s24, 1
          %s1341 = scalar_select %p1340, %s24, 1
          %p1342 = scmp.lt.s32.totalorder %s25, 2
          %s1343 = scalar_select %p1342, %s25, 2
          %s1344 = smul.addr %s1343, 4
          %s1345 = smul.addr %s1341, 12
          %s1346 = sadd.s32 %s1344, %s1345
          %s1347 = smul.addr %s1346, 8
          %s1348 = scalar_lea.vmem %s6, %s1347
        $region192: #{_lambda_.6} parent=179 // pred_fallthru
          _
      $region180: #{_lambda_.6} parent=5 // pred_fallthru
        _
    $region6: #{_lambda_.6} parent=1 // loop_footer
      %s17 = sadd.s32 1, %s13
    $region7: #{_lambda_.6} parent=1 // loop_footer_branch
      %12 = sbr.rel target = $region3
    $region8: #{_lambda_.6} parent=1 // loop_exit
      _

// kernel: _lambda_.7
$region0: #{_lambda_.7}
  #allocation0 [shape = 'u32[]', space=smem, size = 0x4, offset = 0x4, fixed_abs, tag = 'smem constant byte address 0x4 - core index']
  #allocation1 [shape = 'u32[72,128]{1,0:T(1,128)}', space=vmem, size = 0x9000, scoped, tag = 'internal scratch']
  %s0 = inlined_call_operand.vmem [shape: f32[2,32,1024], index: 0, kind: input, shape index: {}]
  %s1 = inlined_call_operand.vmem [shape: f32[32,1], index: 1, kind: input, shape index: {}]
  %s2 = inlined_call_operand.vmem [shape: f32[32,1], index: 2, kind: input, shape index: {}]
  %s3 = inlined_call_operand.vmem [shape: f32[32,32], index: 3, kind: input, shape index: {}]
  %s4 = inlined_call_operand.vmem [shape: f32[2,32,1024], index: 4, kind: output, shape index: {0}]
  %s5 = inlined_call_operand.vmem [shape: f32[2,3,32,1], index: 5, kind: output, shape index: {1}]
  %s6 = inlined_call_operand.vmem [shape: f32[2,3,32,1], index: 6, kind: output, shape index: {2}]
  %7 = xla_tuple %s4, %s5, %s6
  %s8 = sld [smem:[#allocation0]]
  $region193: #{_lambda_.7} parent=0
    _
  %s10 = ssub.s32 1, %s8
  %s11 = scalar_select 0, %s10, %s8
  $region1: #{_lambda_.7} parent=0
    #allocation2 [shape = 'u8[98304]{0}', space=vmem, size = 0x18000, scoped, tag = 'input window, operand 0']
    #allocation3 [shape = 'u8[98304]{0}', space=vmem, size = 0x18000, scoped, tag = 'output window, operand 0']
    loop: start=0, step=1, limit=8
    $region2: #{_lambda_.7} parent=1 // loop_pre_header
      _
    $region3: #{_lambda_.7} parent=1 // loop_header
      %s13 = sphi 0, %s17
      %p14 = scmp.ge.s32.totalorder %s13, 8
      %s20 = sphi 0, %s32
      %s21 = sphi 0, %s28
      %s22 = sphi 0, %s20
      %s23 = sphi 0, %s21
      %s24 = sphi 0, %s22
      %s25 = sphi 0, %s23
      %s37 = sphi 0, %s39
      %s40 = sphi 0, %s37
      %s41 = sphi 0, %s40
      %s57 = sphi 0, %s41
      %s61 = sphi 0, %s61
      %s63 = sphi 0, %s61
      %s64 = sphi 0, %s63
      %s78 = sphi 0, %s64
      %s82 = sphi 0, %s82
      %s84 = sphi 0, %s82
      %s85 = sphi 0, %s84
      %s99 = sphi 0, %s85
      %s103 = sphi 0, %s103
      %s105 = sphi 0, %s103
      %s106 = sphi 0, %s105
      %s120 = sphi 0, %s106
      %s128 = sphi 0, %s130
      %s131 = sphi 0, %s128
      %s132 = sphi 0, %s131
      %s148 = sphi 0, %s132
      %s156 = sphi 0, %s158
      %s159 = sphi 0, %s156
      %s160 = sphi 0, %s159
      %s176 = sphi 0, %s160
      %s184 = sphi 0, %s186
      %s187 = sphi 0, %s184
      %s188 = sphi 0, %s187
      %s204 = sphi 0, %s188
    $region4: #{_lambda_.7} parent=1 // loop_header_branch
      %16 = sbr.rel (%p14) target = $region8
    $region5: #{_lambda_.7} parent=1 // loop_body
      %s18 = ssub.s32 %s13, 1
      %s19 = ssub.s32 %s13, 2
      %s26 = sadd.s32 1, %s21
      %p27 = scmp.ge.s32.totalorder %s26, 3
      %s28 = scalar_select %p27, 0, %s26
      %s29 = sadd.s32 1, %s20
      %s30 = scalar_select %p27, %s29, %s20
      %p31 = scmp.ge.s32.totalorder %s30, 2
      %s32 = scalar_select %p31, 0, %s30
      %s33 = ssub.s32 %s20, %s32
      %s34 = ssub.s32 %s21, %s28
      %s35 = sor.u32 %s33, %s34
      %p36 = scmp.eq.s32.totalorder %s35, 0
      %s38 = sadd.s32 %s37, 1
      %s39 = scalar_select %p36, %s37, %s38
      %p42 = pneg %p36
      %p43 = scmp.eq.s32.totalorder %s13, 5
      %p44 = por %p42, %p43
      %p45 = scmp.ne.s32.totalorder %s37, %s40
      %p46 = scmp.eq.s32.totalorder %s13, 0
      %p47 = por %p45, %p46
      %p48 = scmp.ne.s32.totalorder %s37, %s40
      %p49 = scmp.eq.s32.totalorder %s18, 5
      %p50 = por %p48, %p49
      %p51 = scmp.ne.s32.totalorder %s40, %s41
      %p52 = scmp.eq.s32.totalorder %s18, 0
      %p53 = por %p51, %p52
      %p54 = scmp.ne.s32.totalorder %s40, %s41
      %p55 = scmp.eq.s32.totalorder %s19, 5
      %p56 = por %p54, %p55
      %p58 = scmp.ne.s32.totalorder %s41, %s57
      %p59 = scmp.eq.s32.totalorder %s19, 0
      %p60 = por %p58, %p59
      %s62 = sadd.s32 %s61, 1
      %p65 = scmp.eq.s32.totalorder %s13, 5
      %p66 = scmp.ne.s32.totalorder %s61, %s63
      %p67 = scmp.eq.s32.totalorder %s13, 0
      %p68 = por %p66, %p67
      %p69 = scmp.ne.s32.totalorder %s61, %s63
      %p70 = scmp.eq.s32.totalorder %s18, 5
      %p71 = por %p69, %p70
      %p72 = scmp.ne.s32.totalorder %s63, %s64
      %p73 = scmp.eq.s32.totalorder %s18, 0
      %p74 = por %p72, %p73
      %p75 = scmp.ne.s32.totalorder %s63, %s64
      %p76 = scmp.eq.s32.totalorder %s19, 5
      %p77 = por %p75, %p76
      %p79 = scmp.ne.s32.totalorder %s64, %s78
      %p80 = scmp.eq.s32.totalorder %s19, 0
      %p81 = por %p79, %p80
      %s83 = sadd.s32 %s82, 1
      %p86 = scmp.eq.s32.totalorder %s13, 5
      %p87 = scmp.ne.s32.totalorder %s82, %s84
      %p88 = scmp.eq.s32.totalorder %s13, 0
      %p89 = por %p87, %p88
      %p90 = scmp.ne.s32.totalorder %s82, %s84
      %p91 = scmp.eq.s32.totalorder %s18, 5
      %p92 = por %p90, %p91
      %p93 = scmp.ne.s32.totalorder %s84, %s85
      %p94 = scmp.eq.s32.totalorder %s18, 0
      %p95 = por %p93, %p94
      %p96 = scmp.ne.s32.totalorder %s84, %s85
      %p97 = scmp.eq.s32.totalorder %s19, 5
      %p98 = por %p96, %p97
      %p100 = scmp.ne.s32.totalorder %s85, %s99
      %p101 = scmp.eq.s32.totalorder %s19, 0
      %p102 = por %p100, %p101
      %s104 = sadd.s32 %s103, 1
      %p107 = scmp.eq.s32.totalorder %s13, 5
      %p108 = scmp.ne.s32.totalorder %s103, %s105
      %p109 = scmp.eq.s32.totalorder %s13, 0
      %p110 = por %p108, %p109
      %p111 = scmp.ne.s32.totalorder %s103, %s105
      %p112 = scmp.eq.s32.totalorder %s18, 5
      %p113 = por %p111, %p112
      %p114 = scmp.ne.s32.totalorder %s105, %s106
      %p115 = scmp.eq.s32.totalorder %s18, 0
      %p116 = por %p114, %p115
      %p117 = scmp.ne.s32.totalorder %s105, %s106
      %p118 = scmp.eq.s32.totalorder %s19, 5
      %p119 = por %p117, %p118
      %p121 = scmp.ne.s32.totalorder %s106, %s120
      %p122 = scmp.eq.s32.totalorder %s19, 0
      %p123 = por %p121, %p122
      %s124 = ssub.s32 %s20, %s32
      %s125 = ssub.s32 %s21, %s28
      %s126 = sor.u32 %s124, %s125
      %p127 = scmp.eq.s32.totalorder %s126, 0
      %s129 = sadd.s32 %s128, 1
      %s130 = scalar_select %p127, %s128, %s129
      %p133 = pneg %p127
      %p134 = scmp.eq.s32.totalorder %s13, 5
      %p135 = por %p133, %p134
      %p136 = scmp.ne.s32.totalorder %s128, %s131
      %p137 = scmp.eq.s32.totalorder %s13, 0
      %p138 = por %p136, %p137
      %p139 = scmp.ne.s32.totalorder %s128, %s131
      %p140 = scmp.eq.s32.totalorder %s18, 5
      %p141 = por %p139, %p140
      %p142 = scmp.ne.s32.totalorder %s131, %s132
      %p143 = scmp.eq.s32.totalorder %s18, 0
      %p144 = por %p142, %p143
      %p145 = scmp.ne.s32.totalorder %s131, %s132
      %p146 = scmp.eq.s32.totalorder %s19, 5
      %p147 = por %p145, %p146
      %p149 = scmp.ne.s32.totalorder %s132, %s148
      %p150 = scmp.eq.s32.totalorder %s19, 0
      %p151 = por %p149, %p150
      %s152 = ssub.s32 %s20, %s32
      %s153 = ssub.s32 %s21, %s28
      %s154 = sor.u32 %s152, %s153
      %p155 = scmp.eq.s32.totalorder %s154, 0
      %s157 = sadd.s32 %s156, 1
      %s158 = scalar_select %p155, %s156, %s157
      %p161 = pneg %p155
      %p162 = scmp.eq.s32.totalorder %s13, 5
      %p163 = por %p161, %p162
      %p164 = scmp.ne.s32.totalorder %s156, %s159
      %p165 = scmp.eq.s32.totalorder %s13, 0
      %p166 = por %p164, %p165
      %p167 = scmp.ne.s32.totalorder %s156, %s159
      %p168 = scmp.eq.s32.totalorder %s18, 5
      %p169 = por %p167, %p168
      %p170 = scmp.ne.s32.totalorder %s159, %s160
      %p171 = scmp.eq.s32.totalorder %s18, 0
      %p172 = por %p170, %p171
      %p173 = scmp.ne.s32.totalorder %s159, %s160
      %p174 = scmp.eq.s32.totalorder %s19, 5
      %p175 = por %p173, %p174
      %p177 = scmp.ne.s32.totalorder %s160, %s176
      %p178 = scmp.eq.s32.totalorder %s19, 0
      %p179 = por %p177, %p178
      %s180 = ssub.s32 %s20, %s32
      %s181 = ssub.s32 %s21, %s28
      %s182 = sor.u32 %s180, %s181
      %p183 = scmp.eq.s32.totalorder %s182, 0
      %s185 = sadd.s32 %s184, 1
      %s186 = scalar_select %p183, %s184, %s185
      %p189 = pneg %p183
      %p190 = scmp.eq.s32.totalorder %s13, 5
      %p191 = por %p189, %p190
      %p192 = scmp.ne.s32.totalorder %s184, %s187
      %p193 = scmp.eq.s32.totalorder %s13, 0
      %p194 = por %p192, %p193
      %p195 = scmp.ne.s32.totalorder %s184, %s187
      %p196 = scmp.eq.s32.totalorder %s18, 5
      %p197 = por %p195, %p196
      %p198 = scmp.ne.s32.totalorder %s187, %s188
      %p199 = scmp.eq.s32.totalorder %s18, 0
      %p200 = por %p198, %p199
      %p201 = scmp.ne.s32.totalorder %s187, %s188
      %p202 = scmp.eq.s32.totalorder %s19, 5
      %p203 = por %p201, %p202
      %p205 = scmp.ne.s32.totalorder %s188, %s204
      %p206 = scmp.eq.s32.totalorder %s19, 0
      %p207 = por %p205, %p206
      %p208 = scmp.le.s32.totalorder 1, %s13
      %p209 = scmp.lt.s32.totalorder %s13, 7
      %p210 = pnand %p208, %p209
      %p211 = pneg %p210
      // Predicated region
      $region9: #{_lambda_.7} parent=5 // pred_check
        _
      $region10: #{_lambda_.7} parent=5 // pred_check_branch
        %213 = sbr.rel (%p210) target = $region12
      $region11: #{_lambda_.7} parent=5 // pred_region
        %s214 = ssub.s32 %s13, 1
        // Predicated region
        $region13: #{_lambda_.7} parent=11 // pred_check
          %p215 = pneg %p74
        $region14: #{_lambda_.7} parent=11 // pred_check_branch
          %217 = sbr.rel (%p215) target = $region16
        $region15: #{_lambda_.7} parent=11 // pred_region
          _
        $region16: #{_lambda_.7} parent=11 // pred_fallthru
          _
        // Predicated region
        $region17: #{_lambda_.7} parent=11 // pred_check
          %p218 = pneg %p95
        $region18: #{_lambda_.7} parent=11 // pred_check_branch
          %220 = sbr.rel (%p218) target = $region20
        $region19: #{_lambda_.7} parent=11 // pred_region
          _
        $region20: #{_lambda_.7} parent=11 // pred_fallthru
          _
        // Predicated region
        $region21: #{_lambda_.7} parent=11 // pred_check
          %p221 = pneg %p116
        $region22: #{_lambda_.7} parent=11 // pred_check_branch
          %223 = sbr.rel (%p221) target = $region24
        $region23: #{_lambda_.7} parent=11 // pred_region
          _
        $region24: #{_lambda_.7} parent=11 // pred_fallthru
          _
      $region12: #{_lambda_.7} parent=5 // pred_fallthru
        _
      %p224 = scmp.lt.s32.totalorder %s13, 6
      // Predicated region
      $region25: #{_lambda_.7} parent=5 // pred_check
        %p225 = pneg %p224
      $region26: #{_lambda_.7} parent=5 // pred_check_branch
        %227 = sbr.rel (%p225) target = $region28
      $region27: #{_lambda_.7} parent=5 // pred_region
        // Predicated region
        $region29: #{_lambda_.7} parent=27 // pred_check
          %p228 = pneg %p47
        $region30: #{_lambda_.7} parent=27 // pred_check_branch
          %230 = sbr.rel (%p228) target = $region32
        $region31: #{_lambda_.7} parent=27 // pred_region
          %s231 = sand.u32 %s37, 1
          %s232 = sand.u32 %s37, 1
          %s233 = smul.addr %s232, 96
          %s234 = scalar_lea.vmem [#allocation2], %s233
          %s235 = smul.u32 3, %s21
          %s236 = ssub.s32 8, %s235
          %p237 = scmp.lt.s32.totalorder %s236, 3
          %s238 = scalar_select %p237, %s236, 3
          %s239 = smul.u32 32, %s238
          %p240 = scmp.ne.s32.totalorder 0, %s239
          %s241 = smul.addr %s20, 32
          %s242 = sadd.s32 %s235, %s241
          %s243 = smul.addr %s242, 8
          %s244 = scalar_lea.vmem %s0, %s243
          %s245 = smul.u32 %s238, 8
          // Predicated region
          $region33: #{_lambda_.7} parent=31 // pred_check
            %p246 = pneg %p240
          $region34: #{_lambda_.7} parent=31 // pred_check_branch
            %248 = sbr.rel (%p246) target = $region36
          $region35: #{_lambda_.7} parent=31 // pred_region
            %p249 = scmp.lt.u32.totalorder %s245, 8
            %p250 = pneg %p249
            // Predicated region
            $region37: #{_lambda_.7} parent=35 // pred_check
              _
            $region38: #{_lambda_.7} parent=35 // pred_check_branch
              %252 = sbr.rel (%p249) target = $region40
            $region39: #{_lambda_.7} parent=35 // pred_region
              %s274 = sand.u32 %s245, 7
              %p275 = scmp.eq.s32.totalorder %s274, 0
              // Predicated region
              $region52: #{_lambda_.7} parent=39 // pred_check
                %p276 = pneg %p275
              $region53: #{_lambda_.7} parent=39 // pred_check_branch
                %278 = sbr.rel (%p276) target = $region55
              $region54: #{_lambda_.7} parent=39 // pred_region
                %s279 = sshrl.u32 %s245, 3
                %s280 = sshrl.u32 %s279, 3
                // While loop
                $region56: #{_lambda_.7} parent=54 // loop_pre_header
                  _
                $region57: #{_lambda_.7} parent=54 // loop_header
                  %s282 = sphi 0, %s284
                  %p283 = scmp.ge.s32.totalorder %s282, %s280
                  %s287 = sphi 0, %s356
                  %s288 = sphi %s244, %s359
                  %s289 = sphi %s234, %s360
                $region58: #{_lambda_.7} parent=54 // loop_header_branch
                  %286 = sbr.rel (%p283) target = $region62
                $region59: #{_lambda_.7} parent=54 // loop_body
                  %v290 = vld [vmem:[%s288] sm:$0xff]
                  %291 = vst [vmem:[%s289] sm:$0xff] %v290
                  %v292 = vld [vmem:[%s288 + $0x8] sm:$0xff]
                  %293 = vst [vmem:[%s289 + $0x8] sm:$0xff] %v292
                  %v294 = vld [vmem:[%s288 + $0x10] sm:$0xff]
                  %295 = vst [vmem:[%s289 + $0x10] sm:$0xff] %v294
                  %v296 = vld [vmem:[%s288 + $0x18] sm:$0xff]
                  %297 = vst [vmem:[%s289 + $0x18] sm:$0xff] %v296
                  %v298 = vld [vmem:[%s288 + $0x20] sm:$0xff]
                  %299 = vst [vmem:[%s289 + $0x20] sm:$0xff] %v298
                  %v300 = vld [vmem:[%s288 + $0x28] sm:$0xff]
                  %301 = vst [vmem:[%s289 + $0x28] sm:$0xff] %v300
                  %v302 = vld [vmem:[%s288 + $0x30] sm:$0xff]
                  %303 = vst [vmem:[%s289 + $0x30] sm:$0xff] %v302
                  %v304 = vld [vmem:[%s288 + $0x38] sm:$0xff]
                  %305 = vst [vmem:[%s289 + $0x38] sm:$0xff] %v304
                  %v306 = vld [vmem:[%s288 + $0x40] sm:$0xff]
                  %307 = vst [vmem:[%s289 + $0x18] sm:$0xff] %v306
                  %v308 = vld [vmem:[%s288 + $0x48] sm:$0xff]
                  %309 = vst [vmem:[%s289 + $0x20] sm:$0xff] %v308
                  %v310 = vld [vmem:[%s288 + $0x50] sm:$0xff]
                  %311 = vst [vmem:[%s289 + $0x28] sm:$0xff] %v310
                  %v312 = vld [vmem:[%s288 + $0x58] sm:$0xff]
                  %313 = vst [vmem:[%s289 + $0x30] sm:$0xff] %v312
                  %v314 = vld [vmem:[%s288 + $0x60] sm:$0xff]
                  %315 = vst [vmem:[%s289 + $0x38] sm:$0xff] %v314
                  %v316 = vld [vmem:[%s288 + $0x68] sm:$0xff]
                  %317 = vst [vmem:[%s289 + $0x40] sm:$0xff] %v316
                  %v318 = vld [vmem:[%s288 + $0x70] sm:$0xff]
                  %319 = vst [vmem:[%s289 + $0x48] sm:$0xff] %v318
                  %v320 = vld [vmem:[%s288 + $0x78] sm:$0xff]
                  %321 = vst [vmem:[%s289 + $0x50] sm:$0xff] %v320
                  %v322 = vld [vmem:[%s288 + $0x80] sm:$0xff]
                  %323 = vst [vmem:[%s289 + $0x30] sm:$0xff] %v322
                  %v324 = vld [vmem:[%s288 + $0x88] sm:$0xff]
                  %325 = vst [vmem:[%s289 + $0x38] sm:$0xff] %v324
                  %v326 = vld [vmem:[%s288 + $0x90] sm:$0xff]
                  %327 = vst [vmem:[%s289 + $0x40] sm:$0xff] %v326
                  %v328 = vld [vmem:[%s288 + $0x98] sm:$0xff]
                  %329 = vst [vmem:[%s289 + $0x48] sm:$0xff] %v328
                  %v330 = vld [vmem:[%s288 + $0xa0] sm:$0xff]
                  %331 = vst [vmem:[%s289 + $0x50] sm:$0xff] %v330
                  %v332 = vld [vmem:[%s288 + $0xa8] sm:$0xff]
                  %333 = vst [vmem:[%s289 + $0x58] sm:$0xff] %v332
                  %v334 = vld [vmem:[%s288 + $0xb0] sm:$0xff]
                  %335 = vst [vmem:[%s289 + $0x60] sm:$0xff] %v334
                  %v336 = vld [vmem:[%s288 + $0xb8] sm:$0xff]
                  %337 = vst [vmem:[%s289 + $0x68] sm:$0xff] %v336
                  %v338 = vld [vmem:[%s288 + $0xc0] sm:$0xff]
                  %339 = vst [vmem:[%s289 + $0x48] sm:$0xff] %v338
                  %v340 = vld [vmem:[%s288 + $0xc8] sm:$0xff]
                  %341 = vst [vmem:[%s289 + $0x50] sm:$0xff] %v340
                  %v342 = vld [vmem:[%s288 + $0xd0] sm:$0xff]
                  %343 = vst [vmem:[%s289 + $0x58] sm:$0xff] %v342
                  %v344 = vld [vmem:[%s288 + $0xd8] sm:$0xff]
                  %345 = vst [vmem:[%s289 + $0x60] sm:$0xff] %v344
                  %v346 = vld [vmem:[%s288 + $0xe0] sm:$0xff]
                  %347 = vst [vmem:[%s289 + $0x68] sm:$0xff] %v346
                  %v348 = vld [vmem:[%s288 + $0xe8] sm:$0xff]
                  %349 = vst [vmem:[%s289 + $0x70] sm:$0xff] %v348
                  %v350 = vld [vmem:[%s288 + $0xf0] sm:$0xff]
                  %351 = vst [vmem:[%s289 + $0x78] sm:$0xff] %v350
                  %v352 = vld [vmem:[%s288 + $0xf8] sm:$0xff]
                  %353 = vst [vmem:[%s289 + $0x80] sm:$0xff] %v352
                  %s354 = sadd.s32 1, %s287
                  %p355 = scmp.ge.s32.totalorder %s354, %s280
                  %s356 = scalar_select %p355, 0, %s354
                  %s357 = smul.u32 %s356, 64
                  %s358 = smul.u32 %s356, 64
                  %s359 = scalar_lea.vmem %s244, %s357
                  %s360 = scalar_lea.vmem %s234, %s358 [#allocation2]
                $region60: #{_lambda_.7} parent=54 // loop_footer
                  %s284 = sadd.s32 %s282, 1
                $region61: #{_lambda_.7} parent=54 // loop_footer_branch
                  %281 = sbr.rel target = $region57
                $region62: #{_lambda_.7} parent=54 // loop_exit
                  _
                %s361 = sshrl.u32 %s279, 3
                %s362 = sand.u32 %s279, 7
                %s363 = smul.u32 %s361, 8
                %s364 = smul.u32 8, %s363
                %s365 = scalar_lea.vmem %s244, %s364
                %s366 = smul.u32 8, %s363
                %s367 = scalar_lea.vmem %s234, %s366 [#allocation2]
                // While loop
                $region63: #{_lambda_.7} parent=54 // loop_pre_header
                  _
                $region64: #{_lambda_.7} parent=54 // loop_header
                  %s369 = sphi 0, %s371
                  %p370 = scmp.ge.s32.totalorder %s369, %s362
                  %s374 = sphi 0, %s387
                  %s375 = sphi %s365, %s390
                  %s376 = sphi %s367, %s391
                $region65: #{_lambda_.7} parent=54 // loop_header_branch
                  %373 = sbr.rel (%p370) target = $region69
                $region66: #{_lambda_.7} parent=54 // loop_body
                  %v377 = vld [vmem:[%s375] sm:$0xff]
                  %378 = vst [vmem:[%s376] sm:$0xff] %v377
                  %v379 = vld [vmem:[%s375 + $0x40] sm:$0xff]
                  %380 = vst [vmem:[%s376 + $0x18] sm:$0xff] %v379
                  %v381 = vld [vmem:[%s375 + $0x80] sm:$0xff]
                  %382 = vst [vmem:[%s376 + $0x30] sm:$0xff] %v381
                  %v383 = vld [vmem:[%s375 + $0xc0] sm:$0xff]
                  %384 = vst [vmem:[%s376 + $0x48] sm:$0xff] %v383
                  %s385 = sadd.s32 1, %s374
                  %p386 = scmp.ge.s32.totalorder %s385, %s362
                  %s387 = scalar_select %p386, 0, %s385
                  %s388 = smul.u32 %s387, 8
                  %s389 = smul.u32 %s387, 8
                  %s390 = scalar_lea.vmem %s365, %s388
                  %s391 = scalar_lea.vmem %s367, %s389 [#allocation2]
                $region67: #{_lambda_.7} parent=54 // loop_footer
                  %s371 = sadd.s32 %s369, 1
                $region68: #{_lambda_.7} parent=54 // loop_footer_branch
                  %368 = sbr.rel target = $region64
                $region69: #{_lambda_.7} parent=54 // loop_exit
                  _
              $region55: #{_lambda_.7} parent=39 // pred_fallthru
                _
              %p392 = pneg %p275
              // Predicated region
              $region70: #{_lambda_.7} parent=39 // pred_check
                _
              $region71: #{_lambda_.7} parent=39 // pred_check_branch
                %394 = sbr.rel (%p275) target = $region73
              $region72: #{_lambda_.7} parent=39 // pred_region
                %s395 = sand.u32 %s245, 7
                %s396 = ssub.s32 %s245, %s395
                %s397 = scalar_lea.vmem %s244, %s396
                %s398 = ssub.s32 %s245, %s395
                %s399 = scalar_lea.vmem %s234, %s398 [#allocation2]
                %s400 = sshrl.u32 %s245, 3
                %s401 = sshrl.u32 %s400, 3
                // While loop
                $region74: #{_lambda_.7} parent=72 // loop_pre_header
                  _
                $region75: #{_lambda_.7} parent=72 // loop_header
                  %s403 = sphi 0, %s405
                  %p404 = scmp.ge.s32.totalorder %s403, %s401
                  %s408 = sphi 0, %s477
                  %s409 = sphi %s244, %s480
                  %s410 = sphi %s234, %s481
                $region76: #{_lambda_.7} parent=72 // loop_header_branch
                  %407 = sbr.rel (%p404) target = $region80
                $region77: #{_lambda_.7} parent=72 // loop_body
                  %v411 = vld [vmem:[%s409] sm:$0xff]
                  %412 = vst [vmem:[%s410] sm:$0xff] %v411
                  %v413 = vld [vmem:[%s409 + $0x8] sm:$0xff]
                  %414 = vst [vmem:[%s410 + $0x8] sm:$0xff] %v413
                  %v415 = vld [vmem:[%s409 + $0x10] sm:$0xff]
                  %416 = vst [vmem:[%s410 + $0x10] sm:$0xff] %v415
                  %v417 = vld [vmem:[%s409 + $0x18] sm:$0xff]
                  %418 = vst [vmem:[%s410 + $0x18] sm:$0xff] %v417
                  %v419 = vld [vmem:[%s409 + $0x20] sm:$0xff]
                  %420 = vst [vmem:[%s410 + $0x20] sm:$0xff] %v419
                  %v421 = vld [vmem:[%s409 + $0x28] sm:$0xff]
                  %422 = vst [vmem:[%s410 + $0x28] sm:$0xff] %v421
                  %v423 = vld [vmem:[%s409 + $0x30] sm:$0xff]
                  %424 = vst [vmem:[%s410 + $0x30] sm:$0xff] %v423
                  %v425 = vld [vmem:[%s409 + $0x38] sm:$0xff]
                  %426 = vst [vmem:[%s410 + $0x38] sm:$0xff] %v425
                  %v427 = vld [vmem:[%s409 + $0x40] sm:$0xff]
                  %428 = vst [vmem:[%s410 + $0x18] sm:$0xff] %v427
                  %v429 = vld [vmem:[%s409 + $0x48] sm:$0xff]
                  %430 = vst [vmem:[%s410 + $0x20] sm:$0xff] %v429
                  %v431 = vld [vmem:[%s409 + $0x50] sm:$0xff]
                  %432 = vst [vmem:[%s410 + $0x28] sm:$0xff] %v431
                  %v433 = vld [vmem:[%s409 + $0x58] sm:$0xff]
                  %434 = vst [vmem:[%s410 + $0x30] sm:$0xff] %v433
                  %v435 = vld [vmem:[%s409 + $0x60] sm:$0xff]
                  %436 = vst [vmem:[%s410 + $0x38] sm:$0xff] %v435
                  %v437 = vld [vmem:[%s409 + $0x68] sm:$0xff]
                  %438 = vst [vmem:[%s410 + $0x40] sm:$0xff] %v437
                  %v439 = vld [vmem:[%s409 + $0x70] sm:$0xff]
                  %440 = vst [vmem:[%s410 + $0x48] sm:$0xff] %v439
                  %v441 = vld [vmem:[%s409 + $0x78] sm:$0xff]
                  %442 = vst [vmem:[%s410 + $0x50] sm:$0xff] %v441
                  %v443 = vld [vmem:[%s409 + $0x80] sm:$0xff]
                  %444 = vst [vmem:[%s410 + $0x30] sm:$0xff] %v443
                  %v445 = vld [vmem:[%s409 + $0x88] sm:$0xff]
                  %446 = vst [vmem:[%s410 + $0x38] sm:$0xff] %v445
                  %v447 = vld [vmem:[%s409 + $0x90] sm:$0xff]
                  %448 = vst [vmem:[%s410 + $0x40] sm:$0xff] %v447
                  %v449 = vld [vmem:[%s409 + $0x98] sm:$0xff]
                  %450 = vst [vmem:[%s410 + $0x48] sm:$0xff] %v449
                  %v451 = vld [vmem:[%s409 + $0xa0] sm:$0xff]
                  %452 = vst [vmem:[%s410 + $0x50] sm:$0xff] %v451
                  %v453 = vld [vmem:[%s409 + $0xa8] sm:$0xff]
                  %454 = vst [vmem:[%s410 + $0x58] sm:$0xff] %v453
                  %v455 = vld [vmem:[%s409 + $0xb0] sm:$0xff]
                  %456 = vst [vmem:[%s410 + $0x60] sm:$0xff] %v455
                  %v457 = vld [vmem:[%s409 + $0xb8] sm:$0xff]
                  %458 = vst [vmem:[%s410 + $0x68] sm:$0xff] %v457
                  %v459 = vld [vmem:[%s409 + $0xc0] sm:$0xff]
                  %460 = vst [vmem:[%s410 + $0x48] sm:$0xff] %v459
                  %v461 = vld [vmem:[%s409 + $0xc8] sm:$0xff]
                  %462 = vst [vmem:[%s410 + $0x50] sm:$0xff] %v461
                  %v463 = vld [vmem:[%s409 + $0xd0] sm:$0xff]
                  %464 = vst [vmem:[%s410 + $0x58] sm:$0xff] %v463
                  %v465 = vld [vmem:[%s409 + $0xd8] sm:$0xff]
                  %466 = vst [vmem:[%s410 + $0x60] sm:$0xff] %v465
                  %v467 = vld [vmem:[%s409 + $0xe0] sm:$0xff]
                  %468 = vst [vmem:[%s410 + $0x68] sm:$0xff] %v467
                  %v469 = vld [vmem:[%s409 + $0xe8] sm:$0xff]
                  %470 = vst [vmem:[%s410 + $0x70] sm:$0xff] %v469
                  %v471 = vld [vmem:[%s409 + $0xf0] sm:$0xff]
                  %472 = vst [vmem:[%s410 + $0x78] sm:$0xff] %v471
                  %v473 = vld [vmem:[%s409 + $0xf8] sm:$0xff]
                  %474 = vst [vmem:[%s410 + $0x80] sm:$0xff] %v473
                  %s475 = sadd.s32 1, %s408
                  %p476 = scmp.ge.s32.totalorder %s475, %s401
                  %s477 = scalar_select %p476, 0, %s475
                  %s478 = smul.u32 %s477, 64
                  %s479 = smul.u32 %s477, 64
                  %s480 = scalar_lea.vmem %s244, %s478
                  %s481 = scalar_lea.vmem %s234, %s479 [#allocation2]
                $region78: #{_lambda_.7} parent=72 // loop_footer
                  %s405 = sadd.s32 %s403, 1
                $region79: #{_lambda_.7} parent=72 // loop_footer_branch
                  %402 = sbr.rel target = $region75
                $region80: #{_lambda_.7} parent=72 // loop_exit
                  _
                %s482 = sshrl.u32 %s400, 3
                %s483 = sand.u32 %s400, 7
                %s484 = smul.u32 %s482, 8
                %s485 = smul.u32 8, %s484
                %s486 = scalar_lea.vmem %s244, %s485
                %s487 = smul.u32 8, %s484
                %s488 = scalar_lea.vmem %s234, %s487 [#allocation2]
                // While loop
                $region81: #{_lambda_.7} parent=72 // loop_pre_header
                  _
                $region82: #{_lambda_.7} parent=72 // loop_header
                  %s490 = sphi 0, %s492
                  %p491 = scmp.ge.s32.totalorder %s490, %s483
                  %s495 = sphi 0, %s508
                  %s496 = sphi %s486, %s511
                  %s497 = sphi %s488, %s512
                $region83: #{_lambda_.7} parent=72 // loop_header_branch
                  %494 = sbr.rel (%p491) target = $region87
                $region84: #{_lambda_.7} parent=72 // loop_body
                  %v498 = vld [vmem:[%s496] sm:$0xff]
                  %499 = vst [vmem:[%s497] sm:$0xff] %v498
                  %v500 = vld [vmem:[%s496 + $0x40] sm:$0xff]
                  %501 = vst [vmem:[%s497 + $0x18] sm:$0xff] %v500
                  %v502 = vld [vmem:[%s496 + $0x80] sm:$0xff]
                  %503 = vst [vmem:[%s497 + $0x30] sm:$0xff] %v502
                  %v504 = vld [vmem:[%s496 + $0xc0] sm:$0xff]
                  %505 = vst [vmem:[%s497 + $0x48] sm:$0xff] %v504
                  %s506 = sadd.s32 1, %s495
                  %p507 = scmp.ge.s32.totalorder %s506, %s483
                  %s508 = scalar_select %p507, 0, %s506
                  %s509 = smul.u32 %s508, 8
                  %s510 = smul.u32 %s508, 8
                  %s511 = scalar_lea.vmem %s486, %s509
                  %s512 = scalar_lea.vmem %s488, %s510 [#allocation2]
                $region85: #{_lambda_.7} parent=72 // loop_footer
                  %s492 = sadd.s32 %s490, 1
                $region86: #{_lambda_.7} parent=72 // loop_footer_branch
                  %489 = sbr.rel target = $region82
                $region87: #{_lambda_.7} parent=72 // loop_exit
                  _
                %s513 = sshll.u32 1, %s395
                %s514 = ssub.s32 %s513, 1
                loop: start=0, step=1, limit=1
                $region88: #{_lambda_.7} parent=72 // loop_pre_header
                  _
                $region89: #{_lambda_.7} parent=72 // loop_header
                  %s516 = sphi 0, %s520
                  %p517 = scmp.ge.s32.totalorder %s516, 1
                  %s521 = sphi %s397, %s397
                  %s522 = sphi %s399, %s399
                $region90: #{_lambda_.7} parent=72 // loop_header_branch
                  %519 = sbr.rel (%p517) target = $region94
                $region91: #{_lambda_.7} parent=72 // loop_body
                  %v523 = vld [vmem:[%s521] sm:%s514]
                  %524 = vst [vmem:[%s522] sm:%s514] %v523
                  %v525 = vld [vmem:[%s521 + $0x40] sm:%s514]
                  %526 = vst [vmem:[%s522 + $0x18] sm:%s514] %v525
                  %v527 = vld [vmem:[%s521 + $0x80] sm:%s514]
                  %528 = vst [vmem:[%s522 + $0x30] sm:%s514] %v527
                  %v529 = vld [vmem:[%s521 + $0xc0] sm:%s514]
                  %530 = vst [vmem:[%s522 + $0x48] sm:%s514] %v529
                $region92: #{_lambda_.7} parent=72 // loop_footer
                  %s520 = sadd.s32 1, %s516
                $region93: #{_lambda_.7} parent=72 // loop_footer_branch
                  %515 = sbr.rel target = $region89
                $region94: #{_lambda_.7} parent=72 // loop_exit
                  _
              $region73: #{_lambda_.7} parent=39 // pred_fallthru
                _
            $region40: #{_lambda_.7} parent=35 // pred_fallthru
              _
            // Predicated region
            $region41: #{_lambda_.7} parent=35 // pred_check
              %p253 = pneg %p249
            $region42: #{_lambda_.7} parent=35 // pred_check_branch
              %255 = sbr.rel (%p253) target = $region44
            $region43: #{_lambda_.7} parent=35 // pred_region
              %s256 = sshll.u32 1, %s245
              %s257 = ssub.s32 %s256, 1
              loop: start=0, step=1, limit=1
              $region45: #{_lambda_.7} parent=43 // loop_pre_header
                _
              $region46: #{_lambda_.7} parent=43 // loop_header
                %s259 = sphi 0, %s263
                %p260 = scmp.ge.s32.totalorder %s259, 1
                %s264 = sphi %s244, %s244
                %s265 = sphi %s234, %s234
              $region47: #{_lambda_.7} parent=43 // loop_header_branch
                %262 = sbr.rel (%p260) target = $region51
              $region48: #{_lambda_.7} parent=43 // loop_body
                %v266 = vld [vmem:[%s264] sm:%s257]
                %267 = vst [vmem:[%s265] sm:%s257] %v266
                %v268 = vld [vmem:[%s264 + $0x40] sm:%s257]
                %269 = vst [vmem:[%s265 + $0x18] sm:%s257] %v268
                %v270 = vld [vmem:[%s264 + $0x80] sm:%s257]
                %271 = vst [vmem:[%s265 + $0x30] sm:%s257] %v270
                %v272 = vld [vmem:[%s264 + $0xc0] sm:%s257]
                %273 = vst [vmem:[%s265 + $0x48] sm:%s257] %v272
              $region49: #{_lambda_.7} parent=43 // loop_footer
                %s263 = sadd.s32 1, %s259
              $region50: #{_lambda_.7} parent=43 // loop_footer_branch
                %258 = sbr.rel target = $region46
              $region51: #{_lambda_.7} parent=43 // loop_exit
                _
            $region44: #{_lambda_.7} parent=35 // pred_fallthru
              _
          $region36: #{_lambda_.7} parent=31 // pred_fallthru
            _
          %531 = vnop
        $region32: #{_lambda_.7} parent=27 // pred_fallthru
          _
      $region28: #{_lambda_.7} parent=5 // pred_fallthru
        _
      %p532 = scmp.le.s32.totalorder 1, %s13
      %p533 = scmp.lt.s32.totalorder %s13, 7
      %p534 = pnand %p532, %p533
      %p535 = pneg %p534
      // Predicated region
      $region95: #{_lambda_.7} parent=5 // pred_check
        _
      $region96: #{_lambda_.7} parent=5 // pred_check_branch
        %537 = sbr.rel (%p534) target = $region98
      $region97: #{_lambda_.7} parent=5 // pred_region
        %s538 = ssub.s32 %s13, 1
        %s539 = sand.u32 %s40, 1
        %s540 = sand.u32 %s40, 1
        %s541 = smul.addr %s540, 96
        %s542 = scalar_lea.vmem [#allocation2], %s541
        // Predicated region
        $region99: #{_lambda_.7} parent=97 // pred_check
          %p543 = pneg %p53
        $region100: #{_lambda_.7} parent=97 // pred_check_branch
          %545 = sbr.rel (%p543) target = $region102
        $region101: #{_lambda_.7} parent=97 // pred_region
          _
        $region102: #{_lambda_.7} parent=97 // pred_fallthru
          _
        %s546 = sand.u32 %s40, 1
        %s547 = sand.u32 %s40, 1
        %s548 = smul.addr %s547, 96
        %s549 = scalar_lea.vmem [#allocation2], %s548
        %p550 = pneg %p53
        %p551 = pneg %p50
        %p552 = pneg %p74
        %p553 = pneg %p71
        %p554 = pneg %p95
        %p555 = pneg %p92
        %p556 = pneg %p116
        %p557 = pneg %p113
        %p558 = pneg %p144
        %p559 = pneg %p141
        %s560 = sand.u32 %s131, 1
        %s561 = sand.u32 %s131, 1
        %s562 = smul.addr %s561, 96
        %s563 = scalar_lea.vmem [#allocation3], %s562
        %p564 = pneg %p172
        %p565 = pneg %p169
        %p566 = scmp.lt.s32.totalorder %s22, 1
        %s567 = scalar_select %p566, %s22, 1
        %p568 = scmp.lt.s32.totalorder %s23, 2
        %s569 = scalar_select %p568, %s23, 2
        %s570 = smul.addr %s569, 4
        %s571 = smul.addr %s567, 12
        %s572 = sadd.s32 %s570, %s571
        %s573 = smul.addr %s572, 8
        %s574 = scalar_lea.vmem %s5, %s573
        %p575 = pneg %p200
        %p576 = pneg %p197
        %p577 = scmp.lt.s32.totalorder %s22, 1
        %s578 = scalar_select %p577, %s22, 1
        %p579 = scmp.lt.s32.totalorder %s23, 2
        %s580 = scalar_select %p579, %s23, 2
        %s581 = smul.addr %s580, 4
        %s582 = smul.addr %s578, 12
        %s583 = sadd.s32 %s581, %s582
        %s584 = smul.addr %s583, 8
        %s585 = scalar_lea.vmem %s6, %s584
        %s586 = smul.u32 3, %s23
        %s587 = ssub.s32 8, %s586
        %p588 = scmp.lt.s32.totalorder %s587, 3
        %s589 = scalar_select %p588, %s587, 3
        %s590 = smul.u32 32, %s589
        %s591 = smul.u32 3, %s23
        %s592 = ssub.s32 8, %s591
        %p593 = scmp.lt.s32.totalorder %s592, 3
        %s594 = scalar_select %p593, %s592, 3
        %s595 = smul.u32 32, %s594
        %p596 = scmp.lt.s32.totalorder %s22, 1
        %s597 = scalar_select %p596, %s22, 1
        %p598 = scmp.lt.s32.totalorder %s23, 2
        %s599 = scalar_select %p598, %s23, 2
        %s600 = smul.addr %s599, 4
        %s601 = smul.addr %s597, 12
        %s602 = sadd.s32 %s600, %s601
        %s603 = smul.addr %s602, 8
        %s604 = scalar_lea.vmem %s5, %s603
        %p605 = scmp.lt.s32.totalorder %s22, 1
        %s606 = scalar_select %p605, %s22, 1
        %p607 = scmp.lt.s32.totalorder %s23, 2
        %s608 = scalar_select %p607, %s23, 2
        %s609 = smul.addr %s608, 4
        %s610 = smul.addr %s606, 12
        %s611 = sadd.s32 %s609, %s610
        %s612 = smul.addr %s611, 8
        %s613 = scalar_lea.vmem %s6, %s612
        %v614 = vld [vmem:[%s542] sm:$0xff]
        %v615 = vld [vmem:[%s542 + $0x8] sm:$0xff]
        %v616 = vld [vmem:[%s542 + $0x10] sm:$0xff]
        %v617 = vld [vmem:[%s542 + $0x18] sm:$0xff]
        %v618 = vld [vmem:[%s542 + $0x20] sm:$0xff]
        %v619 = vld [vmem:[%s542 + $0x28] sm:$0xff]
        %v620 = vld [vmem:[%s542 + $0x30] sm:$0xff]
        %v621 = vld [vmem:[%s542 + $0x38] sm:$0xff]
        %v622 = vld [vmem:[%s542 + $0x40] sm:$0xff]
        %v623 = vld [vmem:[%s542 + $0x48] sm:$0xff]
        %v624 = vld [vmem:[%s542 + $0x50] sm:$0xff]
        %v625 = vld [vmem:[%s542 + $0x58] sm:$0xff]
        %v626 = vld [vmem:[%s1] sm:$0xff]
        %v627 = vld [vmem:[%s1 + $0x8] sm:$0xff]
        %v628 = vld [vmem:[%s1 + $0x10] sm:$0xff]
        %v629 = vld [vmem:[%s1 + $0x18] sm:$0xff]
        %631 = vset.pattern.permute.xlu0 0
        %632 = vperm.xlu0 %631, %v626
        %v633 = vpop.permute.xlu0 %632
        %636 = vset.pattern.permute.xlu0 0
        %637 = vperm.xlu0 %636, %v627
        %v638 = vpop.permute.xlu0 %637
        %641 = vset.pattern.permute.xlu0 0
        %642 = vperm.xlu0 %641, %v628
        %v643 = vpop.permute.xlu0 %642
        %646 = vset.pattern.permute.xlu0 0
        %647 = vperm.xlu0 %646, %v629
        %v648 = vpop.permute.xlu0 %647
        %v650 = vmul.f32 %v614, %v633
        %v651 = vmul.f32 %v615, %v633
        %v652 = vmul.f32 %v616, %v633
        %v653 = vmul.f32 %v617, %v638
        %v654 = vmul.f32 %v618, %v638
        %v655 = vmul.f32 %v619, %v638
        %v656 = vmul.f32 %v620, %v643
        %v657 = vmul.f32 %v621, %v643
        %v658 = vmul.f32 %v622, %v643
        %v659 = vmul.f32 %v623, %v648
        %v660 = vmul.f32 %v624, %v648
        %v661 = vmul.f32 %v625, %v648
        %v662 = vld [vmem:[%s2] sm:$0xff]
        %v663 = vld [vmem:[%s2 + $0x8] sm:$0xff]
        %v664 = vld [vmem:[%s2 + $0x10] sm:$0xff]
        %v665 = vld [vmem:[%s2 + $0x18] sm:$0xff]
        %667 = vset.pattern.permute.xlu0 0
        %668 = vperm.xlu0 %667, %v662
        %v669 = vpop.permute.xlu0 %668
        %672 = vset.pattern.permute.xlu0 0
        %673 = vperm.xlu0 %672, %v663
        %v674 = vpop.permute.xlu0 %673
        %677 = vset.pattern.permute.xlu0 0
        %678 = vperm.xlu0 %677, %v664
        %v679 = vpop.permute.xlu0 %678
        %682 = vset.pattern.permute.xlu0 0
        %683 = vperm.xlu0 %682, %v665
        %v684 = vpop.permute.xlu0 %683
        %v686 = vadd.f32 %v650, %v669
        %v687 = vadd.f32 %v651, %v669
        %v688 = vadd.f32 %v652, %v669
        %v689 = vadd.f32 %v653, %v674
        %v690 = vadd.f32 %v654, %v674
        %v691 = vadd.f32 %v655, %v674
        %v692 = vadd.f32 %v656, %v679
        %v693 = vadd.f32 %v657, %v679
        %v694 = vadd.f32 %v658, %v679
        %v695 = vadd.f32 %v659, %v684
        %v696 = vadd.f32 %v660, %v684
        %v697 = vadd.f32 %v661, %v684
        %v698 = vmax.f32 %v686, 0.0
        %v699 = vmax.f32 %v687, 0.0
        %v700 = vmax.f32 %v688, 0.0
        %v701 = vmax.f32 %v689, 0.0
        %v702 = vmax.f32 %v690, 0.0
        %v703 = vmax.f32 %v691, 0.0
        %v704 = vmax.f32 %v692, 0.0
        %v705 = vmax.f32 %v693, 0.0
        %v706 = vmax.f32 %v694, 0.0
        %v707 = vmax.f32 %v695, 0.0
        %v708 = vmax.f32 %v696, 0.0
        %v709 = vmax.f32 %v697, 0.0
        %v710 = vld [vmem:[%s3] sm:$0xff]
        %v711 = vld [vmem:[%s3 + $0x8] sm:$0xff]
        %v712 = vld [vmem:[%s3 + $0x10] sm:$0xff]
        %v713 = vld [vmem:[%s3 + $0x18] sm:$0xff]
        %vm714 = vcmask 261120
        %v716 = vsel %vm714, %v710, 0
        %v719 = vsel %vm714, %v711, 0
        %v722 = vsel %vm714, %v712, 0
        %v725 = vsel %vm714, %v713, 0
        %727 = vmatpush.msra.mxu0 0.0
        %728 = vmatpush.msra.mxu0 0.0
        %729 = vmatpush.msra.mxu0 0.0
        %730 = vmatpush.msra.mxu0 0.0
        %731 = vmatpush.msra.mxu0 0.0
        %732 = vmatpush.msra.mxu0 0.0
        %733 = vmatpush.msra.mxu0 0.0
        %734 = vmatpush.msra.mxu0 0.0
        %735 = vmatpush.msra.mxu0 0.0
        %736 = vmatpush.msra.mxu0 0.0
        %737 = vmatpush.msra.mxu0 0.0
        %738 = vmatpush.msra.mxu0 0.0
        %739 = vmatpush.msra.mxu0 %v707
        %740 = vmatpush.msra.mxu0 %v704
        %741 = vmatpush.msra.mxu0 %v701
        %742 = vmatpush.msra.mxu0 %v698
        %743 = vmatmul.f32.gmra.mxu0 %v716
        %v744 = vpop.f32.mrf.mxu0
        %v745 = vadd.f32 0.0, %v744
        %746 = vmatmul.f32.gmra.mxu0 %v719
        %v747 = vpop.f32.mrf.mxu0
        %v748 = vadd.f32 0.0, %v747
        %749 = vmatmul.f32.gmra.mxu0 %v722
        %v750 = vpop.f32.mrf.mxu0
        %v751 = vadd.f32 0.0, %v750
        %752 = vmatmul.f32.gmra.mxu0 %v725
        %v753 = vpop.f32.mrf.mxu0
        %v754 = vadd.f32 0.0, %v753
        %755 = vdwg.mxu0
        %756 = vmatpush.msra.mxu0 0.0
        %757 = vmatpush.msra.mxu0 0.0
        %758 = vmatpush.msra.mxu0 0.0
        %759 = vmatpush.msra.mxu0 0.0
        %760 = vmatpush.msra.mxu0 0.0
        %761 = vmatpush.msra.mxu0 0.0
        %762 = vmatpush.msra.mxu0 0.0
        %763 = vmatpush.msra.mxu0 0.0
        %764 = vmatpush.msra.mxu0 0.0
        %765 = vmatpush.msra.mxu0 0.0
        %766 = vmatpush.msra.mxu0 0.0
        %767 = vmatpush.msra.mxu0 0.0
        %768 = vmatpush.msra.mxu0 %v708
        %769 = vmatpush.msra.mxu0 %v705
        %770 = vmatpush.msra.mxu0 %v702
        %771 = vmatpush.msra.mxu0 %v699
        %772 = vmatmul.f32.gmra.mxu0 %v716
        %v773 = vpop.f32.mrf.mxu0
        %v774 = vadd.f32 0.0, %v773
        %775 = vmatmul.f32.gmra.mxu0 %v719
        %v776 = vpop.f32.mrf.mxu0
        %v777 = vadd.f32 0.0, %v776
        %778 = vmatmul.f32.gmra.mxu0 %v722
        %v779 = vpop.f32.mrf.mxu0
        %v780 = vadd.f32 0.0, %v779
        %781 = vmatmul.f32.gmra.mxu0 %v725
        %v782 = vpop.f32.mrf.mxu0
        %v783 = vadd.f32 0.0, %v782
        %784 = vdwg.mxu0
        %785 = vmatpush.msra.mxu0 0.0
        %786 = vmatpush.msra.mxu0 0.0
        %787 = vmatpush.msra.mxu0 0.0
        %788 = vmatpush.msra.mxu0 0.0
        %789 = vmatpush.msra.mxu0 0.0
        %790 = vmatpush.msra.mxu0 0.0
        %791 = vmatpush.msra.mxu0 0.0
        %792 = vmatpush.msra.mxu0 0.0
        %793 = vmatpush.msra.mxu0 0.0
        %794 = vmatpush.msra.mxu0 0.0
        %795 = vmatpush.msra.mxu0 0.0
        %796 = vmatpush.msra.mxu0 0.0
        %797 = vmatpush.msra.mxu0 %v709
        %798 = vmatpush.msra.mxu0 %v706
        %799 = vmatpush.msra.mxu0 %v703
        %800 = vmatpush.msra.mxu0 %v700
        %801 = vmatmul.f32.gmra.mxu0 %v716
        %v802 = vpop.f32.mrf.mxu0
        %v803 = vadd.f32 0.0, %v802
        %804 = vmatmul.f32.gmra.mxu0 %v719
        %v805 = vpop.f32.mrf.mxu0
        %v806 = vadd.f32 0.0, %v805
        %807 = vmatmul.f32.gmra.mxu0 %v722
        %v808 = vpop.f32.mrf.mxu0
        %v809 = vadd.f32 0.0, %v808
        %810 = vmatmul.f32.gmra.mxu0 %v725
        %v811 = vpop.f32.mrf.mxu0
        %v812 = vadd.f32 0.0, %v811
        %813 = vdwg.mxu0
        %v814 = vlaneseq
        %v815 = vand.u32 %v814, 127
        %v816 = vadd.s32 %v815, 128
        %v817 = vadd.s32 %v815, 256
        %s818 = smul.u32 %s23, 384
        %v819 = vstv %s818
        %v820 = vadd.s32 %v815, %v819
        %v821 = vadd.s32 %v816, %v819
        %v822 = vadd.s32 %v817, %v819
        %vm823 = vcmp.lt.s32.totalorder %v820, 1024
        %vm824 = vcmp.lt.s32.totalorder %v821, 1024
        %vm825 = vcmp.lt.s32.totalorder %v822, 1024
        %v826 = vsel %vm823, %v745, 0.0
        %v827 = vsel %vm824, %v774, 0.0
        %v828 = vsel %vm825, %v803, 0.0
        %v829 = vsel %vm823, %v748, 0.0
        %v830 = vsel %vm824, %v777, 0.0
        %v831 = vsel %vm825, %v806, 0.0
        %v832 = vsel %vm823, %v751, 0.0
        %v833 = vsel %vm824, %v780, 0.0
        %v834 = vsel %vm825, %v809, 0.0
        %v835 = vsel %vm823, %v754, 0.0
        %v836 = vsel %vm824, %v783, 0.0
        %v837 = vsel %vm825, %v812, 0.0
        %v838 = vadd.f32 %v826, %v827
        %v839 = vadd.f32 %v838, %v828
        %840 = vadd.xlane.f32.xlu0 %v839
        %v841 = vpop.xlane.xlu0 %840
        %v842 = vadd.f32 %v829, %v830
        %v843 = vadd.f32 %v842, %v831
        %844 = vadd.xlane.f32.xlu0 %v843
        %v845 = vpop.xlane.xlu0 %844
        %v846 = vadd.f32 %v832, %v833
        %v847 = vadd.f32 %v846, %v834
        %848 = vadd.xlane.f32.xlu0 %v847
        %v849 = vpop.xlane.xlu0 %848
        %v850 = vadd.f32 %v835, %v836
        %v851 = vadd.f32 %v850, %v837
        %852 = vadd.xlane.f32.xlu0 %v851
        %v853 = vpop.xlane.xlu0 %852
        %vm854 = vcmask 7168
        %855 = vst.msk [vmem:[%s604] sm:$0xff] %vm854, %v841
        %856 = vst.msk [vmem:[%s604 + $0x8] sm:$0xff] %vm854, %v845
        %857 = vst.msk [vmem:[%s604 + $0x10] sm:$0xff] %vm854, %v849
        %858 = vst.msk [vmem:[%s604 + $0x18] sm:$0xff] %vm854, %v853
        %v859 = vmul.f32 %v826, %v826
        %v860 = vmul.f32 %v827, %v827
        %v861 = vmul.f32 %v828, %v828
        %v862 = vmul.f32 %v829, %v829
        %v863 = vmul.f32 %v830, %v830
        %v864 = vmul.f32 %v831, %v831
        %v865 = vmul.f32 %v832, %v832
        %v866 = vmul.f32 %v833, %v833
        %v867 = vmul.f32 %v834, %v834
        %v868 = vmul.f32 %v835, %v835
        %v869 = vmul.f32 %v836, %v836
        %v870 = vmul.f32 %v837, %v837
        %v871 = vadd.f32 %v859, %v860
        %v872 = vadd.f32 %v871, %v861
        %873 = vadd.xlane.f32.xlu0 %v872
        %v874 = vpop.xlane.xlu0 %873
        %v875 = vadd.f32 %v862, %v863
        %v876 = vadd.f32 %v875, %v864
        %877 = vadd.xlane.f32.xlu0 %v876
        %v878 = vpop.xlane.xlu0 %877
        %v879 = vadd.f32 %v865, %v866
        %v880 = vadd.f32 %v879, %v867
        %881 = vadd.xlane.f32.xlu0 %v880
        %v882 = vpop.xlane.xlu0 %881
        %v883 = vadd.f32 %v868, %v869
        %v884 = vadd.f32 %v883, %v870
        %885 = vadd.xlane.f32.xlu0 %v884
        %v886 = vpop.xlane.xlu0 %885
        %887 = vst.msk [vmem:[%s613] sm:$0xff] %vm854, %v874
        %888 = vst.msk [vmem:[%s613 + $0x8] sm:$0xff] %vm854, %v878
        %889 = vst.msk [vmem:[%s613 + $0x10] sm:$0xff] %vm854, %v882
        %890 = vst.msk [vmem:[%s613 + $0x18] sm:$0xff] %vm854, %v886
        %891 = vst [vmem:[%s563] sm:$0xff] %v745
        %892 = vst [vmem:[%s563 + $0x8] sm:$0xff] %v774
        %893 = vst [vmem:[%s563 + $0x10] sm:$0xff] %v803
        %894 = vst [vmem:[%s563 + $0x18] sm:$0xff] %v748
        %895 = vst [vmem:[%s563 + $0x20] sm:$0xff] %v777
        %896 = vst [vmem:[%s563 + $0x28] sm:$0xff] %v806
        %897 = vst [vmem:[%s563 + $0x30] sm:$0xff] %v751
        %898 = vst [vmem:[%s563 + $0x38] sm:$0xff] %v780
        %899 = vst [vmem:[%s563 + $0x40] sm:$0xff] %v809
        %900 = vst [vmem:[%s563 + $0x48] sm:$0xff] %v754
        %901 = vst [vmem:[%s563 + $0x50] sm:$0xff] %v783
        %902 = vst [vmem:[%s563 + $0x58] sm:$0xff] %v812
        %s903 = sand.u32 %s131, 1
        %s904 = sand.u32 %s131, 1
        %s905 = smul.addr %s904, 96
        %s906 = scalar_lea.vmem [#allocation3], %s905
        %p907 = scmp.lt.s32.totalorder %s22, 1
        %s908 = scalar_select %p907, %s22, 1
        %p909 = scmp.lt.s32.totalorder %s23, 2
        %s910 = scalar_select %p909, %s23, 2
        %s911 = smul.addr %s910, 4
        %s912 = smul.addr %s908, 12
        %s913 = sadd.s32 %s911, %s912
        %s914 = smul.addr %s913, 8
        %s915 = scalar_lea.vmem %s5, %s914
        %p916 = scmp.lt.s32.totalorder %s22, 1
        %s917 = scalar_select %p916, %s22, 1
        %p918 = scmp.lt.s32.totalorder %s23, 2
        %s919 = scalar_select %p918, %s23, 2
        %s920 = smul.addr %s919, 4
        %s921 = smul.addr %s917, 12
        %s922 = sadd.s32 %s920, %s921
        %s923 = smul.addr %s922, 8
        %s924 = scalar_lea.vmem %s6, %s923
        // Predicated region
        $region103: #{_lambda_.7} parent=97 // pred_check
          %p925 = pneg %p141
        $region104: #{_lambda_.7} parent=97 // pred_check_branch
          %927 = sbr.rel (%p925) target = $region106
        $region105: #{_lambda_.7} parent=97 // pred_region
          %s928 = smul.u32 3, %s23
          %s929 = ssub.s32 8, %s928
          %p930 = scmp.lt.s32.totalorder %s929, 3
          %s931 = scalar_select %p930, %s929, 3
          %s932 = smul.u32 32, %s931
          %p933 = scmp.ne.s32.totalorder 0, %s932
          %s934 = smul.addr %s22, 32
          %s935 = sadd.s32 %s928, %s934
          %s936 = smul.addr %s935, 8
          %s937 = scalar_lea.vmem %s4, %s936
          %s938 = smul.u32 %s931, 8
          // Predicated region
          $region107: #{_lambda_.7} parent=105 // pred_check
            %p939 = pneg %p933
          $region108: #{_lambda_.7} parent=105 // pred_check_branch
            %941 = sbr.rel (%p939) target = $region110
          $region109: #{_lambda_.7} parent=105 // pred_region
            %p942 = scmp.lt.u32.totalorder %s938, 8
            %p943 = pneg %p942
            // Predicated region
            $region111: #{_lambda_.7} parent=109 // pred_check
              _
            $region112: #{_lambda_.7} parent=109 // pred_check_branch
              %945 = sbr.rel (%p942) target = $region114
            $region113: #{_lambda_.7} parent=109 // pred_region
              %s967 = sand.u32 %s938, 7
              %p968 = scmp.eq.s32.totalorder %s967, 0
              // Predicated region
              $region126: #{_lambda_.7} parent=113 // pred_check
                %p969 = pneg %p968
              $region127: #{_lambda_.7} parent=113 // pred_check_branch
                %971 = sbr.rel (%p969) target = $region129
              $region128: #{_lambda_.7} parent=113 // pred_region
                %s972 = sshrl.u32 %s938, 3
                %s973 = sshrl.u32 %s972, 3
                // While loop
                $region130: #{_lambda_.7} parent=128 // loop_pre_header
                  _
                $region131: #{_lambda_.7} parent=128 // loop_header
                  %s975 = sphi 0, %s977
                  %p976 = scmp.ge.s32.totalorder %s975, %s973
                  %s980 = sphi 0, %s1049
                  %s981 = sphi %s906, %s1052
                  %s982 = sphi %s937, %s1053
                $region132: #{_lambda_.7} parent=128 // loop_header_branch
                  %979 = sbr.rel (%p976) target = $region136
                $region133: #{_lambda_.7} parent=128 // loop_body
                  %v983 = vld [vmem:[%s981] sm:$0xff]
                  %984 = vst [vmem:[%s982] sm:$0xff] %v983
                  %v985 = vld [vmem:[%s981 + $0x8] sm:$0xff]
                  %986 = vst [vmem:[%s982 + $0x8] sm:$0xff] %v985
                  %v987 = vld [vmem:[%s981 + $0x10] sm:$0xff]
                  %988 = vst [vmem:[%s982 + $0x10] sm:$0xff] %v987
                  %v989 = vld [vmem:[%s981 + $0x18] sm:$0xff]
                  %990 = vst [vmem:[%s982 + $0x18] sm:$0xff] %v989
                  %v991 = vld [vmem:[%s981 + $0x20] sm:$0xff]
                  %992 = vst [vmem:[%s982 + $0x20] sm:$0xff] %v991
                  %v993 = vld [vmem:[%s981 + $0x28] sm:$0xff]
                  %994 = vst [vmem:[%s982 + $0x28] sm:$0xff] %v993
                  %v995 = vld [vmem:[%s981 + $0x30] sm:$0xff]
                  %996 = vst [vmem:[%s982 + $0x30] sm:$0xff] %v995
                  %v997 = vld [vmem:[%s981 + $0x38] sm:$0xff]
                  %998 = vst [vmem:[%s982 + $0x38] sm:$0xff] %v997
                  %v999 = vld [vmem:[%s981 + $0x18] sm:$0xff]
                  %1000 = vst [vmem:[%s982 + $0x40] sm:$0xff] %v999
                  %v1001 = vld [vmem:[%s981 + $0x20] sm:$0xff]
                  %1002 = vst [vmem:[%s982 + $0x48] sm:$0xff] %v1001
                  %v1003 = vld [vmem:[%s981 + $0x28] sm:$0xff]
                  %1004 = vst [vmem:[%s982 + $0x50] sm:$0xff] %v1003
                  %v1005 = vld [vmem:[%s981 + $0x30] sm:$0xff]
                  %1006 = vst [vmem:[%s982 + $0x58] sm:$0xff] %v1005
                  %v1007 = vld [vmem:[%s981 + $0x38] sm:$0xff]
                  %1008 = vst [vmem:[%s982 + $0x60] sm:$0xff] %v1007
                  %v1009 = vld [vmem:[%s981 + $0x40] sm:$0xff]
                  %1010 = vst [vmem:[%s982 + $0x68] sm:$0xff] %v1009
                  %v1011 = vld [vmem:[%s981 + $0x48] sm:$0xff]
                  %1012 = vst [vmem:[%s982 + $0x70] sm:$0xff] %v1011
                  %v1013 = vld [vmem:[%s981 + $0x50] sm:$0xff]
                  %1014 = vst [vmem:[%s982 + $0x78] sm:$0xff] %v1013
                  %v1015 = vld [vmem:[%s981 + $0x30] sm:$0xff]
                  %1016 = vst [vmem:[%s982 + $0x80] sm:$0xff] %v1015
                  %v1017 = vld [vmem:[%s981 + $0x38] sm:$0xff]
                  %1018 = vst [vmem:[%s982 + $0x88] sm:$0xff] %v1017
                  %v1019 = vld [vmem:[%s981 + $0x40] sm:$0xff]
                  %1020 = vst [vmem:[%s982 + $0x90] sm:$0xff] %v1019
                  %v1021 = vld [vmem:[%s981 + $0x48] sm:$0xff]
                  %1022 = vst [vmem:[%s982 + $0x98] sm:$0xff] %v1021
                  %v1023 = vld [vmem:[%s981 + $0x50] sm:$0xff]
                  %1024 = vst [vmem:[%s982 + $0xa0] sm:$0xff] %v1023
                  %v1025 = vld [vmem:[%s981 + $0x58] sm:$0xff]
                  %1026 = vst [vmem:[%s982 + $0xa8] sm:$0xff] %v1025
                  %v1027 = vld [vmem:[%s981 + $0x60] sm:$0xff]
                  %1028 = vst [vmem:[%s982 + $0xb0] sm:$0xff] %v1027
                  %v1029 = vld [vmem:[%s981 + $0x68] sm:$0xff]
                  %1030 = vst [vmem:[%s982 + $0xb8] sm:$0xff] %v1029
                  %v1031 = vld [vmem:[%s981 + $0x48] sm:$0xff]
                  %1032 = vst [vmem:[%s982 + $0xc0] sm:$0xff] %v1031
                  %v1033 = vld [vmem:[%s981 + $0x50] sm:$0xff]
                  %1034 = vst [vmem:[%s982 + $0xc8] sm:$0xff] %v1033
                  %v1035 = vld [vmem:[%s981 + $0x58] sm:$0xff]
                  %1036 = vst [vmem:[%s982 + $0xd0] sm:$0xff] %v1035
                  %v1037 = vld [vmem:[%s981 + $0x60] sm:$0xff]
                  %1038 = vst [vmem:[%s982 + $0xd8] sm:$0xff] %v1037
                  %v1039 = vld [vmem:[%s981 + $0x68] sm:$0xff]
                  %1040 = vst [vmem:[%s982 + $0xe0] sm:$0xff] %v1039
                  %v1041 = vld [vmem:[%s981 + $0x70] sm:$0xff]
                  %1042 = vst [vmem:[%s982 + $0xe8] sm:$0xff] %v1041
                  %v1043 = vld [vmem:[%s981 + $0x78] sm:$0xff]
                  %1044 = vst [vmem:[%s982 + $0xf0] sm:$0xff] %v1043
                  %v1045 = vld [vmem:[%s981 + $0x80] sm:$0xff]
                  %1046 = vst [vmem:[%s982 + $0xf8] sm:$0xff] %v1045
                  %s1047 = sadd.s32 1, %s980
                  %p1048 = scmp.ge.s32.totalorder %s1047, %s973
                  %s1049 = scalar_select %p1048, 0, %s1047
                  %s1050 = smul.u32 %s1049, 64
                  %s1051 = smul.u32 %s1049, 64
                  %s1052 = scalar_lea.vmem %s906, %s1050 [#allocation3]
                  %s1053 = scalar_lea.vmem %s937, %s1051
                $region134: #{_lambda_.7} parent=128 // loop_footer
                  %s977 = sadd.s32 %s975, 1
                $region135: #{_lambda_.7} parent=128 // loop_footer_branch
                  %974 = sbr.rel target = $region131
                $region136: #{_lambda_.7} parent=128 // loop_exit
                  _
                %s1054 = sshrl.u32 %s972, 3
                %s1055 = sand.u32 %s972, 7
                %s1056 = smul.u32 %s1054, 8
                %s1057 = smul.u32 8, %s1056
                %s1058 = scalar_lea.vmem %s906, %s1057 [#allocation3]
                %s1059 = smul.u32 8, %s1056
                %s1060 = scalar_lea.vmem %s937, %s1059
                // While loop
                $region137: #{_lambda_.7} parent=128 // loop_pre_header
                  _
                $region138: #{_lambda_.7} parent=128 // loop_header
                  %s1062 = sphi 0, %s1064
                  %p1063 = scmp.ge.s32.totalorder %s1062, %s1055
                  %s1067 = sphi 0, %s1080
                  %s1068 = sphi %s1058, %s1083
                  %s1069 = sphi %s1060, %s1084
                $region139: #{_lambda_.7} parent=128 // loop_header_branch
                  %1066 = sbr.rel (%p1063) target = $region143
                $region140: #{_lambda_.7} parent=128 // loop_body
                  %v1070 = vld [vmem:[%s1068] sm:$0xff]
                  %1071 = vst [vmem:[%s1069] sm:$0xff] %v1070
                  %v1072 = vld [vmem:[%s1068 + $0x18] sm:$0xff]
                  %1073 = vst [vmem:[%s1069 + $0x40] sm:$0xff] %v1072
                  %v1074 = vld [vmem:[%s1068 + $0x30] sm:$0xff]
                  %1075 = vst [vmem:[%s1069 + $0x80] sm:$0xff] %v1074
                  %v1076 = vld [vmem:[%s1068 + $0x48] sm:$0xff]
                  %1077 = vst [vmem:[%s1069 + $0xc0] sm:$0xff] %v1076
                  %s1078 = sadd.s32 1, %s1067
                  %p1079 = scmp.ge.s32.totalorder %s1078, %s1055
                  %s1080 = scalar_select %p1079, 0, %s1078
                  %s1081 = smul.u32 %s1080, 8
                  %s1082 = smul.u32 %s1080, 8
                  %s1083 = scalar_lea.vmem %s1058, %s1081 [#allocation3]
                  %s1084 = scalar_lea.vmem %s1060, %s1082
                $region141: #{_lambda_.7} parent=128 // loop_footer
                  %s1064 = sadd.s32 %s1062, 1
                $region142: #{_lambda_.7} parent=128 // loop_footer_branch
                  %1061 = sbr.rel target = $region138
                $region143: #{_lambda_.7} parent=128 // loop_exit
                  _
              $region129: #{_lambda_.7} parent=113 // pred_fallthru
                _
              %p1085 = pneg %p968
              // Predicated region
              $region144: #{_lambda_.7} parent=113 // pred_check
                _
              $region145: #{_lambda_.7} parent=113 // pred_check_branch
                %1087 = sbr.rel (%p968) target = $region147
              $region146: #{_lambda_.7} parent=113 // pred_region
                %s1088 = sand.u32 %s938, 7
                %s1089 = ssub.s32 %s938, %s1088
                %s1090 = scalar_lea.vmem %s906, %s1089 [#allocation3]
                %s1091 = ssub.s32 %s938, %s1088
                %s1092 = scalar_lea.vmem %s937, %s1091
                %s1093 = sshrl.u32 %s938, 3
                %s1094 = sshrl.u32 %s1093, 3
                // While loop
                $region148: #{_lambda_.7} parent=146 // loop_pre_header
                  _
                $region149: #{_lambda_.7} parent=146 // loop_header
                  %s1096 = sphi 0, %s1098
                  %p1097 = scmp.ge.s32.totalorder %s1096, %s1094
                  %s1101 = sphi 0, %s1170
                  %s1102 = sphi %s906, %s1173
                  %s1103 = sphi %s937, %s1174
                $region150: #{_lambda_.7} parent=146 // loop_header_branch
                  %1100 = sbr.rel (%p1097) target = $region154
                $region151: #{_lambda_.7} parent=146 // loop_body
                  %v1104 = vld [vmem:[%s1102] sm:$0xff]
                  %1105 = vst [vmem:[%s1103] sm:$0xff] %v1104
                  %v1106 = vld [vmem:[%s1102 + $0x8] sm:$0xff]
                  %1107 = vst [vmem:[%s1103 + $0x8] sm:$0xff] %v1106
                  %v1108 = vld [vmem:[%s1102 + $0x10] sm:$0xff]
                  %1109 = vst [vmem:[%s1103 + $0x10] sm:$0xff] %v1108
                  %v1110 = vld [vmem:[%s1102 + $0x18] sm:$0xff]
                  %1111 = vst [vmem:[%s1103 + $0x18] sm:$0xff] %v1110
                  %v1112 = vld [vmem:[%s1102 + $0x20] sm:$0xff]
                  %1113 = vst [vmem:[%s1103 + $0x20] sm:$0xff] %v1112
                  %v1114 = vld [vmem:[%s1102 + $0x28] sm:$0xff]
                  %1115 = vst [vmem:[%s1103 + $0x28] sm:$0xff] %v1114
                  %v1116 = vld [vmem:[%s1102 + $0x30] sm:$0xff]
                  %1117 = vst [vmem:[%s1103 + $0x30] sm:$0xff] %v1116
                  %v1118 = vld [vmem:[%s1102 + $0x38] sm:$0xff]
                  %1119 = vst [vmem:[%s1103 + $0x38] sm:$0xff] %v1118
                  %v1120 = vld [vmem:[%s1102 + $0x18] sm:$0xff]
                  %1121 = vst [vmem:[%s1103 + $0x40] sm:$0xff] %v1120
                  %v1122 = vld [vmem:[%s1102 + $0x20] sm:$0xff]
                  %1123 = vst [vmem:[%s1103 + $0x48] sm:$0xff] %v1122
                  %v1124 = vld [vmem:[%s1102 + $0x28] sm:$0xff]
                  %1125 = vst [vmem:[%s1103 + $0x50] sm:$0xff] %v1124
                  %v1126 = vld [vmem:[%s1102 + $0x30] sm:$0xff]
                  %1127 = vst [vmem:[%s1103 + $0x58] sm:$0xff] %v1126
                  %v1128 = vld [vmem:[%s1102 + $0x38] sm:$0xff]
                  %1129 = vst [vmem:[%s1103 + $0x60] sm:$0xff] %v1128
                  %v1130 = vld [vmem:[%s1102 + $0x40] sm:$0xff]
                  %1131 = vst [vmem:[%s1103 + $0x68] sm:$0xff] %v1130
                  %v1132 = vld [vmem:[%s1102 + $0x48] sm:$0xff]
                  %1133 = vst [vmem:[%s1103 + $0x70] sm:$0xff] %v1132
                  %v1134 = vld [vmem:[%s1102 + $0x50] sm:$0xff]
                  %1135 = vst [vmem:[%s1103 + $0x78] sm:$0xff] %v1134
                  %v1136 = vld [vmem:[%s1102 + $0x30] sm:$0xff]
                  %1137 = vst [vmem:[%s1103 + $0x80] sm:$0xff] %v1136
                  %v1138 = vld [vmem:[%s1102 + $0x38] sm:$0xff]
                  %1139 = vst [vmem:[%s1103 + $0x88] sm:$0xff] %v1138
                  %v1140 = vld [vmem:[%s1102 + $0x40] sm:$0xff]
                  %1141 = vst [vmem:[%s1103 + $0x90] sm:$0xff] %v1140
                  %v1142 = vld [vmem:[%s1102 + $0x48] sm:$0xff]
                  %1143 = vst [vmem:[%s1103 + $0x98] sm:$0xff] %v1142
                  %v1144 = vld [vmem:[%s1102 + $0x50] sm:$0xff]
                  %1145 = vst [vmem:[%s1103 + $0xa0] sm:$0xff] %v1144
                  %v1146 = vld [vmem:[%s1102 + $0x58] sm:$0xff]
                  %1147 = vst [vmem:[%s1103 + $0xa8] sm:$0xff] %v1146
                  %v1148 = vld [vmem:[%s1102 + $0x60] sm:$0xff]
                  %1149 = vst [vmem:[%s1103 + $0xb0] sm:$0xff] %v1148
                  %v1150 = vld [vmem:[%s1102 + $0x68] sm:$0xff]
                  %1151 = vst [vmem:[%s1103 + $0xb8] sm:$0xff] %v1150
                  %v1152 = vld [vmem:[%s1102 + $0x48] sm:$0xff]
                  %1153 = vst [vmem:[%s1103 + $0xc0] sm:$0xff] %v1152
                  %v1154 = vld [vmem:[%s1102 + $0x50] sm:$0xff]
                  %1155 = vst [vmem:[%s1103 + $0xc8] sm:$0xff] %v1154
                  %v1156 = vld [vmem:[%s1102 + $0x58] sm:$0xff]
                  %1157 = vst [vmem:[%s1103 + $0xd0] sm:$0xff] %v1156
                  %v1158 = vld [vmem:[%s1102 + $0x60] sm:$0xff]
                  %1159 = vst [vmem:[%s1103 + $0xd8] sm:$0xff] %v1158
                  %v1160 = vld [vmem:[%s1102 + $0x68] sm:$0xff]
                  %1161 = vst [vmem:[%s1103 + $0xe0] sm:$0xff] %v1160
                  %v1162 = vld [vmem:[%s1102 + $0x70] sm:$0xff]
                  %1163 = vst [vmem:[%s1103 + $0xe8] sm:$0xff] %v1162
                  %v1164 = vld [vmem:[%s1102 + $0x78] sm:$0xff]
                  %1165 = vst [vmem:[%s1103 + $0xf0] sm:$0xff] %v1164
                  %v1166 = vld [vmem:[%s1102 + $0x80] sm:$0xff]
                  %1167 = vst [vmem:[%s1103 + $0xf8] sm:$0xff] %v1166
                  %s1168 = sadd.s32 1, %s1101
                  %p1169 = scmp.ge.s32.totalorder %s1168, %s1094
                  %s1170 = scalar_select %p1169, 0, %s1168
                  %s1171 = smul.u32 %s1170, 64
                  %s1172 = smul.u32 %s1170, 64
                  %s1173 = scalar_lea.vmem %s906, %s1171 [#allocation3]
                  %s1174 = scalar_lea.vmem %s937, %s1172
                $region152: #{_lambda_.7} parent=146 // loop_footer
                  %s1098 = sadd.s32 %s1096, 1
                $region153: #{_lambda_.7} parent=146 // loop_footer_branch
                  %1095 = sbr.rel target = $region149
                $region154: #{_lambda_.7} parent=146 // loop_exit
                  _
                %s1175 = sshrl.u32 %s1093, 3
                %s1176 = sand.u32 %s1093, 7
                %s1177 = smul.u32 %s1175, 8
                %s1178 = smul.u32 8, %s1177
                %s1179 = scalar_lea.vmem %s906, %s1178 [#allocation3]
                %s1180 = smul.u32 8, %s1177
                %s1181 = scalar_lea.vmem %s937, %s1180
                // While loop
                $region155: #{_lambda_.7} parent=146 // loop_pre_header
                  _
                $region156: #{_lambda_.7} parent=146 // loop_header
                  %s1183 = sphi 0, %s1185
                  %p1184 = scmp.ge.s32.totalorder %s1183, %s1176
                  %s1188 = sphi 0, %s1201
                  %s1189 = sphi %s1179, %s1204
                  %s1190 = sphi %s1181, %s1205
                $region157: #{_lambda_.7} parent=146 // loop_header_branch
                  %1187 = sbr.rel (%p1184) target = $region161
                $region158: #{_lambda_.7} parent=146 // loop_body
                  %v1191 = vld [vmem:[%s1189] sm:$0xff]
                  %1192 = vst [vmem:[%s1190] sm:$0xff] %v1191
                  %v1193 = vld [vmem:[%s1189 + $0x18] sm:$0xff]
                  %1194 = vst [vmem:[%s1190 + $0x40] sm:$0xff] %v1193
                  %v1195 = vld [vmem:[%s1189 + $0x30] sm:$0xff]
                  %1196 = vst [vmem:[%s1190 + $0x80] sm:$0xff] %v1195
                  %v1197 = vld [vmem:[%s1189 + $0x48] sm:$0xff]
                  %1198 = vst [vmem:[%s1190 + $0xc0] sm:$0xff] %v1197
                  %s1199 = sadd.s32 1, %s1188
                  %p1200 = scmp.ge.s32.totalorder %s1199, %s1176
                  %s1201 = scalar_select %p1200, 0, %s1199
                  %s1202 = smul.u32 %s1201, 8
                  %s1203 = smul.u32 %s1201, 8
                  %s1204 = scalar_lea.vmem %s1179, %s1202 [#allocation3]
                  %s1205 = scalar_lea.vmem %s1181, %s1203
                $region159: #{_lambda_.7} parent=146 // loop_footer
                  %s1185 = sadd.s32 %s1183, 1
                $region160: #{_lambda_.7} parent=146 // loop_footer_branch
                  %1182 = sbr.rel target = $region156
                $region161: #{_lambda_.7} parent=146 // loop_exit
                  _
                %s1206 = sshll.u32 1, %s1088
                %s1207 = ssub.s32 %s1206, 1
                loop: start=0, step=1, limit=1
                $region162: #{_lambda_.7} parent=146 // loop_pre_header
                  _
                $region163: #{_lambda_.7} parent=146 // loop_header
                  %s1209 = sphi 0, %s1213
                  %p1210 = scmp.ge.s32.totalorder %s1209, 1
                  %s1214 = sphi %s1090, %s1090
                  %s1215 = sphi %s1092, %s1092
                $region164: #{_lambda_.7} parent=146 // loop_header_branch
                  %1212 = sbr.rel (%p1210) target = $region168
                $region165: #{_lambda_.7} parent=146 // loop_body
                  %v1216 = vld [vmem:[%s1214] sm:%s1207]
                  %1217 = vst [vmem:[%s1215] sm:%s1207] %v1216
                  %v1218 = vld [vmem:[%s1214 + $0x18] sm:%s1207]
                  %1219 = vst [vmem:[%s1215 + $0x40] sm:%s1207] %v1218
                  %v1220 = vld [vmem:[%s1214 + $0x30] sm:%s1207]
                  %1221 = vst [vmem:[%s1215 + $0x80] sm:%s1207] %v1220
                  %v1222 = vld [vmem:[%s1214 + $0x48] sm:%s1207]
                  %1223 = vst [vmem:[%s1215 + $0xc0] sm:%s1207] %v1222
                $region166: #{_lambda_.7} parent=146 // loop_footer
                  %s1213 = sadd.s32 1, %s1209
                $region167: #{_lambda_.7} parent=146 // loop_footer_branch
                  %1208 = sbr.rel target = $region163
                $region168: #{_lambda_.7} parent=146 // loop_exit
                  _
              $region147: #{_lambda_.7} parent=113 // pred_fallthru
                _
            $region114: #{_lambda_.7} parent=109 // pred_fallthru
              _
            // Predicated region
            $region115: #{_lambda_.7} parent=109 // pred_check
              %p946 = pneg %p942
            $region116: #{_lambda_.7} parent=109 // pred_check_branch
              %948 = sbr.rel (%p946) target = $region118
            $region117: #{_lambda_.7} parent=109 // pred_region
              %s949 = sshll.u32 1, %s938
              %s950 = ssub.s32 %s949, 1
              loop: start=0, step=1, limit=1
              $region119: #{_lambda_.7} parent=117 // loop_pre_header
                _
              $region120: #{_lambda_.7} parent=117 // loop_header
                %s952 = sphi 0, %s956
                %p953 = scmp.ge.s32.totalorder %s952, 1
                %s957 = sphi %s906, %s906
                %s958 = sphi %s937, %s937
              $region121: #{_lambda_.7} parent=117 // loop_header_branch
                %955 = sbr.rel (%p953) target = $region125
              $region122: #{_lambda_.7} parent=117 // loop_body
                %v959 = vld [vmem:[%s957] sm:%s950]
                %960 = vst [vmem:[%s958] sm:%s950] %v959
                %v961 = vld [vmem:[%s957 + $0x18] sm:%s950]
                %962 = vst [vmem:[%s958 + $0x40] sm:%s950] %v961
                %v963 = vld [vmem:[%s957 + $0x30] sm:%s950]
                %964 = vst [vmem:[%s958 + $0x80] sm:%s950] %v963
                %v965 = vld [vmem:[%s957 + $0x48] sm:%s950]
                %966 = vst [vmem:[%s958 + $0xc0] sm:%s950] %v965
              $region123: #{_lambda_.7} parent=117 // loop_footer
                %s956 = sadd.s32 1, %s952
              $region124: #{_lambda_.7} parent=117 // loop_footer_branch
                %951 = sbr.rel target = $region120
              $region125: #{_lambda_.7} parent=117 // loop_exit
                _
            $region118: #{_lambda_.7} parent=109 // pred_fallthru
              _
          $region110: #{_lambda_.7} parent=105 // pred_fallthru
            _
          %1224 = vnop
        $region106: #{_lambda_.7} parent=97 // pred_fallthru
          _
        // Predicated region
        $region169: #{_lambda_.7} parent=97 // pred_check
          %p1225 = pneg %p169
        $region170: #{_lambda_.7} parent=97 // pred_check_branch
          %1227 = sbr.rel (%p1225) target = $region172
        $region171: #{_lambda_.7} parent=97 // pred_region
          _
        $region172: #{_lambda_.7} parent=97 // pred_fallthru
          _
        // Predicated region
        $region173: #{_lambda_.7} parent=97 // pred_check
          %p1228 = pneg %p197
        $region174: #{_lambda_.7} parent=97 // pred_check_branch
          %1230 = sbr.rel (%p1228) target = $region176
        $region175: #{_lambda_.7} parent=97 // pred_region
          _
        $region176: #{_lambda_.7} parent=97 // pred_fallthru
          _
      $region98: #{_lambda_.7} parent=5 // pred_fallthru
        _
      %p1231 = scmp.le.s32.totalorder 2, %s13
      // Predicated region
      $region177: #{_lambda_.7} parent=5 // pred_check
        %p1232 = pneg %p1231
      $region178: #{_lambda_.7} parent=5 // pred_check_branch
        %1234 = sbr.rel (%p1232) target = $region180
      $region179: #{_lambda_.7} parent=5 // pred_region
        %s1235 = ssub.s32 %s13, 2
        // Predicated region
        $region181: #{_lambda_.7} parent=179 // pred_check
          %p1236 = pneg %p147
        $region182: #{_lambda_.7} parent=179 // pred_check_branch
          %1238 = sbr.rel (%p1236) target = $region184
        $region183: #{_lambda_.7} parent=179 // pred_region
          %s1239 = sand.u32 %s132, 1
          %s1240 = sand.u32 %s132, 1
          %s1241 = smul.addr %s1240, 96
          %s1242 = scalar_lea.vmem [#allocation3], %s1241
        $region184: #{_lambda_.7} parent=179 // pred_fallthru
          _
        // Predicated region
        $region185: #{_lambda_.7} parent=179 // pred_check
          %p1243 = pneg %p175
        $region186: #{_lambda_.7} parent=179 // pred_check_branch
          %1245 = sbr.rel (%p1243) target = $region188
        $region187: #{_lambda_.7} parent=179 // pred_region
          %p1246 = scmp.lt.s32.totalorder %s24, 1
          %s1247 = scalar_select %p1246, %s24, 1
          %p1248 = scmp.lt.s32.totalorder %s25, 2
          %s1249 = scalar_select %p1248, %s25, 2
          %s1250 = smul.addr %s1249, 4
          %s1251 = smul.addr %s1247, 12
          %s1252 = sadd.s32 %s1250, %s1251
          %s1253 = smul.addr %s1252, 8
          %s1254 = scalar_lea.vmem %s5, %s1253
        $region188: #{_lambda_.7} parent=179 // pred_fallthru
          _
        // Predicated region
        $region189: #{_lambda_.7} parent=179 // pred_check
          %p1255 = pneg %p203
        $region190: #{_lambda_.7} parent=179 // pred_check_branch
          %1257 = sbr.rel (%p1255) target = $region192
        $region191: #{_lambda_.7} parent=179 // pred_region
          %p1258 = scmp.lt.s32.totalorder %s24, 1
          %s1259 = scalar_select %p1258, %s24, 1
          %p1260 = scmp.lt.s32.totalorder %s25, 2
          %s1261 = scalar_select %p1260, %s25, 2
          %s1262 = smul.addr %s1261, 4
          %s1263 = smul.addr %s1259, 12
          %s1264 = sadd.s32 %s1262, %s1263
          %s1265 = smul.addr %s1264, 8
          %s1266 = scalar_lea.vmem %s6, %s1265
        $region192: #{_lambda_.7} parent=179 // pred_fallthru
          _
      $region180: #{_lambda_.7} parent=5 // pred_fallthru
        _
    $region6: #{_lambda_.7} parent=1 // loop_footer
      %s17 = sadd.s32 1, %s13
    $region7: #{_lambda_.7} parent=1 // loop_footer_branch
      %12 = sbr.rel target = $region3
    $region8: #{_lambda_.7} parent=1 // loop_exit
      _

// kernel: _lambda_.9
$region0: #{_lambda_.9}
  #allocation0 [shape = 'u32[]', space=smem, size = 0x4, offset = 0x4, fixed_abs, tag = 'smem constant byte address 0x4 - core index']
  #allocation1 [shape = 'u32[72,128]{1,0:T(1,128)}', space=vmem, size = 0x9000, scoped, tag = 'internal scratch']
  %s0 = inlined_call_operand.vmem [shape: f32[2,48,1024], index: 0, kind: input, shape index: {}]
  %s1 = inlined_call_operand.vmem [shape: f32[48,1], index: 1, kind: input, shape index: {}]
  %s2 = inlined_call_operand.vmem [shape: f32[48,1], index: 2, kind: input, shape index: {}]
  %s3 = inlined_call_operand.vmem [shape: f32[64,48], index: 3, kind: input, shape index: {}]
  %s4 = inlined_call_operand.vmem [shape: f32[64,1], index: 4, kind: input, shape index: {}]
  %s5 = inlined_call_operand.vmem [shape: f32[2,64,1024], index: 5, kind: output, shape index: {}]
  %s6 = sld [smem:[#allocation0]]
  $region181: #{_lambda_.9} parent=0
    _
  %s8 = ssub.s32 1, %s6
  %s9 = scalar_select 0, %s8, %s6
  $region1: #{_lambda_.9} parent=0
    #allocation2 [shape = 'u8[147456]{0}', space=vmem, size = 0x24000, scoped, tag = 'input window, operand 0']
    #allocation3 [shape = 'u8[196608]{0}', space=vmem, size = 0x30000, scoped, tag = 'output window, operand 0']
    loop: start=0, step=1, limit=8
    $region2: #{_lambda_.9} parent=1 // loop_pre_header
      _
    $region3: #{_lambda_.9} parent=1 // loop_header
      %s11 = sphi 0, %s15
      %p12 = scmp.ge.s32.totalorder %s11, 8
      %s18 = sphi 0, %s30
      %s19 = sphi 0, %s26
      %s20 = sphi 0, %s18
      %s21 = sphi 0, %s19
      %s22 = sphi 0, %s20
      %s23 = sphi 0, %s21
      %s35 = sphi 0, %s37
      %s38 = sphi 0, %s35
      %s39 = sphi 0, %s38
      %s55 = sphi 0, %s39
      %s59 = sphi 0, %s59
      %s61 = sphi 0, %s59
      %s62 = sphi 0, %s61
      %s76 = sphi 0, %s62
      %s80 = sphi 0, %s80
      %s82 = sphi 0, %s80
      %s83 = sphi 0, %s82
      %s97 = sphi 0, %s83
      %s101 = sphi 0, %s101
      %s103 = sphi 0, %s101
      %s104 = sphi 0, %s103
      %s118 = sphi 0, %s104
      %s122 = sphi 0, %s122
      %s124 = sphi 0, %s122
      %s125 = sphi 0, %s124
      %s139 = sphi 0, %s125
      %s147 = sphi 0, %s149
      %s150 = sphi 0, %s147
      %s151 = sphi 0, %s150
      %s167 = sphi 0, %s151
    $region4: #{_lambda_.9} parent=1 // loop_header_branch
      %14 = sbr.rel (%p12) target = $region8
    $region5: #{_lambda_.9} parent=1 // loop_body
      %s16 = ssub.s32 %s11, 1
      %s17 = ssub.s32 %s11, 2
      %s24 = sadd.s32 1, %s19
      %p25 = scmp.ge.s32.totalorder %s24, 3
      %s26 = scalar_select %p25, 0, %s24
      %s27 = sadd.s32 1, %s18
      %s28 = scalar_select %p25, %s27, %s18
      %p29 = scmp.ge.s32.totalorder %s28, 2
      %s30 = scalar_select %p29, 0, %s28
      %s31 = ssub.s32 %s18, %s30
      %s32 = ssub.s32 %s19, %s26
      %s33 = sor.u32 %s31, %s32
      %p34 = scmp.eq.s32.totalorder %s33, 0
      %s36 = sadd.s32 %s35, 1
      %s37 = scalar_select %p34, %s35, %s36
      %p40 = pneg %p34
      %p41 = scmp.eq.s32.totalorder %s11, 5
      %p42 = por %p40, %p41
      %p43 = scmp.ne.s32.totalorder %s35, %s38
      %p44 = scmp.eq.s32.totalorder %s11, 0
      %p45 = por %p43, %p44
      %p46 = scmp.ne.s32.totalorder %s35, %s38
      %p47 = scmp.eq.s32.totalorder %s16, 5
      %p48 = por %p46, %p47
      %p49 = scmp.ne.s32.totalorder %s38, %s39
      %p50 = scmp.eq.s32.totalorder %s16, 0
      %p51 = por %p49, %p50
      %p52 = scmp.ne.s32.totalorder %s38, %s39
      %p53 = scmp.eq.s32.totalorder %s17, 5
      %p54 = por %p52, %p53
      %p56 = scmp.ne.s32.totalorder %s39, %s55
      %p57 = scmp.eq.s32.totalorder %s17, 0
      %p58 = por %p56, %p57
      %s60 = sadd.s32 %s59, 1
      %p63 = scmp.eq.s32.totalorder %s11, 5
      %p64 = scmp.ne.s32.totalorder %s59, %s61
      %p65 = scmp.eq.s32.totalorder %s11, 0
      %p66 = por %p64, %p65
      %p67 = scmp.ne.s32.totalorder %s59, %s61
      %p68 = scmp.eq.s32.totalorder %s16, 5
      %p69 = por %p67, %p68
      %p70 = scmp.ne.s32.totalorder %s61, %s62
      %p71 = scmp.eq.s32.totalorder %s16, 0
      %p72 = por %p70, %p71
      %p73 = scmp.ne.s32.totalorder %s61, %s62
      %p74 = scmp.eq.s32.totalorder %s17, 5
      %p75 = por %p73, %p74
      %p77 = scmp.ne.s32.totalorder %s62, %s76
      %p78 = scmp.eq.s32.totalorder %s17, 0
      %p79 = por %p77, %p78
      %s81 = sadd.s32 %s80, 1
      %p84 = scmp.eq.s32.totalorder %s11, 5
      %p85 = scmp.ne.s32.totalorder %s80, %s82
      %p86 = scmp.eq.s32.totalorder %s11, 0
      %p87 = por %p85, %p86
      %p88 = scmp.ne.s32.totalorder %s80, %s82
      %p89 = scmp.eq.s32.totalorder %s16, 5
      %p90 = por %p88, %p89
      %p91 = scmp.ne.s32.totalorder %s82, %s83
      %p92 = scmp.eq.s32.totalorder %s16, 0
      %p93 = por %p91, %p92
      %p94 = scmp.ne.s32.totalorder %s82, %s83
      %p95 = scmp.eq.s32.totalorder %s17, 5
      %p96 = por %p94, %p95
      %p98 = scmp.ne.s32.totalorder %s83, %s97
      %p99 = scmp.eq.s32.totalorder %s17, 0
      %p100 = por %p98, %p99
      %s102 = sadd.s32 %s101, 1
      %p105 = scmp.eq.s32.totalorder %s11, 5
      %p106 = scmp.ne.s32.totalorder %s101, %s103
      %p107 = scmp.eq.s32.totalorder %s11, 0
      %p108 = por %p106, %p107
      %p109 = scmp.ne.s32.totalorder %s101, %s103
      %p110 = scmp.eq.s32.totalorder %s16, 5
      %p111 = por %p109, %p110
      %p112 = scmp.ne.s32.totalorder %s103, %s104
      %p113 = scmp.eq.s32.totalorder %s16, 0
      %p114 = por %p112, %p113
      %p115 = scmp.ne.s32.totalorder %s103, %s104
      %p116 = scmp.eq.s32.totalorder %s17, 5
      %p117 = por %p115, %p116
      %p119 = scmp.ne.s32.totalorder %s104, %s118
      %p120 = scmp.eq.s32.totalorder %s17, 0
      %p121 = por %p119, %p120
      %s123 = sadd.s32 %s122, 1
      %p126 = scmp.eq.s32.totalorder %s11, 5
      %p127 = scmp.ne.s32.totalorder %s122, %s124
      %p128 = scmp.eq.s32.totalorder %s11, 0
      %p129 = por %p127, %p128
      %p130 = scmp.ne.s32.totalorder %s122, %s124
      %p131 = scmp.eq.s32.totalorder %s16, 5
      %p132 = por %p130, %p131
      %p133 = scmp.ne.s32.totalorder %s124, %s125
      %p134 = scmp.eq.s32.totalorder %s16, 0
      %p135 = por %p133, %p134
      %p136 = scmp.ne.s32.totalorder %s124, %s125
      %p137 = scmp.eq.s32.totalorder %s17, 5
      %p138 = por %p136, %p137
      %p140 = scmp.ne.s32.totalorder %s125, %s139
      %p141 = scmp.eq.s32.totalorder %s17, 0
      %p142 = por %p140, %p141
      %s143 = ssub.s32 %s18, %s30
      %s144 = ssub.s32 %s19, %s26
      %s145 = sor.u32 %s143, %s144
      %p146 = scmp.eq.s32.totalorder %s145, 0
      %s148 = sadd.s32 %s147, 1
      %s149 = scalar_select %p146, %s147, %s148
      %p152 = pneg %p146
      %p153 = scmp.eq.s32.totalorder %s11, 5
      %p154 = por %p152, %p153
      %p155 = scmp.ne.s32.totalorder %s147, %s150
      %p156 = scmp.eq.s32.totalorder %s11, 0
      %p157 = por %p155, %p156
      %p158 = scmp.ne.s32.totalorder %s147, %s150
      %p159 = scmp.eq.s32.totalorder %s16, 5
      %p160 = por %p158, %p159
      %p161 = scmp.ne.s32.totalorder %s150, %s151
      %p162 = scmp.eq.s32.totalorder %s16, 0
      %p163 = por %p161, %p162
      %p164 = scmp.ne.s32.totalorder %s150, %s151
      %p165 = scmp.eq.s32.totalorder %s17, 5
      %p166 = por %p164, %p165
      %p168 = scmp.ne.s32.totalorder %s151, %s167
      %p169 = scmp.eq.s32.totalorder %s17, 0
      %p170 = por %p168, %p169
      %p171 = scmp.le.s32.totalorder 1, %s11
      %p172 = scmp.lt.s32.totalorder %s11, 7
      %p173 = pnand %p171, %p172
      %p174 = pneg %p173
      // Predicated region
      $region9: #{_lambda_.9} parent=5 // pred_check
        _
      $region10: #{_lambda_.9} parent=5 // pred_check_branch
        %176 = sbr.rel (%p173) target = $region12
      $region11: #{_lambda_.9} parent=5 // pred_region
        %s177 = ssub.s32 %s11, 1
        // Predicated region
        $region13: #{_lambda_.9} parent=11 // pred_check
          %p178 = pneg %p72
        $region14: #{_lambda_.9} parent=11 // pred_check_branch
          %180 = sbr.rel (%p178) target = $region16
        $region15: #{_lambda_.9} parent=11 // pred_region
          _
        $region16: #{_lambda_.9} parent=11 // pred_fallthru
          _
        // Predicated region
        $region17: #{_lambda_.9} parent=11 // pred_check
          %p181 = pneg %p93
        $region18: #{_lambda_.9} parent=11 // pred_check_branch
          %183 = sbr.rel (%p181) target = $region20
        $region19: #{_lambda_.9} parent=11 // pred_region
          _
        $region20: #{_lambda_.9} parent=11 // pred_fallthru
          _
        // Predicated region
        $region21: #{_lambda_.9} parent=11 // pred_check
          %p184 = pneg %p114
        $region22: #{_lambda_.9} parent=11 // pred_check_branch
          %186 = sbr.rel (%p184) target = $region24
        $region23: #{_lambda_.9} parent=11 // pred_region
          _
        $region24: #{_lambda_.9} parent=11 // pred_fallthru
          _
        // Predicated region
        $region25: #{_lambda_.9} parent=11 // pred_check
          %p187 = pneg %p135
        $region26: #{_lambda_.9} parent=11 // pred_check_branch
          %189 = sbr.rel (%p187) target = $region28
        $region27: #{_lambda_.9} parent=11 // pred_region
          _
        $region28: #{_lambda_.9} parent=11 // pred_fallthru
          _
      $region12: #{_lambda_.9} parent=5 // pred_fallthru
        _
      %p190 = scmp.lt.s32.totalorder %s11, 6
      // Predicated region
      $region29: #{_lambda_.9} parent=5 // pred_check
        %p191 = pneg %p190
      $region30: #{_lambda_.9} parent=5 // pred_check_branch
        %193 = sbr.rel (%p191) target = $region32
      $region31: #{_lambda_.9} parent=5 // pred_region
        // Predicated region
        $region33: #{_lambda_.9} parent=31 // pred_check
          %p194 = pneg %p45
        $region34: #{_lambda_.9} parent=31 // pred_check_branch
          %196 = sbr.rel (%p194) target = $region36
        $region35: #{_lambda_.9} parent=31 // pred_region
          %s197 = sand.u32 %s35, 1
          %s198 = sand.u32 %s35, 1
          %s199 = smul.addr %s198, 144
          %s200 = scalar_lea.vmem [#allocation2], %s199
          %s201 = smul.u32 3, %s19
          %s202 = ssub.s32 8, %s201
          %p203 = scmp.lt.s32.totalorder %s202, 3
          %s204 = scalar_select %p203, %s202, 3
          %s205 = smul.u32 48, %s204
          %p206 = scmp.ne.s32.totalorder 0, %s205
          %s207 = smul.addr %s18, 48
          %s208 = sadd.s32 %s201, %s207
          %s209 = smul.addr %s208, 8
          %s210 = scalar_lea.vmem %s0, %s209
          %s211 = smul.u32 %s204, 8
          // Predicated region
          $region37: #{_lambda_.9} parent=35 // pred_check
            %p212 = pneg %p206
          $region38: #{_lambda_.9} parent=35 // pred_check_branch
            %214 = sbr.rel (%p212) target = $region40
          $region39: #{_lambda_.9} parent=35 // pred_region
            %p215 = scmp.lt.u32.totalorder %s211, 8
            %p216 = pneg %p215
            // Predicated region
            $region41: #{_lambda_.9} parent=39 // pred_check
              _
            $region42: #{_lambda_.9} parent=39 // pred_check_branch
              %218 = sbr.rel (%p215) target = $region44
            $region43: #{_lambda_.9} parent=39 // pred_region
              %s244 = sand.u32 %s211, 7
              %p245 = scmp.eq.s32.totalorder %s244, 0
              // Predicated region
              $region56: #{_lambda_.9} parent=43 // pred_check
                %p246 = pneg %p245
              $region57: #{_lambda_.9} parent=43 // pred_check_branch
                %248 = sbr.rel (%p246) target = $region59
              $region58: #{_lambda_.9} parent=43 // pred_region
                %s249 = sshrl.u32 %s211, 3
                %s250 = sdiv.u32.pop %s249, 6
                %s251 = srem.u32.pop %s249, 6
                // While loop
                $region60: #{_lambda_.9} parent=58 // loop_pre_header
                  _
                $region61: #{_lambda_.9} parent=58 // loop_header
                  %s253 = sphi 0, %s255
                  %p254 = scmp.ge.s32.totalorder %s253, %s250
                  %s258 = sphi 0, %s335
                  %s259 = sphi %s210, %s338
                  %s260 = sphi %s200, %s339
                $region62: #{_lambda_.9} parent=58 // loop_header_branch
                  %257 = sbr.rel (%p254) target = $region66
                $region63: #{_lambda_.9} parent=58 // loop_body
                  %v261 = vld [vmem:[%s259] sm:$0xff]
                  %262 = vst [vmem:[%s260] sm:$0xff] %v261
                  %v263 = vld [vmem:[%s259 + $0x8] sm:$0xff]
                  %264 = vst [vmem:[%s260 + $0x8] sm:$0xff] %v263
                  %v265 = vld [vmem:[%s259 + $0x10] sm:$0xff]
                  %266 = vst [vmem:[%s260 + $0x10] sm:$0xff] %v265
                  %v267 = vld [vmem:[%s259 + $0x18] sm:$0xff]
                  %268 = vst [vmem:[%s260 + $0x18] sm:$0xff] %v267
                  %v269 = vld [vmem:[%s259 + $0x20] sm:$0xff]
                  %270 = vst [vmem:[%s260 + $0x20] sm:$0xff] %v269
                  %v271 = vld [vmem:[%s259 + $0x28] sm:$0xff]
                  %272 = vst [vmem:[%s260 + $0x28] sm:$0xff] %v271
                  %v273 = vld [vmem:[%s259 + $0x40] sm:$0xff]
                  %274 = vst [vmem:[%s260 + $0x18] sm:$0xff] %v273
                  %v275 = vld [vmem:[%s259 + $0x48] sm:$0xff]
                  %276 = vst [vmem:[%s260 + $0x20] sm:$0xff] %v275
                  %v277 = vld [vmem:[%s259 + $0x50] sm:$0xff]
                  %278 = vst [vmem:[%s260 + $0x28] sm:$0xff] %v277
                  %v279 = vld [vmem:[%s259 + $0x58] sm:$0xff]
                  %280 = vst [vmem:[%s260 + $0x30] sm:$0xff] %v279
                  %v281 = vld [vmem:[%s259 + $0x60] sm:$0xff]
                  %282 = vst [vmem:[%s260 + $0x38] sm:$0xff] %v281
                  %v283 = vld [vmem:[%s259 + $0x68] sm:$0xff]
                  %284 = vst [vmem:[%s260 + $0x40] sm:$0xff] %v283
                  %v285 = vld [vmem:[%s259 + $0x80] sm:$0xff]
                  %286 = vst [vmem:[%s260 + $0x30] sm:$0xff] %v285
                  %v287 = vld [vmem:[%s259 + $0x88] sm:$0xff]
                  %288 = vst [vmem:[%s260 + $0x38] sm:$0xff] %v287
                  %v289 = vld [vmem:[%s259 + $0x90] sm:$0xff]
                  %290 = vst [vmem:[%s260 + $0x40] sm:$0xff] %v289
                  %v291 = vld [vmem:[%s259 + $0x98] sm:$0xff]
                  %292 = vst [vmem:[%s260 + $0x48] sm:$0xff] %v291
                  %v293 = vld [vmem:[%s259 + $0xa0] sm:$0xff]
                  %294 = vst [vmem:[%s260 + $0x50] sm:$0xff] %v293
                  %v295 = vld [vmem:[%s259 + $0xa8] sm:$0xff]
                  %296 = vst [vmem:[%s260 + $0x58] sm:$0xff] %v295
                  %v297 = vld [vmem:[%s259 + $0xc0] sm:$0xff]
                  %298 = vst [vmem:[%s260 + $0x48] sm:$0xff] %v297
                  %v299 = vld [vmem:[%s259 + $0xc8] sm:$0xff]
                  %300 = vst [vmem:[%s260 + $0x50] sm:$0xff] %v299
                  %v301 = vld [vmem:[%s259 + $0xd0] sm:$0xff]
                  %302 = vst [vmem:[%s260 + $0x58] sm:$0xff] %v301
                  %v303 = vld [vmem:[%s259 + $0xd8] sm:$0xff]
                  %304 = vst [vmem:[%s260 + $0x60] sm:$0xff] %v303
                  %v305 = vld [vmem:[%s259 + $0xe0] sm:$0xff]
                  %306 = vst [vmem:[%s260 + $0x68] sm:$0xff] %v305
                  %v307 = vld [vmem:[%s259 + $0xe8] sm:$0xff]
                  %308 = vst [vmem:[%s260 + $0x70] sm:$0xff] %v307
                  %v309 = vld [vmem:[%s259 + $0x100] sm:$0xff]
                  %310 = vst [vmem:[%s260 + $0x60] sm:$0xff] %v309
                  %v311 = vld [vmem:[%s259 + $0x108] sm:$0xff]
                  %312 = vst [vmem:[%s260 + $0x68] sm:$0xff] %v311
                  %v313 = vld [vmem:[%s259 + $0x110] sm:$0xff]
                  %314 = vst [vmem:[%s260 + $0x70] sm:$0xff] %v313
                  %v315 = vld [vmem:[%s259 + $0x118] sm:$0xff]
                  %316 = vst [vmem:[%s260 + $0x78] sm:$0xff] %v315
                  %v317 = vld [vmem:[%s259 + $0x120] sm:$0xff]
                  %318 = vst [vmem:[%s260 + $0x80] sm:$0xff] %v317
                  %v319 = vld [vmem:[%s259 + $0x128] sm:$0xff]
                  %320 = vst [vmem:[%s260 + $0x88] sm:$0xff] %v319
                  %v321 = vld [vmem:[%s259 + $0x140] sm:$0xff]
                  %322 = vst [vmem:[%s260 + $0x78] sm:$0xff] %v321
                  %v323 = vld [vmem:[%s259 + $0x148] sm:$0xff]
                  %324 = vst [vmem:[%s260 + $0x80] sm:$0xff] %v323
                  %v325 = vld [vmem:[%s259 + $0x150] sm:$0xff]
                  %326 = vst [vmem:[%s260 + $0x88] sm:$0xff] %v325
                  %v327 = vld [vmem:[%s259 + $0x158] sm:$0xff]
                  %328 = vst [vmem:[%s260 + $0x90] sm:$0xff] %v327
                  %v329 = vld [vmem:[%s259 + $0x160] sm:$0xff]
                  %330 = vst [vmem:[%s260 + $0x98] sm:$0xff] %v329
                  %v331 = vld [vmem:[%s259 + $0x168] sm:$0xff]
                  %332 = vst [vmem:[%s260 + $0xa0] sm:$0xff] %v331
                  %s333 = sadd.s32 1, %s258
                  %p334 = scmp.ge.s32.totalorder %s333, %s250
                  %s335 = scalar_select %p334, 0, %s333
                  %s336 = smul.u32 %s335, 48
                  %s337 = smul.u32 %s335, 48
                  %s338 = scalar_lea.vmem %s210, %s336
                  %s339 = scalar_lea.vmem %s200, %s337 [#allocation2]
                $region64: #{_lambda_.9} parent=58 // loop_footer
                  %s255 = sadd.s32 %s253, 1
                $region65: #{_lambda_.9} parent=58 // loop_footer_branch
                  %252 = sbr.rel target = $region61
                $region66: #{_lambda_.9} parent=58 // loop_exit
                  _
                %s340 = sdiv.u32.pop %s249, 6
                %s341 = srem.u32.pop %s249, 6
                %s342 = smul.u32 %s340, 6
                %s343 = smul.u32 8, %s342
                %s344 = scalar_lea.vmem %s210, %s343
                %s345 = smul.u32 8, %s342
                %s346 = scalar_lea.vmem %s200, %s345 [#allocation2]
                // While loop
                $region67: #{_lambda_.9} parent=58 // loop_pre_header
                  _
                $region68: #{_lambda_.9} parent=58 // loop_header
                  %s348 = sphi 0, %s350
                  %p349 = scmp.ge.s32.totalorder %s348, %s341
                  %s353 = sphi 0, %s370
                  %s354 = sphi %s344, %s373
                  %s355 = sphi %s346, %s374
                $region69: #{_lambda_.9} parent=58 // loop_header_branch
                  %352 = sbr.rel (%p349) target = $region73
                $region70: #{_lambda_.9} parent=58 // loop_body
                  %v356 = vld [vmem:[%s354] sm:$0xff]
                  %357 = vst [vmem:[%s355] sm:$0xff] %v356
                  %v358 = vld [vmem:[%s354 + $0x40] sm:$0xff]
                  %359 = vst [vmem:[%s355 + $0x18] sm:$0xff] %v358
                  %v360 = vld [vmem:[%s354 + $0x80] sm:$0xff]
                  %361 = vst [vmem:[%s355 + $0x30] sm:$0xff] %v360
                  %v362 = vld [vmem:[%s354 + $0xc0] sm:$0xff]
                  %363 = vst [vmem:[%s355 + $0x48] sm:$0xff] %v362
                  %v364 = vld [vmem:[%s354 + $0x100] sm:$0xff]
                  %365 = vst [vmem:[%s355 + $0x60] sm:$0xff] %v364
                  %v366 = vld [vmem:[%s354 + $0x140] sm:$0xff]
                  %367 = vst [vmem:[%s355 + $0x78] sm:$0xff] %v366
                  %s368 = sadd.s32 1, %s353
                  %p369 = scmp.ge.s32.totalorder %s368, %s341
                  %s370 = scalar_select %p369, 0, %s368
                  %s371 = smul.u32 %s370, 8
                  %s372 = smul.u32 %s370, 8
                  %s373 = scalar_lea.vmem %s344, %s371
                  %s374 = scalar_lea.vmem %s346, %s372 [#allocation2]
                $region71: #{_lambda_.9} parent=58 // loop_footer
                  %s350 = sadd.s32 %s348, 1
                $region72: #{_lambda_.9} parent=58 // loop_footer_branch
                  %347 = sbr.rel target = $region68
                $region73: #{_lambda_.9} parent=58 // loop_exit
                  _
              $region59: #{_lambda_.9} parent=43 // pred_fallthru
                _
              %p375 = pneg %p245
              // Predicated region
              $region74: #{_lambda_.9} parent=43 // pred_check
                _
              $region75: #{_lambda_.9} parent=43 // pred_check_branch
                %377 = sbr.rel (%p245) target = $region77
              $region76: #{_lambda_.9} parent=43 // pred_region
                %s378 = sand.u32 %s211, 7
                %s379 = ssub.s32 %s211, %s378
                %s380 = scalar_lea.vmem %s210, %s379
                %s381 = ssub.s32 %s211, %s378
                %s382 = scalar_lea.vmem %s200, %s381 [#allocation2]
                %s383 = sshrl.u32 %s211, 3
                %s384 = sdiv.u32.pop %s383, 6
                %s385 = srem.u32.pop %s383, 6
                // While loop
                $region78: #{_lambda_.9} parent=76 // loop_pre_header
                  _
                $region79: #{_lambda_.9} parent=76 // loop_header
                  %s387 = sphi 0, %s389
                  %p388 = scmp.ge.s32.totalorder %s387, %s384
                  %s392 = sphi 0, %s469
                  %s393 = sphi %s210, %s472
                  %s394 = sphi %s200, %s473
                $region80: #{_lambda_.9} parent=76 // loop_header_branch
                  %391 = sbr.rel (%p388) target = $region84
                $region81: #{_lambda_.9} parent=76 // loop_body
                  %v395 = vld [vmem:[%s393] sm:$0xff]
                  %396 = vst [vmem:[%s394] sm:$0xff] %v395
                  %v397 = vld [vmem:[%s393 + $0x8] sm:$0xff]
                  %398 = vst [vmem:[%s394 + $0x8] sm:$0xff] %v397
                  %v399 = vld [vmem:[%s393 + $0x10] sm:$0xff]
                  %400 = vst [vmem:[%s394 + $0x10] sm:$0xff] %v399
                  %v401 = vld [vmem:[%s393 + $0x18] sm:$0xff]
                  %402 = vst [vmem:[%s394 + $0x18] sm:$0xff] %v401
                  %v403 = vld [vmem:[%s393 + $0x20] sm:$0xff]
                  %404 = vst [vmem:[%s394 + $0x20] sm:$0xff] %v403
                  %v405 = vld [vmem:[%s393 + $0x28] sm:$0xff]
                  %406 = vst [vmem:[%s394 + $0x28] sm:$0xff] %v405
                  %v407 = vld [vmem:[%s393 + $0x40] sm:$0xff]
                  %408 = vst [vmem:[%s394 + $0x18] sm:$0xff] %v407
                  %v409 = vld [vmem:[%s393 + $0x48] sm:$0xff]
                  %410 = vst [vmem:[%s394 + $0x20] sm:$0xff] %v409
                  %v411 = vld [vmem:[%s393 + $0x50] sm:$0xff]
                  %412 = vst [vmem:[%s394 + $0x28] sm:$0xff] %v411
                  %v413 = vld [vmem:[%s393 + $0x58] sm:$0xff]
                  %414 = vst [vmem:[%s394 + $0x30] sm:$0xff] %v413
                  %v415 = vld [vmem:[%s393 + $0x60] sm:$0xff]
                  %416 = vst [vmem:[%s394 + $0x38] sm:$0xff] %v415
                  %v417 = vld [vmem:[%s393 + $0x68] sm:$0xff]
                  %418 = vst [vmem:[%s394 + $0x40] sm:$0xff] %v417
                  %v419 = vld [vmem:[%s393 + $0x80] sm:$0xff]
                  %420 = vst [vmem:[%s394 + $0x30] sm:$0xff] %v419
                  %v421 = vld [vmem:[%s393 + $0x88] sm:$0xff]
                  %422 = vst [vmem:[%s394 + $0x38] sm:$0xff] %v421
                  %v423 = vld [vmem:[%s393 + $0x90] sm:$0xff]
                  %424 = vst [vmem:[%s394 + $0x40] sm:$0xff] %v423
                  %v425 = vld [vmem:[%s393 + $0x98] sm:$0xff]
                  %426 = vst [vmem:[%s394 + $0x48] sm:$0xff] %v425
                  %v427 = vld [vmem:[%s393 + $0xa0] sm:$0xff]
                  %428 = vst [vmem:[%s394 + $0x50] sm:$0xff] %v427
                  %v429 = vld [vmem:[%s393 + $0xa8] sm:$0xff]
                  %430 = vst [vmem:[%s394 + $0x58] sm:$0xff] %v429
                  %v431 = vld [vmem:[%s393 + $0xc0] sm:$0xff]
                  %432 = vst [vmem:[%s394 + $0x48] sm:$0xff] %v431
                  %v433 = vld [vmem:[%s393 + $0xc8] sm:$0xff]
                  %434 = vst [vmem:[%s394 + $0x50] sm:$0xff] %v433
                  %v435 = vld [vmem:[%s393 + $0xd0] sm:$0xff]
                  %436 = vst [vmem:[%s394 + $0x58] sm:$0xff] %v435
                  %v437 = vld [vmem:[%s393 + $0xd8] sm:$0xff]
                  %438 = vst [vmem:[%s394 + $0x60] sm:$0xff] %v437
                  %v439 = vld [vmem:[%s393 + $0xe0] sm:$0xff]
                  %440 = vst [vmem:[%s394 + $0x68] sm:$0xff] %v439
                  %v441 = vld [vmem:[%s393 + $0xe8] sm:$0xff]
                  %442 = vst [vmem:[%s394 + $0x70] sm:$0xff] %v441
                  %v443 = vld [vmem:[%s393 + $0x100] sm:$0xff]
                  %444 = vst [vmem:[%s394 + $0x60] sm:$0xff] %v443
                  %v445 = vld [vmem:[%s393 + $0x108] sm:$0xff]
                  %446 = vst [vmem:[%s394 + $0x68] sm:$0xff] %v445
                  %v447 = vld [vmem:[%s393 + $0x110] sm:$0xff]
                  %448 = vst [vmem:[%s394 + $0x70] sm:$0xff] %v447
                  %v449 = vld [vmem:[%s393 + $0x118] sm:$0xff]
                  %450 = vst [vmem:[%s394 + $0x78] sm:$0xff] %v449
                  %v451 = vld [vmem:[%s393 + $0x120] sm:$0xff]
                  %452 = vst [vmem:[%s394 + $0x80] sm:$0xff] %v451
                  %v453 = vld [vmem:[%s393 + $0x128] sm:$0xff]
                  %454 = vst [vmem:[%s394 + $0x88] sm:$0xff] %v453
                  %v455 = vld [vmem:[%s393 + $0x140] sm:$0xff]
                  %456 = vst [vmem:[%s394 + $0x78] sm:$0xff] %v455
                  %v457 = vld [vmem:[%s393 + $0x148] sm:$0xff]
                  %458 = vst [vmem:[%s394 + $0x80] sm:$0xff] %v457
                  %v459 = vld [vmem:[%s393 + $0x150] sm:$0xff]
                  %460 = vst [vmem:[%s394 + $0x88] sm:$0xff] %v459
                  %v461 = vld [vmem:[%s393 + $0x158] sm:$0xff]
                  %462 = vst [vmem:[%s394 + $0x90] sm:$0xff] %v461
                  %v463 = vld [vmem:[%s393 + $0x160] sm:$0xff]
                  %464 = vst [vmem:[%s394 + $0x98] sm:$0xff] %v463
                  %v465 = vld [vmem:[%s393 + $0x168] sm:$0xff]
                  %466 = vst [vmem:[%s394 + $0xa0] sm:$0xff] %v465
                  %s467 = sadd.s32 1, %s392
                  %p468 = scmp.ge.s32.totalorder %s467, %s384
                  %s469 = scalar_select %p468, 0, %s467
                  %s470 = smul.u32 %s469, 48
                  %s471 = smul.u32 %s469, 48
                  %s472 = scalar_lea.vmem %s210, %s470
                  %s473 = scalar_lea.vmem %s200, %s471 [#allocation2]
                $region82: #{_lambda_.9} parent=76 // loop_footer
                  %s389 = sadd.s32 %s387, 1
                $region83: #{_lambda_.9} parent=76 // loop_footer_branch
                  %386 = sbr.rel target = $region79
                $region84: #{_lambda_.9} parent=76 // loop_exit
                  _
                %s474 = sdiv.u32.pop %s383, 6
                %s475 = srem.u32.pop %s383, 6
                %s476 = smul.u32 %s474, 6
                %s477 = smul.u32 8, %s476
                %s478 = scalar_lea.vmem %s210, %s477
                %s479 = smul.u32 8, %s476
                %s480 = scalar_lea.vmem %s200, %s479 [#allocation2]
                // While loop
                $region85: #{_lambda_.9} parent=76 // loop_pre_header
                  _
                $region86: #{_lambda_.9} parent=76 // loop_header
                  %s482 = sphi 0, %s484
                  %p483 = scmp.ge.s32.totalorder %s482, %s475
                  %s487 = sphi 0, %s504
                  %s488 = sphi %s478, %s507
                  %s489 = sphi %s480, %s508
                $region87: #{_lambda_.9} parent=76 // loop_header_branch
                  %486 = sbr.rel (%p483) target = $region91
                $region88: #{_lambda_.9} parent=76 // loop_body
                  %v490 = vld [vmem:[%s488] sm:$0xff]
                  %491 = vst [vmem:[%s489] sm:$0xff] %v490
                  %v492 = vld [vmem:[%s488 + $0x40] sm:$0xff]
                  %493 = vst [vmem:[%s489 + $0x18] sm:$0xff] %v492
                  %v494 = vld [vmem:[%s488 + $0x80] sm:$0xff]
                  %495 = vst [vmem:[%s489 + $0x30] sm:$0xff] %v494
                  %v496 = vld [vmem:[%s488 + $0xc0] sm:$0xff]
                  %497 = vst [vmem:[%s489 + $0x48] sm:$0xff] %v496
                  %v498 = vld [vmem:[%s488 + $0x100] sm:$0xff]
                  %499 = vst [vmem:[%s489 + $0x60] sm:$0xff] %v498
                  %v500 = vld [vmem:[%s488 + $0x140] sm:$0xff]
                  %501 = vst [vmem:[%s489 + $0x78] sm:$0xff] %v500
                  %s502 = sadd.s32 1, %s487
                  %p503 = scmp.ge.s32.totalorder %s502, %s475
                  %s504 = scalar_select %p503, 0, %s502
                  %s505 = smul.u32 %s504, 8
                  %s506 = smul.u32 %s504, 8
                  %s507 = scalar_lea.vmem %s478, %s505
                  %s508 = scalar_lea.vmem %s480, %s506 [#allocation2]
                $region89: #{_lambda_.9} parent=76 // loop_footer
                  %s484 = sadd.s32 %s482, 1
                $region90: #{_lambda_.9} parent=76 // loop_footer_branch
                  %481 = sbr.rel target = $region86
                $region91: #{_lambda_.9} parent=76 // loop_exit
                  _
                %s509 = sshll.u32 1, %s378
                %s510 = ssub.s32 %s509, 1
                loop: start=0, step=1, limit=1
                $region92: #{_lambda_.9} parent=76 // loop_pre_header
                  _
                $region93: #{_lambda_.9} parent=76 // loop_header
                  %s512 = sphi 0, %s516
                  %p513 = scmp.ge.s32.totalorder %s512, 1
                  %s517 = sphi %s380, %s380
                  %s518 = sphi %s382, %s382
                $region94: #{_lambda_.9} parent=76 // loop_header_branch
                  %515 = sbr.rel (%p513) target = $region98
                $region95: #{_lambda_.9} parent=76 // loop_body
                  %v519 = vld [vmem:[%s517] sm:%s510]
                  %520 = vst [vmem:[%s518] sm:%s510] %v519
                  %v521 = vld [vmem:[%s517 + $0x40] sm:%s510]
                  %522 = vst [vmem:[%s518 + $0x18] sm:%s510] %v521
                  %v523 = vld [vmem:[%s517 + $0x80] sm:%s510]
                  %524 = vst [vmem:[%s518 + $0x30] sm:%s510] %v523
                  %v525 = vld [vmem:[%s517 + $0xc0] sm:%s510]
                  %526 = vst [vmem:[%s518 + $0x48] sm:%s510] %v525
                  %v527 = vld [vmem:[%s517 + $0x100] sm:%s510]
                  %528 = vst [vmem:[%s518 + $0x60] sm:%s510] %v527
                  %v529 = vld [vmem:[%s517 + $0x140] sm:%s510]
                  %530 = vst [vmem:[%s518 + $0x78] sm:%s510] %v529
                $region96: #{_lambda_.9} parent=76 // loop_footer
                  %s516 = sadd.s32 1, %s512
                $region97: #{_lambda_.9} parent=76 // loop_footer_branch
                  %511 = sbr.rel target = $region93
                $region98: #{_lambda_.9} parent=76 // loop_exit
                  _
              $region77: #{_lambda_.9} parent=43 // pred_fallthru
                _
            $region44: #{_lambda_.9} parent=39 // pred_fallthru
              _
            // Predicated region
            $region45: #{_lambda_.9} parent=39 // pred_check
              %p219 = pneg %p215
            $region46: #{_lambda_.9} parent=39 // pred_check_branch
              %221 = sbr.rel (%p219) target = $region48
            $region47: #{_lambda_.9} parent=39 // pred_region
              %s222 = sshll.u32 1, %s211
              %s223 = ssub.s32 %s222, 1
              loop: start=0, step=1, limit=1
              $region49: #{_lambda_.9} parent=47 // loop_pre_header
                _
              $region50: #{_lambda_.9} parent=47 // loop_header
                %s225 = sphi 0, %s229
                %p226 = scmp.ge.s32.totalorder %s225, 1
                %s230 = sphi %s210, %s210
                %s231 = sphi %s200, %s200
              $region51: #{_lambda_.9} parent=47 // loop_header_branch
                %228 = sbr.rel (%p226) target = $region55
              $region52: #{_lambda_.9} parent=47 // loop_body
                %v232 = vld [vmem:[%s230] sm:%s223]
                %233 = vst [vmem:[%s231] sm:%s223] %v232
                %v234 = vld [vmem:[%s230 + $0x40] sm:%s223]
                %235 = vst [vmem:[%s231 + $0x18] sm:%s223] %v234
                %v236 = vld [vmem:[%s230 + $0x80] sm:%s223]
                %237 = vst [vmem:[%s231 + $0x30] sm:%s223] %v236
                %v238 = vld [vmem:[%s230 + $0xc0] sm:%s223]
                %239 = vst [vmem:[%s231 + $0x48] sm:%s223] %v238
                %v240 = vld [vmem:[%s230 + $0x100] sm:%s223]
                %241 = vst [vmem:[%s231 + $0x60] sm:%s223] %v240
                %v242 = vld [vmem:[%s230 + $0x140] sm:%s223]
                %243 = vst [vmem:[%s231 + $0x78] sm:%s223] %v242
              $region53: #{_lambda_.9} parent=47 // loop_footer
                %s229 = sadd.s32 1, %s225
              $region54: #{_lambda_.9} parent=47 // loop_footer_branch
                %224 = sbr.rel target = $region50
              $region55: #{_lambda_.9} parent=47 // loop_exit
                _
            $region48: #{_lambda_.9} parent=39 // pred_fallthru
              _
          $region40: #{_lambda_.9} parent=35 // pred_fallthru
            _
          %531 = vnop
        $region36: #{_lambda_.9} parent=31 // pred_fallthru
          _
      $region32: #{_lambda_.9} parent=5 // pred_fallthru
        _
      %p532 = scmp.le.s32.totalorder 1, %s11
      %p533 = scmp.lt.s32.totalorder %s11, 7
      %p534 = pnand %p532, %p533
      %p535 = pneg %p534
      // Predicated region
      $region99: #{_lambda_.9} parent=5 // pred_check
        _
      $region100: #{_lambda_.9} parent=5 // pred_check_branch
        %537 = sbr.rel (%p534) target = $region102
      $region101: #{_lambda_.9} parent=5 // pred_region
        %s538 = ssub.s32 %s11, 1
        %s539 = sand.u32 %s38, 1
        %s540 = sand.u32 %s38, 1
        %s541 = smul.addr %s540, 144
        %s542 = scalar_lea.vmem [#allocation2], %s541
        // Predicated region
        $region103: #{_lambda_.9} parent=101 // pred_check
          %p543 = pneg %p51
        $region104: #{_lambda_.9} parent=101 // pred_check_branch
          %545 = sbr.rel (%p543) target = $region106
        $region105: #{_lambda_.9} parent=101 // pred_region
          _
        $region106: #{_lambda_.9} parent=101 // pred_fallthru
          _
        %s546 = sand.u32 %s38, 1
        %s547 = sand.u32 %s38, 1
        %s548 = smul.addr %s547, 144
        %s549 = scalar_lea.vmem [#allocation2], %s548
        %p550 = pneg %p51
        %p551 = pneg %p48
        %p552 = pneg %p72
        %p553 = pneg %p69
        %p554 = pneg %p93
        %p555 = pneg %p90
        %p556 = pneg %p114
        %p557 = pneg %p111
        %p558 = pneg %p135
        %p559 = pneg %p132
        %p560 = pneg %p163
        %p561 = pneg %p160
        %s562 = sand.u32 %s150, 1
        %s563 = sand.u32 %s150, 1
        %s564 = smul.addr %s563, 192
        %s565 = scalar_lea.vmem [#allocation3], %s564
        %s566 = smul.u32 3, %s21
        %s567 = ssub.s32 8, %s566
        %p568 = scmp.lt.s32.totalorder %s567, 3
        %s569 = scalar_select %p568, %s567, 3
        %s570 = smul.u32 48, %s569
        %s571 = smul.u32 3, %s21
        %s572 = ssub.s32 8, %s571
        %p573 = scmp.lt.s32.totalorder %s572, 3
        %s574 = scalar_select %p573, %s572, 3
        %s575 = smul.u32 64, %s574
        %v576 = vld [vmem:[%s542] sm:$0xff]
        %v577 = vld [vmem:[%s542 + $0x8] sm:$0xff]
        %v578 = vld [vmem:[%s542 + $0x10] sm:$0xff]
        %v579 = vld [vmem:[%s542 + $0x18] sm:$0xff]
        %v580 = vld [vmem:[%s542 + $0x20] sm:$0xff]
        %v581 = vld [vmem:[%s542 + $0x28] sm:$0xff]
        %v582 = vld [vmem:[%s542 + $0x30] sm:$0xff]
        %v583 = vld [vmem:[%s542 + $0x38] sm:$0xff]
        %v584 = vld [vmem:[%s542 + $0x40] sm:$0xff]
        %v585 = vld [vmem:[%s542 + $0x48] sm:$0xff]
        %v586 = vld [vmem:[%s542 + $0x50] sm:$0xff]
        %v587 = vld [vmem:[%s542 + $0x58] sm:$0xff]
        %v588 = vld [vmem:[%s542 + $0x60] sm:$0xff]
        %v589 = vld [vmem:[%s542 + $0x68] sm:$0xff]
        %v590 = vld [vmem:[%s542 + $0x70] sm:$0xff]
        %v591 = vld [vmem:[%s542 + $0x78] sm:$0xff]
        %v592 = vld [vmem:[%s542 + $0x80] sm:$0xff]
        %v593 = vld [vmem:[%s542 + $0x88] sm:$0xff]
        %v594 = vld [vmem:[%s1] sm:$0xff]
        %v595 = vld [vmem:[%s1 + $0x8] sm:$0xff]
        %v596 = vld [vmem:[%s1 + $0x10] sm:$0xff]
        %v597 = vld [vmem:[%s1 + $0x18] sm:$0xff]
        %v598 = vld [vmem:[%s1 + $0x20] sm:$0xff]
        %v599 = vld [vmem:[%s1 + $0x28] sm:$0xff]
        %601 = vset.pattern.permute.xlu0 0
        %602 = vperm.xlu0 %601, %v594
        %v603 = vpop.permute.xlu0 %602
        %606 = vset.pattern.permute.xlu0 0
        %607 = vperm.xlu0 %606, %v595
        %v608 = vpop.permute.xlu0 %607
        %611 = vset.pattern.permute.xlu0 0
        %612 = vperm.xlu0 %611, %v596
        %v613 = vpop.permute.xlu0 %612
        %616 = vset.pattern.permute.xlu0 0
        %617 = vperm.xlu0 %616, %v597
        %v618 = vpop.permute.xlu0 %617
        %621 = vset.pattern.permute.xlu0 0
        %622 = vperm.xlu0 %621, %v598
        %v623 = vpop.permute.xlu0 %622
        %626 = vset.pattern.permute.xlu0 0
        %627 = vperm.xlu0 %626, %v599
        %v628 = vpop.permute.xlu0 %627
        %v630 = vmul.f32 %v576, %v603
        %v631 = vmul.f32 %v577, %v603
        %v632 = vmul.f32 %v578, %v603
        %v633 = vmul.f32 %v579, %v608
        %v634 = vmul.f32 %v580, %v608
        %v635 = vmul.f32 %v581, %v608
        %v636 = vmul.f32 %v582, %v613
        %v637 = vmul.f32 %v583, %v613
        %v638 = vmul.f32 %v584, %v613
        %v639 = vmul.f32 %v585, %v618
        %v640 = vmul.f32 %v586, %v618
        %v641 = vmul.f32 %v587, %v618
        %v642 = vmul.f32 %v588, %v623
        %v643 = vmul.f32 %v589, %v623
        %v644 = vmul.f32 %v590, %v623
        %v645 = vmul.f32 %v591, %v628
        %v646 = vmul.f32 %v592, %v628
        %v647 = vmul.f32 %v593, %v628
        %v648 = vld [vmem:[%s2] sm:$0xff]
        %v649 = vld [vmem:[%s2 + $0x8] sm:$0xff]
        %v650 = vld [vmem:[%s2 + $0x10] sm:$0xff]
        %v651 = vld [vmem:[%s2 + $0x18] sm:$0xff]
        %v652 = vld [vmem:[%s2 + $0x20] sm:$0xff]
        %v653 = vld [vmem:[%s2 + $0x28] sm:$0xff]
        %655 = vset.pattern.permute.xlu0 0
        %656 = vperm.xlu0 %655, %v648
        %v657 = vpop.permute.xlu0 %656
        %660 = vset.pattern.permute.xlu0 0
        %661 = vperm.xlu0 %660, %v649
        %v662 = vpop.permute.xlu0 %661
        %665 = vset.pattern.permute.xlu0 0
        %666 = vperm.xlu0 %665, %v650
        %v667 = vpop.permute.xlu0 %666
        %670 = vset.pattern.permute.xlu0 0
        %671 = vperm.xlu0 %670, %v651
        %v672 = vpop.permute.xlu0 %671
        %675 = vset.pattern.permute.xlu0 0
        %676 = vperm.xlu0 %675, %v652
        %v677 = vpop.permute.xlu0 %676
        %680 = vset.pattern.permute.xlu0 0
        %681 = vperm.xlu0 %680, %v653
        %v682 = vpop.permute.xlu0 %681
        %v684 = vadd.f32 %v630, %v657
        %v685 = vadd.f32 %v631, %v657
        %v686 = vadd.f32 %v632, %v657
        %v687 = vadd.f32 %v633, %v662
        %v688 = vadd.f32 %v634, %v662
        %v689 = vadd.f32 %v635, %v662
        %v690 = vadd.f32 %v636, %v667
        %v691 = vadd.f32 %v637, %v667
        %v692 = vadd.f32 %v638, %v667
        %v693 = vadd.f32 %v639, %v672
        %v694 = vadd.f32 %v640, %v672
        %v695 = vadd.f32 %v641, %v672
        %v696 = vadd.f32 %v642, %v677
        %v697 = vadd.f32 %v643, %v677
        %v698 = vadd.f32 %v644, %v677
        %v699 = vadd.f32 %v645, %v682
        %v700 = vadd.f32 %v646, %v682
        %v701 = vadd.f32 %v647, %v682
        %v702 = vmax.f32 %v684, 0.0
        %v703 = vmax.f32 %v685, 0.0
        %v704 = vmax.f32 %v686, 0.0
        %v705 = vmax.f32 %v687, 0.0
        %v706 = vmax.f32 %v688, 0.0
        %v707 = vmax.f32 %v689, 0.0
        %v708 = vmax.f32 %v690, 0.0
        %v709 = vmax.f32 %v691, 0.0
        %v710 = vmax.f32 %v692, 0.0
        %v711 = vmax.f32 %v693, 0.0
        %v712 = vmax.f32 %v694, 0.0
        %v713 = vmax.f32 %v695, 0.0
        %v714 = vmax.f32 %v696, 0.0
        %v715 = vmax.f32 %v697, 0.0
        %v716 = vmax.f32 %v698, 0.0
        %v717 = vmax.f32 %v699, 0.0
        %v718 = vmax.f32 %v700, 0.0
        %v719 = vmax.f32 %v701, 0.0
        %v720 = vld [vmem:[%s3] sm:$0xff]
        %v721 = vld [vmem:[%s3 + $0x8] sm:$0xff]
        %v722 = vld [vmem:[%s3 + $0x10] sm:$0xff]
        %v723 = vld [vmem:[%s3 + $0x18] sm:$0xff]
        %v724 = vld [vmem:[%s3 + $0x20] sm:$0xff]
        %v725 = vld [vmem:[%s3 + $0x28] sm:$0xff]
        %v726 = vld [vmem:[%s3 + $0x30] sm:$0xff]
        %v727 = vld [vmem:[%s3 + $0x38] sm:$0xff]
        %v728 = vld [vmem:[%s4] sm:$0xff]
        %v729 = vld [vmem:[%s4 + $0x8] sm:$0xff]
        %v730 = vld [vmem:[%s4 + $0x10] sm:$0xff]
        %v731 = vld [vmem:[%s4 + $0x18] sm:$0xff]
        %v732 = vld [vmem:[%s4 + $0x20] sm:$0xff]
        %v733 = vld [vmem:[%s4 + $0x28] sm:$0xff]
        %v734 = vld [vmem:[%s4 + $0x30] sm:$0xff]
        %v735 = vld [vmem:[%s4 + $0x38] sm:$0xff]
        %737 = vset.pattern.permute.xlu0 0
        %738 = vperm.xlu0 %737, %v728
        %v739 = vpop.permute.xlu0 %738
        %742 = vset.pattern.permute.xlu0 0
        %743 = vperm.xlu0 %742, %v729
        %v744 = vpop.permute.xlu0 %743
        %747 = vset.pattern.permute.xlu0 0
        %748 = vperm.xlu0 %747, %v730
        %v749 = vpop.permute.xlu0 %748
        %752 = vset.pattern.permute.xlu0 0
        %753 = vperm.xlu0 %752, %v731
        %v754 = vpop.permute.xlu0 %753
        %757 = vset.pattern.permute.xlu0 0
        %758 = vperm.xlu0 %757, %v732
        %v759 = vpop.permute.xlu0 %758
        %762 = vset.pattern.permute.xlu0 0
        %763 = vperm.xlu0 %762, %v733
        %v764 = vpop.permute.xlu0 %763
        %767 = vset.pattern.permute.xlu0 0
        %768 = vperm.xlu0 %767, %v734
        %v769 = vpop.permute.xlu0 %768
        %772 = vset.pattern.permute.xlu0 0
        %773 = vperm.xlu0 %772, %v735
        %v774 = vpop.permute.xlu0 %773
        %vm776 = vcmask 392192
        %v778 = vsel %vm776, %v720, 0
        %v781 = vsel %vm776, %v721, 0
        %v784 = vsel %vm776, %v722, 0
        %v787 = vsel %vm776, %v723, 0
        %v790 = vsel %vm776, %v724, 0
        %v793 = vsel %vm776, %v725, 0
        %v796 = vsel %vm776, %v726, 0
        %v799 = vsel %vm776, %v727, 0
        %801 = vmatpush.msra.mxu0 0.0
        %802 = vmatpush.msra.mxu0 0.0
        %803 = vmatpush.msra.mxu0 0.0
        %804 = vmatpush.msra.mxu0 0.0
        %805 = vmatpush.msra.mxu0 0.0
        %806 = vmatpush.msra.mxu0 0.0
        %807 = vmatpush.msra.mxu0 0.0
        %808 = vmatpush.msra.mxu0 0.0
        %809 = vmatpush.msra.mxu0 0.0
        %810 = vmatpush.msra.mxu0 0.0
        %811 = vmatpush.msra.mxu0 %v717
        %812 = vmatpush.msra.mxu0 %v714
        %813 = vmatpush.msra.mxu0 %v711
        %814 = vmatpush.msra.mxu0 %v708
        %815 = vmatpush.msra.mxu0 %v705
        %816 = vmatpush.msra.mxu0 %v702
        %817 = vmatmul.f32.gmra.mxu0 %v778
        %v818 = vpop.f32.mrf.mxu0
        %v819 = vadd.f32 %v739, %v818
        %820 = vmatmul.f32.gmra.mxu0 %v781
        %v821 = vpop.f32.mrf.mxu0
        %v822 = vadd.f32 %v744, %v821
        %823 = vmatmul.f32.gmra.mxu0 %v784
        %v824 = vpop.f32.mrf.mxu0
        %v825 = vadd.f32 %v749, %v824
        %826 = vmatmul.f32.gmra.mxu0 %v787
        %v827 = vpop.f32.mrf.mxu0
        %v828 = vadd.f32 %v754, %v827
        %829 = vmatmul.f32.gmra.mxu0 %v790
        %v830 = vpop.f32.mrf.mxu0
        %v831 = vadd.f32 %v759, %v830
        %832 = vmatmul.f32.gmra.mxu0 %v793
        %v833 = vpop.f32.mrf.mxu0
        %v834 = vadd.f32 %v764, %v833
        %835 = vmatmul.f32.gmra.mxu0 %v796
        %v836 = vpop.f32.mrf.mxu0
        %v837 = vadd.f32 %v769, %v836
        %838 = vmatmul.f32.gmra.mxu0 %v799
        %v839 = vpop.f32.mrf.mxu0
        %v840 = vadd.f32 %v774, %v839
        %841 = vdwg.mxu0
        %842 = vmatpush.msra.mxu0 0.0
        %843 = vmatpush.msra.mxu0 0.0
        %844 = vmatpush.msra.mxu0 0.0
        %845 = vmatpush.msra.mxu0 0.0
        %846 = vmatpush.msra.mxu0 0.0
        %847 = vmatpush.msra.mxu0 0.0
        %848 = vmatpush.msra.mxu0 0.0
        %849 = vmatpush.msra.mxu0 0.0
        %850 = vmatpush.msra.mxu0 0.0
        %851 = vmatpush.msra.mxu0 0.0
        %852 = vmatpush.msra.mxu0 %v718
        %853 = vmatpush.msra.mxu0 %v715
        %854 = vmatpush.msra.mxu0 %v712
        %855 = vmatpush.msra.mxu0 %v709
        %856 = vmatpush.msra.mxu0 %v706
        %857 = vmatpush.msra.mxu0 %v703
        %858 = vmatmul.f32.gmra.mxu0 %v778
        %v859 = vpop.f32.mrf.mxu0
        %v860 = vadd.f32 %v739, %v859
        %861 = vmatmul.f32.gmra.mxu0 %v781
        %v862 = vpop.f32.mrf.mxu0
        %v863 = vadd.f32 %v744, %v862
        %864 = vmatmul.f32.gmra.mxu0 %v784
        %v865 = vpop.f32.mrf.mxu0
        %v866 = vadd.f32 %v749, %v865
        %867 = vmatmul.f32.gmra.mxu0 %v787
        %v868 = vpop.f32.mrf.mxu0
        %v869 = vadd.f32 %v754, %v868
        %870 = vmatmul.f32.gmra.mxu0 %v790
        %v871 = vpop.f32.mrf.mxu0
        %v872 = vadd.f32 %v759, %v871
        %873 = vmatmul.f32.gmra.mxu0 %v793
        %v874 = vpop.f32.mrf.mxu0
        %v875 = vadd.f32 %v764, %v874
        %876 = vmatmul.f32.gmra.mxu0 %v796
        %v877 = vpop.f32.mrf.mxu0
        %v878 = vadd.f32 %v769, %v877
        %879 = vmatmul.f32.gmra.mxu0 %v799
        %v880 = vpop.f32.mrf.mxu0
        %v881 = vadd.f32 %v774, %v880
        %882 = vdwg.mxu0
        %883 = vmatpush.msra.mxu0 0.0
        %884 = vmatpush.msra.mxu0 0.0
        %885 = vmatpush.msra.mxu0 0.0
        %886 = vmatpush.msra.mxu0 0.0
        %887 = vmatpush.msra.mxu0 0.0
        %888 = vmatpush.msra.mxu0 0.0
        %889 = vmatpush.msra.mxu0 0.0
        %890 = vmatpush.msra.mxu0 0.0
        %891 = vmatpush.msra.mxu0 0.0
        %892 = vmatpush.msra.mxu0 0.0
        %893 = vmatpush.msra.mxu0 %v719
        %894 = vmatpush.msra.mxu0 %v716
        %895 = vmatpush.msra.mxu0 %v713
        %896 = vmatpush.msra.mxu0 %v710
        %897 = vmatpush.msra.mxu0 %v707
        %898 = vmatpush.msra.mxu0 %v704
        %899 = vmatmul.f32.gmra.mxu0 %v778
        %v900 = vpop.f32.mrf.mxu0
        %v901 = vadd.f32 %v739, %v900
        %902 = vmatmul.f32.gmra.mxu0 %v781
        %v903 = vpop.f32.mrf.mxu0
        %v904 = vadd.f32 %v744, %v903
        %905 = vmatmul.f32.gmra.mxu0 %v784
        %v906 = vpop.f32.mrf.mxu0
        %v907 = vadd.f32 %v749, %v906
        %908 = vmatmul.f32.gmra.mxu0 %v787
        %v909 = vpop.f32.mrf.mxu0
        %v910 = vadd.f32 %v754, %v909
        %911 = vmatmul.f32.gmra.mxu0 %v790
        %v912 = vpop.f32.mrf.mxu0
        %v913 = vadd.f32 %v759, %v912
        %914 = vmatmul.f32.gmra.mxu0 %v793
        %v915 = vpop.f32.mrf.mxu0
        %v916 = vadd.f32 %v764, %v915
        %917 = vmatmul.f32.gmra.mxu0 %v796
        %v918 = vpop.f32.mrf.mxu0
        %v919 = vadd.f32 %v769, %v918
        %920 = vmatmul.f32.gmra.mxu0 %v799
        %v921 = vpop.f32.mrf.mxu0
        %v922 = vadd.f32 %v774, %v921
        %923 = vdwg.mxu0
        %924 = vst [vmem:[%s565] sm:$0xff] %v819
        %925 = vst [vmem:[%s565 + $0x8] sm:$0xff] %v860
        %926 = vst [vmem:[%s565 + $0x10] sm:$0xff] %v901
        %927 = vst [vmem:[%s565 + $0x18] sm:$0xff] %v822
        %928 = vst [vmem:[%s565 + $0x20] sm:$0xff] %v863
        %929 = vst [vmem:[%s565 + $0x28] sm:$0xff] %v904
        %930 = vst [vmem:[%s565 + $0x30] sm:$0xff] %v825
        %931 = vst [vmem:[%s565 + $0x38] sm:$0xff] %v866
        %932 = vst [vmem:[%s565 + $0x40] sm:$0xff] %v907
        %933 = vst [vmem:[%s565 + $0x48] sm:$0xff] %v828
        %934 = vst [vmem:[%s565 + $0x50] sm:$0xff] %v869
        %935 = vst [vmem:[%s565 + $0x58] sm:$0xff] %v910
        %936 = vst [vmem:[%s565 + $0x60] sm:$0xff] %v831
        %937 = vst [vmem:[%s565 + $0x68] sm:$0xff] %v872
        %938 = vst [vmem:[%s565 + $0x70] sm:$0xff] %v913
        %939 = vst [vmem:[%s565 + $0x78] sm:$0xff] %v834
        %940 = vst [vmem:[%s565 + $0x80] sm:$0xff] %v875
        %941 = vst [vmem:[%s565 + $0x88] sm:$0xff] %v916
        %942 = vst [vmem:[%s565 + $0x90] sm:$0xff] %v837
        %943 = vst [vmem:[%s565 + $0x98] sm:$0xff] %v878
        %944 = vst [vmem:[%s565 + $0xa0] sm:$0xff] %v919
        %945 = vst [vmem:[%s565 + $0xa8] sm:$0xff] %v840
        %946 = vst [vmem:[%s565 + $0xb0] sm:$0xff] %v881
        %947 = vst [vmem:[%s565 + $0xb8] sm:$0xff] %v922
        %s948 = sand.u32 %s150, 1
        %s949 = sand.u32 %s150, 1
        %s950 = smul.addr %s949, 192
        %s951 = scalar_lea.vmem [#allocation3], %s950
        // Predicated region
        $region107: #{_lambda_.9} parent=101 // pred_check
          %p952 = pneg %p160
        $region108: #{_lambda_.9} parent=101 // pred_check_branch
          %954 = sbr.rel (%p952) target = $region110
        $region109: #{_lambda_.9} parent=101 // pred_region
          %s955 = smul.u32 3, %s21
          %s956 = ssub.s32 8, %s955
          %p957 = scmp.lt.s32.totalorder %s956, 3
          %s958 = scalar_select %p957, %s956, 3
          %s959 = smul.u32 64, %s958
          %p960 = scmp.ne.s32.totalorder 0, %s959
          %s961 = smul.addr %s20, 64
          %s962 = sadd.s32 %s955, %s961
          %s963 = smul.addr %s962, 8
          %s964 = scalar_lea.vmem %s5, %s963
          %s965 = smul.u32 %s958, 8
          // Predicated region
          $region111: #{_lambda_.9} parent=109 // pred_check
            %p966 = pneg %p960
          $region112: #{_lambda_.9} parent=109 // pred_check_branch
            %968 = sbr.rel (%p966) target = $region114
          $region113: #{_lambda_.9} parent=109 // pred_region
            %p969 = scmp.lt.u32.totalorder %s965, 8
            %p970 = pneg %p969
            // Predicated region
            $region115: #{_lambda_.9} parent=113 // pred_check
              _
            $region116: #{_lambda_.9} parent=113 // pred_check_branch
              %972 = sbr.rel (%p969) target = $region118
            $region117: #{_lambda_.9} parent=113 // pred_region
              %s1002 = sand.u32 %s965, 7
              %p1003 = scmp.eq.s32.totalorder %s1002, 0
              // Predicated region
              $region130: #{_lambda_.9} parent=117 // pred_check
                %p1004 = pneg %p1003
              $region131: #{_lambda_.9} parent=117 // pred_check_branch
                %1006 = sbr.rel (%p1004) target = $region133
              $region132: #{_lambda_.9} parent=117 // pred_region
                %s1007 = sshrl.u32 %s965, 3
                %s1008 = sshrl.u32 %s1007, 2
                // While loop
                $region134: #{_lambda_.9} parent=132 // loop_pre_header
                  _
                $region135: #{_lambda_.9} parent=132 // loop_header
                  %s1010 = sphi 0, %s1012
                  %p1011 = scmp.ge.s32.totalorder %s1010, %s1008
                  %s1015 = sphi 0, %s1084
                  %s1016 = sphi %s951, %s1087
                  %s1017 = sphi %s964, %s1088
                $region136: #{_lambda_.9} parent=132 // loop_header_branch
                  %1014 = sbr.rel (%p1011) target = $region140
                $region137: #{_lambda_.9} parent=132 // loop_body
                  %v1018 = vld [vmem:[%s1016] sm:$0xff]
                  %1019 = vst [vmem:[%s1017] sm:$0xff] %v1018
                  %v1020 = vld [vmem:[%s1016 + $0x8] sm:$0xff]
                  %1021 = vst [vmem:[%s1017 + $0x8] sm:$0xff] %v1020
                  %v1022 = vld [vmem:[%s1016 + $0x10] sm:$0xff]
                  %1023 = vst [vmem:[%s1017 + $0x10] sm:$0xff] %v1022
                  %v1024 = vld [vmem:[%s1016 + $0x18] sm:$0xff]
                  %1025 = vst [vmem:[%s1017 + $0x18] sm:$0xff] %v1024
                  %v1026 = vld [vmem:[%s1016 + $0x18] sm:$0xff]
                  %1027 = vst [vmem:[%s1017 + $0x40] sm:$0xff] %v1026
                  %v1028 = vld [vmem:[%s1016 + $0x20] sm:$0xff]
                  %1029 = vst [vmem:[%s1017 + $0x48] sm:$0xff] %v1028
                  %v1030 = vld [vmem:[%s1016 + $0x28] sm:$0xff]
                  %1031 = vst [vmem:[%s1017 + $0x50] sm:$0xff] %v1030
                  %v1032 = vld [vmem:[%s1016 + $0x30] sm:$0xff]
                  %1033 = vst [vmem:[%s1017 + $0x58] sm:$0xff] %v1032
                  %v1034 = vld [vmem:[%s1016 + $0x30] sm:$0xff]
                  %1035 = vst [vmem:[%s1017 + $0x80] sm:$0xff] %v1034
                  %v1036 = vld [vmem:[%s1016 + $0x38] sm:$0xff]
                  %1037 = vst [vmem:[%s1017 + $0x88] sm:$0xff] %v1036
                  %v1038 = vld [vmem:[%s1016 + $0x40] sm:$0xff]
                  %1039 = vst [vmem:[%s1017 + $0x90] sm:$0xff] %v1038
                  %v1040 = vld [vmem:[%s1016 + $0x48] sm:$0xff]
                  %1041 = vst [vmem:[%s1017 + $0x98] sm:$0xff] %v1040
                  %v1042 = vld [vmem:[%s1016 + $0x48] sm:$0xff]
                  %1043 = vst [vmem:[%s1017 + $0xc0] sm:$0xff] %v1042
                  %v1044 = vld [vmem:[%s1016 + $0x50] sm:$0xff]
                  %1045 = vst [vmem:[%s1017 + $0xc8] sm:$0xff] %v1044
                  %v1046 = vld [vmem:[%s1016 + $0x58] sm:$0xff]
                  %1047 = vst [vmem:[%s1017 + $0xd0] sm:$0xff] %v1046
                  %v1048 = vld [vmem:[%s1016 + $0x60] sm:$0xff]
                  %1049 = vst [vmem:[%s1017 + $0xd8] sm:$0xff] %v1048
                  %v1050 = vld [vmem:[%s1016 + $0x60] sm:$0xff]
                  %1051 = vst [vmem:[%s1017 + $0x100] sm:$0xff] %v1050
                  %v1052 = vld [vmem:[%s1016 + $0x68] sm:$0xff]
                  %1053 = vst [vmem:[%s1017 + $0x108] sm:$0xff] %v1052
                  %v1054 = vld [vmem:[%s1016 + $0x70] sm:$0xff]
                  %1055 = vst [vmem:[%s1017 + $0x110] sm:$0xff] %v1054
                  %v1056 = vld [vmem:[%s1016 + $0x78] sm:$0xff]
                  %1057 = vst [vmem:[%s1017 + $0x118] sm:$0xff] %v1056
                  %v1058 = vld [vmem:[%s1016 + $0x78] sm:$0xff]
                  %1059 = vst [vmem:[%s1017 + $0x140] sm:$0xff] %v1058
                  %v1060 = vld [vmem:[%s1016 + $0x80] sm:$0xff]
                  %1061 = vst [vmem:[%s1017 + $0x148] sm:$0xff] %v1060
                  %v1062 = vld [vmem:[%s1016 + $0x88] sm:$0xff]
                  %1063 = vst [vmem:[%s1017 + $0x150] sm:$0xff] %v1062
                  %v1064 = vld [vmem:[%s1016 + $0x90] sm:$0xff]
                  %1065 = vst [vmem:[%s1017 + $0x158] sm:$0xff] %v1064
                  %v1066 = vld [vmem:[%s1016 + $0x90] sm:$0xff]
                  %1067 = vst [vmem:[%s1017 + $0x180] sm:$0xff] %v1066
                  %v1068 = vld [vmem:[%s1016 + $0x98] sm:$0xff]
                  %1069 = vst [vmem:[%s1017 + $0x188] sm:$0xff] %v1068
                  %v1070 = vld [vmem:[%s1016 + $0xa0] sm:$0xff]
                  %1071 = vst [vmem:[%s1017 + $0x190] sm:$0xff] %v1070
                  %v1072 = vld [vmem:[%s1016 + $0xa8] sm:$0xff]
                  %1073 = vst [vmem:[%s1017 + $0x198] sm:$0xff] %v1072
                  %v1074 = vld [vmem:[%s1016 + $0xa8] sm:$0xff]
                  %1075 = vst [vmem:[%s1017 + $0x1c0] sm:$0xff] %v1074
                  %v1076 = vld [vmem:[%s1016 + $0xb0] sm:$0xff]
                  %1077 = vst [vmem:[%s1017 + $0x1c8] sm:$0xff] %v1076
                  %v1078 = vld [vmem:[%s1016 + $0xb8] sm:$0xff]
                  %1079 = vst [vmem:[%s1017 + $0x1d0] sm:$0xff] %v1078
                  %v1080 = vld [vmem:[%s1016 + $0xc0] sm:$0xff]
                  %1081 = vst [vmem:[%s1017 + $0x1d8] sm:$0xff] %v1080
                  %s1082 = sadd.s32 1, %s1015
                  %p1083 = scmp.ge.s32.totalorder %s1082, %s1008
                  %s1084 = scalar_select %p1083, 0, %s1082
                  %s1085 = smul.u32 %s1084, 32
                  %s1086 = smul.u32 %s1084, 32
                  %s1087 = scalar_lea.vmem %s951, %s1085 [#allocation3]
                  %s1088 = scalar_lea.vmem %s964, %s1086
                $region138: #{_lambda_.9} parent=132 // loop_footer
                  %s1012 = sadd.s32 %s1010, 1
                $region139: #{_lambda_.9} parent=132 // loop_footer_branch
                  %1009 = sbr.rel target = $region135
                $region140: #{_lambda_.9} parent=132 // loop_exit
                  _
                %s1089 = sshrl.u32 %s1007, 2
                %s1090 = sand.u32 %s1007, 3
                %s1091 = smul.u32 %s1089, 4
                %s1092 = smul.u32 8, %s1091
                %s1093 = scalar_lea.vmem %s951, %s1092 [#allocation3]
                %s1094 = smul.u32 8, %s1091
                %s1095 = scalar_lea.vmem %s964, %s1094
                // While loop
                $region141: #{_lambda_.9} parent=132 // loop_pre_header
                  _
                $region142: #{_lambda_.9} parent=132 // loop_header
                  %s1097 = sphi 0, %s1099
                  %p1098 = scmp.ge.s32.totalorder %s1097, %s1090
                  %s1102 = sphi 0, %s1123
                  %s1103 = sphi %s1093, %s1126
                  %s1104 = sphi %s1095, %s1127
                $region143: #{_lambda_.9} parent=132 // loop_header_branch
                  %1101 = sbr.rel (%p1098) target = $region147
                $region144: #{_lambda_.9} parent=132 // loop_body
                  %v1105 = vld [vmem:[%s1103] sm:$0xff]
                  %1106 = vst [vmem:[%s1104] sm:$0xff] %v1105
                  %v1107 = vld [vmem:[%s1103 + $0x18] sm:$0xff]
                  %1108 = vst [vmem:[%s1104 + $0x40] sm:$0xff] %v1107
                  %v1109 = vld [vmem:[%s1103 + $0x30] sm:$0xff]
                  %1110 = vst [vmem:[%s1104 + $0x80] sm:$0xff] %v1109
                  %v1111 = vld [vmem:[%s1103 + $0x48] sm:$0xff]
                  %1112 = vst [vmem:[%s1104 + $0xc0] sm:$0xff] %v1111
                  %v1113 = vld [vmem:[%s1103 + $0x60] sm:$0xff]
                  %1114 = vst [vmem:[%s1104 + $0x100] sm:$0xff] %v1113
                  %v1115 = vld [vmem:[%s1103 + $0x78] sm:$0xff]
                  %1116 = vst [vmem:[%s1104 + $0x140] sm:$0xff] %v1115
                  %v1117 = vld [vmem:[%s1103 + $0x90] sm:$0xff]
                  %1118 = vst [vmem:[%s1104 + $0x180] sm:$0xff] %v1117
                  %v1119 = vld [vmem:[%s1103 + $0xa8] sm:$0xff]
                  %1120 = vst [vmem:[%s1104 + $0x1c0] sm:$0xff] %v1119
                  %s1121 = sadd.s32 1, %s1102
                  %p1122 = scmp.ge.s32.totalorder %s1121, %s1090
                  %s1123 = scalar_select %p1122, 0, %s1121
                  %s1124 = smul.u32 %s1123, 8
                  %s1125 = smul.u32 %s1123, 8
                  %s1126 = scalar_lea.vmem %s1093, %s1124 [#allocation3]
                  %s1127 = scalar_lea.vmem %s1095, %s1125
                $region145: #{_lambda_.9} parent=132 // loop_footer
                  %s1099 = sadd.s32 %s1097, 1
                $region146: #{_lambda_.9} parent=132 // loop_footer_branch
                  %1096 = sbr.rel target = $region142
                $region147: #{_lambda_.9} parent=132 // loop_exit
                  _
              $region133: #{_lambda_.9} parent=117 // pred_fallthru
                _
              %p1128 = pneg %p1003
              // Predicated region
              $region148: #{_lambda_.9} parent=117 // pred_check
                _
              $region149: #{_lambda_.9} parent=117 // pred_check_branch
                %1130 = sbr.rel (%p1003) target = $region151
              $region150: #{_lambda_.9} parent=117 // pred_region
                %s1131 = sand.u32 %s965, 7
                %s1132 = ssub.s32 %s965, %s1131
                %s1133 = scalar_lea.vmem %s951, %s1132 [#allocation3]
                %s1134 = ssub.s32 %s965, %s1131
                %s1135 = scalar_lea.vmem %s964, %s1134
                %s1136 = sshrl.u32 %s965, 3
                %s1137 = sshrl.u32 %s1136, 2
                // While loop
                $region152: #{_lambda_.9} parent=150 // loop_pre_header
                  _
                $region153: #{_lambda_.9} parent=150 // loop_header
                  %s1139 = sphi 0, %s1141
                  %p1140 = scmp.ge.s32.totalorder %s1139, %s1137
                  %s1144 = sphi 0, %s1213
                  %s1145 = sphi %s951, %s1216
                  %s1146 = sphi %s964, %s1217
                $region154: #{_lambda_.9} parent=150 // loop_header_branch
                  %1143 = sbr.rel (%p1140) target = $region158
                $region155: #{_lambda_.9} parent=150 // loop_body
                  %v1147 = vld [vmem:[%s1145] sm:$0xff]
                  %1148 = vst [vmem:[%s1146] sm:$0xff] %v1147
                  %v1149 = vld [vmem:[%s1145 + $0x8] sm:$0xff]
                  %1150 = vst [vmem:[%s1146 + $0x8] sm:$0xff] %v1149
                  %v1151 = vld [vmem:[%s1145 + $0x10] sm:$0xff]
                  %1152 = vst [vmem:[%s1146 + $0x10] sm:$0xff] %v1151
                  %v1153 = vld [vmem:[%s1145 + $0x18] sm:$0xff]
                  %1154 = vst [vmem:[%s1146 + $0x18] sm:$0xff] %v1153
                  %v1155 = vld [vmem:[%s1145 + $0x18] sm:$0xff]
                  %1156 = vst [vmem:[%s1146 + $0x40] sm:$0xff] %v1155
                  %v1157 = vld [vmem:[%s1145 + $0x20] sm:$0xff]
                  %1158 = vst [vmem:[%s1146 + $0x48] sm:$0xff] %v1157
                  %v1159 = vld [vmem:[%s1145 + $0x28] sm:$0xff]
                  %1160 = vst [vmem:[%s1146 + $0x50] sm:$0xff] %v1159
                  %v1161 = vld [vmem:[%s1145 + $0x30] sm:$0xff]
                  %1162 = vst [vmem:[%s1146 + $0x58] sm:$0xff] %v1161
                  %v1163 = vld [vmem:[%s1145 + $0x30] sm:$0xff]
                  %1164 = vst [vmem:[%s1146 + $0x80] sm:$0xff] %v1163
                  %v1165 = vld [vmem:[%s1145 + $0x38] sm:$0xff]
                  %1166 = vst [vmem:[%s1146 + $0x88] sm:$0xff] %v1165
                  %v1167 = vld [vmem:[%s1145 + $0x40] sm:$0xff]
                  %1168 = vst [vmem:[%s1146 + $0x90] sm:$0xff] %v1167
                  %v1169 = vld [vmem:[%s1145 + $0x48] sm:$0xff]
                  %1170 = vst [vmem:[%s1146 + $0x98] sm:$0xff] %v1169
                  %v1171 = vld [vmem:[%s1145 + $0x48] sm:$0xff]
                  %1172 = vst [vmem:[%s1146 + $0xc0] sm:$0xff] %v1171
                  %v1173 = vld [vmem:[%s1145 + $0x50] sm:$0xff]
                  %1174 = vst [vmem:[%s1146 + $0xc8] sm:$0xff] %v1173
                  %v1175 = vld [vmem:[%s1145 + $0x58] sm:$0xff]
                  %1176 = vst [vmem:[%s1146 + $0xd0] sm:$0xff] %v1175
                  %v1177 = vld [vmem:[%s1145 + $0x60] sm:$0xff]
                  %1178 = vst [vmem:[%s1146 + $0xd8] sm:$0xff] %v1177
                  %v1179 = vld [vmem:[%s1145 + $0x60] sm:$0xff]
                  %1180 = vst [vmem:[%s1146 + $0x100] sm:$0xff] %v1179
                  %v1181 = vld [vmem:[%s1145 + $0x68] sm:$0xff]
                  %1182 = vst [vmem:[%s1146 + $0x108] sm:$0xff] %v1181
                  %v1183 = vld [vmem:[%s1145 + $0x70] sm:$0xff]
                  %1184 = vst [vmem:[%s1146 + $0x110] sm:$0xff] %v1183
                  %v1185 = vld [vmem:[%s1145 + $0x78] sm:$0xff]
                  %1186 = vst [vmem:[%s1146 + $0x118] sm:$0xff] %v1185
                  %v1187 = vld [vmem:[%s1145 + $0x78] sm:$0xff]
                  %1188 = vst [vmem:[%s1146 + $0x140] sm:$0xff] %v1187
                  %v1189 = vld [vmem:[%s1145 + $0x80] sm:$0xff]
                  %1190 = vst [vmem:[%s1146 + $0x148] sm:$0xff] %v1189
                  %v1191 = vld [vmem:[%s1145 + $0x88] sm:$0xff]
                  %1192 = vst [vmem:[%s1146 + $0x150] sm:$0xff] %v1191
                  %v1193 = vld [vmem:[%s1145 + $0x90] sm:$0xff]
                  %1194 = vst [vmem:[%s1146 + $0x158] sm:$0xff] %v1193
                  %v1195 = vld [vmem:[%s1145 + $0x90] sm:$0xff]
                  %1196 = vst [vmem:[%s1146 + $0x180] sm:$0xff] %v1195
                  %v1197 = vld [vmem:[%s1145 + $0x98] sm:$0xff]
                  %1198 = vst [vmem:[%s1146 + $0x188] sm:$0xff] %v1197
                  %v1199 = vld [vmem:[%s1145 + $0xa0] sm:$0xff]
                  %1200 = vst [vmem:[%s1146 + $0x190] sm:$0xff] %v1199
                  %v1201 = vld [vmem:[%s1145 + $0xa8] sm:$0xff]
                  %1202 = vst [vmem:[%s1146 + $0x198] sm:$0xff] %v1201
                  %v1203 = vld [vmem:[%s1145 + $0xa8] sm:$0xff]
                  %1204 = vst [vmem:[%s1146 + $0x1c0] sm:$0xff] %v1203
                  %v1205 = vld [vmem:[%s1145 + $0xb0] sm:$0xff]
                  %1206 = vst [vmem:[%s1146 + $0x1c8] sm:$0xff] %v1205
                  %v1207 = vld [vmem:[%s1145 + $0xb8] sm:$0xff]
                  %1208 = vst [vmem:[%s1146 + $0x1d0] sm:$0xff] %v1207
                  %v1209 = vld [vmem:[%s1145 + $0xc0] sm:$0xff]
                  %1210 = vst [vmem:[%s1146 + $0x1d8] sm:$0xff] %v1209
                  %s1211 = sadd.s32 1, %s1144
                  %p1212 = scmp.ge.s32.totalorder %s1211, %s1137
                  %s1213 = scalar_select %p1212, 0, %s1211
                  %s1214 = smul.u32 %s1213, 32
                  %s1215 = smul.u32 %s1213, 32
                  %s1216 = scalar_lea.vmem %s951, %s1214 [#allocation3]
                  %s1217 = scalar_lea.vmem %s964, %s1215
                $region156: #{_lambda_.9} parent=150 // loop_footer
                  %s1141 = sadd.s32 %s1139, 1
                $region157: #{_lambda_.9} parent=150 // loop_footer_branch
                  %1138 = sbr.rel target = $region153
                $region158: #{_lambda_.9} parent=150 // loop_exit
                  _
                %s1218 = sshrl.u32 %s1136, 2
                %s1219 = sand.u32 %s1136, 3
                %s1220 = smul.u32 %s1218, 4
                %s1221 = smul.u32 8, %s1220
                %s1222 = scalar_lea.vmem %s951, %s1221 [#allocation3]
                %s1223 = smul.u32 8, %s1220
                %s1224 = scalar_lea.vmem %s964, %s1223
                // While loop
                $region159: #{_lambda_.9} parent=150 // loop_pre_header
                  _
                $region160: #{_lambda_.9} parent=150 // loop_header
                  %s1226 = sphi 0, %s1228
                  %p1227 = scmp.ge.s32.totalorder %s1226, %s1219
                  %s1231 = sphi 0, %s1252
                  %s1232 = sphi %s1222, %s1255
                  %s1233 = sphi %s1224, %s1256
                $region161: #{_lambda_.9} parent=150 // loop_header_branch
                  %1230 = sbr.rel (%p1227) target = $region165
                $region162: #{_lambda_.9} parent=150 // loop_body
                  %v1234 = vld [vmem:[%s1232] sm:$0xff]
                  %1235 = vst [vmem:[%s1233] sm:$0xff] %v1234
                  %v1236 = vld [vmem:[%s1232 + $0x18] sm:$0xff]
                  %1237 = vst [vmem:[%s1233 + $0x40] sm:$0xff] %v1236
                  %v1238 = vld [vmem:[%s1232 + $0x30] sm:$0xff]
                  %1239 = vst [vmem:[%s1233 + $0x80] sm:$0xff] %v1238
                  %v1240 = vld [vmem:[%s1232 + $0x48] sm:$0xff]
                  %1241 = vst [vmem:[%s1233 + $0xc0] sm:$0xff] %v1240
                  %v1242 = vld [vmem:[%s1232 + $0x60] sm:$0xff]
                  %1243 = vst [vmem:[%s1233 + $0x100] sm:$0xff] %v1242
                  %v1244 = vld [vmem:[%s1232 + $0x78] sm:$0xff]
                  %1245 = vst [vmem:[%s1233 + $0x140] sm:$0xff] %v1244
                  %v1246 = vld [vmem:[%s1232 + $0x90] sm:$0xff]
                  %1247 = vst [vmem:[%s1233 + $0x180] sm:$0xff] %v1246
                  %v1248 = vld [vmem:[%s1232 + $0xa8] sm:$0xff]
                  %1249 = vst [vmem:[%s1233 + $0x1c0] sm:$0xff] %v1248
                  %s1250 = sadd.s32 1, %s1231
                  %p1251 = scmp.ge.s32.totalorder %s1250, %s1219
                  %s1252 = scalar_select %p1251, 0, %s1250
                  %s1253 = smul.u32 %s1252, 8
                  %s1254 = smul.u32 %s1252, 8
                  %s1255 = scalar_lea.vmem %s1222, %s1253 [#allocation3]
                  %s1256 = scalar_lea.vmem %s1224, %s1254
                $region163: #{_lambda_.9} parent=150 // loop_footer
                  %s1228 = sadd.s32 %s1226, 1
                $region164: #{_lambda_.9} parent=150 // loop_footer_branch
                  %1225 = sbr.rel target = $region160
                $region165: #{_lambda_.9} parent=150 // loop_exit
                  _
                %s1257 = sshll.u32 1, %s1131
                %s1258 = ssub.s32 %s1257, 1
                loop: start=0, step=1, limit=1
                $region166: #{_lambda_.9} parent=150 // loop_pre_header
                  _
                $region167: #{_lambda_.9} parent=150 // loop_header
                  %s1260 = sphi 0, %s1264
                  %p1261 = scmp.ge.s32.totalorder %s1260, 1
                  %s1265 = sphi %s1133, %s1133
                  %s1266 = sphi %s1135, %s1135
                $region168: #{_lambda_.9} parent=150 // loop_header_branch
                  %1263 = sbr.rel (%p1261) target = $region172
                $region169: #{_lambda_.9} parent=150 // loop_body
                  %v1267 = vld [vmem:[%s1265] sm:%s1258]
                  %1268 = vst [vmem:[%s1266] sm:%s1258] %v1267
                  %v1269 = vld [vmem:[%s1265 + $0x18] sm:%s1258]
                  %1270 = vst [vmem:[%s1266 + $0x40] sm:%s1258] %v1269
                  %v1271 = vld [vmem:[%s1265 + $0x30] sm:%s1258]
                  %1272 = vst [vmem:[%s1266 + $0x80] sm:%s1258] %v1271
                  %v1273 = vld [vmem:[%s1265 + $0x48] sm:%s1258]
                  %1274 = vst [vmem:[%s1266 + $0xc0] sm:%s1258] %v1273
                  %v1275 = vld [vmem:[%s1265 + $0x60] sm:%s1258]
                  %1276 = vst [vmem:[%s1266 + $0x100] sm:%s1258] %v1275
                  %v1277 = vld [vmem:[%s1265 + $0x78] sm:%s1258]
                  %1278 = vst [vmem:[%s1266 + $0x140] sm:%s1258] %v1277
                  %v1279 = vld [vmem:[%s1265 + $0x90] sm:%s1258]
                  %1280 = vst [vmem:[%s1266 + $0x180] sm:%s1258] %v1279
                  %v1281 = vld [vmem:[%s1265 + $0xa8] sm:%s1258]
                  %1282 = vst [vmem:[%s1266 + $0x1c0] sm:%s1258] %v1281
                $region170: #{_lambda_.9} parent=150 // loop_footer
                  %s1264 = sadd.s32 1, %s1260
                $region171: #{_lambda_.9} parent=150 // loop_footer_branch
                  %1259 = sbr.rel target = $region167
                $region172: #{_lambda_.9} parent=150 // loop_exit
                  _
              $region151: #{_lambda_.9} parent=117 // pred_fallthru
                _
            $region118: #{_lambda_.9} parent=113 // pred_fallthru
              _
            // Predicated region
            $region119: #{_lambda_.9} parent=113 // pred_check
              %p973 = pneg %p969
            $region120: #{_lambda_.9} parent=113 // pred_check_branch
              %975 = sbr.rel (%p973) target = $region122
            $region121: #{_lambda_.9} parent=113 // pred_region
              %s976 = sshll.u32 1, %s965
              %s977 = ssub.s32 %s976, 1
              loop: start=0, step=1, limit=1
              $region123: #{_lambda_.9} parent=121 // loop_pre_header
                _
              $region124: #{_lambda_.9} parent=121 // loop_header
                %s979 = sphi 0, %s983
                %p980 = scmp.ge.s32.totalorder %s979, 1
                %s984 = sphi %s951, %s951
                %s985 = sphi %s964, %s964
              $region125: #{_lambda_.9} parent=121 // loop_header_branch
                %982 = sbr.rel (%p980) target = $region129
              $region126: #{_lambda_.9} parent=121 // loop_body
                %v986 = vld [vmem:[%s984] sm:%s977]
                %987 = vst [vmem:[%s985] sm:%s977] %v986
                %v988 = vld [vmem:[%s984 + $0x18] sm:%s977]
                %989 = vst [vmem:[%s985 + $0x40] sm:%s977] %v988
                %v990 = vld [vmem:[%s984 + $0x30] sm:%s977]
                %991 = vst [vmem:[%s985 + $0x80] sm:%s977] %v990
                %v992 = vld [vmem:[%s984 + $0x48] sm:%s977]
                %993 = vst [vmem:[%s985 + $0xc0] sm:%s977] %v992
                %v994 = vld [vmem:[%s984 + $0x60] sm:%s977]
                %995 = vst [vmem:[%s985 + $0x100] sm:%s977] %v994
                %v996 = vld [vmem:[%s984 + $0x78] sm:%s977]
                %997 = vst [vmem:[%s985 + $0x140] sm:%s977] %v996
                %v998 = vld [vmem:[%s984 + $0x90] sm:%s977]
                %999 = vst [vmem:[%s985 + $0x180] sm:%s977] %v998
                %v1000 = vld [vmem:[%s984 + $0xa8] sm:%s977]
                %1001 = vst [vmem:[%s985 + $0x1c0] sm:%s977] %v1000
              $region127: #{_lambda_.9} parent=121 // loop_footer
                %s983 = sadd.s32 1, %s979
              $region128: #{_lambda_.9} parent=121 // loop_footer_branch
                %978 = sbr.rel target = $region124
              $region129: #{_lambda_.9} parent=121 // loop_exit
                _
            $region122: #{_lambda_.9} parent=113 // pred_fallthru
              _
          $region114: #{_lambda_.9} parent=109 // pred_fallthru
            _
          %1283 = vnop
        $region110: #{_lambda_.9} parent=101 // pred_fallthru
          _
      $region102: #{_lambda_.9} parent=5 // pred_fallthru
        _
      %p1284 = scmp.le.s32.totalorder 2, %s11
      // Predicated region
      $region173: #{_lambda_.9} parent=5 // pred_check
        %p1285 = pneg %p1284
      $region174: #{_lambda_.9} parent=5 // pred_check_branch
        %1287 = sbr.rel (%p1285) target = $region176
      $region175: #{_lambda_.9} parent=5 // pred_region
        %s1288 = ssub.s32 %s11, 2
        // Predicated region
        $region177: #{_lambda_.9} parent=175 // pred_check
          %p1289 = pneg %p166
        $region178: #{_lambda_.9} parent=175 // pred_check_branch
          %1291 = sbr.rel (%p1289) target = $region180
        $region179: #{_lambda_.9} parent=175 // pred_region
          %s1292 = sand.u32 %s151, 1
          %s1293 = sand.u32 %s151, 1
          %s1294 = smul.addr %s1293, 192
          %s1295 = scalar_lea.vmem [#allocation3], %s1294
        $region180: #{_lambda_.9} parent=175 // pred_fallthru
          _
      $region176: #{_lambda_.9} parent=5 // pred_fallthru
        _
    $region6: #{_lambda_.9} parent=1 // loop_footer
      %s15 = sadd.s32 1, %s11
    $region7: #{_lambda_.9} parent=1 // loop_footer_branch
      %10 = sbr.rel target = $region3
    $region8: #{_lambda_.9} parent=1 // loop_exit
      _

</llo_original>
